<compile_context>
chip_gen: v7x
topology: tpu7x:2x2x1
jax: 0.10.0
libtpu: 0.0.40
codegen_flags: <defaults>
</compile_context>

<pallas_src>
import functools

import jax
import jax.numpy as jnp
from jax.experimental import pallas as pl
from jax.experimental.pallas import tpu as pltpu

d_model = 512
d_ff = 2048
LN_EPS = 1e-5


def ffn_kernel(x_ref, w1_ref, w2_ref, o_ref):
    # x_ref: (tm, d_model) f32; w1_ref: (d_model, d_ff) bf16; w2_ref: (d_ff, d_model) bf16
    x = x_ref[...]  # single VMEM load; reused for the residual below

    # Linear(d_model -> d_ff, bias=False) + ReLU  -- bf16 MXU operands, f32 accumulate
    h = jnp.dot(x.astype(jnp.bfloat16), w1_ref[...],
                preferred_element_type=jnp.float32)
    h = jnp.maximum(h, 0.0)

    # Linear(d_ff -> d_model, bias=False)
    y = jnp.dot(h.astype(jnp.bfloat16), w2_ref[...],
                preferred_element_type=jnp.float32)

    # residual add (f32) + LayerNorm over last dim (no affine, eps = 1e-5)
    z = y + x
    mean = jnp.mean(z, axis=-1, keepdims=True)
    zc = z - mean
    var = jnp.mean(zc * zc, axis=-1, keepdims=True)
    o_ref[...] = (zc * jax.lax.rsqrt(var + LN_EPS)).astype(o_ref.dtype)


_TM_CANDIDATES = (1024, 768, 512, 256)   # multiples of 256 (2x256x256 MXU on v6e/v7x)


def _choose_tm(M):
    """Pick the row tile (second-to-last block dim).

    Preference order (per perf review):
      1. tiny input  -> one full block (block_shape == array dims is always legal);
      2. a tile that divides M with an even grid of length >= 2, largest first
         (v7x's two TensorCores split the 'parallel' row axis evenly);
      3. any tile that divides M (no masked tail), largest first;
      4. tm=1024 with grid = pl.cdiv(M, tm) and a Pallas-masked tail block
         (avoids a whole-activation jnp.pad copy for ragged M).
    Never shrinks below 256 for large M (keeps the ~0.35 us per-step overhead small
    on every TPU generation, including v5e).
    """
    if M <= 512:
        return M
    for tm in _TM_CANDIDATES:
        if M % tm == 0 and (M // tm) >= 2 and (M // tm) % 2 == 0:
            return tm
    for tm in _TM_CANDIDATES:
        if M % tm == 0:
            return tm
    return 1024


@functools.partial(jax.jit, static_argnames=("tm", "single_buffer_weights"))
def _ffn_pallas(x2, w1b, w2b, *, tm, single_buffer_weights):
    M, D = x2.shape
    grid = (pl.cdiv(M, tm),)

    # Weights have constant index_maps, so they are fetched once and stay VMEM-resident
    # across all grid steps.  Buffered(1) drops the dead second buffer (~4 MiB).
    if single_buffer_weights:
        w1_spec = pl.BlockSpec((d_model, d_ff), lambda i: (0, 0),
                               pipeline_mode=pl.Buffered(1))
        w2_spec = pl.BlockSpec((d_ff, d_model), lambda i: (0, 0),
                               pipeline_mode=pl.Buffered(1))
    else:
        w1_spec = pl.BlockSpec((d_model, d_ff), lambda i: (0, 0))
        w2_spec = pl.BlockSpec((d_ff, d_model), lambda i: (0, 0))

    # VMEM budget @ tm=1024:
    #   bf16 weights:         2 * 2 MiB  (4 MiB single-buffered, 8 MiB double)
    #   x / out f32 tiles:    2 * 2 MiB * 2 buffers = 8 MiB
    #   h (f32 + bf16 copy):  ~12 MiB, + misc temporaries
    # ~= 30-36 MiB needed; cap at 48 MiB (fits v7x's 64 MiB/TC; v5e/v6e have 128 MiB).
    vmem_limit = 48 << 20

    cost = pl.CostEstimate(
        flops=4 * M * d_model * d_ff,               # two matmuls: 2*M*D*F flops each
        transcendentals=M,                          # one rsqrt per row
        bytes_accessed=(2 * M * d_model * 4         # x in + out (f32)
                        + 2 * d_model * d_ff * 2),  # bf16 weights
    )

    return pl.pallas_call(
        ffn_kernel,
        out_shape=jax.ShapeDtypeStruct((M, D), x2.dtype),
        grid_spec=pltpu.PrefetchScalarGridSpec(
            num_scalar_prefetch=0,
            grid=grid,
            in_specs=[
                pl.BlockSpec((tm, d_model), lambda i: (i, 0)),
                w1_spec,
                w2_spec,
            ],
            out_specs=pl.BlockSpec((tm, d_model), lambda i: (i, 0)),
        ),
        compiler_params=pltpu.CompilerParams(
            dimension_semantics=("parallel",),  # lets v7x shard rows across its 2 TCs
            vmem_limit_bytes=vmem_limit,
        ),
        cost_estimate=cost,
    )(x2, w1b, w2b)


def feed_forward_net(x, w1, w2, *, tm=None):
    """x: (B, S, d_model) f32; w1: (d_model, d_ff); w2: (d_ff, d_model).

    Weights are stored (in, out) so the kernel computes y = x @ W (already transposed
    relative to nn.Linear's (out, in) storage).  For best performance pass the weights
    already cast to bf16 (cast once at init); the cast below is only a no-op guard.
    """
    B, S, D = x.shape
    assert D == d_model
    M = B * S
    x2 = x.reshape(M, D)

    if w1.dtype != jnp.bfloat16:
        w1 = w1.astype(jnp.bfloat16)   # hoist to init time in real use (no-op here)
    if w2.dtype != jnp.bfloat16:
        w2 = w2.astype(jnp.bfloat16)

    if tm is None:
        tm = _choose_tm(M)

    try:
        out = _ffn_pallas(x2, w1, w2, tm=tm, single_buffer_weights=True)
    except Exception:
        # pl.Buffered(1) lowering unavailable on this jax/libtpu: fall back to the
        # previously-validated default double-buffered weight specs.
        out = _ffn_pallas(x2, w1, w2, tm=tm, single_buffer_weights=False)
    return out.reshape(B, S, D)


def reference(x, w1, w2):
    """Pure-JAX reference mirroring the kernel's arithmetic (bf16 matmuls, f32 accum)."""
    B, S, D = x.shape
    x2 = x.reshape(-1, D)
    h = jnp.maximum(
        jnp.dot(x2.astype(jnp.bfloat16), w1.astype(jnp.bfloat16),
                preferred_element_type=jnp.float32), 0.0)
    y = jnp.dot(h.astype(jnp.bfloat16), w2.astype(jnp.bfloat16),
                preferred_element_type=jnp.float32)
    z = y.reshape(B, S, D) + x
    mean = jnp.mean(z, axis=-1, keepdims=True)
    var = jnp.mean((z - mean) ** 2, axis=-1, keepdims=True)
    return (z - mean) / jnp.sqrt(var + LN_EPS)


if __name__ == "__main__":
    key = jax.random.PRNGKey(0)
    kx, k1, k2 = jax.random.split(key, 3)

    B, S = 2, 8
    x = jax.random.normal(kx, (B, S, d_model), dtype=jnp.float32)
    # deterministic synthetic weights (fan-in scaled), stored (in, out) so y = x @ W;
    # cast to bf16 ONCE here (init time) so no per-call convert op runs before the kernel.
    w1 = (jax.random.normal(k1, (d_model, d_ff), dtype=jnp.float32)
          * (1.0 / jnp.sqrt(d_model))).astype(jnp.bfloat16)
    w2 = (jax.random.normal(k2, (d_ff, d_model), dtype=jnp.float32)
          * (1.0 / jnp.sqrt(d_ff))).astype(jnp.bfloat16)

    out = feed_forward_net(x, w1, w2)
    out = jax.block_until_ready(out)
    assert out.shape == (B, S, d_model)

    ref = reference(x, w1, w2)
    max_err = float(jnp.max(jnp.abs(out - ref)))
    assert jnp.allclose(out, ref, atol=2e-2, rtol=2e-2), max_err
    print("KERNEL_OK")
</pallas_src>

<mosaic_0001>
module attributes {stable_mosaic.version = 11 : i64} {
  func.func @ffn_kernel(%arg0: i32, %arg1: memref<16x512xf32, #tpu.memory_space<vmem>>, %arg2: memref<512x2048xbf16, #tpu.memory_space<vmem>>, %arg3: memref<2048x512xbf16, #tpu.memory_space<vmem>>, %arg4: memref<16x512xf32, #tpu.memory_space<vmem>>) attributes {dimension_semantics = [#tpu.dimension_semantics<parallel>], iteration_bounds = array<i64: 1>, scalar_prefetch = 0 : i64, scratch_operands = 0 : i64, tpu.core_type = #tpu.core_type<tc>, window_params = [{transform_indices = @transform_0, window_bounds = array<i64: 16, 512>}, {pipeline_mode = #tpu.pipeline_mode<synchronous>, transform_indices = @transform_1, window_bounds = array<i64: 512, 2048>}, {pipeline_mode = #tpu.pipeline_mode<synchronous>, transform_indices = @transform_2, window_bounds = array<i64: 2048, 512>}, {transform_indices = @transform_3, window_bounds = array<i64: 16, 512>}]} {
    %c0 = arith.constant 0 : index
    %c0_0 = arith.constant 0 : index
    %0 = vector.load %arg1[%c0, %c0_0] : memref<16x512xf32, #tpu.memory_space<vmem>>, vector<16x512xf32>
    %1 = arith.truncf %0 : vector<16x512xf32> to vector<16x512xbf16>
    %c0_1 = arith.constant 0 : index
    %c0_2 = arith.constant 0 : index
    %2 = vector.load %arg2[%c0_1, %c0_2] : memref<512x2048xbf16, #tpu.memory_space<vmem>>, vector<512x2048xbf16>
    %cst = arith.constant dense<0.000000e+00> : vector<16x2048xf32>
    %3 = tpu.matmul %1, %2, %cst {dimension_numbers = #tpu.dot_dimension_numbers<[1], [0], [0], [1], [0, 0, 1, 1], [], []>} : vector<16x512xbf16>, vector<512x2048xbf16>, vector<16x2048xf32> -> vector<16x2048xf32>
    %cst_3 = arith.constant 0.000000e+00 : f32
    %4 = vector.broadcast %cst_3 : f32 to vector<16x2048xf32>
    %5 = arith.maximumf %3, %4 : vector<16x2048xf32>
    %6 = arith.truncf %5 : vector<16x2048xf32> to vector<16x2048xbf16>
    %c0_4 = arith.constant 0 : index
    %c0_5 = arith.constant 0 : index
    %7 = vector.load %arg3[%c0_4, %c0_5] : memref<2048x512xbf16, #tpu.memory_space<vmem>>, vector<2048x512xbf16>
    %cst_6 = arith.constant dense<0.000000e+00> : vector<16x512xf32>
    %8 = tpu.matmul %6, %7, %cst_6 {dimension_numbers = #tpu.dot_dimension_numbers<[1], [0], [0], [1], [0, 0, 1, 1], [], []>} : vector<16x2048xbf16>, vector<2048x512xbf16>, vector<16x512xf32> -> vector<16x512xf32>
    %9 = arith.addf %8, %0 : vector<16x512xf32>
    %cst_7 = arith.constant dense<0.000000e+00> : vector<16xf32>
    %10 = vector.multi_reduction <add>, %9, %cst_7 [1] : vector<16x512xf32> to vector<16xf32>
    %11 = vector.shape_cast %10 : vector<16xf32> to vector<16x1xf32>
    %cst_8 = arith.constant 5.120000e+02 : f32
    %12 = vector.broadcast %cst_8 : f32 to vector<16x1xf32>
    %13 = arith.divf %11, %12 : vector<16x1xf32>
    %14 = vector.broadcast %13 : vector<16x1xf32> to vector<16x512xf32>
    %15 = arith.subf %9, %14 : vector<16x512xf32>
    %16 = arith.mulf %15, %15 : vector<16x512xf32>
    %cst_9 = arith.constant dense<0.000000e+00> : vector<16xf32>
    %17 = vector.multi_reduction <add>, %16, %cst_9 [1] : vector<16x512xf32> to vector<16xf32>
    %18 = vector.shape_cast %17 : vector<16xf32> to vector<16x1xf32>
    %cst_10 = arith.constant 5.120000e+02 : f32
    %19 = vector.broadcast %cst_10 : f32 to vector<16x1xf32>
    %20 = arith.divf %18, %19 : vector<16x1xf32>
    %cst_11 = arith.constant 9.99999974E-6 : f32
    %21 = vector.broadcast %cst_11 : f32 to vector<16x1xf32>
    %22 = arith.addf %20, %21 : vector<16x1xf32>
    %23 = math.rsqrt %22 : vector<16x1xf32>
    %24 = vector.broadcast %23 : vector<16x1xf32> to vector<16x512xf32>
    %25 = arith.mulf %15, %24 : vector<16x512xf32>
    %c0_12 = arith.constant 0 : index
    %c0_13 = arith.constant 0 : index
    %26 = vector.load %arg4[%c0_12, %c0_13] : memref<16x512xf32, #tpu.memory_space<vmem>>, vector<16x512xf32>
    tpu.vector_store %arg4[%c0_12, %c0_13], %25 {strides = array<i32>} : memref<16x512xf32, #tpu.memory_space<vmem>>, vector<16x512xf32>,
    return
  }
  func.func @transform_0(%arg0: i32) -> (i32, i32) {
    %c0_i32 = arith.constant 0 : i32
    %c0_i32_0 = arith.constant 0 : i32
    return %arg0, %c0_i32 : i32, i32
  }
  func.func @transform_1(%arg0: i32) -> (i32, i32) {
    %c0_i32 = arith.constant 0 : i32
    %c0_i32_0 = arith.constant 0 : i32
    %c0_i32_1 = arith.constant 0 : i32
    return %c0_i32, %c0_i32_0 : i32, i32
  }
  func.func @transform_2(%arg0: i32) -> (i32, i32) {
    %c0_i32 = arith.constant 0 : i32
    %c0_i32_0 = arith.constant 0 : i32
    %c0_i32_1 = arith.constant 0 : i32
    return %c0_i32, %c0_i32_0 : i32, i32
  }
  func.func @transform_3(%arg0: i32) -> (i32, i32) {
    %c0_i32 = arith.constant 0 : i32
    %c0_i32_0 = arith.constant 0 : i32
    return %arg0, %c0_i32 : i32, i32
  }
}

module attributes {stable_mosaic.version = 11 : i64} {
  func.func @ffn_kernel(%arg0: i32, %arg1: memref<16x512xf32, #tpu.memory_space<vmem>>, %arg2: memref<512x2048xbf16, #tpu.memory_space<vmem>>, %arg3: memref<2048x512xbf16, #tpu.memory_space<vmem>>, %arg4: memref<16x512xf32, #tpu.memory_space<vmem>>) attributes {dimension_semantics = [#tpu.dimension_semantics<parallel>], iteration_bounds = array<i64: 1>, scalar_prefetch = 0 : i64, scratch_operands = 0 : i64, tpu.core_type = #tpu.core_type<tc>, window_params = [{transform_indices = @transform_0, window_bounds = array<i64: 16, 512>}, {pipeline_mode = #tpu.pipeline_mode<synchronous>, transform_indices = @transform_1, window_bounds = array<i64: 512, 2048>}, {pipeline_mode = #tpu.pipeline_mode<synchronous>, transform_indices = @transform_2, window_bounds = array<i64: 2048, 512>}, {transform_indices = @transform_3, window_bounds = array<i64: 16, 512>}]} {
    %c0 = arith.constant 0 : index
    %c0_0 = arith.constant 0 : index
    %0 = vector.load %arg1[%c0, %c0_0] : memref<16x512xf32, #tpu.memory_space<vmem>>, vector<16x512xf32>
    %1 = arith.truncf %0 : vector<16x512xf32> to vector<16x512xbf16>
    %c0_1 = arith.constant 0 : index
    %c0_2 = arith.constant 0 : index
    %2 = vector.load %arg2[%c0_1, %c0_2] : memref<512x2048xbf16, #tpu.memory_space<vmem>>, vector<512x2048xbf16>
    %cst = arith.constant dense<0.000000e+00> : vector<16x2048xf32>
    %3 = tpu.matmul %1, %2, %cst {dimension_numbers = #tpu.dot_dimension_numbers<[1], [0], [0], [1], [0, 0, 1, 1], [], []>} : vector<16x512xbf16>, vector<512x2048xbf16>, vector<16x2048xf32> -> vector<16x2048xf32>
    %cst_3 = arith.constant 0.000000e+00 : f32
    %4 = vector.broadcast %cst_3 : f32 to vector<16x2048xf32>
    %5 = arith.maximumf %3, %4 : vector<16x2048xf32>
    %6 = arith.truncf %5 : vector<16x2048xf32> to vector<16x2048xbf16>
    %c0_4 = arith.constant 0 : index
    %c0_5 = arith.constant 0 : index
    %7 = vector.load %arg3[%c0_4, %c0_5] : memref<2048x512xbf16, #tpu.memory_space<vmem>>, vector<2048x512xbf16>
    %cst_6 = arith.constant dense<0.000000e+00> : vector<16x512xf32>
    %8 = tpu.matmul %6, %7, %cst_6 {dimension_numbers = #tpu.dot_dimension_numbers<[1], [0], [0], [1], [0, 0, 1, 1], [], []>} : vector<16x2048xbf16>, vector<2048x512xbf16>, vector<16x512xf32> -> vector<16x512xf32>
    %9 = arith.addf %8, %0 : vector<16x512xf32>
    %cst_7 = arith.constant dense<0.000000e+00> : vector<16xf32>
    %10 = vector.multi_reduction <add>, %9, %cst_7 [1] : vector<16x512xf32> to vector<16xf32>
    %11 = vector.shape_cast %10 : vector<16xf32> to vector<16x1xf32>
    %cst_8 = arith.constant 5.120000e+02 : f32
    %12 = vector.broadcast %cst_8 : f32 to vector<16x1xf32>
    %13 = arith.divf %11, %12 : vector<16x1xf32>
    %14 = vector.broadcast %13 : vector<16x1xf32> to vector<16x512xf32>
    %15 = arith.subf %9, %14 : vector<16x512xf32>
    %16 = arith.mulf %15, %15 : vector<16x512xf32>
    %cst_9 = arith.constant dense<0.000000e+00> : vector<16xf32>
    %17 = vector.multi_reduction <add>, %16, %cst_9 [1] : vector<16x512xf32> to vector<16xf32>
    %18 = vector.shape_cast %17 : vector<16xf32> to vector<16x1xf32>
    %cst_10 = arith.constant 5.120000e+02 : f32
    %19 = vector.broadcast %cst_10 : f32 to vector<16x1xf32>
    %20 = arith.divf %18, %19 : vector<16x1xf32>
    %cst_11 = arith.constant 9.99999974E-6 : f32
    %21 = vector.broadcast %cst_11 : f32 to vector<16x1xf32>
    %22 = arith.addf %20, %21 : vector<16x1xf32>
    %23 = math.rsqrt %22 : vector<16x1xf32>
    %24 = vector.broadcast %23 : vector<16x1xf32> to vector<16x512xf32>
    %25 = arith.mulf %15, %24 : vector<16x512xf32>
    %c0_12 = arith.constant 0 : index
    %c0_13 = arith.constant 0 : index
    %26 = vector.load %arg4[%c0_12, %c0_13] : memref<16x512xf32, #tpu.memory_space<vmem>>, vector<16x512xf32>
    tpu.vector_store %arg4[%c0_12, %c0_13], %25 {strides = array<i32>} : memref<16x512xf32, #tpu.memory_space<vmem>>, vector<16x512xf32>,
    return
  }
  func.func @transform_0(%arg0: i32) -> (i32, i32) {
    %c0_i32 = arith.constant 0 : i32
    %c0_i32_0 = arith.constant 0 : i32
    return %arg0, %c0_i32 : i32, i32
  }
  func.func @transform_1(%arg0: i32) -> (i32, i32) {
    %c0_i32 = arith.constant 0 : i32
    %c0_i32_0 = arith.constant 0 : i32
    %c0_i32_1 = arith.constant 0 : i32
    return %c0_i32, %c0_i32_0 : i32, i32
  }
  func.func @transform_2(%arg0: i32) -> (i32, i32) {
    %c0_i32 = arith.constant 0 : i32
    %c0_i32_0 = arith.constant 0 : i32
    %c0_i32_1 = arith.constant 0 : i32
    return %c0_i32, %c0_i32_0 : i32, i32
  }
  func.func @transform_3(%arg0: i32) -> (i32, i32) {
    %c0_i32 = arith.constant 0 : i32
    %c0_i32_0 = arith.constant 0 : i32
    return %arg0, %c0_i32 : i32, i32
  }
}

</mosaic_0001>

<llo_original>
// kernel: _ffn_pallas.1
$region0: #{_ffn_pallas.1}
  #allocation0 [shape = 'u32[]', space=smem, size = 0x4, offset = 0x4, fixed_abs, tag = 'smem constant byte address 0x4 - core index']
  #allocation1 [shape = 'u32[144,128]{1,0:T(1,128)}', space=vmem, size = 0x12000, scoped, tag = 'internal scratch']
  %s0 = inlined_call_operand.hbm [shape: f32[16,512], index: 0, kind: input, shape index: {}]
  %s1 = inlined_call_operand.hbm [shape: bf16[512,2048], index: 1, kind: input, shape index: {}]
  %s2 = inlined_call_operand.hbm [shape: bf16[2048,512], index: 2, kind: input, shape index: {}]
  %s3 = inlined_call_operand.hbm [shape: f32[16,512], index: 3, kind: output, shape index: {}]
  %s4 = sld [smem:[#allocation0]]
  $region34: #{_ffn_pallas.1} parent=0
    _
  %s6 = ssub.s32 1, %s4
  %s7 = scalar_select 0, %s6, %s4
  $region1: #{_ffn_pallas.1} parent=0
    #allocation2 [shape = 'u8[32768]{0}', space=vmem, size = 0x8000, scoped, tag = 'input window, operand 0, single buffered']
    #allocation3 [shape = 's32[1]{0}', space=sflag, size = 0x4, scoped, tag = 'scoped memory for _ffn_pallas.1']
    #allocation4 [shape = 's32[1]{0}', space=sflag, size = 0x4, scoped, tag = 'scoped memory for _ffn_pallas.1']
    #allocation5 [shape = 'u8[2097152]{0}', space=vmem, size = 0x200000, scoped, tag = 'input window, operand 1, single buffered']
    #allocation6 [shape = 's32[1]{0}', space=sflag, size = 0x4, scoped, tag = 'scoped memory for _ffn_pallas.1']
    #allocation7 [shape = 'u8[2097152]{0}', space=vmem, size = 0x200000, scoped, tag = 'input window, operand 2, single buffered']
    #allocation8 [shape = 'u8[32768]{0}', space=vmem, size = 0x8000, scoped, tag = 'output window, operand 0, single buffered']
    %8 = vsyncpa [#allocation3], 0
    %9 = vsyncpa [#allocation6], 0
    %10 = vsyncpa [#allocation4], 0
    // Predicated region
    $region2: #{_ffn_pallas.1} parent=1 // pred_check
      _
    $region3: #{_ffn_pallas.1} parent=1 // pred_check_branch
      %12 = sbr.rel (0) target = $region5
    $region4: #{_ffn_pallas.1} parent=1 // pred_region
      %s14 = ssub.s32 1024, 1024
      %15 = vsyncadd [#allocation3], %s14
      %s16 = sshll.u32 [#allocation2], 4
      %s17 = int_to_ptr.vmem [resolvable:$true] %s16
      %22 = dma.hbm_to_vmem [thread:$0]  %s0, 1024, %s17, [#allocation3], 512, 512, 32
    $region5: #{_ffn_pallas.1} parent=1 // pred_fallthru
      _
    // Predicated region
    $region6: #{_ffn_pallas.1} parent=1 // pred_check
      _
    $region7: #{_ffn_pallas.1} parent=1 // pred_check_branch
      %24 = sbr.rel (0) target = $region9
    $region8: #{_ffn_pallas.1} parent=1 // pred_region
      %s26 = ssub.s32 65536, 65536
      %27 = vsyncadd [#allocation6], %s26
      %s28 = sshll.u32 [#allocation5], 4
      %s29 = int_to_ptr.vmem [resolvable:$true] %s28
      %34 = dma.hbm_to_vmem [thread:$0]  %s1, 65536, %s29, [#allocation6], 1024, 1024, 64
    $region9: #{_ffn_pallas.1} parent=1 // pred_fallthru
      _
    // Predicated region
    $region10: #{_ffn_pallas.1} parent=1 // pred_check
      _
    $region11: #{_ffn_pallas.1} parent=1 // pred_check_branch
      %36 = sbr.rel (0) target = $region13
    $region12: #{_ffn_pallas.1} parent=1 // pred_region
      %s38 = ssub.s32 65536, 65536
      %39 = vsyncadd [#allocation6], %s38
      %s40 = sshll.u32 [#allocation7], 4
      %s41 = int_to_ptr.vmem [resolvable:$true] %s40
      %46 = dma.hbm_to_vmem [thread:$0]  %s2, 65536, %s41, [#allocation6], 256, 256, 16
    $region13: #{_ffn_pallas.1} parent=1 // pred_fallthru
      _
    // Predicated region
    $region14: #{_ffn_pallas.1} parent=1 // pred_check
      _
    $region15: #{_ffn_pallas.1} parent=1 // pred_check_branch
      %48 = sbr.rel (0) target = $region17
    $region16: #{_ffn_pallas.1} parent=1 // pred_region
      %49 = dma.done [#allocation3], 1024
    $region17: #{_ffn_pallas.1} parent=1 // pred_fallthru
      _
    // Predicated region
    $region18: #{_ffn_pallas.1} parent=1 // pred_check
      _
    $region19: #{_ffn_pallas.1} parent=1 // pred_check_branch
      %51 = sbr.rel (0) target = $region21
    $region20: #{_ffn_pallas.1} parent=1 // pred_region
      %52 = dma.done [#allocation6], 65536
    $region21: #{_ffn_pallas.1} parent=1 // pred_fallthru
      _
    // Predicated region
    $region22: #{_ffn_pallas.1} parent=1 // pred_check
      _
    $region23: #{_ffn_pallas.1} parent=1 // pred_check_branch
      %54 = sbr.rel (0) target = $region25
    $region24: #{_ffn_pallas.1} parent=1 // pred_region
      %55 = dma.done [#allocation6], 65536
    $region25: #{_ffn_pallas.1} parent=1 // pred_fallthru
      _
    %v56 = vld [vmem:[#allocation2] sm:$0xff]
    %v57 = vld [vmem:[#allocation2 + $0x8] sm:$0xff]
    %v58 = vld [vmem:[#allocation2 + $0x10] sm:$0xff]
    %v59 = vld [vmem:[#allocation2 + $0x18] sm:$0xff]
    %v60 = vld [vmem:[#allocation2 + $0x20] sm:$0xff]
    %v61 = vld [vmem:[#allocation2 + $0x28] sm:$0xff]
    %v62 = vld [vmem:[#allocation2 + $0x30] sm:$0xff]
    %v63 = vld [vmem:[#allocation2 + $0x38] sm:$0xff]
    %v64 = vpack.c.bf16 %v60, %v56
    %v65 = vpack.c.bf16 %v61, %v57
    %v66 = vpack.c.bf16 %v62, %v58
    %v67 = vpack.c.bf16 %v63, %v59
    %v68 = vld [vmem:[#allocation5] sm:$0xff]
    %v69 = vld [vmem:[#allocation5 + $0x8] sm:$0xff]
    %v70 = vld [vmem:[#allocation5 + $0x10] sm:$0xff]
    %v71 = vld [vmem:[#allocation5 + $0x18] sm:$0xff]
    %v72 = vld [vmem:[#allocation5 + $0x20] sm:$0xff]
    %v73 = vld [vmem:[#allocation5 + $0x28] sm:$0xff]
    %v74 = vld [vmem:[#allocation5 + $0x30] sm:$0xff]
    %v75 = vld [vmem:[#allocation5 + $0x38] sm:$0xff]
    %v76 = vld [vmem:[#allocation5 + $0x40] sm:$0xff]
    %v77 = vld [vmem:[#allocation5 + $0x48] sm:$0xff]
    %v78 = vld [vmem:[#allocation5 + $0x50] sm:$0xff]
    %v79 = vld [vmem:[#allocation5 + $0x58] sm:$0xff]
    %v80 = vld [vmem:[#allocation5 + $0x60] sm:$0xff]
    %v81 = vld [vmem:[#allocation5 + $0x68] sm:$0xff]
    %v82 = vld [vmem:[#allocation5 + $0x70] sm:$0xff]
    %v83 = vld [vmem:[#allocation5 + $0x78] sm:$0xff]
    %v84 = vld [vmem:[#allocation5 + $0x80] sm:$0xff]
    %v85 = vld [vmem:[#allocation5 + $0x88] sm:$0xff]
    %v86 = vld [vmem:[#allocation5 + $0x90] sm:$0xff]
    %v87 = vld [vmem:[#allocation5 + $0x98] sm:$0xff]
    %v88 = vld [vmem:[#allocation5 + $0xa0] sm:$0xff]
    %v89 = vld [vmem:[#allocation5 + $0xa8] sm:$0xff]
    %v90 = vld [vmem:[#allocation5 + $0xb0] sm:$0xff]
    %v91 = vld [vmem:[#allocation5 + $0xb8] sm:$0xff]
    %v92 = vld [vmem:[#allocation5 + $0xc0] sm:$0xff]
    %v93 = vld [vmem:[#allocation5 + $0xc8] sm:$0xff]
    %v94 = vld [vmem:[#allocation5 + $0xd0] sm:$0xff]
    %v95 = vld [vmem:[#allocation5 + $0xd8] sm:$0xff]
    %v96 = vld [vmem:[#allocation5 + $0xe0] sm:$0xff]
    %v97 = vld [vmem:[#allocation5 + $0xe8] sm:$0xff]
    %v98 = vld [vmem:[#allocation5 + $0xf0] sm:$0xff]
    %v99 = vld [vmem:[#allocation5 + $0xf8] sm:$0xff]
    %v100 = vld [vmem:[#allocation5 + $0x100] sm:$0xff]
    %v101 = vld [vmem:[#allocation5 + $0x108] sm:$0xff]
    %v102 = vld [vmem:[#allocation5 + $0x110] sm:$0xff]
    %v103 = vld [vmem:[#allocation5 + $0x118] sm:$0xff]
    %v104 = vld [vmem:[#allocation5 + $0x120] sm:$0xff]
    %v105 = vld [vmem:[#allocation5 + $0x128] sm:$0xff]
    %v106 = vld [vmem:[#allocation5 + $0x130] sm:$0xff]
    %v107 = vld [vmem:[#allocation5 + $0x138] sm:$0xff]
    %v108 = vld [vmem:[#allocation5 + $0x140] sm:$0xff]
    %v109 = vld [vmem:[#allocation5 + $0x148] sm:$0xff]
    %v110 = vld [vmem:[#allocation5 + $0x150] sm:$0xff]
    %v111 = vld [vmem:[#allocation5 + $0x158] sm:$0xff]
    %v112 = vld [vmem:[#allocation5 + $0x160] sm:$0xff]
    %v113 = vld [vmem:[#allocation5 + $0x168] sm:$0xff]
    %v114 = vld [vmem:[#allocation5 + $0x170] sm:$0xff]
    %v115 = vld [vmem:[#allocation5 + $0x178] sm:$0xff]
    %v116 = vld [vmem:[#allocation5 + $0x180] sm:$0xff]
    %v117 = vld [vmem:[#allocation5 + $0x188] sm:$0xff]
    %v118 = vld [vmem:[#allocation5 + $0x190] sm:$0xff]
    %v119 = vld [vmem:[#allocation5 + $0x198] sm:$0xff]
    %v120 = vld [vmem:[#allocation5 + $0x1a0] sm:$0xff]
    %v121 = vld [vmem:[#allocation5 + $0x1a8] sm:$0xff]
    %v122 = vld [vmem:[#allocation5 + $0x1b0] sm:$0xff]
    %v123 = vld [vmem:[#allocation5 + $0x1b8] sm:$0xff]
    %v124 = vld [vmem:[#allocation5 + $0x1c0] sm:$0xff]
    %v125 = vld [vmem:[#allocation5 + $0x1c8] sm:$0xff]
    %v126 = vld [vmem:[#allocation5 + $0x1d0] sm:$0xff]
    %v127 = vld [vmem:[#allocation5 + $0x1d8] sm:$0xff]
    %v128 = vld [vmem:[#allocation5 + $0x1e0] sm:$0xff]
    %v129 = vld [vmem:[#allocation5 + $0x1e8] sm:$0xff]
    %v130 = vld [vmem:[#allocation5 + $0x1f0] sm:$0xff]
    %v131 = vld [vmem:[#allocation5 + $0x1f8] sm:$0xff]
    %v132 = vld [vmem:[#allocation5 + $0x200] sm:$0xff]
    %v133 = vld [vmem:[#allocation5 + $0x208] sm:$0xff]
    %v134 = vld [vmem:[#allocation5 + $0x210] sm:$0xff]
    %v135 = vld [vmem:[#allocation5 + $0x218] sm:$0xff]
    %v136 = vld [vmem:[#allocation5 + $0x220] sm:$0xff]
    %v137 = vld [vmem:[#allocation5 + $0x228] sm:$0xff]
    %v138 = vld [vmem:[#allocation5 + $0x230] sm:$0xff]
    %v139 = vld [vmem:[#allocation5 + $0x238] sm:$0xff]
    %v140 = vld [vmem:[#allocation5 + $0x240] sm:$0xff]
    %v141 = vld [vmem:[#allocation5 + $0x248] sm:$0xff]
    %v142 = vld [vmem:[#allocation5 + $0x250] sm:$0xff]
    %v143 = vld [vmem:[#allocation5 + $0x258] sm:$0xff]
    %v144 = vld [vmem:[#allocation5 + $0x260] sm:$0xff]
    %v145 = vld [vmem:[#allocation5 + $0x268] sm:$0xff]
    %v146 = vld [vmem:[#allocation5 + $0x270] sm:$0xff]
    %v147 = vld [vmem:[#allocation5 + $0x278] sm:$0xff]
    %v148 = vld [vmem:[#allocation5 + $0x280] sm:$0xff]
    %v149 = vld [vmem:[#allocation5 + $0x288] sm:$0xff]
    %v150 = vld [vmem:[#allocation5 + $0x290] sm:$0xff]
    %v151 = vld [vmem:[#allocation5 + $0x298] sm:$0xff]
    %v152 = vld [vmem:[#allocation5 + $0x2a0] sm:$0xff]
    %v153 = vld [vmem:[#allocation5 + $0x2a8] sm:$0xff]
    %v154 = vld [vmem:[#allocation5 + $0x2b0] sm:$0xff]
    %v155 = vld [vmem:[#allocation5 + $0x2b8] sm:$0xff]
    %v156 = vld [vmem:[#allocation5 + $0x2c0] sm:$0xff]
    %v157 = vld [vmem:[#allocation5 + $0x2c8] sm:$0xff]
    %v158 = vld [vmem:[#allocation5 + $0x2d0] sm:$0xff]
    %v159 = vld [vmem:[#allocation5 + $0x2d8] sm:$0xff]
    %v160 = vld [vmem:[#allocation5 + $0x2e0] sm:$0xff]
    %v161 = vld [vmem:[#allocation5 + $0x2e8] sm:$0xff]
    %v162 = vld [vmem:[#allocation5 + $0x2f0] sm:$0xff]
    %v163 = vld [vmem:[#allocation5 + $0x2f8] sm:$0xff]
    %v164 = vld [vmem:[#allocation5 + $0x300] sm:$0xff]
    %v165 = vld [vmem:[#allocation5 + $0x308] sm:$0xff]
    %v166 = vld [vmem:[#allocation5 + $0x310] sm:$0xff]
    %v167 = vld [vmem:[#allocation5 + $0x318] sm:$0xff]
    %v168 = vld [vmem:[#allocation5 + $0x320] sm:$0xff]
    %v169 = vld [vmem:[#allocation5 + $0x328] sm:$0xff]
    %v170 = vld [vmem:[#allocation5 + $0x330] sm:$0xff]
    %v171 = vld [vmem:[#allocation5 + $0x338] sm:$0xff]
    %v172 = vld [vmem:[#allocation5 + $0x340] sm:$0xff]
    %v173 = vld [vmem:[#allocation5 + $0x348] sm:$0xff]
    %v174 = vld [vmem:[#allocation5 + $0x350] sm:$0xff]
    %v175 = vld [vmem:[#allocation5 + $0x358] sm:$0xff]
    %v176 = vld [vmem:[#allocation5 + $0x360] sm:$0xff]
    %v177 = vld [vmem:[#allocation5 + $0x368] sm:$0xff]
    %v178 = vld [vmem:[#allocation5 + $0x370] sm:$0xff]
    %v179 = vld [vmem:[#allocation5 + $0x378] sm:$0xff]
    %v180 = vld [vmem:[#allocation5 + $0x380] sm:$0xff]
    %v181 = vld [vmem:[#allocation5 + $0x388] sm:$0xff]
    %v182 = vld [vmem:[#allocation5 + $0x390] sm:$0xff]
    %v183 = vld [vmem:[#allocation5 + $0x398] sm:$0xff]
    %v184 = vld [vmem:[#allocation5 + $0x3a0] sm:$0xff]
    %v185 = vld [vmem:[#allocation5 + $0x3a8] sm:$0xff]
    %v186 = vld [vmem:[#allocation5 + $0x3b0] sm:$0xff]
    %v187 = vld [vmem:[#allocation5 + $0x3b8] sm:$0xff]
    %v188 = vld [vmem:[#allocation5 + $0x3c0] sm:$0xff]
    %v189 = vld [vmem:[#allocation5 + $0x3c8] sm:$0xff]
    %v190 = vld [vmem:[#allocation5 + $0x3d0] sm:$0xff]
    %v191 = vld [vmem:[#allocation5 + $0x3d8] sm:$0xff]
    %v192 = vld [vmem:[#allocation5 + $0x3e0] sm:$0xff]
    %v193 = vld [vmem:[#allocation5 + $0x3e8] sm:$0xff]
    %v194 = vld [vmem:[#allocation5 + $0x3f0] sm:$0xff]
    %v195 = vld [vmem:[#allocation5 + $0x3f8] sm:$0xff]
    %v196 = vld [vmem:[#allocation5 + $0x400] sm:$0xff]
    %v197 = vld [vmem:[#allocation5 + $0x408] sm:$0xff]
    %v198 = vld [vmem:[#allocation5 + $0x410] sm:$0xff]
    %v199 = vld [vmem:[#allocation5 + $0x418] sm:$0xff]
    %v200 = vld [vmem:[#allocation5 + $0x420] sm:$0xff]
    %v201 = vld [vmem:[#allocation5 + $0x428] sm:$0xff]
    %v202 = vld [vmem:[#allocation5 + $0x430] sm:$0xff]
    %v203 = vld [vmem:[#allocation5 + $0x438] sm:$0xff]
    %v204 = vld [vmem:[#allocation5 + $0x440] sm:$0xff]
    %v205 = vld [vmem:[#allocation5 + $0x448] sm:$0xff]
    %v206 = vld [vmem:[#allocation5 + $0x450] sm:$0xff]
    %v207 = vld [vmem:[#allocation5 + $0x458] sm:$0xff]
    %v208 = vld [vmem:[#allocation5 + $0x460] sm:$0xff]
    %v209 = vld [vmem:[#allocation5 + $0x468] sm:$0xff]
    %v210 = vld [vmem:[#allocation5 + $0x470] sm:$0xff]
    %v211 = vld [vmem:[#allocation5 + $0x478] sm:$0xff]
    %v212 = vld [vmem:[#allocation5 + $0x480] sm:$0xff]
    %v213 = vld [vmem:[#allocation5 + $0x488] sm:$0xff]
    %v214 = vld [vmem:[#allocation5 + $0x490] sm:$0xff]
    %v215 = vld [vmem:[#allocation5 + $0x498] sm:$0xff]
    %v216 = vld [vmem:[#allocation5 + $0x4a0] sm:$0xff]
    %v217 = vld [vmem:[#allocation5 + $0x4a8] sm:$0xff]
    %v218 = vld [vmem:[#allocation5 + $0x4b0] sm:$0xff]
    %v219 = vld [vmem:[#allocation5 + $0x4b8] sm:$0xff]
    %v220 = vld [vmem:[#allocation5 + $0x4c0] sm:$0xff]
    %v221 = vld [vmem:[#allocation5 + $0x4c8] sm:$0xff]
    %v222 = vld [vmem:[#allocation5 + $0x4d0] sm:$0xff]
    %v223 = vld [vmem:[#allocation5 + $0x4d8] sm:$0xff]
    %v224 = vld [vmem:[#allocation5 + $0x4e0] sm:$0xff]
    %v225 = vld [vmem:[#allocation5 + $0x4e8] sm:$0xff]
    %v226 = vld [vmem:[#allocation5 + $0x4f0] sm:$0xff]
    %v227 = vld [vmem:[#allocation5 + $0x4f8] sm:$0xff]
    %v228 = vld [vmem:[#allocation5 + $0x500] sm:$0xff]
    %v229 = vld [vmem:[#allocation5 + $0x508] sm:$0xff]
    %v230 = vld [vmem:[#allocation5 + $0x510] sm:$0xff]
    %v231 = vld [vmem:[#allocation5 + $0x518] sm:$0xff]
    %v232 = vld [vmem:[#allocation5 + $0x520] sm:$0xff]
    %v233 = vld [vmem:[#allocation5 + $0x528] sm:$0xff]
    %v234 = vld [vmem:[#allocation5 + $0x530] sm:$0xff]
    %v235 = vld [vmem:[#allocation5 + $0x538] sm:$0xff]
    %v236 = vld [vmem:[#allocation5 + $0x540] sm:$0xff]
    %v237 = vld [vmem:[#allocation5 + $0x548] sm:$0xff]
    %v238 = vld [vmem:[#allocation5 + $0x550] sm:$0xff]
    %v239 = vld [vmem:[#allocation5 + $0x558] sm:$0xff]
    %v240 = vld [vmem:[#allocation5 + $0x560] sm:$0xff]
    %v241 = vld [vmem:[#allocation5 + $0x568] sm:$0xff]
    %v242 = vld [vmem:[#allocation5 + $0x570] sm:$0xff]
    %v243 = vld [vmem:[#allocation5 + $0x578] sm:$0xff]
    %v244 = vld [vmem:[#allocation5 + $0x580] sm:$0xff]
    %v245 = vld [vmem:[#allocation5 + $0x588] sm:$0xff]
    %v246 = vld [vmem:[#allocation5 + $0x590] sm:$0xff]
    %v247 = vld [vmem:[#allocation5 + $0x598] sm:$0xff]
    %v248 = vld [vmem:[#allocation5 + $0x5a0] sm:$0xff]
    %v249 = vld [vmem:[#allocation5 + $0x5a8] sm:$0xff]
    %v250 = vld [vmem:[#allocation5 + $0x5b0] sm:$0xff]
    %v251 = vld [vmem:[#allocation5 + $0x5b8] sm:$0xff]
    %v252 = vld [vmem:[#allocation5 + $0x5c0] sm:$0xff]
    %v253 = vld [vmem:[#allocation5 + $0x5c8] sm:$0xff]
    %v254 = vld [vmem:[#allocation5 + $0x5d0] sm:$0xff]
    %v255 = vld [vmem:[#allocation5 + $0x5d8] sm:$0xff]
    %v256 = vld [vmem:[#allocation5 + $0x5e0] sm:$0xff]
    %v257 = vld [vmem:[#allocation5 + $0x5e8] sm:$0xff]
    %v258 = vld [vmem:[#allocation5 + $0x5f0] sm:$0xff]
    %v259 = vld [vmem:[#allocation5 + $0x5f8] sm:$0xff]
    %v260 = vld [vmem:[#allocation5 + $0x600] sm:$0xff]
    %v261 = vld [vmem:[#allocation5 + $0x608] sm:$0xff]
    %v262 = vld [vmem:[#allocation5 + $0x610] sm:$0xff]
    %v263 = vld [vmem:[#allocation5 + $0x618] sm:$0xff]
    %v264 = vld [vmem:[#allocation5 + $0x620] sm:$0xff]
    %v265 = vld [vmem:[#allocation5 + $0x628] sm:$0xff]
    %v266 = vld [vmem:[#allocation5 + $0x630] sm:$0xff]
    %v267 = vld [vmem:[#allocation5 + $0x638] sm:$0xff]
    %v268 = vld [vmem:[#allocation5 + $0x640] sm:$0xff]
    %v269 = vld [vmem:[#allocation5 + $0x648] sm:$0xff]
    %v270 = vld [vmem:[#allocation5 + $0x650] sm:$0xff]
    %v271 = vld [vmem:[#allocation5 + $0x658] sm:$0xff]
    %v272 = vld [vmem:[#allocation5 + $0x660] sm:$0xff]
    %v273 = vld [vmem:[#allocation5 + $0x668] sm:$0xff]
    %v274 = vld [vmem:[#allocation5 + $0x670] sm:$0xff]
    %v275 = vld [vmem:[#allocation5 + $0x678] sm:$0xff]
    %v276 = vld [vmem:[#allocation5 + $0x680] sm:$0xff]
    %v277 = vld [vmem:[#allocation5 + $0x688] sm:$0xff]
    %v278 = vld [vmem:[#allocation5 + $0x690] sm:$0xff]
    %v279 = vld [vmem:[#allocation5 + $0x698] sm:$0xff]
    %v280 = vld [vmem:[#allocation5 + $0x6a0] sm:$0xff]
    %v281 = vld [vmem:[#allocation5 + $0x6a8] sm:$0xff]
    %v282 = vld [vmem:[#allocation5 + $0x6b0] sm:$0xff]
    %v283 = vld [vmem:[#allocation5 + $0x6b8] sm:$0xff]
    %v284 = vld [vmem:[#allocation5 + $0x6c0] sm:$0xff]
    %v285 = vld [vmem:[#allocation5 + $0x6c8] sm:$0xff]
    %v286 = vld [vmem:[#allocation5 + $0x6d0] sm:$0xff]
    %v287 = vld [vmem:[#allocation5 + $0x6d8] sm:$0xff]
    %v288 = vld [vmem:[#allocation5 + $0x6e0] sm:$0xff]
    %v289 = vld [vmem:[#allocation5 + $0x6e8] sm:$0xff]
    %v290 = vld [vmem:[#allocation5 + $0x6f0] sm:$0xff]
    %v291 = vld [vmem:[#allocation5 + $0x6f8] sm:$0xff]
    %v292 = vld [vmem:[#allocation5 + $0x700] sm:$0xff]
    %v293 = vld [vmem:[#allocation5 + $0x708] sm:$0xff]
    %v294 = vld [vmem:[#allocation5 + $0x710] sm:$0xff]
    %v295 = vld [vmem:[#allocation5 + $0x718] sm:$0xff]
    %v296 = vld [vmem:[#allocation5 + $0x720] sm:$0xff]
    %v297 = vld [vmem:[#allocation5 + $0x728] sm:$0xff]
    %v298 = vld [vmem:[#allocation5 + $0x730] sm:$0xff]
    %v299 = vld [vmem:[#allocation5 + $0x738] sm:$0xff]
    %v300 = vld [vmem:[#allocation5 + $0x740] sm:$0xff]
    %v301 = vld [vmem:[#allocation5 + $0x748] sm:$0xff]
    %v302 = vld [vmem:[#allocation5 + $0x750] sm:$0xff]
    %v303 = vld [vmem:[#allocation5 + $0x758] sm:$0xff]
    %v304 = vld [vmem:[#allocation5 + $0x760] sm:$0xff]
    %v305 = vld [vmem:[#allocation5 + $0x768] sm:$0xff]
    %v306 = vld [vmem:[#allocation5 + $0x770] sm:$0xff]
    %v307 = vld [vmem:[#allocation5 + $0x778] sm:$0xff]
    %v308 = vld [vmem:[#allocation5 + $0x780] sm:$0xff]
    %v309 = vld [vmem:[#allocation5 + $0x788] sm:$0xff]
    %v310 = vld [vmem:[#allocation5 + $0x790] sm:$0xff]
    %v311 = vld [vmem:[#allocation5 + $0x798] sm:$0xff]
    %v312 = vld [vmem:[#allocation5 + $0x7a0] sm:$0xff]
    %v313 = vld [vmem:[#allocation5 + $0x7a8] sm:$0xff]
    %v314 = vld [vmem:[#allocation5 + $0x7b0] sm:$0xff]
    %v315 = vld [vmem:[#allocation5 + $0x7b8] sm:$0xff]
    %v316 = vld [vmem:[#allocation5 + $0x7c0] sm:$0xff]
    %v317 = vld [vmem:[#allocation5 + $0x7c8] sm:$0xff]
    %v318 = vld [vmem:[#allocation5 + $0x7d0] sm:$0xff]
    %v319 = vld [vmem:[#allocation5 + $0x7d8] sm:$0xff]
    %v320 = vld [vmem:[#allocation5 + $0x7e0] sm:$0xff]
    %v321 = vld [vmem:[#allocation5 + $0x7e8] sm:$0xff]
    %v322 = vld [vmem:[#allocation5 + $0x7f0] sm:$0xff]
    %v323 = vld [vmem:[#allocation5 + $0x7f8] sm:$0xff]
    %v324 = vld [vmem:[#allocation5 + $0x800] sm:$0xff]
    %v325 = vld [vmem:[#allocation5 + $0x808] sm:$0xff]
    %v326 = vld [vmem:[#allocation5 + $0x810] sm:$0xff]
    %v327 = vld [vmem:[#allocation5 + $0x818] sm:$0xff]
    %v328 = vld [vmem:[#allocation5 + $0x820] sm:$0xff]
    %v329 = vld [vmem:[#allocation5 + $0x828] sm:$0xff]
    %v330 = vld [vmem:[#allocation5 + $0x830] sm:$0xff]
    %v331 = vld [vmem:[#allocation5 + $0x838] sm:$0xff]
    %v332 = vld [vmem:[#allocation5 + $0x840] sm:$0xff]
    %v333 = vld [vmem:[#allocation5 + $0x848] sm:$0xff]
    %v334 = vld [vmem:[#allocation5 + $0x850] sm:$0xff]
    %v335 = vld [vmem:[#allocation5 + $0x858] sm:$0xff]
    %v336 = vld [vmem:[#allocation5 + $0x860] sm:$0xff]
    %v337 = vld [vmem:[#allocation5 + $0x868] sm:$0xff]
    %v338 = vld [vmem:[#allocation5 + $0x870] sm:$0xff]
    %v339 = vld [vmem:[#allocation5 + $0x878] sm:$0xff]
    %v340 = vld [vmem:[#allocation5 + $0x880] sm:$0xff]
    %v341 = vld [vmem:[#allocation5 + $0x888] sm:$0xff]
    %v342 = vld [vmem:[#allocation5 + $0x890] sm:$0xff]
    %v343 = vld [vmem:[#allocation5 + $0x898] sm:$0xff]
    %v344 = vld [vmem:[#allocation5 + $0x8a0] sm:$0xff]
    %v345 = vld [vmem:[#allocation5 + $0x8a8] sm:$0xff]
    %v346 = vld [vmem:[#allocation5 + $0x8b0] sm:$0xff]
    %v347 = vld [vmem:[#allocation5 + $0x8b8] sm:$0xff]
    %v348 = vld [vmem:[#allocation5 + $0x8c0] sm:$0xff]
    %v349 = vld [vmem:[#allocation5 + $0x8c8] sm:$0xff]
    %v350 = vld [vmem:[#allocation5 + $0x8d0] sm:$0xff]
    %v351 = vld [vmem:[#allocation5 + $0x8d8] sm:$0xff]
    %v352 = vld [vmem:[#allocation5 + $0x8e0] sm:$0xff]
    %v353 = vld [vmem:[#allocation5 + $0x8e8] sm:$0xff]
    %v354 = vld [vmem:[#allocation5 + $0x8f0] sm:$0xff]
    %v355 = vld [vmem:[#allocation5 + $0x8f8] sm:$0xff]
    %v356 = vld [vmem:[#allocation5 + $0x900] sm:$0xff]
    %v357 = vld [vmem:[#allocation5 + $0x908] sm:$0xff]
    %v358 = vld [vmem:[#allocation5 + $0x910] sm:$0xff]
    %v359 = vld [vmem:[#allocation5 + $0x918] sm:$0xff]
    %v360 = vld [vmem:[#allocation5 + $0x920] sm:$0xff]
    %v361 = vld [vmem:[#allocation5 + $0x928] sm:$0xff]
    %v362 = vld [vmem:[#allocation5 + $0x930] sm:$0xff]
    %v363 = vld [vmem:[#allocation5 + $0x938] sm:$0xff]
    %v364 = vld [vmem:[#allocation5 + $0x940] sm:$0xff]
    %v365 = vld [vmem:[#allocation5 + $0x948] sm:$0xff]
    %v366 = vld [vmem:[#allocation5 + $0x950] sm:$0xff]
    %v367 = vld [vmem:[#allocation5 + $0x958] sm:$0xff]
    %v368 = vld [vmem:[#allocation5 + $0x960] sm:$0xff]
    %v369 = vld [vmem:[#allocation5 + $0x968] sm:$0xff]
    %v370 = vld [vmem:[#allocation5 + $0x970] sm:$0xff]
    %v371 = vld [vmem:[#allocation5 + $0x978] sm:$0xff]
    %v372 = vld [vmem:[#allocation5 + $0x980] sm:$0xff]
    %v373 = vld [vmem:[#allocation5 + $0x988] sm:$0xff]
    %v374 = vld [vmem:[#allocation5 + $0x990] sm:$0xff]
    %v375 = vld [vmem:[#allocation5 + $0x998] sm:$0xff]
    %v376 = vld [vmem:[#allocation5 + $0x9a0] sm:$0xff]
    %v377 = vld [vmem:[#allocation5 + $0x9a8] sm:$0xff]
    %v378 = vld [vmem:[#allocation5 + $0x9b0] sm:$0xff]
    %v379 = vld [vmem:[#allocation5 + $0x9b8] sm:$0xff]
    %v380 = vld [vmem:[#allocation5 + $0x9c0] sm:$0xff]
    %v381 = vld [vmem:[#allocation5 + $0x9c8] sm:$0xff]
    %v382 = vld [vmem:[#allocation5 + $0x9d0] sm:$0xff]
    %v383 = vld [vmem:[#allocation5 + $0x9d8] sm:$0xff]
    %v384 = vld [vmem:[#allocation5 + $0x9e0] sm:$0xff]
    %v385 = vld [vmem:[#allocation5 + $0x9e8] sm:$0xff]
    %v386 = vld [vmem:[#allocation5 + $0x9f0] sm:$0xff]
    %v387 = vld [vmem:[#allocation5 + $0x9f8] sm:$0xff]
    %v388 = vld [vmem:[#allocation5 + $0xa00] sm:$0xff]
    %v389 = vld [vmem:[#allocation5 + $0xa08] sm:$0xff]
    %v390 = vld [vmem:[#allocation5 + $0xa10] sm:$0xff]
    %v391 = vld [vmem:[#allocation5 + $0xa18] sm:$0xff]
    %v392 = vld [vmem:[#allocation5 + $0xa20] sm:$0xff]
    %v393 = vld [vmem:[#allocation5 + $0xa28] sm:$0xff]
    %v394 = vld [vmem:[#allocation5 + $0xa30] sm:$0xff]
    %v395 = vld [vmem:[#allocation5 + $0xa38] sm:$0xff]
    %v396 = vld [vmem:[#allocation5 + $0xa40] sm:$0xff]
    %v397 = vld [vmem:[#allocation5 + $0xa48] sm:$0xff]
    %v398 = vld [vmem:[#allocation5 + $0xa50] sm:$0xff]
    %v399 = vld [vmem:[#allocation5 + $0xa58] sm:$0xff]
    %v400 = vld [vmem:[#allocation5 + $0xa60] sm:$0xff]
    %v401 = vld [vmem:[#allocation5 + $0xa68] sm:$0xff]
    %v402 = vld [vmem:[#allocation5 + $0xa70] sm:$0xff]
    %v403 = vld [vmem:[#allocation5 + $0xa78] sm:$0xff]
    %v404 = vld [vmem:[#allocation5 + $0xa80] sm:$0xff]
    %v405 = vld [vmem:[#allocation5 + $0xa88] sm:$0xff]
    %v406 = vld [vmem:[#allocation5 + $0xa90] sm:$0xff]
    %v407 = vld [vmem:[#allocation5 + $0xa98] sm:$0xff]
    %v408 = vld [vmem:[#allocation5 + $0xaa0] sm:$0xff]
    %v409 = vld [vmem:[#allocation5 + $0xaa8] sm:$0xff]
    %v410 = vld [vmem:[#allocation5 + $0xab0] sm:$0xff]
    %v411 = vld [vmem:[#allocation5 + $0xab8] sm:$0xff]
    %v412 = vld [vmem:[#allocation5 + $0xac0] sm:$0xff]
    %v413 = vld [vmem:[#allocation5 + $0xac8] sm:$0xff]
    %v414 = vld [vmem:[#allocation5 + $0xad0] sm:$0xff]
    %v415 = vld [vmem:[#allocation5 + $0xad8] sm:$0xff]
    %v416 = vld [vmem:[#allocation5 + $0xae0] sm:$0xff]
    %v417 = vld [vmem:[#allocation5 + $0xae8] sm:$0xff]
    %v418 = vld [vmem:[#allocation5 + $0xaf0] sm:$0xff]
    %v419 = vld [vmem:[#allocation5 + $0xaf8] sm:$0xff]
    %v420 = vld [vmem:[#allocation5 + $0xb00] sm:$0xff]
    %v421 = vld [vmem:[#allocation5 + $0xb08] sm:$0xff]
    %v422 = vld [vmem:[#allocation5 + $0xb10] sm:$0xff]
    %v423 = vld [vmem:[#allocation5 + $0xb18] sm:$0xff]
    %v424 = vld [vmem:[#allocation5 + $0xb20] sm:$0xff]
    %v425 = vld [vmem:[#allocation5 + $0xb28] sm:$0xff]
    %v426 = vld [vmem:[#allocation5 + $0xb30] sm:$0xff]
    %v427 = vld [vmem:[#allocation5 + $0xb38] sm:$0xff]
    %v428 = vld [vmem:[#allocation5 + $0xb40] sm:$0xff]
    %v429 = vld [vmem:[#allocation5 + $0xb48] sm:$0xff]
    %v430 = vld [vmem:[#allocation5 + $0xb50] sm:$0xff]
    %v431 = vld [vmem:[#allocation5 + $0xb58] sm:$0xff]
    %v432 = vld [vmem:[#allocation5 + $0xb60] sm:$0xff]
    %v433 = vld [vmem:[#allocation5 + $0xb68] sm:$0xff]
    %v434 = vld [vmem:[#allocation5 + $0xb70] sm:$0xff]
    %v435 = vld [vmem:[#allocation5 + $0xb78] sm:$0xff]
    %v436 = vld [vmem:[#allocation5 + $0xb80] sm:$0xff]
    %v437 = vld [vmem:[#allocation5 + $0xb88] sm:$0xff]
    %v438 = vld [vmem:[#allocation5 + $0xb90] sm:$0xff]
    %v439 = vld [vmem:[#allocation5 + $0xb98] sm:$0xff]
    %v440 = vld [vmem:[#allocation5 + $0xba0] sm:$0xff]
    %v441 = vld [vmem:[#allocation5 + $0xba8] sm:$0xff]
    %v442 = vld [vmem:[#allocation5 + $0xbb0] sm:$0xff]
    %v443 = vld [vmem:[#allocation5 + $0xbb8] sm:$0xff]
    %v444 = vld [vmem:[#allocation5 + $0xbc0] sm:$0xff]
    %v445 = vld [vmem:[#allocation5 + $0xbc8] sm:$0xff]
    %v446 = vld [vmem:[#allocation5 + $0xbd0] sm:$0xff]
    %v447 = vld [vmem:[#allocation5 + $0xbd8] sm:$0xff]
    %v448 = vld [vmem:[#allocation5 + $0xbe0] sm:$0xff]
    %v449 = vld [vmem:[#allocation5 + $0xbe8] sm:$0xff]
    %v450 = vld [vmem:[#allocation5 + $0xbf0] sm:$0xff]
    %v451 = vld [vmem:[#allocation5 + $0xbf8] sm:$0xff]
    %v452 = vld [vmem:[#allocation5 + $0xc00] sm:$0xff]
    %v453 = vld [vmem:[#allocation5 + $0xc08] sm:$0xff]
    %v454 = vld [vmem:[#allocation5 + $0xc10] sm:$0xff]
    %v455 = vld [vmem:[#allocation5 + $0xc18] sm:$0xff]
    %v456 = vld [vmem:[#allocation5 + $0xc20] sm:$0xff]
    %v457 = vld [vmem:[#allocation5 + $0xc28] sm:$0xff]
    %v458 = vld [vmem:[#allocation5 + $0xc30] sm:$0xff]
    %v459 = vld [vmem:[#allocation5 + $0xc38] sm:$0xff]
    %v460 = vld [vmem:[#allocation5 + $0xc40] sm:$0xff]
    %v461 = vld [vmem:[#allocation5 + $0xc48] sm:$0xff]
    %v462 = vld [vmem:[#allocation5 + $0xc50] sm:$0xff]
    %v463 = vld [vmem:[#allocation5 + $0xc58] sm:$0xff]
    %v464 = vld [vmem:[#allocation5 + $0xc60] sm:$0xff]
    %v465 = vld [vmem:[#allocation5 + $0xc68] sm:$0xff]
    %v466 = vld [vmem:[#allocation5 + $0xc70] sm:$0xff]
    %v467 = vld [vmem:[#allocation5 + $0xc78] sm:$0xff]
    %v468 = vld [vmem:[#allocation5 + $0xc80] sm:$0xff]
    %v469 = vld [vmem:[#allocation5 + $0xc88] sm:$0xff]
    %v470 = vld [vmem:[#allocation5 + $0xc90] sm:$0xff]
    %v471 = vld [vmem:[#allocation5 + $0xc98] sm:$0xff]
    %v472 = vld [vmem:[#allocation5 + $0xca0] sm:$0xff]
    %v473 = vld [vmem:[#allocation5 + $0xca8] sm:$0xff]
    %v474 = vld [vmem:[#allocation5 + $0xcb0] sm:$0xff]
    %v475 = vld [vmem:[#allocation5 + $0xcb8] sm:$0xff]
    %v476 = vld [vmem:[#allocation5 + $0xcc0] sm:$0xff]
    %v477 = vld [vmem:[#allocation5 + $0xcc8] sm:$0xff]
    %v478 = vld [vmem:[#allocation5 + $0xcd0] sm:$0xff]
    %v479 = vld [vmem:[#allocation5 + $0xcd8] sm:$0xff]
    %v480 = vld [vmem:[#allocation5 + $0xce0] sm:$0xff]
    %v481 = vld [vmem:[#allocation5 + $0xce8] sm:$0xff]
    %v482 = vld [vmem:[#allocation5 + $0xcf0] sm:$0xff]
    %v483 = vld [vmem:[#allocation5 + $0xcf8] sm:$0xff]
    %v484 = vld [vmem:[#allocation5 + $0xd00] sm:$0xff]
    %v485 = vld [vmem:[#allocation5 + $0xd08] sm:$0xff]
    %v486 = vld [vmem:[#allocation5 + $0xd10] sm:$0xff]
    %v487 = vld [vmem:[#allocation5 + $0xd18] sm:$0xff]
    %v488 = vld [vmem:[#allocation5 + $0xd20] sm:$0xff]
    %v489 = vld [vmem:[#allocation5 + $0xd28] sm:$0xff]
    %v490 = vld [vmem:[#allocation5 + $0xd30] sm:$0xff]
    %v491 = vld [vmem:[#allocation5 + $0xd38] sm:$0xff]
    %v492 = vld [vmem:[#allocation5 + $0xd40] sm:$0xff]
    %v493 = vld [vmem:[#allocation5 + $0xd48] sm:$0xff]
    %v494 = vld [vmem:[#allocation5 + $0xd50] sm:$0xff]
    %v495 = vld [vmem:[#allocation5 + $0xd58] sm:$0xff]
    %v496 = vld [vmem:[#allocation5 + $0xd60] sm:$0xff]
    %v497 = vld [vmem:[#allocation5 + $0xd68] sm:$0xff]
    %v498 = vld [vmem:[#allocation5 + $0xd70] sm:$0xff]
    %v499 = vld [vmem:[#allocation5 + $0xd78] sm:$0xff]
    %v500 = vld [vmem:[#allocation5 + $0xd80] sm:$0xff]
    %v501 = vld [vmem:[#allocation5 + $0xd88] sm:$0xff]
    %v502 = vld [vmem:[#allocation5 + $0xd90] sm:$0xff]
    %v503 = vld [vmem:[#allocation5 + $0xd98] sm:$0xff]
    %v504 = vld [vmem:[#allocation5 + $0xda0] sm:$0xff]
    %v505 = vld [vmem:[#allocation5 + $0xda8] sm:$0xff]
    %v506 = vld [vmem:[#allocation5 + $0xdb0] sm:$0xff]
    %v507 = vld [vmem:[#allocation5 + $0xdb8] sm:$0xff]
    %v508 = vld [vmem:[#allocation5 + $0xdc0] sm:$0xff]
    %v509 = vld [vmem:[#allocation5 + $0xdc8] sm:$0xff]
    %v510 = vld [vmem:[#allocation5 + $0xdd0] sm:$0xff]
    %v511 = vld [vmem:[#allocation5 + $0xdd8] sm:$0xff]
    %v512 = vld [vmem:[#allocation5 + $0xde0] sm:$0xff]
    %v513 = vld [vmem:[#allocation5 + $0xde8] sm:$0xff]
    %v514 = vld [vmem:[#allocation5 + $0xdf0] sm:$0xff]
    %v515 = vld [vmem:[#allocation5 + $0xdf8] sm:$0xff]
    %v516 = vld [vmem:[#allocation5 + $0xe00] sm:$0xff]
    %v517 = vld [vmem:[#allocation5 + $0xe08] sm:$0xff]
    %v518 = vld [vmem:[#allocation5 + $0xe10] sm:$0xff]
    %v519 = vld [vmem:[#allocation5 + $0xe18] sm:$0xff]
    %v520 = vld [vmem:[#allocation5 + $0xe20] sm:$0xff]
    %v521 = vld [vmem:[#allocation5 + $0xe28] sm:$0xff]
    %v522 = vld [vmem:[#allocation5 + $0xe30] sm:$0xff]
    %v523 = vld [vmem:[#allocation5 + $0xe38] sm:$0xff]
    %v524 = vld [vmem:[#allocation5 + $0xe40] sm:$0xff]
    %v525 = vld [vmem:[#allocation5 + $0xe48] sm:$0xff]
    %v526 = vld [vmem:[#allocation5 + $0xe50] sm:$0xff]
    %v527 = vld [vmem:[#allocation5 + $0xe58] sm:$0xff]
    %v528 = vld [vmem:[#allocation5 + $0xe60] sm:$0xff]
    %v529 = vld [vmem:[#allocation5 + $0xe68] sm:$0xff]
    %v530 = vld [vmem:[#allocation5 + $0xe70] sm:$0xff]
    %v531 = vld [vmem:[#allocation5 + $0xe78] sm:$0xff]
    %v532 = vld [vmem:[#allocation5 + $0xe80] sm:$0xff]
    %v533 = vld [vmem:[#allocation5 + $0xe88] sm:$0xff]
    %v534 = vld [vmem:[#allocation5 + $0xe90] sm:$0xff]
    %v535 = vld [vmem:[#allocation5 + $0xe98] sm:$0xff]
    %v536 = vld [vmem:[#allocation5 + $0xea0] sm:$0xff]
    %v537 = vld [vmem:[#allocation5 + $0xea8] sm:$0xff]
    %v538 = vld [vmem:[#allocation5 + $0xeb0] sm:$0xff]
    %v539 = vld [vmem:[#allocation5 + $0xeb8] sm:$0xff]
    %v540 = vld [vmem:[#allocation5 + $0xec0] sm:$0xff]
    %v541 = vld [vmem:[#allocation5 + $0xec8] sm:$0xff]
    %v542 = vld [vmem:[#allocation5 + $0xed0] sm:$0xff]
    %v543 = vld [vmem:[#allocation5 + $0xed8] sm:$0xff]
    %v544 = vld [vmem:[#allocation5 + $0xee0] sm:$0xff]
    %v545 = vld [vmem:[#allocation5 + $0xee8] sm:$0xff]
    %v546 = vld [vmem:[#allocation5 + $0xef0] sm:$0xff]
    %v547 = vld [vmem:[#allocation5 + $0xef8] sm:$0xff]
    %v548 = vld [vmem:[#allocation5 + $0xf00] sm:$0xff]
    %v549 = vld [vmem:[#allocation5 + $0xf08] sm:$0xff]
    %v550 = vld [vmem:[#allocation5 + $0xf10] sm:$0xff]
    %v551 = vld [vmem:[#allocation5 + $0xf18] sm:$0xff]
    %v552 = vld [vmem:[#allocation5 + $0xf20] sm:$0xff]
    %v553 = vld [vmem:[#allocation5 + $0xf28] sm:$0xff]
    %v554 = vld [vmem:[#allocation5 + $0xf30] sm:$0xff]
    %v555 = vld [vmem:[#allocation5 + $0xf38] sm:$0xff]
    %v556 = vld [vmem:[#allocation5 + $0xf40] sm:$0xff]
    %v557 = vld [vmem:[#allocation5 + $0xf48] sm:$0xff]
    %v558 = vld [vmem:[#allocation5 + $0xf50] sm:$0xff]
    %v559 = vld [vmem:[#allocation5 + $0xf58] sm:$0xff]
    %v560 = vld [vmem:[#allocation5 + $0xf60] sm:$0xff]
    %v561 = vld [vmem:[#allocation5 + $0xf68] sm:$0xff]
    %v562 = vld [vmem:[#allocation5 + $0xf70] sm:$0xff]
    %v563 = vld [vmem:[#allocation5 + $0xf78] sm:$0xff]
    %v564 = vld [vmem:[#allocation5 + $0xf80] sm:$0xff]
    %v565 = vld [vmem:[#allocation5 + $0xf88] sm:$0xff]
    %v566 = vld [vmem:[#allocation5 + $0xf90] sm:$0xff]
    %v567 = vld [vmem:[#allocation5 + $0xf98] sm:$0xff]
    %v568 = vld [vmem:[#allocation5 + $0xfa0] sm:$0xff]
    %v569 = vld [vmem:[#allocation5 + $0xfa8] sm:$0xff]
    %v570 = vld [vmem:[#allocation5 + $0xfb0] sm:$0xff]
    %v571 = vld [vmem:[#allocation5 + $0xfb8] sm:$0xff]
    %v572 = vld [vmem:[#allocation5 + $0xfc0] sm:$0xff]
    %v573 = vld [vmem:[#allocation5 + $0xfc8] sm:$0xff]
    %v574 = vld [vmem:[#allocation5 + $0xfd0] sm:$0xff]
    %v575 = vld [vmem:[#allocation5 + $0xfd8] sm:$0xff]
    %v576 = vld [vmem:[#allocation5 + $0xfe0] sm:$0xff]
    %v577 = vld [vmem:[#allocation5 + $0xfe8] sm:$0xff]
    %v578 = vld [vmem:[#allocation5 + $0xff0] sm:$0xff]
    %v579 = vld [vmem:[#allocation5 + $0xff8] sm:$0xff]
    %v1092 = vunpack.c.l.b16 %v68
    %v1093 = vunpack.c.h.b16 %v68
    %v1094 = vunpack.c.l.b16 %v69
    %v1095 = vunpack.c.h.b16 %v69
    %v1096 = vunpack.c.l.b16 %v70
    %v1097 = vunpack.c.h.b16 %v70
    %v1098 = vunpack.c.l.b16 %v71
    %v1099 = vunpack.c.h.b16 %v71
    %v1100 = vunpack.c.l.b16 %v72
    %v1101 = vunpack.c.h.b16 %v72
    %v1102 = vunpack.c.l.b16 %v73
    %v1103 = vunpack.c.h.b16 %v73
    %v1104 = vunpack.c.l.b16 %v74
    %v1105 = vunpack.c.h.b16 %v74
    %v1106 = vunpack.c.l.b16 %v75
    %v1107 = vunpack.c.h.b16 %v75
    %v1108 = vunpack.c.l.b16 %v76
    %v1109 = vunpack.c.h.b16 %v76
    %v1110 = vunpack.c.l.b16 %v77
    %v1111 = vunpack.c.h.b16 %v77
    %v1112 = vunpack.c.l.b16 %v78
    %v1113 = vunpack.c.h.b16 %v78
    %v1114 = vunpack.c.l.b16 %v79
    %v1115 = vunpack.c.h.b16 %v79
    %v1116 = vunpack.c.l.b16 %v80
    %v1117 = vunpack.c.h.b16 %v80
    %v1118 = vunpack.c.l.b16 %v81
    %v1119 = vunpack.c.h.b16 %v81
    %v1120 = vunpack.c.l.b16 %v82
    %v1121 = vunpack.c.h.b16 %v82
    %v1122 = vunpack.c.l.b16 %v83
    %v1123 = vunpack.c.h.b16 %v83
    %v1124 = vunpack.c.l.b16 %v84
    %v1125 = vunpack.c.h.b16 %v84
    %v1126 = vunpack.c.l.b16 %v85
    %v1127 = vunpack.c.h.b16 %v85
    %v1128 = vunpack.c.l.b16 %v86
    %v1129 = vunpack.c.h.b16 %v86
    %v1130 = vunpack.c.l.b16 %v87
    %v1131 = vunpack.c.h.b16 %v87
    %v1132 = vunpack.c.l.b16 %v88
    %v1133 = vunpack.c.h.b16 %v88
    %v1134 = vunpack.c.l.b16 %v89
    %v1135 = vunpack.c.h.b16 %v89
    %v1136 = vunpack.c.l.b16 %v90
    %v1137 = vunpack.c.h.b16 %v90
    %v1138 = vunpack.c.l.b16 %v91
    %v1139 = vunpack.c.h.b16 %v91
    %v1140 = vunpack.c.l.b16 %v92
    %v1141 = vunpack.c.h.b16 %v92
    %v1142 = vunpack.c.l.b16 %v93
    %v1143 = vunpack.c.h.b16 %v93
    %v1144 = vunpack.c.l.b16 %v94
    %v1145 = vunpack.c.h.b16 %v94
    %v1146 = vunpack.c.l.b16 %v95
    %v1147 = vunpack.c.h.b16 %v95
    %v1148 = vunpack.c.l.b16 %v96
    %v1149 = vunpack.c.h.b16 %v96
    %v1150 = vunpack.c.l.b16 %v97
    %v1151 = vunpack.c.h.b16 %v97
    %v1152 = vunpack.c.l.b16 %v98
    %v1153 = vunpack.c.h.b16 %v98
    %v1154 = vunpack.c.l.b16 %v99
    %v1155 = vunpack.c.h.b16 %v99
    %v1156 = vunpack.c.l.b16 %v100
    %v1157 = vunpack.c.h.b16 %v100
    %v1158 = vunpack.c.l.b16 %v101
    %v1159 = vunpack.c.h.b16 %v101
    %v1160 = vunpack.c.l.b16 %v102
    %v1161 = vunpack.c.h.b16 %v102
    %v1162 = vunpack.c.l.b16 %v103
    %v1163 = vunpack.c.h.b16 %v103
    %v1164 = vunpack.c.l.b16 %v104
    %v1165 = vunpack.c.h.b16 %v104
    %v1166 = vunpack.c.l.b16 %v105
    %v1167 = vunpack.c.h.b16 %v105
    %v1168 = vunpack.c.l.b16 %v106
    %v1169 = vunpack.c.h.b16 %v106
    %v1170 = vunpack.c.l.b16 %v107
    %v1171 = vunpack.c.h.b16 %v107
    %v1172 = vunpack.c.l.b16 %v108
    %v1173 = vunpack.c.h.b16 %v108
    %v1174 = vunpack.c.l.b16 %v109
    %v1175 = vunpack.c.h.b16 %v109
    %v1176 = vunpack.c.l.b16 %v110
    %v1177 = vunpack.c.h.b16 %v110
    %v1178 = vunpack.c.l.b16 %v111
    %v1179 = vunpack.c.h.b16 %v111
    %v1180 = vunpack.c.l.b16 %v112
    %v1181 = vunpack.c.h.b16 %v112
    %v1182 = vunpack.c.l.b16 %v113
    %v1183 = vunpack.c.h.b16 %v113
    %v1184 = vunpack.c.l.b16 %v114
    %v1185 = vunpack.c.h.b16 %v114
    %v1186 = vunpack.c.l.b16 %v115
    %v1187 = vunpack.c.h.b16 %v115
    %v1188 = vunpack.c.l.b16 %v116
    %v1189 = vunpack.c.h.b16 %v116
    %v1190 = vunpack.c.l.b16 %v117
    %v1191 = vunpack.c.h.b16 %v117
    %v1192 = vunpack.c.l.b16 %v118
    %v1193 = vunpack.c.h.b16 %v118
    %v1194 = vunpack.c.l.b16 %v119
    %v1195 = vunpack.c.h.b16 %v119
    %v1196 = vunpack.c.l.b16 %v120
    %v1197 = vunpack.c.h.b16 %v120
    %v1198 = vunpack.c.l.b16 %v121
    %v1199 = vunpack.c.h.b16 %v121
    %v1200 = vunpack.c.l.b16 %v122
    %v1201 = vunpack.c.h.b16 %v122
    %v1202 = vunpack.c.l.b16 %v123
    %v1203 = vunpack.c.h.b16 %v123
    %v1204 = vunpack.c.l.b16 %v124
    %v1205 = vunpack.c.h.b16 %v124
    %v1206 = vunpack.c.l.b16 %v125
    %v1207 = vunpack.c.h.b16 %v125
    %v1208 = vunpack.c.l.b16 %v126
    %v1209 = vunpack.c.h.b16 %v126
    %v1210 = vunpack.c.l.b16 %v127
    %v1211 = vunpack.c.h.b16 %v127
    %v1212 = vunpack.c.l.b16 %v128
    %v1213 = vunpack.c.h.b16 %v128
    %v1214 = vunpack.c.l.b16 %v129
    %v1215 = vunpack.c.h.b16 %v129
    %v1216 = vunpack.c.l.b16 %v130
    %v1217 = vunpack.c.h.b16 %v130
    %v1218 = vunpack.c.l.b16 %v131
    %v1219 = vunpack.c.h.b16 %v131
    %v1220 = vunpack.c.l.b16 %v132
    %v1221 = vunpack.c.h.b16 %v132
    %v1222 = vunpack.c.l.b16 %v133
    %v1223 = vunpack.c.h.b16 %v133
    %v1224 = vunpack.c.l.b16 %v134
    %v1225 = vunpack.c.h.b16 %v134
    %v1226 = vunpack.c.l.b16 %v135
    %v1227 = vunpack.c.h.b16 %v135
    %v1228 = vunpack.c.l.b16 %v136
    %v1229 = vunpack.c.h.b16 %v136
    %v1230 = vunpack.c.l.b16 %v137
    %v1231 = vunpack.c.h.b16 %v137
    %v1232 = vunpack.c.l.b16 %v138
    %v1233 = vunpack.c.h.b16 %v138
    %v1234 = vunpack.c.l.b16 %v139
    %v1235 = vunpack.c.h.b16 %v139
    %v1236 = vunpack.c.l.b16 %v140
    %v1237 = vunpack.c.h.b16 %v140
    %v1238 = vunpack.c.l.b16 %v141
    %v1239 = vunpack.c.h.b16 %v141
    %v1240 = vunpack.c.l.b16 %v142
    %v1241 = vunpack.c.h.b16 %v142
    %v1242 = vunpack.c.l.b16 %v143
    %v1243 = vunpack.c.h.b16 %v143
    %v1244 = vunpack.c.l.b16 %v144
    %v1245 = vunpack.c.h.b16 %v144
    %v1246 = vunpack.c.l.b16 %v145
    %v1247 = vunpack.c.h.b16 %v145
    %v1248 = vunpack.c.l.b16 %v146
    %v1249 = vunpack.c.h.b16 %v146
    %v1250 = vunpack.c.l.b16 %v147
    %v1251 = vunpack.c.h.b16 %v147
    %v1252 = vunpack.c.l.b16 %v148
    %v1253 = vunpack.c.h.b16 %v148
    %v1254 = vunpack.c.l.b16 %v149
    %v1255 = vunpack.c.h.b16 %v149
    %v1256 = vunpack.c.l.b16 %v150
    %v1257 = vunpack.c.h.b16 %v150
    %v1258 = vunpack.c.l.b16 %v151
    %v1259 = vunpack.c.h.b16 %v151
    %v1260 = vunpack.c.l.b16 %v152
    %v1261 = vunpack.c.h.b16 %v152
    %v1262 = vunpack.c.l.b16 %v153
    %v1263 = vunpack.c.h.b16 %v153
    %v1264 = vunpack.c.l.b16 %v154
    %v1265 = vunpack.c.h.b16 %v154
    %v1266 = vunpack.c.l.b16 %v155
    %v1267 = vunpack.c.h.b16 %v155
    %v1268 = vunpack.c.l.b16 %v156
    %v1269 = vunpack.c.h.b16 %v156
    %v1270 = vunpack.c.l.b16 %v157
    %v1271 = vunpack.c.h.b16 %v157
    %v1272 = vunpack.c.l.b16 %v158
    %v1273 = vunpack.c.h.b16 %v158
    %v1274 = vunpack.c.l.b16 %v159
    %v1275 = vunpack.c.h.b16 %v159
    %v1276 = vunpack.c.l.b16 %v160
    %v1277 = vunpack.c.h.b16 %v160
    %v1278 = vunpack.c.l.b16 %v161
    %v1279 = vunpack.c.h.b16 %v161
    %v1280 = vunpack.c.l.b16 %v162
    %v1281 = vunpack.c.h.b16 %v162
    %v1282 = vunpack.c.l.b16 %v163
    %v1283 = vunpack.c.h.b16 %v163
    %v1284 = vunpack.c.l.b16 %v164
    %v1285 = vunpack.c.h.b16 %v164
    %v1286 = vunpack.c.l.b16 %v165
    %v1287 = vunpack.c.h.b16 %v165
    %v1288 = vunpack.c.l.b16 %v166
    %v1289 = vunpack.c.h.b16 %v166
    %v1290 = vunpack.c.l.b16 %v167
    %v1291 = vunpack.c.h.b16 %v167
    %v1292 = vunpack.c.l.b16 %v168
    %v1293 = vunpack.c.h.b16 %v168
    %v1294 = vunpack.c.l.b16 %v169
    %v1295 = vunpack.c.h.b16 %v169
    %v1296 = vunpack.c.l.b16 %v170
    %v1297 = vunpack.c.h.b16 %v170
    %v1298 = vunpack.c.l.b16 %v171
    %v1299 = vunpack.c.h.b16 %v171
    %v1300 = vunpack.c.l.b16 %v172
    %v1301 = vunpack.c.h.b16 %v172
    %v1302 = vunpack.c.l.b16 %v173
    %v1303 = vunpack.c.h.b16 %v173
    %v1304 = vunpack.c.l.b16 %v174
    %v1305 = vunpack.c.h.b16 %v174
    %v1306 = vunpack.c.l.b16 %v175
    %v1307 = vunpack.c.h.b16 %v175
    %v1308 = vunpack.c.l.b16 %v176
    %v1309 = vunpack.c.h.b16 %v176
    %v1310 = vunpack.c.l.b16 %v177
    %v1311 = vunpack.c.h.b16 %v177
    %v1312 = vunpack.c.l.b16 %v178
    %v1313 = vunpack.c.h.b16 %v178
    %v1314 = vunpack.c.l.b16 %v179
    %v1315 = vunpack.c.h.b16 %v179
    %v1316 = vunpack.c.l.b16 %v180
    %v1317 = vunpack.c.h.b16 %v180
    %v1318 = vunpack.c.l.b16 %v181
    %v1319 = vunpack.c.h.b16 %v181
    %v1320 = vunpack.c.l.b16 %v182
    %v1321 = vunpack.c.h.b16 %v182
    %v1322 = vunpack.c.l.b16 %v183
    %v1323 = vunpack.c.h.b16 %v183
    %v1324 = vunpack.c.l.b16 %v184
    %v1325 = vunpack.c.h.b16 %v184
    %v1326 = vunpack.c.l.b16 %v185
    %v1327 = vunpack.c.h.b16 %v185
    %v1328 = vunpack.c.l.b16 %v186
    %v1329 = vunpack.c.h.b16 %v186
    %v1330 = vunpack.c.l.b16 %v187
    %v1331 = vunpack.c.h.b16 %v187
    %v1332 = vunpack.c.l.b16 %v188
    %v1333 = vunpack.c.h.b16 %v188
    %v1334 = vunpack.c.l.b16 %v189
    %v1335 = vunpack.c.h.b16 %v189
    %v1336 = vunpack.c.l.b16 %v190
    %v1337 = vunpack.c.h.b16 %v190
    %v1338 = vunpack.c.l.b16 %v191
    %v1339 = vunpack.c.h.b16 %v191
    %v1340 = vunpack.c.l.b16 %v192
    %v1341 = vunpack.c.h.b16 %v192
    %v1342 = vunpack.c.l.b16 %v193
    %v1343 = vunpack.c.h.b16 %v193
    %v1344 = vunpack.c.l.b16 %v194
    %v1345 = vunpack.c.h.b16 %v194
    %v1346 = vunpack.c.l.b16 %v195
    %v1347 = vunpack.c.h.b16 %v195
    %v1348 = vunpack.c.l.b16 %v196
    %v1349 = vunpack.c.h.b16 %v196
    %v1350 = vunpack.c.l.b16 %v197
    %v1351 = vunpack.c.h.b16 %v197
    %v1352 = vunpack.c.l.b16 %v198
    %v1353 = vunpack.c.h.b16 %v198
    %v1354 = vunpack.c.l.b16 %v199
    %v1355 = vunpack.c.h.b16 %v199
    %v1356 = vunpack.c.l.b16 %v200
    %v1357 = vunpack.c.h.b16 %v200
    %v1358 = vunpack.c.l.b16 %v201
    %v1359 = vunpack.c.h.b16 %v201
    %v1360 = vunpack.c.l.b16 %v202
    %v1361 = vunpack.c.h.b16 %v202
    %v1362 = vunpack.c.l.b16 %v203
    %v1363 = vunpack.c.h.b16 %v203
    %v1364 = vunpack.c.l.b16 %v204
    %v1365 = vunpack.c.h.b16 %v204
    %v1366 = vunpack.c.l.b16 %v205
    %v1367 = vunpack.c.h.b16 %v205
    %v1368 = vunpack.c.l.b16 %v206
    %v1369 = vunpack.c.h.b16 %v206
    %v1370 = vunpack.c.l.b16 %v207
    %v1371 = vunpack.c.h.b16 %v207
    %v1372 = vunpack.c.l.b16 %v208
    %v1373 = vunpack.c.h.b16 %v208
    %v1374 = vunpack.c.l.b16 %v209
    %v1375 = vunpack.c.h.b16 %v209
    %v1376 = vunpack.c.l.b16 %v210
    %v1377 = vunpack.c.h.b16 %v210
    %v1378 = vunpack.c.l.b16 %v211
    %v1379 = vunpack.c.h.b16 %v211
    %v1380 = vunpack.c.l.b16 %v212
    %v1381 = vunpack.c.h.b16 %v212
    %v1382 = vunpack.c.l.b16 %v213
    %v1383 = vunpack.c.h.b16 %v213
    %v1384 = vunpack.c.l.b16 %v214
    %v1385 = vunpack.c.h.b16 %v214
    %v1386 = vunpack.c.l.b16 %v215
    %v1387 = vunpack.c.h.b16 %v215
    %v1388 = vunpack.c.l.b16 %v216
    %v1389 = vunpack.c.h.b16 %v216
    %v1390 = vunpack.c.l.b16 %v217
    %v1391 = vunpack.c.h.b16 %v217
    %v1392 = vunpack.c.l.b16 %v218
    %v1393 = vunpack.c.h.b16 %v218
    %v1394 = vunpack.c.l.b16 %v219
    %v1395 = vunpack.c.h.b16 %v219
    %v1396 = vunpack.c.l.b16 %v220
    %v1397 = vunpack.c.h.b16 %v220
    %v1398 = vunpack.c.l.b16 %v221
    %v1399 = vunpack.c.h.b16 %v221
    %v1400 = vunpack.c.l.b16 %v222
    %v1401 = vunpack.c.h.b16 %v222
    %v1402 = vunpack.c.l.b16 %v223
    %v1403 = vunpack.c.h.b16 %v223
    %v1404 = vunpack.c.l.b16 %v224
    %v1405 = vunpack.c.h.b16 %v224
    %v1406 = vunpack.c.l.b16 %v225
    %v1407 = vunpack.c.h.b16 %v225
    %v1408 = vunpack.c.l.b16 %v226
    %v1409 = vunpack.c.h.b16 %v226
    %v1410 = vunpack.c.l.b16 %v227
    %v1411 = vunpack.c.h.b16 %v227
    %v1412 = vunpack.c.l.b16 %v228
    %v1413 = vunpack.c.h.b16 %v228
    %v1414 = vunpack.c.l.b16 %v229
    %v1415 = vunpack.c.h.b16 %v229
    %v1416 = vunpack.c.l.b16 %v230
    %v1417 = vunpack.c.h.b16 %v230
    %v1418 = vunpack.c.l.b16 %v231
    %v1419 = vunpack.c.h.b16 %v231
    %v1420 = vunpack.c.l.b16 %v232
    %v1421 = vunpack.c.h.b16 %v232
    %v1422 = vunpack.c.l.b16 %v233
    %v1423 = vunpack.c.h.b16 %v233
    %v1424 = vunpack.c.l.b16 %v234
    %v1425 = vunpack.c.h.b16 %v234
    %v1426 = vunpack.c.l.b16 %v235
    %v1427 = vunpack.c.h.b16 %v235
    %v1428 = vunpack.c.l.b16 %v236
    %v1429 = vunpack.c.h.b16 %v236
    %v1430 = vunpack.c.l.b16 %v237
    %v1431 = vunpack.c.h.b16 %v237
    %v1432 = vunpack.c.l.b16 %v238
    %v1433 = vunpack.c.h.b16 %v238
    %v1434 = vunpack.c.l.b16 %v239
    %v1435 = vunpack.c.h.b16 %v239
    %v1436 = vunpack.c.l.b16 %v240
    %v1437 = vunpack.c.h.b16 %v240
    %v1438 = vunpack.c.l.b16 %v241
    %v1439 = vunpack.c.h.b16 %v241
    %v1440 = vunpack.c.l.b16 %v242
    %v1441 = vunpack.c.h.b16 %v242
    %v1442 = vunpack.c.l.b16 %v243
    %v1443 = vunpack.c.h.b16 %v243
    %v1444 = vunpack.c.l.b16 %v244
    %v1445 = vunpack.c.h.b16 %v244
    %v1446 = vunpack.c.l.b16 %v245
    %v1447 = vunpack.c.h.b16 %v245
    %v1448 = vunpack.c.l.b16 %v246
    %v1449 = vunpack.c.h.b16 %v246
    %v1450 = vunpack.c.l.b16 %v247
    %v1451 = vunpack.c.h.b16 %v247
    %v1452 = vunpack.c.l.b16 %v248
    %v1453 = vunpack.c.h.b16 %v248
    %v1454 = vunpack.c.l.b16 %v249
    %v1455 = vunpack.c.h.b16 %v249
    %v1456 = vunpack.c.l.b16 %v250
    %v1457 = vunpack.c.h.b16 %v250
    %v1458 = vunpack.c.l.b16 %v251
    %v1459 = vunpack.c.h.b16 %v251
    %v1460 = vunpack.c.l.b16 %v252
    %v1461 = vunpack.c.h.b16 %v252
    %v1462 = vunpack.c.l.b16 %v253
    %v1463 = vunpack.c.h.b16 %v253
    %v1464 = vunpack.c.l.b16 %v254
    %v1465 = vunpack.c.h.b16 %v254
    %v1466 = vunpack.c.l.b16 %v255
    %v1467 = vunpack.c.h.b16 %v255
    %v1468 = vunpack.c.l.b16 %v256
    %v1469 = vunpack.c.h.b16 %v256
    %v1470 = vunpack.c.l.b16 %v257
    %v1471 = vunpack.c.h.b16 %v257
    %v1472 = vunpack.c.l.b16 %v258
    %v1473 = vunpack.c.h.b16 %v258
    %v1474 = vunpack.c.l.b16 %v259
    %v1475 = vunpack.c.h.b16 %v259
    %v1476 = vunpack.c.l.b16 %v260
    %v1477 = vunpack.c.h.b16 %v260
    %v1478 = vunpack.c.l.b16 %v261
    %v1479 = vunpack.c.h.b16 %v261
    %v1480 = vunpack.c.l.b16 %v262
    %v1481 = vunpack.c.h.b16 %v262
    %v1482 = vunpack.c.l.b16 %v263
    %v1483 = vunpack.c.h.b16 %v263
    %v1484 = vunpack.c.l.b16 %v264
    %v1485 = vunpack.c.h.b16 %v264
    %v1486 = vunpack.c.l.b16 %v265
    %v1487 = vunpack.c.h.b16 %v265
    %v1488 = vunpack.c.l.b16 %v266
    %v1489 = vunpack.c.h.b16 %v266
    %v1490 = vunpack.c.l.b16 %v267
    %v1491 = vunpack.c.h.b16 %v267
    %v1492 = vunpack.c.l.b16 %v268
    %v1493 = vunpack.c.h.b16 %v268
    %v1494 = vunpack.c.l.b16 %v269
    %v1495 = vunpack.c.h.b16 %v269
    %v1496 = vunpack.c.l.b16 %v270
    %v1497 = vunpack.c.h.b16 %v270
    %v1498 = vunpack.c.l.b16 %v271
    %v1499 = vunpack.c.h.b16 %v271
    %v1500 = vunpack.c.l.b16 %v272
    %v1501 = vunpack.c.h.b16 %v272
    %v1502 = vunpack.c.l.b16 %v273
    %v1503 = vunpack.c.h.b16 %v273
    %v1504 = vunpack.c.l.b16 %v274
    %v1505 = vunpack.c.h.b16 %v274
    %v1506 = vunpack.c.l.b16 %v275
    %v1507 = vunpack.c.h.b16 %v275
    %v1508 = vunpack.c.l.b16 %v276
    %v1509 = vunpack.c.h.b16 %v276
    %v1510 = vunpack.c.l.b16 %v277
    %v1511 = vunpack.c.h.b16 %v277
    %v1512 = vunpack.c.l.b16 %v278
    %v1513 = vunpack.c.h.b16 %v278
    %v1514 = vunpack.c.l.b16 %v279
    %v1515 = vunpack.c.h.b16 %v279
    %v1516 = vunpack.c.l.b16 %v280
    %v1517 = vunpack.c.h.b16 %v280
    %v1518 = vunpack.c.l.b16 %v281
    %v1519 = vunpack.c.h.b16 %v281
    %v1520 = vunpack.c.l.b16 %v282
    %v1521 = vunpack.c.h.b16 %v282
    %v1522 = vunpack.c.l.b16 %v283
    %v1523 = vunpack.c.h.b16 %v283
    %v1524 = vunpack.c.l.b16 %v284
    %v1525 = vunpack.c.h.b16 %v284
    %v1526 = vunpack.c.l.b16 %v285
    %v1527 = vunpack.c.h.b16 %v285
    %v1528 = vunpack.c.l.b16 %v286
    %v1529 = vunpack.c.h.b16 %v286
    %v1530 = vunpack.c.l.b16 %v287
    %v1531 = vunpack.c.h.b16 %v287
    %v1532 = vunpack.c.l.b16 %v288
    %v1533 = vunpack.c.h.b16 %v288
    %v1534 = vunpack.c.l.b16 %v289
    %v1535 = vunpack.c.h.b16 %v289
    %v1536 = vunpack.c.l.b16 %v290
    %v1537 = vunpack.c.h.b16 %v290
    %v1538 = vunpack.c.l.b16 %v291
    %v1539 = vunpack.c.h.b16 %v291
    %v1540 = vunpack.c.l.b16 %v292
    %v1541 = vunpack.c.h.b16 %v292
    %v1542 = vunpack.c.l.b16 %v293
    %v1543 = vunpack.c.h.b16 %v293
    %v1544 = vunpack.c.l.b16 %v294
    %v1545 = vunpack.c.h.b16 %v294
    %v1546 = vunpack.c.l.b16 %v295
    %v1547 = vunpack.c.h.b16 %v295
    %v1548 = vunpack.c.l.b16 %v296
    %v1549 = vunpack.c.h.b16 %v296
    %v1550 = vunpack.c.l.b16 %v297
    %v1551 = vunpack.c.h.b16 %v297
    %v1552 = vunpack.c.l.b16 %v298
    %v1553 = vunpack.c.h.b16 %v298
    %v1554 = vunpack.c.l.b16 %v299
    %v1555 = vunpack.c.h.b16 %v299
    %v1556 = vunpack.c.l.b16 %v300
    %v1557 = vunpack.c.h.b16 %v300
    %v1558 = vunpack.c.l.b16 %v301
    %v1559 = vunpack.c.h.b16 %v301
    %v1560 = vunpack.c.l.b16 %v302
    %v1561 = vunpack.c.h.b16 %v302
    %v1562 = vunpack.c.l.b16 %v303
    %v1563 = vunpack.c.h.b16 %v303
    %v1564 = vunpack.c.l.b16 %v304
    %v1565 = vunpack.c.h.b16 %v304
    %v1566 = vunpack.c.l.b16 %v305
    %v1567 = vunpack.c.h.b16 %v305
    %v1568 = vunpack.c.l.b16 %v306
    %v1569 = vunpack.c.h.b16 %v306
    %v1570 = vunpack.c.l.b16 %v307
    %v1571 = vunpack.c.h.b16 %v307
    %v1572 = vunpack.c.l.b16 %v308
    %v1573 = vunpack.c.h.b16 %v308
    %v1574 = vunpack.c.l.b16 %v309
    %v1575 = vunpack.c.h.b16 %v309
    %v1576 = vunpack.c.l.b16 %v310
    %v1577 = vunpack.c.h.b16 %v310
    %v1578 = vunpack.c.l.b16 %v311
    %v1579 = vunpack.c.h.b16 %v311
    %v1580 = vunpack.c.l.b16 %v312
    %v1581 = vunpack.c.h.b16 %v312
    %v1582 = vunpack.c.l.b16 %v313
    %v1583 = vunpack.c.h.b16 %v313
    %v1584 = vunpack.c.l.b16 %v314
    %v1585 = vunpack.c.h.b16 %v314
    %v1586 = vunpack.c.l.b16 %v315
    %v1587 = vunpack.c.h.b16 %v315
    %v1588 = vunpack.c.l.b16 %v316
    %v1589 = vunpack.c.h.b16 %v316
    %v1590 = vunpack.c.l.b16 %v317
    %v1591 = vunpack.c.h.b16 %v317
    %v1592 = vunpack.c.l.b16 %v318
    %v1593 = vunpack.c.h.b16 %v318
    %v1594 = vunpack.c.l.b16 %v319
    %v1595 = vunpack.c.h.b16 %v319
    %v1596 = vunpack.c.l.b16 %v320
    %v1597 = vunpack.c.h.b16 %v320
    %v1598 = vunpack.c.l.b16 %v321
    %v1599 = vunpack.c.h.b16 %v321
    %v1600 = vunpack.c.l.b16 %v322
    %v1601 = vunpack.c.h.b16 %v322
    %v1602 = vunpack.c.l.b16 %v323
    %v1603 = vunpack.c.h.b16 %v323
    %v1604 = vunpack.c.l.b16 %v324
    %v1605 = vunpack.c.h.b16 %v324
    %v1606 = vunpack.c.l.b16 %v325
    %v1607 = vunpack.c.h.b16 %v325
    %v1608 = vunpack.c.l.b16 %v326
    %v1609 = vunpack.c.h.b16 %v326
    %v1610 = vunpack.c.l.b16 %v327
    %v1611 = vunpack.c.h.b16 %v327
    %v1612 = vunpack.c.l.b16 %v328
    %v1613 = vunpack.c.h.b16 %v328
    %v1614 = vunpack.c.l.b16 %v329
    %v1615 = vunpack.c.h.b16 %v329
    %v1616 = vunpack.c.l.b16 %v330
    %v1617 = vunpack.c.h.b16 %v330
    %v1618 = vunpack.c.l.b16 %v331
    %v1619 = vunpack.c.h.b16 %v331
    %v1620 = vunpack.c.l.b16 %v332
    %v1621 = vunpack.c.h.b16 %v332
    %v1622 = vunpack.c.l.b16 %v333
    %v1623 = vunpack.c.h.b16 %v333
    %v1624 = vunpack.c.l.b16 %v334
    %v1625 = vunpack.c.h.b16 %v334
    %v1626 = vunpack.c.l.b16 %v335
    %v1627 = vunpack.c.h.b16 %v335
    %v1628 = vunpack.c.l.b16 %v336
    %v1629 = vunpack.c.h.b16 %v336
    %v1630 = vunpack.c.l.b16 %v337
    %v1631 = vunpack.c.h.b16 %v337
    %v1632 = vunpack.c.l.b16 %v338
    %v1633 = vunpack.c.h.b16 %v338
    %v1634 = vunpack.c.l.b16 %v339
    %v1635 = vunpack.c.h.b16 %v339
    %v1636 = vunpack.c.l.b16 %v340
    %v1637 = vunpack.c.h.b16 %v340
    %v1638 = vunpack.c.l.b16 %v341
    %v1639 = vunpack.c.h.b16 %v341
    %v1640 = vunpack.c.l.b16 %v342
    %v1641 = vunpack.c.h.b16 %v342
    %v1642 = vunpack.c.l.b16 %v343
    %v1643 = vunpack.c.h.b16 %v343
    %v1644 = vunpack.c.l.b16 %v344
    %v1645 = vunpack.c.h.b16 %v344
    %v1646 = vunpack.c.l.b16 %v345
    %v1647 = vunpack.c.h.b16 %v345
    %v1648 = vunpack.c.l.b16 %v346
    %v1649 = vunpack.c.h.b16 %v346
    %v1650 = vunpack.c.l.b16 %v347
    %v1651 = vunpack.c.h.b16 %v347
    %v1652 = vunpack.c.l.b16 %v348
    %v1653 = vunpack.c.h.b16 %v348
    %v1654 = vunpack.c.l.b16 %v349
    %v1655 = vunpack.c.h.b16 %v349
    %v1656 = vunpack.c.l.b16 %v350
    %v1657 = vunpack.c.h.b16 %v350
    %v1658 = vunpack.c.l.b16 %v351
    %v1659 = vunpack.c.h.b16 %v351
    %v1660 = vunpack.c.l.b16 %v352
    %v1661 = vunpack.c.h.b16 %v352
    %v1662 = vunpack.c.l.b16 %v353
    %v1663 = vunpack.c.h.b16 %v353
    %v1664 = vunpack.c.l.b16 %v354
    %v1665 = vunpack.c.h.b16 %v354
    %v1666 = vunpack.c.l.b16 %v355
    %v1667 = vunpack.c.h.b16 %v355
    %v1668 = vunpack.c.l.b16 %v356
    %v1669 = vunpack.c.h.b16 %v356
    %v1670 = vunpack.c.l.b16 %v357
    %v1671 = vunpack.c.h.b16 %v357
    %v1672 = vunpack.c.l.b16 %v358
    %v1673 = vunpack.c.h.b16 %v358
    %v1674 = vunpack.c.l.b16 %v359
    %v1675 = vunpack.c.h.b16 %v359
    %v1676 = vunpack.c.l.b16 %v360
    %v1677 = vunpack.c.h.b16 %v360
    %v1678 = vunpack.c.l.b16 %v361
    %v1679 = vunpack.c.h.b16 %v361
    %v1680 = vunpack.c.l.b16 %v362
    %v1681 = vunpack.c.h.b16 %v362
    %v1682 = vunpack.c.l.b16 %v363
    %v1683 = vunpack.c.h.b16 %v363
    %v1684 = vunpack.c.l.b16 %v364
    %v1685 = vunpack.c.h.b16 %v364
    %v1686 = vunpack.c.l.b16 %v365
    %v1687 = vunpack.c.h.b16 %v365
    %v1688 = vunpack.c.l.b16 %v366
    %v1689 = vunpack.c.h.b16 %v366
    %v1690 = vunpack.c.l.b16 %v367
    %v1691 = vunpack.c.h.b16 %v367
    %v1692 = vunpack.c.l.b16 %v368
    %v1693 = vunpack.c.h.b16 %v368
    %v1694 = vunpack.c.l.b16 %v369
    %v1695 = vunpack.c.h.b16 %v369
    %v1696 = vunpack.c.l.b16 %v370
    %v1697 = vunpack.c.h.b16 %v370
    %v1698 = vunpack.c.l.b16 %v371
    %v1699 = vunpack.c.h.b16 %v371
    %v1700 = vunpack.c.l.b16 %v372
    %v1701 = vunpack.c.h.b16 %v372
    %v1702 = vunpack.c.l.b16 %v373
    %v1703 = vunpack.c.h.b16 %v373
    %v1704 = vunpack.c.l.b16 %v374
    %v1705 = vunpack.c.h.b16 %v374
    %v1706 = vunpack.c.l.b16 %v375
    %v1707 = vunpack.c.h.b16 %v375
    %v1708 = vunpack.c.l.b16 %v376
    %v1709 = vunpack.c.h.b16 %v376
    %v1710 = vunpack.c.l.b16 %v377
    %v1711 = vunpack.c.h.b16 %v377
    %v1712 = vunpack.c.l.b16 %v378
    %v1713 = vunpack.c.h.b16 %v378
    %v1714 = vunpack.c.l.b16 %v379
    %v1715 = vunpack.c.h.b16 %v379
    %v1716 = vunpack.c.l.b16 %v380
    %v1717 = vunpack.c.h.b16 %v380
    %v1718 = vunpack.c.l.b16 %v381
    %v1719 = vunpack.c.h.b16 %v381
    %v1720 = vunpack.c.l.b16 %v382
    %v1721 = vunpack.c.h.b16 %v382
    %v1722 = vunpack.c.l.b16 %v383
    %v1723 = vunpack.c.h.b16 %v383
    %v1724 = vunpack.c.l.b16 %v384
    %v1725 = vunpack.c.h.b16 %v384
    %v1726 = vunpack.c.l.b16 %v385
    %v1727 = vunpack.c.h.b16 %v385
    %v1728 = vunpack.c.l.b16 %v386
    %v1729 = vunpack.c.h.b16 %v386
    %v1730 = vunpack.c.l.b16 %v387
    %v1731 = vunpack.c.h.b16 %v387
    %v1732 = vunpack.c.l.b16 %v388
    %v1733 = vunpack.c.h.b16 %v388
    %v1734 = vunpack.c.l.b16 %v389
    %v1735 = vunpack.c.h.b16 %v389
    %v1736 = vunpack.c.l.b16 %v390
    %v1737 = vunpack.c.h.b16 %v390
    %v1738 = vunpack.c.l.b16 %v391
    %v1739 = vunpack.c.h.b16 %v391
    %v1740 = vunpack.c.l.b16 %v392
    %v1741 = vunpack.c.h.b16 %v392
    %v1742 = vunpack.c.l.b16 %v393
    %v1743 = vunpack.c.h.b16 %v393
    %v1744 = vunpack.c.l.b16 %v394
    %v1745 = vunpack.c.h.b16 %v394
    %v1746 = vunpack.c.l.b16 %v395
    %v1747 = vunpack.c.h.b16 %v395
    %v1748 = vunpack.c.l.b16 %v396
    %v1749 = vunpack.c.h.b16 %v396
    %v1750 = vunpack.c.l.b16 %v397
    %v1751 = vunpack.c.h.b16 %v397
    %v1752 = vunpack.c.l.b16 %v398
    %v1753 = vunpack.c.h.b16 %v398
    %v1754 = vunpack.c.l.b16 %v399
    %v1755 = vunpack.c.h.b16 %v399
    %v1756 = vunpack.c.l.b16 %v400
    %v1757 = vunpack.c.h.b16 %v400
    %v1758 = vunpack.c.l.b16 %v401
    %v1759 = vunpack.c.h.b16 %v401
    %v1760 = vunpack.c.l.b16 %v402
    %v1761 = vunpack.c.h.b16 %v402
    %v1762 = vunpack.c.l.b16 %v403
    %v1763 = vunpack.c.h.b16 %v403
    %v1764 = vunpack.c.l.b16 %v404
    %v1765 = vunpack.c.h.b16 %v404
    %v1766 = vunpack.c.l.b16 %v405
    %v1767 = vunpack.c.h.b16 %v405
    %v1768 = vunpack.c.l.b16 %v406
    %v1769 = vunpack.c.h.b16 %v406
    %v1770 = vunpack.c.l.b16 %v407
    %v1771 = vunpack.c.h.b16 %v407
    %v1772 = vunpack.c.l.b16 %v408
    %v1773 = vunpack.c.h.b16 %v408
    %v1774 = vunpack.c.l.b16 %v409
    %v1775 = vunpack.c.h.b16 %v409
    %v1776 = vunpack.c.l.b16 %v410
    %v1777 = vunpack.c.h.b16 %v410
    %v1778 = vunpack.c.l.b16 %v411
    %v1779 = vunpack.c.h.b16 %v411
    %v1780 = vunpack.c.l.b16 %v412
    %v1781 = vunpack.c.h.b16 %v412
    %v1782 = vunpack.c.l.b16 %v413
    %v1783 = vunpack.c.h.b16 %v413
    %v1784 = vunpack.c.l.b16 %v414
    %v1785 = vunpack.c.h.b16 %v414
    %v1786 = vunpack.c.l.b16 %v415
    %v1787 = vunpack.c.h.b16 %v415
    %v1788 = vunpack.c.l.b16 %v416
    %v1789 = vunpack.c.h.b16 %v416
    %v1790 = vunpack.c.l.b16 %v417
    %v1791 = vunpack.c.h.b16 %v417
    %v1792 = vunpack.c.l.b16 %v418
    %v1793 = vunpack.c.h.b16 %v418
    %v1794 = vunpack.c.l.b16 %v419
    %v1795 = vunpack.c.h.b16 %v419
    %v1796 = vunpack.c.l.b16 %v420
    %v1797 = vunpack.c.h.b16 %v420
    %v1798 = vunpack.c.l.b16 %v421
    %v1799 = vunpack.c.h.b16 %v421
    %v1800 = vunpack.c.l.b16 %v422
    %v1801 = vunpack.c.h.b16 %v422
    %v1802 = vunpack.c.l.b16 %v423
    %v1803 = vunpack.c.h.b16 %v423
    %v1804 = vunpack.c.l.b16 %v424
    %v1805 = vunpack.c.h.b16 %v424
    %v1806 = vunpack.c.l.b16 %v425
    %v1807 = vunpack.c.h.b16 %v425
    %v1808 = vunpack.c.l.b16 %v426
    %v1809 = vunpack.c.h.b16 %v426
    %v1810 = vunpack.c.l.b16 %v427
    %v1811 = vunpack.c.h.b16 %v427
    %v1812 = vunpack.c.l.b16 %v428
    %v1813 = vunpack.c.h.b16 %v428
    %v1814 = vunpack.c.l.b16 %v429
    %v1815 = vunpack.c.h.b16 %v429
    %v1816 = vunpack.c.l.b16 %v430
    %v1817 = vunpack.c.h.b16 %v430
    %v1818 = vunpack.c.l.b16 %v431
    %v1819 = vunpack.c.h.b16 %v431
    %v1820 = vunpack.c.l.b16 %v432
    %v1821 = vunpack.c.h.b16 %v432
    %v1822 = vunpack.c.l.b16 %v433
    %v1823 = vunpack.c.h.b16 %v433
    %v1824 = vunpack.c.l.b16 %v434
    %v1825 = vunpack.c.h.b16 %v434
    %v1826 = vunpack.c.l.b16 %v435
    %v1827 = vunpack.c.h.b16 %v435
    %v1828 = vunpack.c.l.b16 %v436
    %v1829 = vunpack.c.h.b16 %v436
    %v1830 = vunpack.c.l.b16 %v437
    %v1831 = vunpack.c.h.b16 %v437
    %v1832 = vunpack.c.l.b16 %v438
    %v1833 = vunpack.c.h.b16 %v438
    %v1834 = vunpack.c.l.b16 %v439
    %v1835 = vunpack.c.h.b16 %v439
    %v1836 = vunpack.c.l.b16 %v440
    %v1837 = vunpack.c.h.b16 %v440
    %v1838 = vunpack.c.l.b16 %v441
    %v1839 = vunpack.c.h.b16 %v441
    %v1840 = vunpack.c.l.b16 %v442
    %v1841 = vunpack.c.h.b16 %v442
    %v1842 = vunpack.c.l.b16 %v443
    %v1843 = vunpack.c.h.b16 %v443
    %v1844 = vunpack.c.l.b16 %v444
    %v1845 = vunpack.c.h.b16 %v444
    %v1846 = vunpack.c.l.b16 %v445
    %v1847 = vunpack.c.h.b16 %v445
    %v1848 = vunpack.c.l.b16 %v446
    %v1849 = vunpack.c.h.b16 %v446
    %v1850 = vunpack.c.l.b16 %v447
    %v1851 = vunpack.c.h.b16 %v447
    %v1852 = vunpack.c.l.b16 %v448
    %v1853 = vunpack.c.h.b16 %v448
    %v1854 = vunpack.c.l.b16 %v449
    %v1855 = vunpack.c.h.b16 %v449
    %v1856 = vunpack.c.l.b16 %v450
    %v1857 = vunpack.c.h.b16 %v450
    %v1858 = vunpack.c.l.b16 %v451
    %v1859 = vunpack.c.h.b16 %v451
    %v1860 = vunpack.c.l.b16 %v452
    %v1861 = vunpack.c.h.b16 %v452
    %v1862 = vunpack.c.l.b16 %v453
    %v1863 = vunpack.c.h.b16 %v453
    %v1864 = vunpack.c.l.b16 %v454
    %v1865 = vunpack.c.h.b16 %v454
    %v1866 = vunpack.c.l.b16 %v455
    %v1867 = vunpack.c.h.b16 %v455
    %v1868 = vunpack.c.l.b16 %v456
    %v1869 = vunpack.c.h.b16 %v456
    %v1870 = vunpack.c.l.b16 %v457
    %v1871 = vunpack.c.h.b16 %v457
    %v1872 = vunpack.c.l.b16 %v458
    %v1873 = vunpack.c.h.b16 %v458
    %v1874 = vunpack.c.l.b16 %v459
    %v1875 = vunpack.c.h.b16 %v459
    %v1876 = vunpack.c.l.b16 %v460
    %v1877 = vunpack.c.h.b16 %v460
    %v1878 = vunpack.c.l.b16 %v461
    %v1879 = vunpack.c.h.b16 %v461
    %v1880 = vunpack.c.l.b16 %v462
    %v1881 = vunpack.c.h.b16 %v462
    %v1882 = vunpack.c.l.b16 %v463
    %v1883 = vunpack.c.h.b16 %v463
    %v1884 = vunpack.c.l.b16 %v464
    %v1885 = vunpack.c.h.b16 %v464
    %v1886 = vunpack.c.l.b16 %v465
    %v1887 = vunpack.c.h.b16 %v465
    %v1888 = vunpack.c.l.b16 %v466
    %v1889 = vunpack.c.h.b16 %v466
    %v1890 = vunpack.c.l.b16 %v467
    %v1891 = vunpack.c.h.b16 %v467
    %v1892 = vunpack.c.l.b16 %v468
    %v1893 = vunpack.c.h.b16 %v468
    %v1894 = vunpack.c.l.b16 %v469
    %v1895 = vunpack.c.h.b16 %v469
    %v1896 = vunpack.c.l.b16 %v470
    %v1897 = vunpack.c.h.b16 %v470
    %v1898 = vunpack.c.l.b16 %v471
    %v1899 = vunpack.c.h.b16 %v471
    %v1900 = vunpack.c.l.b16 %v472
    %v1901 = vunpack.c.h.b16 %v472
    %v1902 = vunpack.c.l.b16 %v473
    %v1903 = vunpack.c.h.b16 %v473
    %v1904 = vunpack.c.l.b16 %v474
    %v1905 = vunpack.c.h.b16 %v474
    %v1906 = vunpack.c.l.b16 %v475
    %v1907 = vunpack.c.h.b16 %v475
    %v1908 = vunpack.c.l.b16 %v476
    %v1909 = vunpack.c.h.b16 %v476
    %v1910 = vunpack.c.l.b16 %v477
    %v1911 = vunpack.c.h.b16 %v477
    %v1912 = vunpack.c.l.b16 %v478
    %v1913 = vunpack.c.h.b16 %v478
    %v1914 = vunpack.c.l.b16 %v479
    %v1915 = vunpack.c.h.b16 %v479
    %v1916 = vunpack.c.l.b16 %v480
    %v1917 = vunpack.c.h.b16 %v480
    %v1918 = vunpack.c.l.b16 %v481
    %v1919 = vunpack.c.h.b16 %v481
    %v1920 = vunpack.c.l.b16 %v482
    %v1921 = vunpack.c.h.b16 %v482
    %v1922 = vunpack.c.l.b16 %v483
    %v1923 = vunpack.c.h.b16 %v483
    %v1924 = vunpack.c.l.b16 %v484
    %v1925 = vunpack.c.h.b16 %v484
    %v1926 = vunpack.c.l.b16 %v485
    %v1927 = vunpack.c.h.b16 %v485
    %v1928 = vunpack.c.l.b16 %v486
    %v1929 = vunpack.c.h.b16 %v486
    %v1930 = vunpack.c.l.b16 %v487
    %v1931 = vunpack.c.h.b16 %v487
    %v1932 = vunpack.c.l.b16 %v488
    %v1933 = vunpack.c.h.b16 %v488
    %v1934 = vunpack.c.l.b16 %v489
    %v1935 = vunpack.c.h.b16 %v489
    %v1936 = vunpack.c.l.b16 %v490
    %v1937 = vunpack.c.h.b16 %v490
    %v1938 = vunpack.c.l.b16 %v491
    %v1939 = vunpack.c.h.b16 %v491
    %v1940 = vunpack.c.l.b16 %v492
    %v1941 = vunpack.c.h.b16 %v492
    %v1942 = vunpack.c.l.b16 %v493
    %v1943 = vunpack.c.h.b16 %v493
    %v1944 = vunpack.c.l.b16 %v494
    %v1945 = vunpack.c.h.b16 %v494
    %v1946 = vunpack.c.l.b16 %v495
    %v1947 = vunpack.c.h.b16 %v495
    %v1948 = vunpack.c.l.b16 %v496
    %v1949 = vunpack.c.h.b16 %v496
    %v1950 = vunpack.c.l.b16 %v497
    %v1951 = vunpack.c.h.b16 %v497
    %v1952 = vunpack.c.l.b16 %v498
    %v1953 = vunpack.c.h.b16 %v498
    %v1954 = vunpack.c.l.b16 %v499
    %v1955 = vunpack.c.h.b16 %v499
    %v1956 = vunpack.c.l.b16 %v500
    %v1957 = vunpack.c.h.b16 %v500
    %v1958 = vunpack.c.l.b16 %v501
    %v1959 = vunpack.c.h.b16 %v501
    %v1960 = vunpack.c.l.b16 %v502
    %v1961 = vunpack.c.h.b16 %v502
    %v1962 = vunpack.c.l.b16 %v503
    %v1963 = vunpack.c.h.b16 %v503
    %v1964 = vunpack.c.l.b16 %v504
    %v1965 = vunpack.c.h.b16 %v504
    %v1966 = vunpack.c.l.b16 %v505
    %v1967 = vunpack.c.h.b16 %v505
    %v1968 = vunpack.c.l.b16 %v506
    %v1969 = vunpack.c.h.b16 %v506
    %v1970 = vunpack.c.l.b16 %v507
    %v1971 = vunpack.c.h.b16 %v507
    %v1972 = vunpack.c.l.b16 %v508
    %v1973 = vunpack.c.h.b16 %v508
    %v1974 = vunpack.c.l.b16 %v509
    %v1975 = vunpack.c.h.b16 %v509
    %v1976 = vunpack.c.l.b16 %v510
    %v1977 = vunpack.c.h.b16 %v510
    %v1978 = vunpack.c.l.b16 %v511
    %v1979 = vunpack.c.h.b16 %v511
    %v1980 = vunpack.c.l.b16 %v512
    %v1981 = vunpack.c.h.b16 %v512
    %v1982 = vunpack.c.l.b16 %v513
    %v1983 = vunpack.c.h.b16 %v513
    %v1984 = vunpack.c.l.b16 %v514
    %v1985 = vunpack.c.h.b16 %v514
    %v1986 = vunpack.c.l.b16 %v515
    %v1987 = vunpack.c.h.b16 %v515
    %v1988 = vunpack.c.l.b16 %v516
    %v1989 = vunpack.c.h.b16 %v516
    %v1990 = vunpack.c.l.b16 %v517
    %v1991 = vunpack.c.h.b16 %v517
    %v1992 = vunpack.c.l.b16 %v518
    %v1993 = vunpack.c.h.b16 %v518
    %v1994 = vunpack.c.l.b16 %v519
    %v1995 = vunpack.c.h.b16 %v519
    %v1996 = vunpack.c.l.b16 %v520
    %v1997 = vunpack.c.h.b16 %v520
    %v1998 = vunpack.c.l.b16 %v521
    %v1999 = vunpack.c.h.b16 %v521
    %v2000 = vunpack.c.l.b16 %v522
    %v2001 = vunpack.c.h.b16 %v522
    %v2002 = vunpack.c.l.b16 %v523
    %v2003 = vunpack.c.h.b16 %v523
    %v2004 = vunpack.c.l.b16 %v524
    %v2005 = vunpack.c.h.b16 %v524
    %v2006 = vunpack.c.l.b16 %v525
    %v2007 = vunpack.c.h.b16 %v525
    %v2008 = vunpack.c.l.b16 %v526
    %v2009 = vunpack.c.h.b16 %v526
    %v2010 = vunpack.c.l.b16 %v527
    %v2011 = vunpack.c.h.b16 %v527
    %v2012 = vunpack.c.l.b16 %v528
    %v2013 = vunpack.c.h.b16 %v528
    %v2014 = vunpack.c.l.b16 %v529
    %v2015 = vunpack.c.h.b16 %v529
    %v2016 = vunpack.c.l.b16 %v530
    %v2017 = vunpack.c.h.b16 %v530
    %v2018 = vunpack.c.l.b16 %v531
    %v2019 = vunpack.c.h.b16 %v531
    %v2020 = vunpack.c.l.b16 %v532
    %v2021 = vunpack.c.h.b16 %v532
    %v2022 = vunpack.c.l.b16 %v533
    %v2023 = vunpack.c.h.b16 %v533
    %v2024 = vunpack.c.l.b16 %v534
    %v2025 = vunpack.c.h.b16 %v534
    %v2026 = vunpack.c.l.b16 %v535
    %v2027 = vunpack.c.h.b16 %v535
    %v2028 = vunpack.c.l.b16 %v536
    %v2029 = vunpack.c.h.b16 %v536
    %v2030 = vunpack.c.l.b16 %v537
    %v2031 = vunpack.c.h.b16 %v537
    %v2032 = vunpack.c.l.b16 %v538
    %v2033 = vunpack.c.h.b16 %v538
    %v2034 = vunpack.c.l.b16 %v539
    %v2035 = vunpack.c.h.b16 %v539
    %v2036 = vunpack.c.l.b16 %v540
    %v2037 = vunpack.c.h.b16 %v540
    %v2038 = vunpack.c.l.b16 %v541
    %v2039 = vunpack.c.h.b16 %v541
    %v2040 = vunpack.c.l.b16 %v542
    %v2041 = vunpack.c.h.b16 %v542
    %v2042 = vunpack.c.l.b16 %v543
    %v2043 = vunpack.c.h.b16 %v543
    %v2044 = vunpack.c.l.b16 %v544
    %v2045 = vunpack.c.h.b16 %v544
    %v2046 = vunpack.c.l.b16 %v545
    %v2047 = vunpack.c.h.b16 %v545
    %v2048 = vunpack.c.l.b16 %v546
    %v2049 = vunpack.c.h.b16 %v546
    %v2050 = vunpack.c.l.b16 %v547
    %v2051 = vunpack.c.h.b16 %v547
    %v2052 = vunpack.c.l.b16 %v548
    %v2053 = vunpack.c.h.b16 %v548
    %v2054 = vunpack.c.l.b16 %v549
    %v2055 = vunpack.c.h.b16 %v549
    %v2056 = vunpack.c.l.b16 %v550
    %v2057 = vunpack.c.h.b16 %v550
    %v2058 = vunpack.c.l.b16 %v551
    %v2059 = vunpack.c.h.b16 %v551
    %v2060 = vunpack.c.l.b16 %v552
    %v2061 = vunpack.c.h.b16 %v552
    %v2062 = vunpack.c.l.b16 %v553
    %v2063 = vunpack.c.h.b16 %v553
    %v2064 = vunpack.c.l.b16 %v554
    %v2065 = vunpack.c.h.b16 %v554
    %v2066 = vunpack.c.l.b16 %v555
    %v2067 = vunpack.c.h.b16 %v555
    %v2068 = vunpack.c.l.b16 %v556
    %v2069 = vunpack.c.h.b16 %v556
    %v2070 = vunpack.c.l.b16 %v557
    %v2071 = vunpack.c.h.b16 %v557
    %v2072 = vunpack.c.l.b16 %v558
    %v2073 = vunpack.c.h.b16 %v558
    %v2074 = vunpack.c.l.b16 %v559
    %v2075 = vunpack.c.h.b16 %v559
    %v2076 = vunpack.c.l.b16 %v560
    %v2077 = vunpack.c.h.b16 %v560
    %v2078 = vunpack.c.l.b16 %v561
    %v2079 = vunpack.c.h.b16 %v561
    %v2080 = vunpack.c.l.b16 %v562
    %v2081 = vunpack.c.h.b16 %v562
    %v2082 = vunpack.c.l.b16 %v563
    %v2083 = vunpack.c.h.b16 %v563
    %v2084 = vunpack.c.l.b16 %v564
    %v2085 = vunpack.c.h.b16 %v564
    %v2086 = vunpack.c.l.b16 %v565
    %v2087 = vunpack.c.h.b16 %v565
    %v2088 = vunpack.c.l.b16 %v566
    %v2089 = vunpack.c.h.b16 %v566
    %v2090 = vunpack.c.l.b16 %v567
    %v2091 = vunpack.c.h.b16 %v567
    %v2092 = vunpack.c.l.b16 %v568
    %v2093 = vunpack.c.h.b16 %v568
    %v2094 = vunpack.c.l.b16 %v569
    %v2095 = vunpack.c.h.b16 %v569
    %v2096 = vunpack.c.l.b16 %v570
    %v2097 = vunpack.c.h.b16 %v570
    %v2098 = vunpack.c.l.b16 %v571
    %v2099 = vunpack.c.h.b16 %v571
    %v2100 = vunpack.c.l.b16 %v572
    %v2101 = vunpack.c.h.b16 %v572
    %v2102 = vunpack.c.l.b16 %v573
    %v2103 = vunpack.c.h.b16 %v573
    %v2104 = vunpack.c.l.b16 %v574
    %v2105 = vunpack.c.h.b16 %v574
    %v2106 = vunpack.c.l.b16 %v575
    %v2107 = vunpack.c.h.b16 %v575
    %v2108 = vunpack.c.l.b16 %v576
    %v2109 = vunpack.c.h.b16 %v576
    %v2110 = vunpack.c.l.b16 %v577
    %v2111 = vunpack.c.h.b16 %v577
    %v2112 = vunpack.c.l.b16 %v578
    %v2113 = vunpack.c.h.b16 %v578
    %v2114 = vunpack.c.l.b16 %v579
    %v2115 = vunpack.c.h.b16 %v579
    %v2116 = vpack.c.b16 %v1108, %v1092
    %v2117 = vpack.c.b16 %v1109, %v1093
    %v2118 = vpack.c.b16 %v1110, %v1094
    %v2119 = vpack.c.b16 %v1111, %v1095
    %v2120 = vpack.c.b16 %v1112, %v1096
    %v2121 = vpack.c.b16 %v1113, %v1097
    %v2122 = vpack.c.b16 %v1114, %v1098
    %v2123 = vpack.c.b16 %v1115, %v1099
    %v2124 = vpack.c.b16 %v1116, %v1100
    %v2125 = vpack.c.b16 %v1117, %v1101
    %v2126 = vpack.c.b16 %v1118, %v1102
    %v2127 = vpack.c.b16 %v1119, %v1103
    %v2128 = vpack.c.b16 %v1120, %v1104
    %v2129 = vpack.c.b16 %v1121, %v1105
    %v2130 = vpack.c.b16 %v1122, %v1106
    %v2131 = vpack.c.b16 %v1123, %v1107
    %v2132 = vpack.c.b16 %v1140, %v1124
    %v2133 = vpack.c.b16 %v1141, %v1125
    %v2134 = vpack.c.b16 %v1142, %v1126
    %v2135 = vpack.c.b16 %v1143, %v1127
    %v2136 = vpack.c.b16 %v1144, %v1128
    %v2137 = vpack.c.b16 %v1145, %v1129
    %v2138 = vpack.c.b16 %v1146, %v1130
    %v2139 = vpack.c.b16 %v1147, %v1131
    %v2140 = vpack.c.b16 %v1148, %v1132
    %v2141 = vpack.c.b16 %v1149, %v1133
    %v2142 = vpack.c.b16 %v1150, %v1134
    %v2143 = vpack.c.b16 %v1151, %v1135
    %v2144 = vpack.c.b16 %v1152, %v1136
    %v2145 = vpack.c.b16 %v1153, %v1137
    %v2146 = vpack.c.b16 %v1154, %v1138
    %v2147 = vpack.c.b16 %v1155, %v1139
    %v2148 = vpack.c.b16 %v1172, %v1156
    %v2149 = vpack.c.b16 %v1173, %v1157
    %v2150 = vpack.c.b16 %v1174, %v1158
    %v2151 = vpack.c.b16 %v1175, %v1159
    %v2152 = vpack.c.b16 %v1176, %v1160
    %v2153 = vpack.c.b16 %v1177, %v1161
    %v2154 = vpack.c.b16 %v1178, %v1162
    %v2155 = vpack.c.b16 %v1179, %v1163
    %v2156 = vpack.c.b16 %v1180, %v1164
    %v2157 = vpack.c.b16 %v1181, %v1165
    %v2158 = vpack.c.b16 %v1182, %v1166
    %v2159 = vpack.c.b16 %v1183, %v1167
    %v2160 = vpack.c.b16 %v1184, %v1168
    %v2161 = vpack.c.b16 %v1185, %v1169
    %v2162 = vpack.c.b16 %v1186, %v1170
    %v2163 = vpack.c.b16 %v1187, %v1171
    %v2164 = vpack.c.b16 %v1204, %v1188
    %v2165 = vpack.c.b16 %v1205, %v1189
    %v2166 = vpack.c.b16 %v1206, %v1190
    %v2167 = vpack.c.b16 %v1207, %v1191
    %v2168 = vpack.c.b16 %v1208, %v1192
    %v2169 = vpack.c.b16 %v1209, %v1193
    %v2170 = vpack.c.b16 %v1210, %v1194
    %v2171 = vpack.c.b16 %v1211, %v1195
    %v2172 = vpack.c.b16 %v1212, %v1196
    %v2173 = vpack.c.b16 %v1213, %v1197
    %v2174 = vpack.c.b16 %v1214, %v1198
    %v2175 = vpack.c.b16 %v1215, %v1199
    %v2176 = vpack.c.b16 %v1216, %v1200
    %v2177 = vpack.c.b16 %v1217, %v1201
    %v2178 = vpack.c.b16 %v1218, %v1202
    %v2179 = vpack.c.b16 %v1219, %v1203
    %v2180 = vpack.c.b16 %v1236, %v1220
    %v2181 = vpack.c.b16 %v1237, %v1221
    %v2182 = vpack.c.b16 %v1238, %v1222
    %v2183 = vpack.c.b16 %v1239, %v1223
    %v2184 = vpack.c.b16 %v1240, %v1224
    %v2185 = vpack.c.b16 %v1241, %v1225
    %v2186 = vpack.c.b16 %v1242, %v1226
    %v2187 = vpack.c.b16 %v1243, %v1227
    %v2188 = vpack.c.b16 %v1244, %v1228
    %v2189 = vpack.c.b16 %v1245, %v1229
    %v2190 = vpack.c.b16 %v1246, %v1230
    %v2191 = vpack.c.b16 %v1247, %v1231
    %v2192 = vpack.c.b16 %v1248, %v1232
    %v2193 = vpack.c.b16 %v1249, %v1233
    %v2194 = vpack.c.b16 %v1250, %v1234
    %v2195 = vpack.c.b16 %v1251, %v1235
    %v2196 = vpack.c.b16 %v1268, %v1252
    %v2197 = vpack.c.b16 %v1269, %v1253
    %v2198 = vpack.c.b16 %v1270, %v1254
    %v2199 = vpack.c.b16 %v1271, %v1255
    %v2200 = vpack.c.b16 %v1272, %v1256
    %v2201 = vpack.c.b16 %v1273, %v1257
    %v2202 = vpack.c.b16 %v1274, %v1258
    %v2203 = vpack.c.b16 %v1275, %v1259
    %v2204 = vpack.c.b16 %v1276, %v1260
    %v2205 = vpack.c.b16 %v1277, %v1261
    %v2206 = vpack.c.b16 %v1278, %v1262
    %v2207 = vpack.c.b16 %v1279, %v1263
    %v2208 = vpack.c.b16 %v1280, %v1264
    %v2209 = vpack.c.b16 %v1281, %v1265
    %v2210 = vpack.c.b16 %v1282, %v1266
    %v2211 = vpack.c.b16 %v1283, %v1267
    %v2212 = vpack.c.b16 %v1300, %v1284
    %v2213 = vpack.c.b16 %v1301, %v1285
    %v2214 = vpack.c.b16 %v1302, %v1286
    %v2215 = vpack.c.b16 %v1303, %v1287
    %v2216 = vpack.c.b16 %v1304, %v1288
    %v2217 = vpack.c.b16 %v1305, %v1289
    %v2218 = vpack.c.b16 %v1306, %v1290
    %v2219 = vpack.c.b16 %v1307, %v1291
    %v2220 = vpack.c.b16 %v1308, %v1292
    %v2221 = vpack.c.b16 %v1309, %v1293
    %v2222 = vpack.c.b16 %v1310, %v1294
    %v2223 = vpack.c.b16 %v1311, %v1295
    %v2224 = vpack.c.b16 %v1312, %v1296
    %v2225 = vpack.c.b16 %v1313, %v1297
    %v2226 = vpack.c.b16 %v1314, %v1298
    %v2227 = vpack.c.b16 %v1315, %v1299
    %v2228 = vpack.c.b16 %v1332, %v1316
    %v2229 = vpack.c.b16 %v1333, %v1317
    %v2230 = vpack.c.b16 %v1334, %v1318
    %v2231 = vpack.c.b16 %v1335, %v1319
    %v2232 = vpack.c.b16 %v1336, %v1320
    %v2233 = vpack.c.b16 %v1337, %v1321
    %v2234 = vpack.c.b16 %v1338, %v1322
    %v2235 = vpack.c.b16 %v1339, %v1323
    %v2236 = vpack.c.b16 %v1340, %v1324
    %v2237 = vpack.c.b16 %v1341, %v1325
    %v2238 = vpack.c.b16 %v1342, %v1326
    %v2239 = vpack.c.b16 %v1343, %v1327
    %v2240 = vpack.c.b16 %v1344, %v1328
    %v2241 = vpack.c.b16 %v1345, %v1329
    %v2242 = vpack.c.b16 %v1346, %v1330
    %v2243 = vpack.c.b16 %v1347, %v1331
    %v2244 = vpack.c.b16 %v1364, %v1348
    %v2245 = vpack.c.b16 %v1365, %v1349
    %v2246 = vpack.c.b16 %v1366, %v1350
    %v2247 = vpack.c.b16 %v1367, %v1351
    %v2248 = vpack.c.b16 %v1368, %v1352
    %v2249 = vpack.c.b16 %v1369, %v1353
    %v2250 = vpack.c.b16 %v1370, %v1354
    %v2251 = vpack.c.b16 %v1371, %v1355
    %v2252 = vpack.c.b16 %v1372, %v1356
    %v2253 = vpack.c.b16 %v1373, %v1357
    %v2254 = vpack.c.b16 %v1374, %v1358
    %v2255 = vpack.c.b16 %v1375, %v1359
    %v2256 = vpack.c.b16 %v1376, %v1360
    %v2257 = vpack.c.b16 %v1377, %v1361
    %v2258 = vpack.c.b16 %v1378, %v1362
    %v2259 = vpack.c.b16 %v1379, %v1363
    %v2260 = vpack.c.b16 %v1396, %v1380
    %v2261 = vpack.c.b16 %v1397, %v1381
    %v2262 = vpack.c.b16 %v1398, %v1382
    %v2263 = vpack.c.b16 %v1399, %v1383
    %v2264 = vpack.c.b16 %v1400, %v1384
    %v2265 = vpack.c.b16 %v1401, %v1385
    %v2266 = vpack.c.b16 %v1402, %v1386
    %v2267 = vpack.c.b16 %v1403, %v1387
    %v2268 = vpack.c.b16 %v1404, %v1388
    %v2269 = vpack.c.b16 %v1405, %v1389
    %v2270 = vpack.c.b16 %v1406, %v1390
    %v2271 = vpack.c.b16 %v1407, %v1391
    %v2272 = vpack.c.b16 %v1408, %v1392
    %v2273 = vpack.c.b16 %v1409, %v1393
    %v2274 = vpack.c.b16 %v1410, %v1394
    %v2275 = vpack.c.b16 %v1411, %v1395
    %v2276 = vpack.c.b16 %v1428, %v1412
    %v2277 = vpack.c.b16 %v1429, %v1413
    %v2278 = vpack.c.b16 %v1430, %v1414
    %v2279 = vpack.c.b16 %v1431, %v1415
    %v2280 = vpack.c.b16 %v1432, %v1416
    %v2281 = vpack.c.b16 %v1433, %v1417
    %v2282 = vpack.c.b16 %v1434, %v1418
    %v2283 = vpack.c.b16 %v1435, %v1419
    %v2284 = vpack.c.b16 %v1436, %v1420
    %v2285 = vpack.c.b16 %v1437, %v1421
    %v2286 = vpack.c.b16 %v1438, %v1422
    %v2287 = vpack.c.b16 %v1439, %v1423
    %v2288 = vpack.c.b16 %v1440, %v1424
    %v2289 = vpack.c.b16 %v1441, %v1425
    %v2290 = vpack.c.b16 %v1442, %v1426
    %v2291 = vpack.c.b16 %v1443, %v1427
    %v2292 = vpack.c.b16 %v1460, %v1444
    %v2293 = vpack.c.b16 %v1461, %v1445
    %v2294 = vpack.c.b16 %v1462, %v1446
    %v2295 = vpack.c.b16 %v1463, %v1447
    %v2296 = vpack.c.b16 %v1464, %v1448
    %v2297 = vpack.c.b16 %v1465, %v1449
    %v2298 = vpack.c.b16 %v1466, %v1450
    %v2299 = vpack.c.b16 %v1467, %v1451
    %v2300 = vpack.c.b16 %v1468, %v1452
    %v2301 = vpack.c.b16 %v1469, %v1453
    %v2302 = vpack.c.b16 %v1470, %v1454
    %v2303 = vpack.c.b16 %v1471, %v1455
    %v2304 = vpack.c.b16 %v1472, %v1456
    %v2305 = vpack.c.b16 %v1473, %v1457
    %v2306 = vpack.c.b16 %v1474, %v1458
    %v2307 = vpack.c.b16 %v1475, %v1459
    %v2308 = vpack.c.b16 %v1492, %v1476
    %v2309 = vpack.c.b16 %v1493, %v1477
    %v2310 = vpack.c.b16 %v1494, %v1478
    %v2311 = vpack.c.b16 %v1495, %v1479
    %v2312 = vpack.c.b16 %v1496, %v1480
    %v2313 = vpack.c.b16 %v1497, %v1481
    %v2314 = vpack.c.b16 %v1498, %v1482
    %v2315 = vpack.c.b16 %v1499, %v1483
    %v2316 = vpack.c.b16 %v1500, %v1484
    %v2317 = vpack.c.b16 %v1501, %v1485
    %v2318 = vpack.c.b16 %v1502, %v1486
    %v2319 = vpack.c.b16 %v1503, %v1487
    %v2320 = vpack.c.b16 %v1504, %v1488
    %v2321 = vpack.c.b16 %v1505, %v1489
    %v2322 = vpack.c.b16 %v1506, %v1490
    %v2323 = vpack.c.b16 %v1507, %v1491
    %v2324 = vpack.c.b16 %v1524, %v1508
    %v2325 = vpack.c.b16 %v1525, %v1509
    %v2326 = vpack.c.b16 %v1526, %v1510
    %v2327 = vpack.c.b16 %v1527, %v1511
    %v2328 = vpack.c.b16 %v1528, %v1512
    %v2329 = vpack.c.b16 %v1529, %v1513
    %v2330 = vpack.c.b16 %v1530, %v1514
    %v2331 = vpack.c.b16 %v1531, %v1515
    %v2332 = vpack.c.b16 %v1532, %v1516
    %v2333 = vpack.c.b16 %v1533, %v1517
    %v2334 = vpack.c.b16 %v1534, %v1518
    %v2335 = vpack.c.b16 %v1535, %v1519
    %v2336 = vpack.c.b16 %v1536, %v1520
    %v2337 = vpack.c.b16 %v1537, %v1521
    %v2338 = vpack.c.b16 %v1538, %v1522
    %v2339 = vpack.c.b16 %v1539, %v1523
    %v2340 = vpack.c.b16 %v1556, %v1540
    %v2341 = vpack.c.b16 %v1557, %v1541
    %v2342 = vpack.c.b16 %v1558, %v1542
    %v2343 = vpack.c.b16 %v1559, %v1543
    %v2344 = vpack.c.b16 %v1560, %v1544
    %v2345 = vpack.c.b16 %v1561, %v1545
    %v2346 = vpack.c.b16 %v1562, %v1546
    %v2347 = vpack.c.b16 %v1563, %v1547
    %v2348 = vpack.c.b16 %v1564, %v1548
    %v2349 = vpack.c.b16 %v1565, %v1549
    %v2350 = vpack.c.b16 %v1566, %v1550
    %v2351 = vpack.c.b16 %v1567, %v1551
    %v2352 = vpack.c.b16 %v1568, %v1552
    %v2353 = vpack.c.b16 %v1569, %v1553
    %v2354 = vpack.c.b16 %v1570, %v1554
    %v2355 = vpack.c.b16 %v1571, %v1555
    %v2356 = vpack.c.b16 %v1588, %v1572
    %v2357 = vpack.c.b16 %v1589, %v1573
    %v2358 = vpack.c.b16 %v1590, %v1574
    %v2359 = vpack.c.b16 %v1591, %v1575
    %v2360 = vpack.c.b16 %v1592, %v1576
    %v2361 = vpack.c.b16 %v1593, %v1577
    %v2362 = vpack.c.b16 %v1594, %v1578
    %v2363 = vpack.c.b16 %v1595, %v1579
    %v2364 = vpack.c.b16 %v1596, %v1580
    %v2365 = vpack.c.b16 %v1597, %v1581
    %v2366 = vpack.c.b16 %v1598, %v1582
    %v2367 = vpack.c.b16 %v1599, %v1583
    %v2368 = vpack.c.b16 %v1600, %v1584
    %v2369 = vpack.c.b16 %v1601, %v1585
    %v2370 = vpack.c.b16 %v1602, %v1586
    %v2371 = vpack.c.b16 %v1603, %v1587
    %v2372 = vpack.c.b16 %v1620, %v1604
    %v2373 = vpack.c.b16 %v1621, %v1605
    %v2374 = vpack.c.b16 %v1622, %v1606
    %v2375 = vpack.c.b16 %v1623, %v1607
    %v2376 = vpack.c.b16 %v1624, %v1608
    %v2377 = vpack.c.b16 %v1625, %v1609
    %v2378 = vpack.c.b16 %v1626, %v1610
    %v2379 = vpack.c.b16 %v1627, %v1611
    %v2380 = vpack.c.b16 %v1628, %v1612
    %v2381 = vpack.c.b16 %v1629, %v1613
    %v2382 = vpack.c.b16 %v1630, %v1614
    %v2383 = vpack.c.b16 %v1631, %v1615
    %v2384 = vpack.c.b16 %v1632, %v1616
    %v2385 = vpack.c.b16 %v1633, %v1617
    %v2386 = vpack.c.b16 %v1634, %v1618
    %v2387 = vpack.c.b16 %v1635, %v1619
    %v2388 = vpack.c.b16 %v1652, %v1636
    %v2389 = vpack.c.b16 %v1653, %v1637
    %v2390 = vpack.c.b16 %v1654, %v1638
    %v2391 = vpack.c.b16 %v1655, %v1639
    %v2392 = vpack.c.b16 %v1656, %v1640
    %v2393 = vpack.c.b16 %v1657, %v1641
    %v2394 = vpack.c.b16 %v1658, %v1642
    %v2395 = vpack.c.b16 %v1659, %v1643
    %v2396 = vpack.c.b16 %v1660, %v1644
    %v2397 = vpack.c.b16 %v1661, %v1645
    %v2398 = vpack.c.b16 %v1662, %v1646
    %v2399 = vpack.c.b16 %v1663, %v1647
    %v2400 = vpack.c.b16 %v1664, %v1648
    %v2401 = vpack.c.b16 %v1665, %v1649
    %v2402 = vpack.c.b16 %v1666, %v1650
    %v2403 = vpack.c.b16 %v1667, %v1651
    %v2404 = vpack.c.b16 %v1684, %v1668
    %v2405 = vpack.c.b16 %v1685, %v1669
    %v2406 = vpack.c.b16 %v1686, %v1670
    %v2407 = vpack.c.b16 %v1687, %v1671
    %v2408 = vpack.c.b16 %v1688, %v1672
    %v2409 = vpack.c.b16 %v1689, %v1673
    %v2410 = vpack.c.b16 %v1690, %v1674
    %v2411 = vpack.c.b16 %v1691, %v1675
    %v2412 = vpack.c.b16 %v1692, %v1676
    %v2413 = vpack.c.b16 %v1693, %v1677
    %v2414 = vpack.c.b16 %v1694, %v1678
    %v2415 = vpack.c.b16 %v1695, %v1679
    %v2416 = vpack.c.b16 %v1696, %v1680
    %v2417 = vpack.c.b16 %v1697, %v1681
    %v2418 = vpack.c.b16 %v1698, %v1682
    %v2419 = vpack.c.b16 %v1699, %v1683
    %v2420 = vpack.c.b16 %v1716, %v1700
    %v2421 = vpack.c.b16 %v1717, %v1701
    %v2422 = vpack.c.b16 %v1718, %v1702
    %v2423 = vpack.c.b16 %v1719, %v1703
    %v2424 = vpack.c.b16 %v1720, %v1704
    %v2425 = vpack.c.b16 %v1721, %v1705
    %v2426 = vpack.c.b16 %v1722, %v1706
    %v2427 = vpack.c.b16 %v1723, %v1707
    %v2428 = vpack.c.b16 %v1724, %v1708
    %v2429 = vpack.c.b16 %v1725, %v1709
    %v2430 = vpack.c.b16 %v1726, %v1710
    %v2431 = vpack.c.b16 %v1727, %v1711
    %v2432 = vpack.c.b16 %v1728, %v1712
    %v2433 = vpack.c.b16 %v1729, %v1713
    %v2434 = vpack.c.b16 %v1730, %v1714
    %v2435 = vpack.c.b16 %v1731, %v1715
    %v2436 = vpack.c.b16 %v1748, %v1732
    %v2437 = vpack.c.b16 %v1749, %v1733
    %v2438 = vpack.c.b16 %v1750, %v1734
    %v2439 = vpack.c.b16 %v1751, %v1735
    %v2440 = vpack.c.b16 %v1752, %v1736
    %v2441 = vpack.c.b16 %v1753, %v1737
    %v2442 = vpack.c.b16 %v1754, %v1738
    %v2443 = vpack.c.b16 %v1755, %v1739
    %v2444 = vpack.c.b16 %v1756, %v1740
    %v2445 = vpack.c.b16 %v1757, %v1741
    %v2446 = vpack.c.b16 %v1758, %v1742
    %v2447 = vpack.c.b16 %v1759, %v1743
    %v2448 = vpack.c.b16 %v1760, %v1744
    %v2449 = vpack.c.b16 %v1761, %v1745
    %v2450 = vpack.c.b16 %v1762, %v1746
    %v2451 = vpack.c.b16 %v1763, %v1747
    %v2452 = vpack.c.b16 %v1780, %v1764
    %v2453 = vpack.c.b16 %v1781, %v1765
    %v2454 = vpack.c.b16 %v1782, %v1766
    %v2455 = vpack.c.b16 %v1783, %v1767
    %v2456 = vpack.c.b16 %v1784, %v1768
    %v2457 = vpack.c.b16 %v1785, %v1769
    %v2458 = vpack.c.b16 %v1786, %v1770
    %v2459 = vpack.c.b16 %v1787, %v1771
    %v2460 = vpack.c.b16 %v1788, %v1772
    %v2461 = vpack.c.b16 %v1789, %v1773
    %v2462 = vpack.c.b16 %v1790, %v1774
    %v2463 = vpack.c.b16 %v1791, %v1775
    %v2464 = vpack.c.b16 %v1792, %v1776
    %v2465 = vpack.c.b16 %v1793, %v1777
    %v2466 = vpack.c.b16 %v1794, %v1778
    %v2467 = vpack.c.b16 %v1795, %v1779
    %v2468 = vpack.c.b16 %v1812, %v1796
    %v2469 = vpack.c.b16 %v1813, %v1797
    %v2470 = vpack.c.b16 %v1814, %v1798
    %v2471 = vpack.c.b16 %v1815, %v1799
    %v2472 = vpack.c.b16 %v1816, %v1800
    %v2473 = vpack.c.b16 %v1817, %v1801
    %v2474 = vpack.c.b16 %v1818, %v1802
    %v2475 = vpack.c.b16 %v1819, %v1803
    %v2476 = vpack.c.b16 %v1820, %v1804
    %v2477 = vpack.c.b16 %v1821, %v1805
    %v2478 = vpack.c.b16 %v1822, %v1806
    %v2479 = vpack.c.b16 %v1823, %v1807
    %v2480 = vpack.c.b16 %v1824, %v1808
    %v2481 = vpack.c.b16 %v1825, %v1809
    %v2482 = vpack.c.b16 %v1826, %v1810
    %v2483 = vpack.c.b16 %v1827, %v1811
    %v2484 = vpack.c.b16 %v1844, %v1828
    %v2485 = vpack.c.b16 %v1845, %v1829
    %v2486 = vpack.c.b16 %v1846, %v1830
    %v2487 = vpack.c.b16 %v1847, %v1831
    %v2488 = vpack.c.b16 %v1848, %v1832
    %v2489 = vpack.c.b16 %v1849, %v1833
    %v2490 = vpack.c.b16 %v1850, %v1834
    %v2491 = vpack.c.b16 %v1851, %v1835
    %v2492 = vpack.c.b16 %v1852, %v1836
    %v2493 = vpack.c.b16 %v1853, %v1837
    %v2494 = vpack.c.b16 %v1854, %v1838
    %v2495 = vpack.c.b16 %v1855, %v1839
    %v2496 = vpack.c.b16 %v1856, %v1840
    %v2497 = vpack.c.b16 %v1857, %v1841
    %v2498 = vpack.c.b16 %v1858, %v1842
    %v2499 = vpack.c.b16 %v1859, %v1843
    %v2500 = vpack.c.b16 %v1876, %v1860
    %v2501 = vpack.c.b16 %v1877, %v1861
    %v2502 = vpack.c.b16 %v1878, %v1862
    %v2503 = vpack.c.b16 %v1879, %v1863
    %v2504 = vpack.c.b16 %v1880, %v1864
    %v2505 = vpack.c.b16 %v1881, %v1865
    %v2506 = vpack.c.b16 %v1882, %v1866
    %v2507 = vpack.c.b16 %v1883, %v1867
    %v2508 = vpack.c.b16 %v1884, %v1868
    %v2509 = vpack.c.b16 %v1885, %v1869
    %v2510 = vpack.c.b16 %v1886, %v1870
    %v2511 = vpack.c.b16 %v1887, %v1871
    %v2512 = vpack.c.b16 %v1888, %v1872
    %v2513 = vpack.c.b16 %v1889, %v1873
    %v2514 = vpack.c.b16 %v1890, %v1874
    %v2515 = vpack.c.b16 %v1891, %v1875
    %v2516 = vpack.c.b16 %v1908, %v1892
    %v2517 = vpack.c.b16 %v1909, %v1893
    %v2518 = vpack.c.b16 %v1910, %v1894
    %v2519 = vpack.c.b16 %v1911, %v1895
    %v2520 = vpack.c.b16 %v1912, %v1896
    %v2521 = vpack.c.b16 %v1913, %v1897
    %v2522 = vpack.c.b16 %v1914, %v1898
    %v2523 = vpack.c.b16 %v1915, %v1899
    %v2524 = vpack.c.b16 %v1916, %v1900
    %v2525 = vpack.c.b16 %v1917, %v1901
    %v2526 = vpack.c.b16 %v1918, %v1902
    %v2527 = vpack.c.b16 %v1919, %v1903
    %v2528 = vpack.c.b16 %v1920, %v1904
    %v2529 = vpack.c.b16 %v1921, %v1905
    %v2530 = vpack.c.b16 %v1922, %v1906
    %v2531 = vpack.c.b16 %v1923, %v1907
    %v2532 = vpack.c.b16 %v1940, %v1924
    %v2533 = vpack.c.b16 %v1941, %v1925
    %v2534 = vpack.c.b16 %v1942, %v1926
    %v2535 = vpack.c.b16 %v1943, %v1927
    %v2536 = vpack.c.b16 %v1944, %v1928
    %v2537 = vpack.c.b16 %v1945, %v1929
    %v2538 = vpack.c.b16 %v1946, %v1930
    %v2539 = vpack.c.b16 %v1947, %v1931
    %v2540 = vpack.c.b16 %v1948, %v1932
    %v2541 = vpack.c.b16 %v1949, %v1933
    %v2542 = vpack.c.b16 %v1950, %v1934
    %v2543 = vpack.c.b16 %v1951, %v1935
    %v2544 = vpack.c.b16 %v1952, %v1936
    %v2545 = vpack.c.b16 %v1953, %v1937
    %v2546 = vpack.c.b16 %v1954, %v1938
    %v2547 = vpack.c.b16 %v1955, %v1939
    %v2548 = vpack.c.b16 %v1972, %v1956
    %v2549 = vpack.c.b16 %v1973, %v1957
    %v2550 = vpack.c.b16 %v1974, %v1958
    %v2551 = vpack.c.b16 %v1975, %v1959
    %v2552 = vpack.c.b16 %v1976, %v1960
    %v2553 = vpack.c.b16 %v1977, %v1961
    %v2554 = vpack.c.b16 %v1978, %v1962
    %v2555 = vpack.c.b16 %v1979, %v1963
    %v2556 = vpack.c.b16 %v1980, %v1964
    %v2557 = vpack.c.b16 %v1981, %v1965
    %v2558 = vpack.c.b16 %v1982, %v1966
    %v2559 = vpack.c.b16 %v1983, %v1967
    %v2560 = vpack.c.b16 %v1984, %v1968
    %v2561 = vpack.c.b16 %v1985, %v1969
    %v2562 = vpack.c.b16 %v1986, %v1970
    %v2563 = vpack.c.b16 %v1987, %v1971
    %v2564 = vpack.c.b16 %v2004, %v1988
    %v2565 = vpack.c.b16 %v2005, %v1989
    %v2566 = vpack.c.b16 %v2006, %v1990
    %v2567 = vpack.c.b16 %v2007, %v1991
    %v2568 = vpack.c.b16 %v2008, %v1992
    %v2569 = vpack.c.b16 %v2009, %v1993
    %v2570 = vpack.c.b16 %v2010, %v1994
    %v2571 = vpack.c.b16 %v2011, %v1995
    %v2572 = vpack.c.b16 %v2012, %v1996
    %v2573 = vpack.c.b16 %v2013, %v1997
    %v2574 = vpack.c.b16 %v2014, %v1998
    %v2575 = vpack.c.b16 %v2015, %v1999
    %v2576 = vpack.c.b16 %v2016, %v2000
    %v2577 = vpack.c.b16 %v2017, %v2001
    %v2578 = vpack.c.b16 %v2018, %v2002
    %v2579 = vpack.c.b16 %v2019, %v2003
    %v2580 = vpack.c.b16 %v2036, %v2020
    %v2581 = vpack.c.b16 %v2037, %v2021
    %v2582 = vpack.c.b16 %v2038, %v2022
    %v2583 = vpack.c.b16 %v2039, %v2023
    %v2584 = vpack.c.b16 %v2040, %v2024
    %v2585 = vpack.c.b16 %v2041, %v2025
    %v2586 = vpack.c.b16 %v2042, %v2026
    %v2587 = vpack.c.b16 %v2043, %v2027
    %v2588 = vpack.c.b16 %v2044, %v2028
    %v2589 = vpack.c.b16 %v2045, %v2029
    %v2590 = vpack.c.b16 %v2046, %v2030
    %v2591 = vpack.c.b16 %v2047, %v2031
    %v2592 = vpack.c.b16 %v2048, %v2032
    %v2593 = vpack.c.b16 %v2049, %v2033
    %v2594 = vpack.c.b16 %v2050, %v2034
    %v2595 = vpack.c.b16 %v2051, %v2035
    %v2596 = vpack.c.b16 %v2068, %v2052
    %v2597 = vpack.c.b16 %v2069, %v2053
    %v2598 = vpack.c.b16 %v2070, %v2054
    %v2599 = vpack.c.b16 %v2071, %v2055
    %v2600 = vpack.c.b16 %v2072, %v2056
    %v2601 = vpack.c.b16 %v2073, %v2057
    %v2602 = vpack.c.b16 %v2074, %v2058
    %v2603 = vpack.c.b16 %v2075, %v2059
    %v2604 = vpack.c.b16 %v2076, %v2060
    %v2605 = vpack.c.b16 %v2077, %v2061
    %v2606 = vpack.c.b16 %v2078, %v2062
    %v2607 = vpack.c.b16 %v2079, %v2063
    %v2608 = vpack.c.b16 %v2080, %v2064
    %v2609 = vpack.c.b16 %v2081, %v2065
    %v2610 = vpack.c.b16 %v2082, %v2066
    %v2611 = vpack.c.b16 %v2083, %v2067
    %v2612 = vpack.c.b16 %v2100, %v2084
    %v2613 = vpack.c.b16 %v2101, %v2085
    %v2614 = vpack.c.b16 %v2102, %v2086
    %v2615 = vpack.c.b16 %v2103, %v2087
    %v2616 = vpack.c.b16 %v2104, %v2088
    %v2617 = vpack.c.b16 %v2105, %v2089
    %v2618 = vpack.c.b16 %v2106, %v2090
    %v2619 = vpack.c.b16 %v2107, %v2091
    %v2620 = vpack.c.b16 %v2108, %v2092
    %v2621 = vpack.c.b16 %v2109, %v2093
    %v2622 = vpack.c.b16 %v2110, %v2094
    %v2623 = vpack.c.b16 %v2111, %v2095
    %v2624 = vpack.c.b16 %v2112, %v2096
    %v2625 = vpack.c.b16 %v2113, %v2097
    %v2626 = vpack.c.b16 %v2114, %v2098
    %v2627 = vpack.c.b16 %v2115, %v2099
    %3140 = vmatprep.subr.bf16.mxu0 %v2117
    %3141 = vmatpush1.bf16.msra.mxu0 %v2116
    %3142 = vmatprep.subr.bf16.mxu0 %v2133
    %3143 = vmatpush1.bf16.msra.mxu0 %v2132
    %3144 = vmatprep.subr.bf16.mxu0 %v2149
    %3145 = vmatpush1.bf16.msra.mxu0 %v2148
    %3146 = vmatprep.subr.bf16.mxu0 %v2165
    %3147 = vmatpush1.bf16.msra.mxu0 %v2164
    %3148 = vmatprep.subr.bf16.mxu0 %v2181
    %3149 = vmatpush1.bf16.msra.mxu0 %v2180
    %3150 = vmatprep.subr.bf16.mxu0 %v2197
    %3151 = vmatpush1.bf16.msra.mxu0 %v2196
    %3152 = vmatprep.subr.bf16.mxu0 %v2213
    %3153 = vmatpush1.bf16.msra.mxu0 %v2212
    %3154 = vmatprep.subr.bf16.mxu0 %v2229
    %3155 = vmatpush1.bf16.msra.mxu0 %v2228
    %3156 = vmatprep.subr.bf16.mxu0 %v2245
    %3157 = vmatpush1.bf16.msra.mxu0 %v2244
    %3158 = vmatprep.subr.bf16.mxu0 %v2261
    %3159 = vmatpush1.bf16.msra.mxu0 %v2260
    %3160 = vmatprep.subr.bf16.mxu0 %v2277
    %3161 = vmatpush1.bf16.msra.mxu0 %v2276
    %3162 = vmatprep.subr.bf16.mxu0 %v2293
    %3163 = vmatpush1.bf16.msra.mxu0 %v2292
    %3164 = vmatprep.subr.bf16.mxu0 %v2309
    %3165 = vmatpush1.bf16.msra.mxu0 %v2308
    %3166 = vmatprep.subr.bf16.mxu0 %v2325
    %3167 = vmatpush1.bf16.msra.mxu0 %v2324
    %3168 = vmatprep.subr.bf16.mxu0 %v2341
    %3169 = vmatpush1.bf16.msra.mxu0 %v2340
    %3170 = vmatprep.subr.bf16.mxu0 %v2357
    %3171 = vmatpush1.bf16.msra.mxu0 %v2356
    %3172 = vmatprep.mubr.bf16.mxu0 %v65
    %3173 = vmatmul.mubr.bf16.gmra.mrb[0].mxu0 %v64
    %v3174 = vpop.f32.mrb[0].mxu0
    %v3175 = vadd.f32 0.0, %v3174
    %v3176 = vpop.f32.mrb[0].mxu0
    %v3177 = vadd.f32 0.0, %v3176
    %v3178 = vpop.f32.mrb[0].mxu0
    %v3179 = vadd.f32 0.0, %v3178
    %v3180 = vpop.f32.mrb[0].mxu0
    %v3181 = vadd.f32 0.0, %v3180
    %3182 = vdwg.mxu0
    %3183 = vmatprep.subr.bf16.mxu0 %v2373
    %3184 = vmatpush1.bf16.msra.mxu0 %v2372
    %3185 = vmatprep.subr.bf16.mxu0 %v2389
    %3186 = vmatpush1.bf16.msra.mxu0 %v2388
    %3187 = vmatprep.subr.bf16.mxu0 %v2405
    %3188 = vmatpush1.bf16.msra.mxu0 %v2404
    %3189 = vmatprep.subr.bf16.mxu0 %v2421
    %3190 = vmatpush1.bf16.msra.mxu0 %v2420
    %3191 = vmatprep.subr.bf16.mxu0 %v2437
    %3192 = vmatpush1.bf16.msra.mxu0 %v2436
    %3193 = vmatprep.subr.bf16.mxu0 %v2453
    %3194 = vmatpush1.bf16.msra.mxu0 %v2452
    %3195 = vmatprep.subr.bf16.mxu0 %v2469
    %3196 = vmatpush1.bf16.msra.mxu0 %v2468
    %3197 = vmatprep.subr.bf16.mxu0 %v2485
    %3198 = vmatpush1.bf16.msra.mxu0 %v2484
    %3199 = vmatprep.subr.bf16.mxu0 %v2501
    %3200 = vmatpush1.bf16.msra.mxu0 %v2500
    %3201 = vmatprep.subr.bf16.mxu0 %v2517
    %3202 = vmatpush1.bf16.msra.mxu0 %v2516
    %3203 = vmatprep.subr.bf16.mxu0 %v2533
    %3204 = vmatpush1.bf16.msra.mxu0 %v2532
    %3205 = vmatprep.subr.bf16.mxu0 %v2549
    %3206 = vmatpush1.bf16.msra.mxu0 %v2548
    %3207 = vmatprep.subr.bf16.mxu0 %v2565
    %3208 = vmatpush1.bf16.msra.mxu0 %v2564
    %3209 = vmatprep.subr.bf16.mxu0 %v2581
    %3210 = vmatpush1.bf16.msra.mxu0 %v2580
    %3211 = vmatprep.subr.bf16.mxu0 %v2597
    %3212 = vmatpush1.bf16.msra.mxu0 %v2596
    %3213 = vmatprep.subr.bf16.mxu0 %v2613
    %3214 = vmatpush1.bf16.msra.mxu0 %v2612
    %3215 = vmatprep.mubr.bf16.mxu0 %v67
    %3216 = vmatmul.mubr.bf16.gmra.mrb[0].mxu0 %v66
    %v3217 = vpop.f32.mrb[0].mxu0
    %v3218 = vadd.f32 %v3175, %v3217
    %v3219 = vpop.f32.mrb[0].mxu0
    %v3220 = vadd.f32 %v3177, %v3219
    %v3221 = vpop.f32.mrb[0].mxu0
    %v3222 = vadd.f32 %v3179, %v3221
    %v3223 = vpop.f32.mrb[0].mxu0
    %v3224 = vadd.f32 %v3181, %v3223
    %3225 = vdwg.mxu0
    %3226 = vmatprep.subr.bf16.mxu0 %v2119
    %3227 = vmatpush1.bf16.msra.mxu0 %v2118
    %3228 = vmatprep.subr.bf16.mxu0 %v2135
    %3229 = vmatpush1.bf16.msra.mxu0 %v2134
    %3230 = vmatprep.subr.bf16.mxu0 %v2151
    %3231 = vmatpush1.bf16.msra.mxu0 %v2150
    %3232 = vmatprep.subr.bf16.mxu0 %v2167
    %3233 = vmatpush1.bf16.msra.mxu0 %v2166
    %3234 = vmatprep.subr.bf16.mxu0 %v2183
    %3235 = vmatpush1.bf16.msra.mxu0 %v2182
    %3236 = vmatprep.subr.bf16.mxu0 %v2199
    %3237 = vmatpush1.bf16.msra.mxu0 %v2198
    %3238 = vmatprep.subr.bf16.mxu0 %v2215
    %3239 = vmatpush1.bf16.msra.mxu0 %v2214
    %3240 = vmatprep.subr.bf16.mxu0 %v2231
    %3241 = vmatpush1.bf16.msra.mxu0 %v2230
    %3242 = vmatprep.subr.bf16.mxu0 %v2247
    %3243 = vmatpush1.bf16.msra.mxu0 %v2246
    %3244 = vmatprep.subr.bf16.mxu0 %v2263
    %3245 = vmatpush1.bf16.msra.mxu0 %v2262
    %3246 = vmatprep.subr.bf16.mxu0 %v2279
    %3247 = vmatpush1.bf16.msra.mxu0 %v2278
    %3248 = vmatprep.subr.bf16.mxu0 %v2295
    %3249 = vmatpush1.bf16.msra.mxu0 %v2294
    %3250 = vmatprep.subr.bf16.mxu0 %v2311
    %3251 = vmatpush1.bf16.msra.mxu0 %v2310
    %3252 = vmatprep.subr.bf16.mxu0 %v2327
    %3253 = vmatpush1.bf16.msra.mxu0 %v2326
    %3254 = vmatprep.subr.bf16.mxu0 %v2343
    %3255 = vmatpush1.bf16.msra.mxu0 %v2342
    %3256 = vmatprep.subr.bf16.mxu0 %v2359
    %3257 = vmatpush1.bf16.msra.mxu0 %v2358
    %3258 = vmatprep.mubr.bf16.mxu0 %v65
    %3259 = vmatmul.mubr.bf16.gmra.mrb[0].mxu0 %v64
    %v3260 = vpop.f32.mrb[0].mxu0
    %v3261 = vadd.f32 0.0, %v3260
    %v3262 = vpop.f32.mrb[0].mxu0
    %v3263 = vadd.f32 0.0, %v3262
    %v3264 = vpop.f32.mrb[0].mxu0
    %v3265 = vadd.f32 0.0, %v3264
    %v3266 = vpop.f32.mrb[0].mxu0
    %v3267 = vadd.f32 0.0, %v3266
    %3268 = vdwg.mxu0
    %3269 = vmatprep.subr.bf16.mxu0 %v2375
    %3270 = vmatpush1.bf16.msra.mxu0 %v2374
    %3271 = vmatprep.subr.bf16.mxu0 %v2391
    %3272 = vmatpush1.bf16.msra.mxu0 %v2390
    %3273 = vmatprep.subr.bf16.mxu0 %v2407
    %3274 = vmatpush1.bf16.msra.mxu0 %v2406
    %3275 = vmatprep.subr.bf16.mxu0 %v2423
    %3276 = vmatpush1.bf16.msra.mxu0 %v2422
    %3277 = vmatprep.subr.bf16.mxu0 %v2439
    %3278 = vmatpush1.bf16.msra.mxu0 %v2438
    %3279 = vmatprep.subr.bf16.mxu0 %v2455
    %3280 = vmatpush1.bf16.msra.mxu0 %v2454
    %3281 = vmatprep.subr.bf16.mxu0 %v2471
    %3282 = vmatpush1.bf16.msra.mxu0 %v2470
    %3283 = vmatprep.subr.bf16.mxu0 %v2487
    %3284 = vmatpush1.bf16.msra.mxu0 %v2486
    %3285 = vmatprep.subr.bf16.mxu0 %v2503
    %3286 = vmatpush1.bf16.msra.mxu0 %v2502
    %3287 = vmatprep.subr.bf16.mxu0 %v2519
    %3288 = vmatpush1.bf16.msra.mxu0 %v2518
    %3289 = vmatprep.subr.bf16.mxu0 %v2535
    %3290 = vmatpush1.bf16.msra.mxu0 %v2534
    %3291 = vmatprep.subr.bf16.mxu0 %v2551
    %3292 = vmatpush1.bf16.msra.mxu0 %v2550
    %3293 = vmatprep.subr.bf16.mxu0 %v2567
    %3294 = vmatpush1.bf16.msra.mxu0 %v2566
    %3295 = vmatprep.subr.bf16.mxu0 %v2583
    %3296 = vmatpush1.bf16.msra.mxu0 %v2582
    %3297 = vmatprep.subr.bf16.mxu0 %v2599
    %3298 = vmatpush1.bf16.msra.mxu0 %v2598
    %3299 = vmatprep.subr.bf16.mxu0 %v2615
    %3300 = vmatpush1.bf16.msra.mxu0 %v2614
    %3301 = vmatprep.mubr.bf16.mxu0 %v67
    %3302 = vmatmul.mubr.bf16.gmra.mrb[0].mxu0 %v66
    %v3303 = vpop.f32.mrb[0].mxu0
    %v3304 = vadd.f32 %v3261, %v3303
    %v3305 = vpop.f32.mrb[0].mxu0
    %v3306 = vadd.f32 %v3263, %v3305
    %v3307 = vpop.f32.mrb[0].mxu0
    %v3308 = vadd.f32 %v3265, %v3307
    %v3309 = vpop.f32.mrb[0].mxu0
    %v3310 = vadd.f32 %v3267, %v3309
    %3311 = vdwg.mxu0
    %3312 = vmatprep.subr.bf16.mxu0 %v2121
    %3313 = vmatpush1.bf16.msra.mxu0 %v2120
    %3314 = vmatprep.subr.bf16.mxu0 %v2137
    %3315 = vmatpush1.bf16.msra.mxu0 %v2136
    %3316 = vmatprep.subr.bf16.mxu0 %v2153
    %3317 = vmatpush1.bf16.msra.mxu0 %v2152
    %3318 = vmatprep.subr.bf16.mxu0 %v2169
    %3319 = vmatpush1.bf16.msra.mxu0 %v2168
    %3320 = vmatprep.subr.bf16.mxu0 %v2185
    %3321 = vmatpush1.bf16.msra.mxu0 %v2184
    %3322 = vmatprep.subr.bf16.mxu0 %v2201
    %3323 = vmatpush1.bf16.msra.mxu0 %v2200
    %3324 = vmatprep.subr.bf16.mxu0 %v2217
    %3325 = vmatpush1.bf16.msra.mxu0 %v2216
    %3326 = vmatprep.subr.bf16.mxu0 %v2233
    %3327 = vmatpush1.bf16.msra.mxu0 %v2232
    %3328 = vmatprep.subr.bf16.mxu0 %v2249
    %3329 = vmatpush1.bf16.msra.mxu0 %v2248
    %3330 = vmatprep.subr.bf16.mxu0 %v2265
    %3331 = vmatpush1.bf16.msra.mxu0 %v2264
    %3332 = vmatprep.subr.bf16.mxu0 %v2281
    %3333 = vmatpush1.bf16.msra.mxu0 %v2280
    %3334 = vmatprep.subr.bf16.mxu0 %v2297
    %3335 = vmatpush1.bf16.msra.mxu0 %v2296
    %3336 = vmatprep.subr.bf16.mxu0 %v2313
    %3337 = vmatpush1.bf16.msra.mxu0 %v2312
    %3338 = vmatprep.subr.bf16.mxu0 %v2329
    %3339 = vmatpush1.bf16.msra.mxu0 %v2328
    %3340 = vmatprep.subr.bf16.mxu0 %v2345
    %3341 = vmatpush1.bf16.msra.mxu0 %v2344
    %3342 = vmatprep.subr.bf16.mxu0 %v2361
    %3343 = vmatpush1.bf16.msra.mxu0 %v2360
    %3344 = vmatprep.mubr.bf16.mxu0 %v65
    %3345 = vmatmul.mubr.bf16.gmra.mrb[0].mxu0 %v64
    %v3346 = vpop.f32.mrb[0].mxu0
    %v3347 = vadd.f32 0.0, %v3346
    %v3348 = vpop.f32.mrb[0].mxu0
    %v3349 = vadd.f32 0.0, %v3348
    %v3350 = vpop.f32.mrb[0].mxu0
    %v3351 = vadd.f32 0.0, %v3350
    %v3352 = vpop.f32.mrb[0].mxu0
    %v3353 = vadd.f32 0.0, %v3352
    %3354 = vdwg.mxu0
    %3355 = vmatprep.subr.bf16.mxu0 %v2377
    %3356 = vmatpush1.bf16.msra.mxu0 %v2376
    %3357 = vmatprep.subr.bf16.mxu0 %v2393
    %3358 = vmatpush1.bf16.msra.mxu0 %v2392
    %3359 = vmatprep.subr.bf16.mxu0 %v2409
    %3360 = vmatpush1.bf16.msra.mxu0 %v2408
    %3361 = vmatprep.subr.bf16.mxu0 %v2425
    %3362 = vmatpush1.bf16.msra.mxu0 %v2424
    %3363 = vmatprep.subr.bf16.mxu0 %v2441
    %3364 = vmatpush1.bf16.msra.mxu0 %v2440
    %3365 = vmatprep.subr.bf16.mxu0 %v2457
    %3366 = vmatpush1.bf16.msra.mxu0 %v2456
    %3367 = vmatprep.subr.bf16.mxu0 %v2473
    %3368 = vmatpush1.bf16.msra.mxu0 %v2472
    %3369 = vmatprep.subr.bf16.mxu0 %v2489
    %3370 = vmatpush1.bf16.msra.mxu0 %v2488
    %3371 = vmatprep.subr.bf16.mxu0 %v2505
    %3372 = vmatpush1.bf16.msra.mxu0 %v2504
    %3373 = vmatprep.subr.bf16.mxu0 %v2521
    %3374 = vmatpush1.bf16.msra.mxu0 %v2520
    %3375 = vmatprep.subr.bf16.mxu0 %v2537
    %3376 = vmatpush1.bf16.msra.mxu0 %v2536
    %3377 = vmatprep.subr.bf16.mxu0 %v2553
    %3378 = vmatpush1.bf16.msra.mxu0 %v2552
    %3379 = vmatprep.subr.bf16.mxu0 %v2569
    %3380 = vmatpush1.bf16.msra.mxu0 %v2568
    %3381 = vmatprep.subr.bf16.mxu0 %v2585
    %3382 = vmatpush1.bf16.msra.mxu0 %v2584
    %3383 = vmatprep.subr.bf16.mxu0 %v2601
    %3384 = vmatpush1.bf16.msra.mxu0 %v2600
    %3385 = vmatprep.subr.bf16.mxu0 %v2617
    %3386 = vmatpush1.bf16.msra.mxu0 %v2616
    %3387 = vmatprep.mubr.bf16.mxu0 %v67
    %3388 = vmatmul.mubr.bf16.gmra.mrb[0].mxu0 %v66
    %v3389 = vpop.f32.mrb[0].mxu0
    %v3390 = vadd.f32 %v3347, %v3389
    %v3391 = vpop.f32.mrb[0].mxu0
    %v3392 = vadd.f32 %v3349, %v3391
    %v3393 = vpop.f32.mrb[0].mxu0
    %v3394 = vadd.f32 %v3351, %v3393
    %v3395 = vpop.f32.mrb[0].mxu0
    %v3396 = vadd.f32 %v3353, %v3395
    %3397 = vdwg.mxu0
    %3398 = vmatprep.subr.bf16.mxu0 %v2123
    %3399 = vmatpush1.bf16.msra.mxu0 %v2122
    %3400 = vmatprep.subr.bf16.mxu0 %v2139
    %3401 = vmatpush1.bf16.msra.mxu0 %v2138
    %3402 = vmatprep.subr.bf16.mxu0 %v2155
    %3403 = vmatpush1.bf16.msra.mxu0 %v2154
    %3404 = vmatprep.subr.bf16.mxu0 %v2171
    %3405 = vmatpush1.bf16.msra.mxu0 %v2170
    %3406 = vmatprep.subr.bf16.mxu0 %v2187
    %3407 = vmatpush1.bf16.msra.mxu0 %v2186
    %3408 = vmatprep.subr.bf16.mxu0 %v2203
    %3409 = vmatpush1.bf16.msra.mxu0 %v2202
    %3410 = vmatprep.subr.bf16.mxu0 %v2219
    %3411 = vmatpush1.bf16.msra.mxu0 %v2218
    %3412 = vmatprep.subr.bf16.mxu0 %v2235
    %3413 = vmatpush1.bf16.msra.mxu0 %v2234
    %3414 = vmatprep.subr.bf16.mxu0 %v2251
    %3415 = vmatpush1.bf16.msra.mxu0 %v2250
    %3416 = vmatprep.subr.bf16.mxu0 %v2267
    %3417 = vmatpush1.bf16.msra.mxu0 %v2266
    %3418 = vmatprep.subr.bf16.mxu0 %v2283
    %3419 = vmatpush1.bf16.msra.mxu0 %v2282
    %3420 = vmatprep.subr.bf16.mxu0 %v2299
    %3421 = vmatpush1.bf16.msra.mxu0 %v2298
    %3422 = vmatprep.subr.bf16.mxu0 %v2315
    %3423 = vmatpush1.bf16.msra.mxu0 %v2314
    %3424 = vmatprep.subr.bf16.mxu0 %v2331
    %3425 = vmatpush1.bf16.msra.mxu0 %v2330
    %3426 = vmatprep.subr.bf16.mxu0 %v2347
    %3427 = vmatpush1.bf16.msra.mxu0 %v2346
    %3428 = vmatprep.subr.bf16.mxu0 %v2363
    %3429 = vmatpush1.bf16.msra.mxu0 %v2362
    %3430 = vmatprep.mubr.bf16.mxu0 %v65
    %3431 = vmatmul.mubr.bf16.gmra.mrb[0].mxu0 %v64
    %v3432 = vpop.f32.mrb[0].mxu0
    %v3433 = vadd.f32 0.0, %v3432
    %v3434 = vpop.f32.mrb[0].mxu0
    %v3435 = vadd.f32 0.0, %v3434
    %v3436 = vpop.f32.mrb[0].mxu0
    %v3437 = vadd.f32 0.0, %v3436
    %v3438 = vpop.f32.mrb[0].mxu0
    %v3439 = vadd.f32 0.0, %v3438
    %3440 = vdwg.mxu0
    %3441 = vmatprep.subr.bf16.mxu0 %v2379
    %3442 = vmatpush1.bf16.msra.mxu0 %v2378
    %3443 = vmatprep.subr.bf16.mxu0 %v2395
    %3444 = vmatpush1.bf16.msra.mxu0 %v2394
    %3445 = vmatprep.subr.bf16.mxu0 %v2411
    %3446 = vmatpush1.bf16.msra.mxu0 %v2410
    %3447 = vmatprep.subr.bf16.mxu0 %v2427
    %3448 = vmatpush1.bf16.msra.mxu0 %v2426
    %3449 = vmatprep.subr.bf16.mxu0 %v2443
    %3450 = vmatpush1.bf16.msra.mxu0 %v2442
    %3451 = vmatprep.subr.bf16.mxu0 %v2459
    %3452 = vmatpush1.bf16.msra.mxu0 %v2458
    %3453 = vmatprep.subr.bf16.mxu0 %v2475
    %3454 = vmatpush1.bf16.msra.mxu0 %v2474
    %3455 = vmatprep.subr.bf16.mxu0 %v2491
    %3456 = vmatpush1.bf16.msra.mxu0 %v2490
    %3457 = vmatprep.subr.bf16.mxu0 %v2507
    %3458 = vmatpush1.bf16.msra.mxu0 %v2506
    %3459 = vmatprep.subr.bf16.mxu0 %v2523
    %3460 = vmatpush1.bf16.msra.mxu0 %v2522
    %3461 = vmatprep.subr.bf16.mxu0 %v2539
    %3462 = vmatpush1.bf16.msra.mxu0 %v2538
    %3463 = vmatprep.subr.bf16.mxu0 %v2555
    %3464 = vmatpush1.bf16.msra.mxu0 %v2554
    %3465 = vmatprep.subr.bf16.mxu0 %v2571
    %3466 = vmatpush1.bf16.msra.mxu0 %v2570
    %3467 = vmatprep.subr.bf16.mxu0 %v2587
    %3468 = vmatpush1.bf16.msra.mxu0 %v2586
    %3469 = vmatprep.subr.bf16.mxu0 %v2603
    %3470 = vmatpush1.bf16.msra.mxu0 %v2602
    %3471 = vmatprep.subr.bf16.mxu0 %v2619
    %3472 = vmatpush1.bf16.msra.mxu0 %v2618
    %3473 = vmatprep.mubr.bf16.mxu0 %v67
    %3474 = vmatmul.mubr.bf16.gmra.mrb[0].mxu0 %v66
    %v3475 = vpop.f32.mrb[0].mxu0
    %v3476 = vadd.f32 %v3433, %v3475
    %v3477 = vpop.f32.mrb[0].mxu0
    %v3478 = vadd.f32 %v3435, %v3477
    %v3479 = vpop.f32.mrb[0].mxu0
    %v3480 = vadd.f32 %v3437, %v3479
    %v3481 = vpop.f32.mrb[0].mxu0
    %v3482 = vadd.f32 %v3439, %v3481
    %3483 = vdwg.mxu0
    %3484 = vmatprep.subr.bf16.mxu0 %v2125
    %3485 = vmatpush1.bf16.msra.mxu0 %v2124
    %3486 = vmatprep.subr.bf16.mxu0 %v2141
    %3487 = vmatpush1.bf16.msra.mxu0 %v2140
    %3488 = vmatprep.subr.bf16.mxu0 %v2157
    %3489 = vmatpush1.bf16.msra.mxu0 %v2156
    %3490 = vmatprep.subr.bf16.mxu0 %v2173
    %3491 = vmatpush1.bf16.msra.mxu0 %v2172
    %3492 = vmatprep.subr.bf16.mxu0 %v2189
    %3493 = vmatpush1.bf16.msra.mxu0 %v2188
    %3494 = vmatprep.subr.bf16.mxu0 %v2205
    %3495 = vmatpush1.bf16.msra.mxu0 %v2204
    %3496 = vmatprep.subr.bf16.mxu0 %v2221
    %3497 = vmatpush1.bf16.msra.mxu0 %v2220
    %3498 = vmatprep.subr.bf16.mxu0 %v2237
    %3499 = vmatpush1.bf16.msra.mxu0 %v2236
    %3500 = vmatprep.subr.bf16.mxu0 %v2253
    %3501 = vmatpush1.bf16.msra.mxu0 %v2252
    %3502 = vmatprep.subr.bf16.mxu0 %v2269
    %3503 = vmatpush1.bf16.msra.mxu0 %v2268
    %3504 = vmatprep.subr.bf16.mxu0 %v2285
    %3505 = vmatpush1.bf16.msra.mxu0 %v2284
    %3506 = vmatprep.subr.bf16.mxu0 %v2301
    %3507 = vmatpush1.bf16.msra.mxu0 %v2300
    %3508 = vmatprep.subr.bf16.mxu0 %v2317
    %3509 = vmatpush1.bf16.msra.mxu0 %v2316
    %3510 = vmatprep.subr.bf16.mxu0 %v2333
    %3511 = vmatpush1.bf16.msra.mxu0 %v2332
    %3512 = vmatprep.subr.bf16.mxu0 %v2349
    %3513 = vmatpush1.bf16.msra.mxu0 %v2348
    %3514 = vmatprep.subr.bf16.mxu0 %v2365
    %3515 = vmatpush1.bf16.msra.mxu0 %v2364
    %3516 = vmatprep.mubr.bf16.mxu0 %v65
    %3517 = vmatmul.mubr.bf16.gmra.mrb[0].mxu0 %v64
    %v3518 = vpop.f32.mrb[0].mxu0
    %v3519 = vadd.f32 0.0, %v3518
    %v3520 = vpop.f32.mrb[0].mxu0
    %v3521 = vadd.f32 0.0, %v3520
    %v3522 = vpop.f32.mrb[0].mxu0
    %v3523 = vadd.f32 0.0, %v3522
    %v3524 = vpop.f32.mrb[0].mxu0
    %v3525 = vadd.f32 0.0, %v3524
    %3526 = vdwg.mxu0
    %3527 = vmatprep.subr.bf16.mxu0 %v2381
    %3528 = vmatpush1.bf16.msra.mxu0 %v2380
    %3529 = vmatprep.subr.bf16.mxu0 %v2397
    %3530 = vmatpush1.bf16.msra.mxu0 %v2396
    %3531 = vmatprep.subr.bf16.mxu0 %v2413
    %3532 = vmatpush1.bf16.msra.mxu0 %v2412
    %3533 = vmatprep.subr.bf16.mxu0 %v2429
    %3534 = vmatpush1.bf16.msra.mxu0 %v2428
    %3535 = vmatprep.subr.bf16.mxu0 %v2445
    %3536 = vmatpush1.bf16.msra.mxu0 %v2444
    %3537 = vmatprep.subr.bf16.mxu0 %v2461
    %3538 = vmatpush1.bf16.msra.mxu0 %v2460
    %3539 = vmatprep.subr.bf16.mxu0 %v2477
    %3540 = vmatpush1.bf16.msra.mxu0 %v2476
    %3541 = vmatprep.subr.bf16.mxu0 %v2493
    %3542 = vmatpush1.bf16.msra.mxu0 %v2492
    %3543 = vmatprep.subr.bf16.mxu0 %v2509
    %3544 = vmatpush1.bf16.msra.mxu0 %v2508
    %3545 = vmatprep.subr.bf16.mxu0 %v2525
    %3546 = vmatpush1.bf16.msra.mxu0 %v2524
    %3547 = vmatprep.subr.bf16.mxu0 %v2541
    %3548 = vmatpush1.bf16.msra.mxu0 %v2540
    %3549 = vmatprep.subr.bf16.mxu0 %v2557
    %3550 = vmatpush1.bf16.msra.mxu0 %v2556
    %3551 = vmatprep.subr.bf16.mxu0 %v2573
    %3552 = vmatpush1.bf16.msra.mxu0 %v2572
    %3553 = vmatprep.subr.bf16.mxu0 %v2589
    %3554 = vmatpush1.bf16.msra.mxu0 %v2588
    %3555 = vmatprep.subr.bf16.mxu0 %v2605
    %3556 = vmatpush1.bf16.msra.mxu0 %v2604
    %3557 = vmatprep.subr.bf16.mxu0 %v2621
    %3558 = vmatpush1.bf16.msra.mxu0 %v2620
    %3559 = vmatprep.mubr.bf16.mxu0 %v67
    %3560 = vmatmul.mubr.bf16.gmra.mrb[0].mxu0 %v66
    %v3561 = vpop.f32.mrb[0].mxu0
    %v3562 = vadd.f32 %v3519, %v3561
    %v3563 = vpop.f32.mrb[0].mxu0
    %v3564 = vadd.f32 %v3521, %v3563
    %v3565 = vpop.f32.mrb[0].mxu0
    %v3566 = vadd.f32 %v3523, %v3565
    %v3567 = vpop.f32.mrb[0].mxu0
    %v3568 = vadd.f32 %v3525, %v3567
    %3569 = vdwg.mxu0
    %3570 = vmatprep.subr.bf16.mxu0 %v2127
    %3571 = vmatpush1.bf16.msra.mxu0 %v2126
    %3572 = vmatprep.subr.bf16.mxu0 %v2143
    %3573 = vmatpush1.bf16.msra.mxu0 %v2142
    %3574 = vmatprep.subr.bf16.mxu0 %v2159
    %3575 = vmatpush1.bf16.msra.mxu0 %v2158
    %3576 = vmatprep.subr.bf16.mxu0 %v2175
    %3577 = vmatpush1.bf16.msra.mxu0 %v2174
    %3578 = vmatprep.subr.bf16.mxu0 %v2191
    %3579 = vmatpush1.bf16.msra.mxu0 %v2190
    %3580 = vmatprep.subr.bf16.mxu0 %v2207
    %3581 = vmatpush1.bf16.msra.mxu0 %v2206
    %3582 = vmatprep.subr.bf16.mxu0 %v2223
    %3583 = vmatpush1.bf16.msra.mxu0 %v2222
    %3584 = vmatprep.subr.bf16.mxu0 %v2239
    %3585 = vmatpush1.bf16.msra.mxu0 %v2238
    %3586 = vmatprep.subr.bf16.mxu0 %v2255
    %3587 = vmatpush1.bf16.msra.mxu0 %v2254
    %3588 = vmatprep.subr.bf16.mxu0 %v2271
    %3589 = vmatpush1.bf16.msra.mxu0 %v2270
    %3590 = vmatprep.subr.bf16.mxu0 %v2287
    %3591 = vmatpush1.bf16.msra.mxu0 %v2286
    %3592 = vmatprep.subr.bf16.mxu0 %v2303
    %3593 = vmatpush1.bf16.msra.mxu0 %v2302
    %3594 = vmatprep.subr.bf16.mxu0 %v2319
    %3595 = vmatpush1.bf16.msra.mxu0 %v2318
    %3596 = vmatprep.subr.bf16.mxu0 %v2335
    %3597 = vmatpush1.bf16.msra.mxu0 %v2334
    %3598 = vmatprep.subr.bf16.mxu0 %v2351
    %3599 = vmatpush1.bf16.msra.mxu0 %v2350
    %3600 = vmatprep.subr.bf16.mxu0 %v2367
    %3601 = vmatpush1.bf16.msra.mxu0 %v2366
    %3602 = vmatprep.mubr.bf16.mxu0 %v65
    %3603 = vmatmul.mubr.bf16.gmra.mrb[0].mxu0 %v64
    %v3604 = vpop.f32.mrb[0].mxu0
    %v3605 = vadd.f32 0.0, %v3604
    %v3606 = vpop.f32.mrb[0].mxu0
    %v3607 = vadd.f32 0.0, %v3606
    %v3608 = vpop.f32.mrb[0].mxu0
    %v3609 = vadd.f32 0.0, %v3608
    %v3610 = vpop.f32.mrb[0].mxu0
    %v3611 = vadd.f32 0.0, %v3610
    %3612 = vdwg.mxu0
    %3613 = vmatprep.subr.bf16.mxu0 %v2383
    %3614 = vmatpush1.bf16.msra.mxu0 %v2382
    %3615 = vmatprep.subr.bf16.mxu0 %v2399
    %3616 = vmatpush1.bf16.msra.mxu0 %v2398
    %3617 = vmatprep.subr.bf16.mxu0 %v2415
    %3618 = vmatpush1.bf16.msra.mxu0 %v2414
    %3619 = vmatprep.subr.bf16.mxu0 %v2431
    %3620 = vmatpush1.bf16.msra.mxu0 %v2430
    %3621 = vmatprep.subr.bf16.mxu0 %v2447
    %3622 = vmatpush1.bf16.msra.mxu0 %v2446
    %3623 = vmatprep.subr.bf16.mxu0 %v2463
    %3624 = vmatpush1.bf16.msra.mxu0 %v2462
    %3625 = vmatprep.subr.bf16.mxu0 %v2479
    %3626 = vmatpush1.bf16.msra.mxu0 %v2478
    %3627 = vmatprep.subr.bf16.mxu0 %v2495
    %3628 = vmatpush1.bf16.msra.mxu0 %v2494
    %3629 = vmatprep.subr.bf16.mxu0 %v2511
    %3630 = vmatpush1.bf16.msra.mxu0 %v2510
    %3631 = vmatprep.subr.bf16.mxu0 %v2527
    %3632 = vmatpush1.bf16.msra.mxu0 %v2526
    %3633 = vmatprep.subr.bf16.mxu0 %v2543
    %3634 = vmatpush1.bf16.msra.mxu0 %v2542
    %3635 = vmatprep.subr.bf16.mxu0 %v2559
    %3636 = vmatpush1.bf16.msra.mxu0 %v2558
    %3637 = vmatprep.subr.bf16.mxu0 %v2575
    %3638 = vmatpush1.bf16.msra.mxu0 %v2574
    %3639 = vmatprep.subr.bf16.mxu0 %v2591
    %3640 = vmatpush1.bf16.msra.mxu0 %v2590
    %3641 = vmatprep.subr.bf16.mxu0 %v2607
    %3642 = vmatpush1.bf16.msra.mxu0 %v2606
    %3643 = vmatprep.subr.bf16.mxu0 %v2623
    %3644 = vmatpush1.bf16.msra.mxu0 %v2622
    %3645 = vmatprep.mubr.bf16.mxu0 %v67
    %3646 = vmatmul.mubr.bf16.gmra.mrb[0].mxu0 %v66
    %v3647 = vpop.f32.mrb[0].mxu0
    %v3648 = vadd.f32 %v3605, %v3647
    %v3649 = vpop.f32.mrb[0].mxu0
    %v3650 = vadd.f32 %v3607, %v3649
    %v3651 = vpop.f32.mrb[0].mxu0
    %v3652 = vadd.f32 %v3609, %v3651
    %v3653 = vpop.f32.mrb[0].mxu0
    %v3654 = vadd.f32 %v3611, %v3653
    %3655 = vdwg.mxu0
    %3656 = vmatprep.subr.bf16.mxu0 %v2129
    %3657 = vmatpush1.bf16.msra.mxu0 %v2128
    %3658 = vmatprep.subr.bf16.mxu0 %v2145
    %3659 = vmatpush1.bf16.msra.mxu0 %v2144
    %3660 = vmatprep.subr.bf16.mxu0 %v2161
    %3661 = vmatpush1.bf16.msra.mxu0 %v2160
    %3662 = vmatprep.subr.bf16.mxu0 %v2177
    %3663 = vmatpush1.bf16.msra.mxu0 %v2176
    %3664 = vmatprep.subr.bf16.mxu0 %v2193
    %3665 = vmatpush1.bf16.msra.mxu0 %v2192
    %3666 = vmatprep.subr.bf16.mxu0 %v2209
    %3667 = vmatpush1.bf16.msra.mxu0 %v2208
    %3668 = vmatprep.subr.bf16.mxu0 %v2225
    %3669 = vmatpush1.bf16.msra.mxu0 %v2224
    %3670 = vmatprep.subr.bf16.mxu0 %v2241
    %3671 = vmatpush1.bf16.msra.mxu0 %v2240
    %3672 = vmatprep.subr.bf16.mxu0 %v2257
    %3673 = vmatpush1.bf16.msra.mxu0 %v2256
    %3674 = vmatprep.subr.bf16.mxu0 %v2273
    %3675 = vmatpush1.bf16.msra.mxu0 %v2272
    %3676 = vmatprep.subr.bf16.mxu0 %v2289
    %3677 = vmatpush1.bf16.msra.mxu0 %v2288
    %3678 = vmatprep.subr.bf16.mxu0 %v2305
    %3679 = vmatpush1.bf16.msra.mxu0 %v2304
    %3680 = vmatprep.subr.bf16.mxu0 %v2321
    %3681 = vmatpush1.bf16.msra.mxu0 %v2320
    %3682 = vmatprep.subr.bf16.mxu0 %v2337
    %3683 = vmatpush1.bf16.msra.mxu0 %v2336
    %3684 = vmatprep.subr.bf16.mxu0 %v2353
    %3685 = vmatpush1.bf16.msra.mxu0 %v2352
    %3686 = vmatprep.subr.bf16.mxu0 %v2369
    %3687 = vmatpush1.bf16.msra.mxu0 %v2368
    %3688 = vmatprep.mubr.bf16.mxu0 %v65
    %3689 = vmatmul.mubr.bf16.gmra.mrb[0].mxu0 %v64
    %v3690 = vpop.f32.mrb[0].mxu0
    %v3691 = vadd.f32 0.0, %v3690
    %v3692 = vpop.f32.mrb[0].mxu0
    %v3693 = vadd.f32 0.0, %v3692
    %v3694 = vpop.f32.mrb[0].mxu0
    %v3695 = vadd.f32 0.0, %v3694
    %v3696 = vpop.f32.mrb[0].mxu0
    %v3697 = vadd.f32 0.0, %v3696
    %3698 = vdwg.mxu0
    %3699 = vmatprep.subr.bf16.mxu0 %v2385
    %3700 = vmatpush1.bf16.msra.mxu0 %v2384
    %3701 = vmatprep.subr.bf16.mxu0 %v2401
    %3702 = vmatpush1.bf16.msra.mxu0 %v2400
    %3703 = vmatprep.subr.bf16.mxu0 %v2417
    %3704 = vmatpush1.bf16.msra.mxu0 %v2416
    %3705 = vmatprep.subr.bf16.mxu0 %v2433
    %3706 = vmatpush1.bf16.msra.mxu0 %v2432
    %3707 = vmatprep.subr.bf16.mxu0 %v2449
    %3708 = vmatpush1.bf16.msra.mxu0 %v2448
    %3709 = vmatprep.subr.bf16.mxu0 %v2465
    %3710 = vmatpush1.bf16.msra.mxu0 %v2464
    %3711 = vmatprep.subr.bf16.mxu0 %v2481
    %3712 = vmatpush1.bf16.msra.mxu0 %v2480
    %3713 = vmatprep.subr.bf16.mxu0 %v2497
    %3714 = vmatpush1.bf16.msra.mxu0 %v2496
    %3715 = vmatprep.subr.bf16.mxu0 %v2513
    %3716 = vmatpush1.bf16.msra.mxu0 %v2512
    %3717 = vmatprep.subr.bf16.mxu0 %v2529
    %3718 = vmatpush1.bf16.msra.mxu0 %v2528
    %3719 = vmatprep.subr.bf16.mxu0 %v2545
    %3720 = vmatpush1.bf16.msra.mxu0 %v2544
    %3721 = vmatprep.subr.bf16.mxu0 %v2561
    %3722 = vmatpush1.bf16.msra.mxu0 %v2560
    %3723 = vmatprep.subr.bf16.mxu0 %v2577
    %3724 = vmatpush1.bf16.msra.mxu0 %v2576
    %3725 = vmatprep.subr.bf16.mxu0 %v2593
    %3726 = vmatpush1.bf16.msra.mxu0 %v2592
    %3727 = vmatprep.subr.bf16.mxu0 %v2609
    %3728 = vmatpush1.bf16.msra.mxu0 %v2608
    %3729 = vmatprep.subr.bf16.mxu0 %v2625
    %3730 = vmatpush1.bf16.msra.mxu0 %v2624
    %3731 = vmatprep.mubr.bf16.mxu0 %v67
    %3732 = vmatmul.mubr.bf16.gmra.mrb[0].mxu0 %v66
    %v3733 = vpop.f32.mrb[0].mxu0
    %v3734 = vadd.f32 %v3691, %v3733
    %v3735 = vpop.f32.mrb[0].mxu0
    %v3736 = vadd.f32 %v3693, %v3735
    %v3737 = vpop.f32.mrb[0].mxu0
    %v3738 = vadd.f32 %v3695, %v3737
    %v3739 = vpop.f32.mrb[0].mxu0
    %v3740 = vadd.f32 %v3697, %v3739
    %3741 = vdwg.mxu0
    %3742 = vmatprep.subr.bf16.mxu0 %v2131
    %3743 = vmatpush1.bf16.msra.mxu0 %v2130
    %3744 = vmatprep.subr.bf16.mxu0 %v2147
    %3745 = vmatpush1.bf16.msra.mxu0 %v2146
    %3746 = vmatprep.subr.bf16.mxu0 %v2163
    %3747 = vmatpush1.bf16.msra.mxu0 %v2162
    %3748 = vmatprep.subr.bf16.mxu0 %v2179
    %3749 = vmatpush1.bf16.msra.mxu0 %v2178
    %3750 = vmatprep.subr.bf16.mxu0 %v2195
    %3751 = vmatpush1.bf16.msra.mxu0 %v2194
    %3752 = vmatprep.subr.bf16.mxu0 %v2211
    %3753 = vmatpush1.bf16.msra.mxu0 %v2210
    %3754 = vmatprep.subr.bf16.mxu0 %v2227
    %3755 = vmatpush1.bf16.msra.mxu0 %v2226
    %3756 = vmatprep.subr.bf16.mxu0 %v2243
    %3757 = vmatpush1.bf16.msra.mxu0 %v2242
    %3758 = vmatprep.subr.bf16.mxu0 %v2259
    %3759 = vmatpush1.bf16.msra.mxu0 %v2258
    %3760 = vmatprep.subr.bf16.mxu0 %v2275
    %3761 = vmatpush1.bf16.msra.mxu0 %v2274
    %3762 = vmatprep.subr.bf16.mxu0 %v2291
    %3763 = vmatpush1.bf16.msra.mxu0 %v2290
    %3764 = vmatprep.subr.bf16.mxu0 %v2307
    %3765 = vmatpush1.bf16.msra.mxu0 %v2306
    %3766 = vmatprep.subr.bf16.mxu0 %v2323
    %3767 = vmatpush1.bf16.msra.mxu0 %v2322
    %3768 = vmatprep.subr.bf16.mxu0 %v2339
    %3769 = vmatpush1.bf16.msra.mxu0 %v2338
    %3770 = vmatprep.subr.bf16.mxu0 %v2355
    %3771 = vmatpush1.bf16.msra.mxu0 %v2354
    %3772 = vmatprep.subr.bf16.mxu0 %v2371
    %3773 = vmatpush1.bf16.msra.mxu0 %v2370
    %3774 = vmatprep.mubr.bf16.mxu0 %v65
    %3775 = vmatmul.mubr.bf16.gmra.mrb[0].mxu0 %v64
    %v3776 = vpop.f32.mrb[0].mxu0
    %v3777 = vadd.f32 0.0, %v3776
    %v3778 = vpop.f32.mrb[0].mxu0
    %v3779 = vadd.f32 0.0, %v3778
    %v3780 = vpop.f32.mrb[0].mxu0
    %v3781 = vadd.f32 0.0, %v3780
    %v3782 = vpop.f32.mrb[0].mxu0
    %v3783 = vadd.f32 0.0, %v3782
    %3784 = vdwg.mxu0
    %3785 = vmatprep.subr.bf16.mxu0 %v2387
    %3786 = vmatpush1.bf16.msra.mxu0 %v2386
    %3787 = vmatprep.subr.bf16.mxu0 %v2403
    %3788 = vmatpush1.bf16.msra.mxu0 %v2402
    %3789 = vmatprep.subr.bf16.mxu0 %v2419
    %3790 = vmatpush1.bf16.msra.mxu0 %v2418
    %3791 = vmatprep.subr.bf16.mxu0 %v2435
    %3792 = vmatpush1.bf16.msra.mxu0 %v2434
    %3793 = vmatprep.subr.bf16.mxu0 %v2451
    %3794 = vmatpush1.bf16.msra.mxu0 %v2450
    %3795 = vmatprep.subr.bf16.mxu0 %v2467
    %3796 = vmatpush1.bf16.msra.mxu0 %v2466
    %3797 = vmatprep.subr.bf16.mxu0 %v2483
    %3798 = vmatpush1.bf16.msra.mxu0 %v2482
    %3799 = vmatprep.subr.bf16.mxu0 %v2499
    %3800 = vmatpush1.bf16.msra.mxu0 %v2498
    %3801 = vmatprep.subr.bf16.mxu0 %v2515
    %3802 = vmatpush1.bf16.msra.mxu0 %v2514
    %3803 = vmatprep.subr.bf16.mxu0 %v2531
    %3804 = vmatpush1.bf16.msra.mxu0 %v2530
    %3805 = vmatprep.subr.bf16.mxu0 %v2547
    %3806 = vmatpush1.bf16.msra.mxu0 %v2546
    %3807 = vmatprep.subr.bf16.mxu0 %v2563
    %3808 = vmatpush1.bf16.msra.mxu0 %v2562
    %3809 = vmatprep.subr.bf16.mxu0 %v2579
    %3810 = vmatpush1.bf16.msra.mxu0 %v2578
    %3811 = vmatprep.subr.bf16.mxu0 %v2595
    %3812 = vmatpush1.bf16.msra.mxu0 %v2594
    %3813 = vmatprep.subr.bf16.mxu0 %v2611
    %3814 = vmatpush1.bf16.msra.mxu0 %v2610
    %3815 = vmatprep.subr.bf16.mxu0 %v2627
    %3816 = vmatpush1.bf16.msra.mxu0 %v2626
    %3817 = vmatprep.mubr.bf16.mxu0 %v67
    %3818 = vmatmul.mubr.bf16.gmra.mrb[0].mxu0 %v66
    %v3819 = vpop.f32.mrb[0].mxu0
    %v3820 = vadd.f32 %v3777, %v3819
    %v3821 = vpop.f32.mrb[0].mxu0
    %v3822 = vadd.f32 %v3779, %v3821
    %v3823 = vpop.f32.mrb[0].mxu0
    %v3824 = vadd.f32 %v3781, %v3823
    %v3825 = vpop.f32.mrb[0].mxu0
    %v3826 = vadd.f32 %v3783, %v3825
    %3827 = vdwg.mxu0
    %v3828 = vmax.f32 %v3218, 0.0
    %v3829 = vmax.f32 %v3220, 0.0
    %v3830 = vmax.f32 %v3304, 0.0
    %v3831 = vmax.f32 %v3306, 0.0
    %v3832 = vmax.f32 %v3390, 0.0
    %v3833 = vmax.f32 %v3392, 0.0
    %v3834 = vmax.f32 %v3476, 0.0
    %v3835 = vmax.f32 %v3478, 0.0
    %v3836 = vmax.f32 %v3562, 0.0
    %v3837 = vmax.f32 %v3564, 0.0
    %v3838 = vmax.f32 %v3648, 0.0
    %v3839 = vmax.f32 %v3650, 0.0
    %v3840 = vmax.f32 %v3734, 0.0
    %v3841 = vmax.f32 %v3736, 0.0
    %v3842 = vmax.f32 %v3820, 0.0
    %v3843 = vmax.f32 %v3822, 0.0
    %v3844 = vmax.f32 %v3222, 0.0
    %v3845 = vmax.f32 %v3224, 0.0
    %v3846 = vmax.f32 %v3308, 0.0
    %v3847 = vmax.f32 %v3310, 0.0
    %v3848 = vmax.f32 %v3394, 0.0
    %v3849 = vmax.f32 %v3396, 0.0
    %v3850 = vmax.f32 %v3480, 0.0
    %v3851 = vmax.f32 %v3482, 0.0
    %v3852 = vmax.f32 %v3566, 0.0
    %v3853 = vmax.f32 %v3568, 0.0
    %v3854 = vmax.f32 %v3652, 0.0
    %v3855 = vmax.f32 %v3654, 0.0
    %v3856 = vmax.f32 %v3738, 0.0
    %v3857 = vmax.f32 %v3740, 0.0
    %v3858 = vmax.f32 %v3824, 0.0
    %v3859 = vmax.f32 %v3826, 0.0
    %v3860 = vpack.c.bf16 %v3844, %v3828
    %v3861 = vpack.c.bf16 %v3845, %v3829
    %v3862 = vpack.c.bf16 %v3846, %v3830
    %v3863 = vpack.c.bf16 %v3847, %v3831
    %v3864 = vpack.c.bf16 %v3848, %v3832
    %v3865 = vpack.c.bf16 %v3849, %v3833
    %v3866 = vpack.c.bf16 %v3850, %v3834
    %v3867 = vpack.c.bf16 %v3851, %v3835
    %v3868 = vpack.c.bf16 %v3852, %v3836
    %v3869 = vpack.c.bf16 %v3853, %v3837
    %v3870 = vpack.c.bf16 %v3854, %v3838
    %v3871 = vpack.c.bf16 %v3855, %v3839
    %v3872 = vpack.c.bf16 %v3856, %v3840
    %v3873 = vpack.c.bf16 %v3857, %v3841
    %v3874 = vpack.c.bf16 %v3858, %v3842
    %v3875 = vpack.c.bf16 %v3859, %v3843
    %v3876 = vld [vmem:[#allocation7] sm:$0xff]
    %v3877 = vld [vmem:[#allocation7 + $0x8] sm:$0xff]
    %v3878 = vld [vmem:[#allocation7 + $0x10] sm:$0xff]
    %v3879 = vld [vmem:[#allocation7 + $0x18] sm:$0xff]
    %v3880 = vld [vmem:[#allocation7 + $0x20] sm:$0xff]
    %v3881 = vld [vmem:[#allocation7 + $0x28] sm:$0xff]
    %v3882 = vld [vmem:[#allocation7 + $0x30] sm:$0xff]
    %v3883 = vld [vmem:[#allocation7 + $0x38] sm:$0xff]
    %v3884 = vld [vmem:[#allocation7 + $0x40] sm:$0xff]
    %v3885 = vld [vmem:[#allocation7 + $0x48] sm:$0xff]
    %v3886 = vld [vmem:[#allocation7 + $0x50] sm:$0xff]
    %v3887 = vld [vmem:[#allocation7 + $0x58] sm:$0xff]
    %v3888 = vld [vmem:[#allocation7 + $0x60] sm:$0xff]
    %v3889 = vld [vmem:[#allocation7 + $0x68] sm:$0xff]
    %v3890 = vld [vmem:[#allocation7 + $0x70] sm:$0xff]
    %v3891 = vld [vmem:[#allocation7 + $0x78] sm:$0xff]
    %v3892 = vld [vmem:[#allocation7 + $0x80] sm:$0xff]
    %v3893 = vld [vmem:[#allocation7 + $0x88] sm:$0xff]
    %v3894 = vld [vmem:[#allocation7 + $0x90] sm:$0xff]
    %v3895 = vld [vmem:[#allocation7 + $0x98] sm:$0xff]
    %v3896 = vld [vmem:[#allocation7 + $0xa0] sm:$0xff]
    %v3897 = vld [vmem:[#allocation7 + $0xa8] sm:$0xff]
    %v3898 = vld [vmem:[#allocation7 + $0xb0] sm:$0xff]
    %v3899 = vld [vmem:[#allocation7 + $0xb8] sm:$0xff]
    %v3900 = vld [vmem:[#allocation7 + $0xc0] sm:$0xff]
    %v3901 = vld [vmem:[#allocation7 + $0xc8] sm:$0xff]
    %v3902 = vld [vmem:[#allocation7 + $0xd0] sm:$0xff]
    %v3903 = vld [vmem:[#allocation7 + $0xd8] sm:$0xff]
    %v3904 = vld [vmem:[#allocation7 + $0xe0] sm:$0xff]
    %v3905 = vld [vmem:[#allocation7 + $0xe8] sm:$0xff]
    %v3906 = vld [vmem:[#allocation7 + $0xf0] sm:$0xff]
    %v3907 = vld [vmem:[#allocation7 + $0xf8] sm:$0xff]
    %v3908 = vld [vmem:[#allocation7 + $0x100] sm:$0xff]
    %v3909 = vld [vmem:[#allocation7 + $0x108] sm:$0xff]
    %v3910 = vld [vmem:[#allocation7 + $0x110] sm:$0xff]
    %v3911 = vld [vmem:[#allocation7 + $0x118] sm:$0xff]
    %v3912 = vld [vmem:[#allocation7 + $0x120] sm:$0xff]
    %v3913 = vld [vmem:[#allocation7 + $0x128] sm:$0xff]
    %v3914 = vld [vmem:[#allocation7 + $0x130] sm:$0xff]
    %v3915 = vld [vmem:[#allocation7 + $0x138] sm:$0xff]
    %v3916 = vld [vmem:[#allocation7 + $0x140] sm:$0xff]
    %v3917 = vld [vmem:[#allocation7 + $0x148] sm:$0xff]
    %v3918 = vld [vmem:[#allocation7 + $0x150] sm:$0xff]
    %v3919 = vld [vmem:[#allocation7 + $0x158] sm:$0xff]
    %v3920 = vld [vmem:[#allocation7 + $0x160] sm:$0xff]
    %v3921 = vld [vmem:[#allocation7 + $0x168] sm:$0xff]
    %v3922 = vld [vmem:[#allocation7 + $0x170] sm:$0xff]
    %v3923 = vld [vmem:[#allocation7 + $0x178] sm:$0xff]
    %v3924 = vld [vmem:[#allocation7 + $0x180] sm:$0xff]
    %v3925 = vld [vmem:[#allocation7 + $0x188] sm:$0xff]
    %v3926 = vld [vmem:[#allocation7 + $0x190] sm:$0xff]
    %v3927 = vld [vmem:[#allocation7 + $0x198] sm:$0xff]
    %v3928 = vld [vmem:[#allocation7 + $0x1a0] sm:$0xff]
    %v3929 = vld [vmem:[#allocation7 + $0x1a8] sm:$0xff]
    %v3930 = vld [vmem:[#allocation7 + $0x1b0] sm:$0xff]
    %v3931 = vld [vmem:[#allocation7 + $0x1b8] sm:$0xff]
    %v3932 = vld [vmem:[#allocation7 + $0x1c0] sm:$0xff]
    %v3933 = vld [vmem:[#allocation7 + $0x1c8] sm:$0xff]
    %v3934 = vld [vmem:[#allocation7 + $0x1d0] sm:$0xff]
    %v3935 = vld [vmem:[#allocation7 + $0x1d8] sm:$0xff]
    %v3936 = vld [vmem:[#allocation7 + $0x1e0] sm:$0xff]
    %v3937 = vld [vmem:[#allocation7 + $0x1e8] sm:$0xff]
    %v3938 = vld [vmem:[#allocation7 + $0x1f0] sm:$0xff]
    %v3939 = vld [vmem:[#allocation7 + $0x1f8] sm:$0xff]
    %v3940 = vld [vmem:[#allocation7 + $0x200] sm:$0xff]
    %v3941 = vld [vmem:[#allocation7 + $0x208] sm:$0xff]
    %v3942 = vld [vmem:[#allocation7 + $0x210] sm:$0xff]
    %v3943 = vld [vmem:[#allocation7 + $0x218] sm:$0xff]
    %v3944 = vld [vmem:[#allocation7 + $0x220] sm:$0xff]
    %v3945 = vld [vmem:[#allocation7 + $0x228] sm:$0xff]
    %v3946 = vld [vmem:[#allocation7 + $0x230] sm:$0xff]
    %v3947 = vld [vmem:[#allocation7 + $0x238] sm:$0xff]
    %v3948 = vld [vmem:[#allocation7 + $0x240] sm:$0xff]
    %v3949 = vld [vmem:[#allocation7 + $0x248] sm:$0xff]
    %v3950 = vld [vmem:[#allocation7 + $0x250] sm:$0xff]
    %v3951 = vld [vmem:[#allocation7 + $0x258] sm:$0xff]
    %v3952 = vld [vmem:[#allocation7 + $0x260] sm:$0xff]
    %v3953 = vld [vmem:[#allocation7 + $0x268] sm:$0xff]
    %v3954 = vld [vmem:[#allocation7 + $0x270] sm:$0xff]
    %v3955 = vld [vmem:[#allocation7 + $0x278] sm:$0xff]
    %v3956 = vld [vmem:[#allocation7 + $0x280] sm:$0xff]
    %v3957 = vld [vmem:[#allocation7 + $0x288] sm:$0xff]
    %v3958 = vld [vmem:[#allocation7 + $0x290] sm:$0xff]
    %v3959 = vld [vmem:[#allocation7 + $0x298] sm:$0xff]
    %v3960 = vld [vmem:[#allocation7 + $0x2a0] sm:$0xff]
    %v3961 = vld [vmem:[#allocation7 + $0x2a8] sm:$0xff]
    %v3962 = vld [vmem:[#allocation7 + $0x2b0] sm:$0xff]
    %v3963 = vld [vmem:[#allocation7 + $0x2b8] sm:$0xff]
    %v3964 = vld [vmem:[#allocation7 + $0x2c0] sm:$0xff]
    %v3965 = vld [vmem:[#allocation7 + $0x2c8] sm:$0xff]
    %v3966 = vld [vmem:[#allocation7 + $0x2d0] sm:$0xff]
    %v3967 = vld [vmem:[#allocation7 + $0x2d8] sm:$0xff]
    %v3968 = vld [vmem:[#allocation7 + $0x2e0] sm:$0xff]
    %v3969 = vld [vmem:[#allocation7 + $0x2e8] sm:$0xff]
    %v3970 = vld [vmem:[#allocation7 + $0x2f0] sm:$0xff]
    %v3971 = vld [vmem:[#allocation7 + $0x2f8] sm:$0xff]
    %v3972 = vld [vmem:[#allocation7 + $0x300] sm:$0xff]
    %v3973 = vld [vmem:[#allocation7 + $0x308] sm:$0xff]
    %v3974 = vld [vmem:[#allocation7 + $0x310] sm:$0xff]
    %v3975 = vld [vmem:[#allocation7 + $0x318] sm:$0xff]
    %v3976 = vld [vmem:[#allocation7 + $0x320] sm:$0xff]
    %v3977 = vld [vmem:[#allocation7 + $0x328] sm:$0xff]
    %v3978 = vld [vmem:[#allocation7 + $0x330] sm:$0xff]
    %v3979 = vld [vmem:[#allocation7 + $0x338] sm:$0xff]
    %v3980 = vld [vmem:[#allocation7 + $0x340] sm:$0xff]
    %v3981 = vld [vmem:[#allocation7 + $0x348] sm:$0xff]
    %v3982 = vld [vmem:[#allocation7 + $0x350] sm:$0xff]
    %v3983 = vld [vmem:[#allocation7 + $0x358] sm:$0xff]
    %v3984 = vld [vmem:[#allocation7 + $0x360] sm:$0xff]
    %v3985 = vld [vmem:[#allocation7 + $0x368] sm:$0xff]
    %v3986 = vld [vmem:[#allocation7 + $0x370] sm:$0xff]
    %v3987 = vld [vmem:[#allocation7 + $0x378] sm:$0xff]
    %v3988 = vld [vmem:[#allocation7 + $0x380] sm:$0xff]
    %v3989 = vld [vmem:[#allocation7 + $0x388] sm:$0xff]
    %v3990 = vld [vmem:[#allocation7 + $0x390] sm:$0xff]
    %v3991 = vld [vmem:[#allocation7 + $0x398] sm:$0xff]
    %v3992 = vld [vmem:[#allocation7 + $0x3a0] sm:$0xff]
    %v3993 = vld [vmem:[#allocation7 + $0x3a8] sm:$0xff]
    %v3994 = vld [vmem:[#allocation7 + $0x3b0] sm:$0xff]
    %v3995 = vld [vmem:[#allocation7 + $0x3b8] sm:$0xff]
    %v3996 = vld [vmem:[#allocation7 + $0x3c0] sm:$0xff]
    %v3997 = vld [vmem:[#allocation7 + $0x3c8] sm:$0xff]
    %v3998 = vld [vmem:[#allocation7 + $0x3d0] sm:$0xff]
    %v3999 = vld [vmem:[#allocation7 + $0x3d8] sm:$0xff]
    %v4000 = vld [vmem:[#allocation7 + $0x3e0] sm:$0xff]
    %v4001 = vld [vmem:[#allocation7 + $0x3e8] sm:$0xff]
    %v4002 = vld [vmem:[#allocation7 + $0x3f0] sm:$0xff]
    %v4003 = vld [vmem:[#allocation7 + $0x3f8] sm:$0xff]
    %v4004 = vld [vmem:[#allocation7 + $0x400] sm:$0xff]
    %v4005 = vld [vmem:[#allocation7 + $0x408] sm:$0xff]
    %v4006 = vld [vmem:[#allocation7 + $0x410] sm:$0xff]
    %v4007 = vld [vmem:[#allocation7 + $0x418] sm:$0xff]
    %v4008 = vld [vmem:[#allocation7 + $0x420] sm:$0xff]
    %v4009 = vld [vmem:[#allocation7 + $0x428] sm:$0xff]
    %v4010 = vld [vmem:[#allocation7 + $0x430] sm:$0xff]
    %v4011 = vld [vmem:[#allocation7 + $0x438] sm:$0xff]
    %v4012 = vld [vmem:[#allocation7 + $0x440] sm:$0xff]
    %v4013 = vld [vmem:[#allocation7 + $0x448] sm:$0xff]
    %v4014 = vld [vmem:[#allocation7 + $0x450] sm:$0xff]
    %v4015 = vld [vmem:[#allocation7 + $0x458] sm:$0xff]
    %v4016 = vld [vmem:[#allocation7 + $0x460] sm:$0xff]
    %v4017 = vld [vmem:[#allocation7 + $0x468] sm:$0xff]
    %v4018 = vld [vmem:[#allocation7 + $0x470] sm:$0xff]
    %v4019 = vld [vmem:[#allocation7 + $0x478] sm:$0xff]
    %v4020 = vld [vmem:[#allocation7 + $0x480] sm:$0xff]
    %v4021 = vld [vmem:[#allocation7 + $0x488] sm:$0xff]
    %v4022 = vld [vmem:[#allocation7 + $0x490] sm:$0xff]
    %v4023 = vld [vmem:[#allocation7 + $0x498] sm:$0xff]
    %v4024 = vld [vmem:[#allocation7 + $0x4a0] sm:$0xff]
    %v4025 = vld [vmem:[#allocation7 + $0x4a8] sm:$0xff]
    %v4026 = vld [vmem:[#allocation7 + $0x4b0] sm:$0xff]
    %v4027 = vld [vmem:[#allocation7 + $0x4b8] sm:$0xff]
    %v4028 = vld [vmem:[#allocation7 + $0x4c0] sm:$0xff]
    %v4029 = vld [vmem:[#allocation7 + $0x4c8] sm:$0xff]
    %v4030 = vld [vmem:[#allocation7 + $0x4d0] sm:$0xff]
    %v4031 = vld [vmem:[#allocation7 + $0x4d8] sm:$0xff]
    %v4032 = vld [vmem:[#allocation7 + $0x4e0] sm:$0xff]
    %v4033 = vld [vmem:[#allocation7 + $0x4e8] sm:$0xff]
    %v4034 = vld [vmem:[#allocation7 + $0x4f0] sm:$0xff]
    %v4035 = vld [vmem:[#allocation7 + $0x4f8] sm:$0xff]
    %v4036 = vld [vmem:[#allocation7 + $0x500] sm:$0xff]
    %v4037 = vld [vmem:[#allocation7 + $0x508] sm:$0xff]
    %v4038 = vld [vmem:[#allocation7 + $0x510] sm:$0xff]
    %v4039 = vld [vmem:[#allocation7 + $0x518] sm:$0xff]
    %v4040 = vld [vmem:[#allocation7 + $0x520] sm:$0xff]
    %v4041 = vld [vmem:[#allocation7 + $0x528] sm:$0xff]
    %v4042 = vld [vmem:[#allocation7 + $0x530] sm:$0xff]
    %v4043 = vld [vmem:[#allocation7 + $0x538] sm:$0xff]
    %v4044 = vld [vmem:[#allocation7 + $0x540] sm:$0xff]
    %v4045 = vld [vmem:[#allocation7 + $0x548] sm:$0xff]
    %v4046 = vld [vmem:[#allocation7 + $0x550] sm:$0xff]
    %v4047 = vld [vmem:[#allocation7 + $0x558] sm:$0xff]
    %v4048 = vld [vmem:[#allocation7 + $0x560] sm:$0xff]
    %v4049 = vld [vmem:[#allocation7 + $0x568] sm:$0xff]
    %v4050 = vld [vmem:[#allocation7 + $0x570] sm:$0xff]
    %v4051 = vld [vmem:[#allocation7 + $0x578] sm:$0xff]
    %v4052 = vld [vmem:[#allocation7 + $0x580] sm:$0xff]
    %v4053 = vld [vmem:[#allocation7 + $0x588] sm:$0xff]
    %v4054 = vld [vmem:[#allocation7 + $0x590] sm:$0xff]
    %v4055 = vld [vmem:[#allocation7 + $0x598] sm:$0xff]
    %v4056 = vld [vmem:[#allocation7 + $0x5a0] sm:$0xff]
    %v4057 = vld [vmem:[#allocation7 + $0x5a8] sm:$0xff]
    %v4058 = vld [vmem:[#allocation7 + $0x5b0] sm:$0xff]
    %v4059 = vld [vmem:[#allocation7 + $0x5b8] sm:$0xff]
    %v4060 = vld [vmem:[#allocation7 + $0x5c0] sm:$0xff]
    %v4061 = vld [vmem:[#allocation7 + $0x5c8] sm:$0xff]
    %v4062 = vld [vmem:[#allocation7 + $0x5d0] sm:$0xff]
    %v4063 = vld [vmem:[#allocation7 + $0x5d8] sm:$0xff]
    %v4064 = vld [vmem:[#allocation7 + $0x5e0] sm:$0xff]
    %v4065 = vld [vmem:[#allocation7 + $0x5e8] sm:$0xff]
    %v4066 = vld [vmem:[#allocation7 + $0x5f0] sm:$0xff]
    %v4067 = vld [vmem:[#allocation7 + $0x5f8] sm:$0xff]
    %v4068 = vld [vmem:[#allocation7 + $0x600] sm:$0xff]
    %v4069 = vld [vmem:[#allocation7 + $0x608] sm:$0xff]
    %v4070 = vld [vmem:[#allocation7 + $0x610] sm:$0xff]
    %v4071 = vld [vmem:[#allocation7 + $0x618] sm:$0xff]
    %v4072 = vld [vmem:[#allocation7 + $0x620] sm:$0xff]
    %v4073 = vld [vmem:[#allocation7 + $0x628] sm:$0xff]
    %v4074 = vld [vmem:[#allocation7 + $0x630] sm:$0xff]
    %v4075 = vld [vmem:[#allocation7 + $0x638] sm:$0xff]
    %v4076 = vld [vmem:[#allocation7 + $0x640] sm:$0xff]
    %v4077 = vld [vmem:[#allocation7 + $0x648] sm:$0xff]
    %v4078 = vld [vmem:[#allocation7 + $0x650] sm:$0xff]
    %v4079 = vld [vmem:[#allocation7 + $0x658] sm:$0xff]
    %v4080 = vld [vmem:[#allocation7 + $0x660] sm:$0xff]
    %v4081 = vld [vmem:[#allocation7 + $0x668] sm:$0xff]
    %v4082 = vld [vmem:[#allocation7 + $0x670] sm:$0xff]
    %v4083 = vld [vmem:[#allocation7 + $0x678] sm:$0xff]
    %v4084 = vld [vmem:[#allocation7 + $0x680] sm:$0xff]
    %v4085 = vld [vmem:[#allocation7 + $0x688] sm:$0xff]
    %v4086 = vld [vmem:[#allocation7 + $0x690] sm:$0xff]
    %v4087 = vld [vmem:[#allocation7 + $0x698] sm:$0xff]
    %v4088 = vld [vmem:[#allocation7 + $0x6a0] sm:$0xff]
    %v4089 = vld [vmem:[#allocation7 + $0x6a8] sm:$0xff]
    %v4090 = vld [vmem:[#allocation7 + $0x6b0] sm:$0xff]
    %v4091 = vld [vmem:[#allocation7 + $0x6b8] sm:$0xff]
    %v4092 = vld [vmem:[#allocation7 + $0x6c0] sm:$0xff]
    %v4093 = vld [vmem:[#allocation7 + $0x6c8] sm:$0xff]
    %v4094 = vld [vmem:[#allocation7 + $0x6d0] sm:$0xff]
    %v4095 = vld [vmem:[#allocation7 + $0x6d8] sm:$0xff]
    %v4096 = vld [vmem:[#allocation7 + $0x6e0] sm:$0xff]
    %v4097 = vld [vmem:[#allocation7 + $0x6e8] sm:$0xff]
    %v4098 = vld [vmem:[#allocation7 + $0x6f0] sm:$0xff]
    %v4099 = vld [vmem:[#allocation7 + $0x6f8] sm:$0xff]
    %v4100 = vld [vmem:[#allocation7 + $0x700] sm:$0xff]
    %v4101 = vld [vmem:[#allocation7 + $0x708] sm:$0xff]
    %v4102 = vld [vmem:[#allocation7 + $0x710] sm:$0xff]
    %v4103 = vld [vmem:[#allocation7 + $0x718] sm:$0xff]
    %v4104 = vld [vmem:[#allocation7 + $0x720] sm:$0xff]
    %v4105 = vld [vmem:[#allocation7 + $0x728] sm:$0xff]
    %v4106 = vld [vmem:[#allocation7 + $0x730] sm:$0xff]
    %v4107 = vld [vmem:[#allocation7 + $0x738] sm:$0xff]
    %v4108 = vld [vmem:[#allocation7 + $0x740] sm:$0xff]
    %v4109 = vld [vmem:[#allocation7 + $0x748] sm:$0xff]
    %v4110 = vld [vmem:[#allocation7 + $0x750] sm:$0xff]
    %v4111 = vld [vmem:[#allocation7 + $0x758] sm:$0xff]
    %v4112 = vld [vmem:[#allocation7 + $0x760] sm:$0xff]
    %v4113 = vld [vmem:[#allocation7 + $0x768] sm:$0xff]
    %v4114 = vld [vmem:[#allocation7 + $0x770] sm:$0xff]
    %v4115 = vld [vmem:[#allocation7 + $0x778] sm:$0xff]
    %v4116 = vld [vmem:[#allocation7 + $0x780] sm:$0xff]
    %v4117 = vld [vmem:[#allocation7 + $0x788] sm:$0xff]
    %v4118 = vld [vmem:[#allocation7 + $0x790] sm:$0xff]
    %v4119 = vld [vmem:[#allocation7 + $0x798] sm:$0xff]
    %v4120 = vld [vmem:[#allocation7 + $0x7a0] sm:$0xff]
    %v4121 = vld [vmem:[#allocation7 + $0x7a8] sm:$0xff]
    %v4122 = vld [vmem:[#allocation7 + $0x7b0] sm:$0xff]
    %v4123 = vld [vmem:[#allocation7 + $0x7b8] sm:$0xff]
    %v4124 = vld [vmem:[#allocation7 + $0x7c0] sm:$0xff]
    %v4125 = vld [vmem:[#allocation7 + $0x7c8] sm:$0xff]
    %v4126 = vld [vmem:[#allocation7 + $0x7d0] sm:$0xff]
    %v4127 = vld [vmem:[#allocation7 + $0x7d8] sm:$0xff]
    %v4128 = vld [vmem:[#allocation7 + $0x7e0] sm:$0xff]
    %v4129 = vld [vmem:[#allocation7 + $0x7e8] sm:$0xff]
    %v4130 = vld [vmem:[#allocation7 + $0x7f0] sm:$0xff]
    %v4131 = vld [vmem:[#allocation7 + $0x7f8] sm:$0xff]
    %v4132 = vld [vmem:[#allocation7 + $0x800] sm:$0xff]
    %v4133 = vld [vmem:[#allocation7 + $0x808] sm:$0xff]
    %v4134 = vld [vmem:[#allocation7 + $0x810] sm:$0xff]
    %v4135 = vld [vmem:[#allocation7 + $0x818] sm:$0xff]
    %v4136 = vld [vmem:[#allocation7 + $0x820] sm:$0xff]
    %v4137 = vld [vmem:[#allocation7 + $0x828] sm:$0xff]
    %v4138 = vld [vmem:[#allocation7 + $0x830] sm:$0xff]
    %v4139 = vld [vmem:[#allocation7 + $0x838] sm:$0xff]
    %v4140 = vld [vmem:[#allocation7 + $0x840] sm:$0xff]
    %v4141 = vld [vmem:[#allocation7 + $0x848] sm:$0xff]
    %v4142 = vld [vmem:[#allocation7 + $0x850] sm:$0xff]
    %v4143 = vld [vmem:[#allocation7 + $0x858] sm:$0xff]
    %v4144 = vld [vmem:[#allocation7 + $0x860] sm:$0xff]
    %v4145 = vld [vmem:[#allocation7 + $0x868] sm:$0xff]
    %v4146 = vld [vmem:[#allocation7 + $0x870] sm:$0xff]
    %v4147 = vld [vmem:[#allocation7 + $0x878] sm:$0xff]
    %v4148 = vld [vmem:[#allocation7 + $0x880] sm:$0xff]
    %v4149 = vld [vmem:[#allocation7 + $0x888] sm:$0xff]
    %v4150 = vld [vmem:[#allocation7 + $0x890] sm:$0xff]
    %v4151 = vld [vmem:[#allocation7 + $0x898] sm:$0xff]
    %v4152 = vld [vmem:[#allocation7 + $0x8a0] sm:$0xff]
    %v4153 = vld [vmem:[#allocation7 + $0x8a8] sm:$0xff]
    %v4154 = vld [vmem:[#allocation7 + $0x8b0] sm:$0xff]
    %v4155 = vld [vmem:[#allocation7 + $0x8b8] sm:$0xff]
    %v4156 = vld [vmem:[#allocation7 + $0x8c0] sm:$0xff]
    %v4157 = vld [vmem:[#allocation7 + $0x8c8] sm:$0xff]
    %v4158 = vld [vmem:[#allocation7 + $0x8d0] sm:$0xff]
    %v4159 = vld [vmem:[#allocation7 + $0x8d8] sm:$0xff]
    %v4160 = vld [vmem:[#allocation7 + $0x8e0] sm:$0xff]
    %v4161 = vld [vmem:[#allocation7 + $0x8e8] sm:$0xff]
    %v4162 = vld [vmem:[#allocation7 + $0x8f0] sm:$0xff]
    %v4163 = vld [vmem:[#allocation7 + $0x8f8] sm:$0xff]
    %v4164 = vld [vmem:[#allocation7 + $0x900] sm:$0xff]
    %v4165 = vld [vmem:[#allocation7 + $0x908] sm:$0xff]
    %v4166 = vld [vmem:[#allocation7 + $0x910] sm:$0xff]
    %v4167 = vld [vmem:[#allocation7 + $0x918] sm:$0xff]
    %v4168 = vld [vmem:[#allocation7 + $0x920] sm:$0xff]
    %v4169 = vld [vmem:[#allocation7 + $0x928] sm:$0xff]
    %v4170 = vld [vmem:[#allocation7 + $0x930] sm:$0xff]
    %v4171 = vld [vmem:[#allocation7 + $0x938] sm:$0xff]
    %v4172 = vld [vmem:[#allocation7 + $0x940] sm:$0xff]
    %v4173 = vld [vmem:[#allocation7 + $0x948] sm:$0xff]
    %v4174 = vld [vmem:[#allocation7 + $0x950] sm:$0xff]
    %v4175 = vld [vmem:[#allocation7 + $0x958] sm:$0xff]
    %v4176 = vld [vmem:[#allocation7 + $0x960] sm:$0xff]
    %v4177 = vld [vmem:[#allocation7 + $0x968] sm:$0xff]
    %v4178 = vld [vmem:[#allocation7 + $0x970] sm:$0xff]
    %v4179 = vld [vmem:[#allocation7 + $0x978] sm:$0xff]
    %v4180 = vld [vmem:[#allocation7 + $0x980] sm:$0xff]
    %v4181 = vld [vmem:[#allocation7 + $0x988] sm:$0xff]
    %v4182 = vld [vmem:[#allocation7 + $0x990] sm:$0xff]
    %v4183 = vld [vmem:[#allocation7 + $0x998] sm:$0xff]
    %v4184 = vld [vmem:[#allocation7 + $0x9a0] sm:$0xff]
    %v4185 = vld [vmem:[#allocation7 + $0x9a8] sm:$0xff]
    %v4186 = vld [vmem:[#allocation7 + $0x9b0] sm:$0xff]
    %v4187 = vld [vmem:[#allocation7 + $0x9b8] sm:$0xff]
    %v4188 = vld [vmem:[#allocation7 + $0x9c0] sm:$0xff]
    %v4189 = vld [vmem:[#allocation7 + $0x9c8] sm:$0xff]
    %v4190 = vld [vmem:[#allocation7 + $0x9d0] sm:$0xff]
    %v4191 = vld [vmem:[#allocation7 + $0x9d8] sm:$0xff]
    %v4192 = vld [vmem:[#allocation7 + $0x9e0] sm:$0xff]
    %v4193 = vld [vmem:[#allocation7 + $0x9e8] sm:$0xff]
    %v4194 = vld [vmem:[#allocation7 + $0x9f0] sm:$0xff]
    %v4195 = vld [vmem:[#allocation7 + $0x9f8] sm:$0xff]
    %v4196 = vld [vmem:[#allocation7 + $0xa00] sm:$0xff]
    %v4197 = vld [vmem:[#allocation7 + $0xa08] sm:$0xff]
    %v4198 = vld [vmem:[#allocation7 + $0xa10] sm:$0xff]
    %v4199 = vld [vmem:[#allocation7 + $0xa18] sm:$0xff]
    %v4200 = vld [vmem:[#allocation7 + $0xa20] sm:$0xff]
    %v4201 = vld [vmem:[#allocation7 + $0xa28] sm:$0xff]
    %v4202 = vld [vmem:[#allocation7 + $0xa30] sm:$0xff]
    %v4203 = vld [vmem:[#allocation7 + $0xa38] sm:$0xff]
    %v4204 = vld [vmem:[#allocation7 + $0xa40] sm:$0xff]
    %v4205 = vld [vmem:[#allocation7 + $0xa48] sm:$0xff]
    %v4206 = vld [vmem:[#allocation7 + $0xa50] sm:$0xff]
    %v4207 = vld [vmem:[#allocation7 + $0xa58] sm:$0xff]
    %v4208 = vld [vmem:[#allocation7 + $0xa60] sm:$0xff]
    %v4209 = vld [vmem:[#allocation7 + $0xa68] sm:$0xff]
    %v4210 = vld [vmem:[#allocation7 + $0xa70] sm:$0xff]
    %v4211 = vld [vmem:[#allocation7 + $0xa78] sm:$0xff]
    %v4212 = vld [vmem:[#allocation7 + $0xa80] sm:$0xff]
    %v4213 = vld [vmem:[#allocation7 + $0xa88] sm:$0xff]
    %v4214 = vld [vmem:[#allocation7 + $0xa90] sm:$0xff]
    %v4215 = vld [vmem:[#allocation7 + $0xa98] sm:$0xff]
    %v4216 = vld [vmem:[#allocation7 + $0xaa0] sm:$0xff]
    %v4217 = vld [vmem:[#allocation7 + $0xaa8] sm:$0xff]
    %v4218 = vld [vmem:[#allocation7 + $0xab0] sm:$0xff]
    %v4219 = vld [vmem:[#allocation7 + $0xab8] sm:$0xff]
    %v4220 = vld [vmem:[#allocation7 + $0xac0] sm:$0xff]
    %v4221 = vld [vmem:[#allocation7 + $0xac8] sm:$0xff]
    %v4222 = vld [vmem:[#allocation7 + $0xad0] sm:$0xff]
    %v4223 = vld [vmem:[#allocation7 + $0xad8] sm:$0xff]
    %v4224 = vld [vmem:[#allocation7 + $0xae0] sm:$0xff]
    %v4225 = vld [vmem:[#allocation7 + $0xae8] sm:$0xff]
    %v4226 = vld [vmem:[#allocation7 + $0xaf0] sm:$0xff]
    %v4227 = vld [vmem:[#allocation7 + $0xaf8] sm:$0xff]
    %v4228 = vld [vmem:[#allocation7 + $0xb00] sm:$0xff]
    %v4229 = vld [vmem:[#allocation7 + $0xb08] sm:$0xff]
    %v4230 = vld [vmem:[#allocation7 + $0xb10] sm:$0xff]
    %v4231 = vld [vmem:[#allocation7 + $0xb18] sm:$0xff]
    %v4232 = vld [vmem:[#allocation7 + $0xb20] sm:$0xff]
    %v4233 = vld [vmem:[#allocation7 + $0xb28] sm:$0xff]
    %v4234 = vld [vmem:[#allocation7 + $0xb30] sm:$0xff]
    %v4235 = vld [vmem:[#allocation7 + $0xb38] sm:$0xff]
    %v4236 = vld [vmem:[#allocation7 + $0xb40] sm:$0xff]
    %v4237 = vld [vmem:[#allocation7 + $0xb48] sm:$0xff]
    %v4238 = vld [vmem:[#allocation7 + $0xb50] sm:$0xff]
    %v4239 = vld [vmem:[#allocation7 + $0xb58] sm:$0xff]
    %v4240 = vld [vmem:[#allocation7 + $0xb60] sm:$0xff]
    %v4241 = vld [vmem:[#allocation7 + $0xb68] sm:$0xff]
    %v4242 = vld [vmem:[#allocation7 + $0xb70] sm:$0xff]
    %v4243 = vld [vmem:[#allocation7 + $0xb78] sm:$0xff]
    %v4244 = vld [vmem:[#allocation7 + $0xb80] sm:$0xff]
    %v4245 = vld [vmem:[#allocation7 + $0xb88] sm:$0xff]
    %v4246 = vld [vmem:[#allocation7 + $0xb90] sm:$0xff]
    %v4247 = vld [vmem:[#allocation7 + $0xb98] sm:$0xff]
    %v4248 = vld [vmem:[#allocation7 + $0xba0] sm:$0xff]
    %v4249 = vld [vmem:[#allocation7 + $0xba8] sm:$0xff]
    %v4250 = vld [vmem:[#allocation7 + $0xbb0] sm:$0xff]
    %v4251 = vld [vmem:[#allocation7 + $0xbb8] sm:$0xff]
    %v4252 = vld [vmem:[#allocation7 + $0xbc0] sm:$0xff]
    %v4253 = vld [vmem:[#allocation7 + $0xbc8] sm:$0xff]
    %v4254 = vld [vmem:[#allocation7 + $0xbd0] sm:$0xff]
    %v4255 = vld [vmem:[#allocation7 + $0xbd8] sm:$0xff]
    %v4256 = vld [vmem:[#allocation7 + $0xbe0] sm:$0xff]
    %v4257 = vld [vmem:[#allocation7 + $0xbe8] sm:$0xff]
    %v4258 = vld [vmem:[#allocation7 + $0xbf0] sm:$0xff]
    %v4259 = vld [vmem:[#allocation7 + $0xbf8] sm:$0xff]
    %v4260 = vld [vmem:[#allocation7 + $0xc00] sm:$0xff]
    %v4261 = vld [vmem:[#allocation7 + $0xc08] sm:$0xff]
    %v4262 = vld [vmem:[#allocation7 + $0xc10] sm:$0xff]
    %v4263 = vld [vmem:[#allocation7 + $0xc18] sm:$0xff]
    %v4264 = vld [vmem:[#allocation7 + $0xc20] sm:$0xff]
    %v4265 = vld [vmem:[#allocation7 + $0xc28] sm:$0xff]
    %v4266 = vld [vmem:[#allocation7 + $0xc30] sm:$0xff]
    %v4267 = vld [vmem:[#allocation7 + $0xc38] sm:$0xff]
    %v4268 = vld [vmem:[#allocation7 + $0xc40] sm:$0xff]
    %v4269 = vld [vmem:[#allocation7 + $0xc48] sm:$0xff]
    %v4270 = vld [vmem:[#allocation7 + $0xc50] sm:$0xff]
    %v4271 = vld [vmem:[#allocation7 + $0xc58] sm:$0xff]
    %v4272 = vld [vmem:[#allocation7 + $0xc60] sm:$0xff]
    %v4273 = vld [vmem:[#allocation7 + $0xc68] sm:$0xff]
    %v4274 = vld [vmem:[#allocation7 + $0xc70] sm:$0xff]
    %v4275 = vld [vmem:[#allocation7 + $0xc78] sm:$0xff]
    %v4276 = vld [vmem:[#allocation7 + $0xc80] sm:$0xff]
    %v4277 = vld [vmem:[#allocation7 + $0xc88] sm:$0xff]
    %v4278 = vld [vmem:[#allocation7 + $0xc90] sm:$0xff]
    %v4279 = vld [vmem:[#allocation7 + $0xc98] sm:$0xff]
    %v4280 = vld [vmem:[#allocation7 + $0xca0] sm:$0xff]
    %v4281 = vld [vmem:[#allocation7 + $0xca8] sm:$0xff]
    %v4282 = vld [vmem:[#allocation7 + $0xcb0] sm:$0xff]
    %v4283 = vld [vmem:[#allocation7 + $0xcb8] sm:$0xff]
    %v4284 = vld [vmem:[#allocation7 + $0xcc0] sm:$0xff]
    %v4285 = vld [vmem:[#allocation7 + $0xcc8] sm:$0xff]
    %v4286 = vld [vmem:[#allocation7 + $0xcd0] sm:$0xff]
    %v4287 = vld [vmem:[#allocation7 + $0xcd8] sm:$0xff]
    %v4288 = vld [vmem:[#allocation7 + $0xce0] sm:$0xff]
    %v4289 = vld [vmem:[#allocation7 + $0xce8] sm:$0xff]
    %v4290 = vld [vmem:[#allocation7 + $0xcf0] sm:$0xff]
    %v4291 = vld [vmem:[#allocation7 + $0xcf8] sm:$0xff]
    %v4292 = vld [vmem:[#allocation7 + $0xd00] sm:$0xff]
    %v4293 = vld [vmem:[#allocation7 + $0xd08] sm:$0xff]
    %v4294 = vld [vmem:[#allocation7 + $0xd10] sm:$0xff]
    %v4295 = vld [vmem:[#allocation7 + $0xd18] sm:$0xff]
    %v4296 = vld [vmem:[#allocation7 + $0xd20] sm:$0xff]
    %v4297 = vld [vmem:[#allocation7 + $0xd28] sm:$0xff]
    %v4298 = vld [vmem:[#allocation7 + $0xd30] sm:$0xff]
    %v4299 = vld [vmem:[#allocation7 + $0xd38] sm:$0xff]
    %v4300 = vld [vmem:[#allocation7 + $0xd40] sm:$0xff]
    %v4301 = vld [vmem:[#allocation7 + $0xd48] sm:$0xff]
    %v4302 = vld [vmem:[#allocation7 + $0xd50] sm:$0xff]
    %v4303 = vld [vmem:[#allocation7 + $0xd58] sm:$0xff]
    %v4304 = vld [vmem:[#allocation7 + $0xd60] sm:$0xff]
    %v4305 = vld [vmem:[#allocation7 + $0xd68] sm:$0xff]
    %v4306 = vld [vmem:[#allocation7 + $0xd70] sm:$0xff]
    %v4307 = vld [vmem:[#allocation7 + $0xd78] sm:$0xff]
    %v4308 = vld [vmem:[#allocation7 + $0xd80] sm:$0xff]
    %v4309 = vld [vmem:[#allocation7 + $0xd88] sm:$0xff]
    %v4310 = vld [vmem:[#allocation7 + $0xd90] sm:$0xff]
    %v4311 = vld [vmem:[#allocation7 + $0xd98] sm:$0xff]
    %v4312 = vld [vmem:[#allocation7 + $0xda0] sm:$0xff]
    %v4313 = vld [vmem:[#allocation7 + $0xda8] sm:$0xff]
    %v4314 = vld [vmem:[#allocation7 + $0xdb0] sm:$0xff]
    %v4315 = vld [vmem:[#allocation7 + $0xdb8] sm:$0xff]
    %v4316 = vld [vmem:[#allocation7 + $0xdc0] sm:$0xff]
    %v4317 = vld [vmem:[#allocation7 + $0xdc8] sm:$0xff]
    %v4318 = vld [vmem:[#allocation7 + $0xdd0] sm:$0xff]
    %v4319 = vld [vmem:[#allocation7 + $0xdd8] sm:$0xff]
    %v4320 = vld [vmem:[#allocation7 + $0xde0] sm:$0xff]
    %v4321 = vld [vmem:[#allocation7 + $0xde8] sm:$0xff]
    %v4322 = vld [vmem:[#allocation7 + $0xdf0] sm:$0xff]
    %v4323 = vld [vmem:[#allocation7 + $0xdf8] sm:$0xff]
    %v4324 = vld [vmem:[#allocation7 + $0xe00] sm:$0xff]
    %v4325 = vld [vmem:[#allocation7 + $0xe08] sm:$0xff]
    %v4326 = vld [vmem:[#allocation7 + $0xe10] sm:$0xff]
    %v4327 = vld [vmem:[#allocation7 + $0xe18] sm:$0xff]
    %v4328 = vld [vmem:[#allocation7 + $0xe20] sm:$0xff]
    %v4329 = vld [vmem:[#allocation7 + $0xe28] sm:$0xff]
    %v4330 = vld [vmem:[#allocation7 + $0xe30] sm:$0xff]
    %v4331 = vld [vmem:[#allocation7 + $0xe38] sm:$0xff]
    %v4332 = vld [vmem:[#allocation7 + $0xe40] sm:$0xff]
    %v4333 = vld [vmem:[#allocation7 + $0xe48] sm:$0xff]
    %v4334 = vld [vmem:[#allocation7 + $0xe50] sm:$0xff]
    %v4335 = vld [vmem:[#allocation7 + $0xe58] sm:$0xff]
    %v4336 = vld [vmem:[#allocation7 + $0xe60] sm:$0xff]
    %v4337 = vld [vmem:[#allocation7 + $0xe68] sm:$0xff]
    %v4338 = vld [vmem:[#allocation7 + $0xe70] sm:$0xff]
    %v4339 = vld [vmem:[#allocation7 + $0xe78] sm:$0xff]
    %v4340 = vld [vmem:[#allocation7 + $0xe80] sm:$0xff]
    %v4341 = vld [vmem:[#allocation7 + $0xe88] sm:$0xff]
    %v4342 = vld [vmem:[#allocation7 + $0xe90] sm:$0xff]
    %v4343 = vld [vmem:[#allocation7 + $0xe98] sm:$0xff]
    %v4344 = vld [vmem:[#allocation7 + $0xea0] sm:$0xff]
    %v4345 = vld [vmem:[#allocation7 + $0xea8] sm:$0xff]
    %v4346 = vld [vmem:[#allocation7 + $0xeb0] sm:$0xff]
    %v4347 = vld [vmem:[#allocation7 + $0xeb8] sm:$0xff]
    %v4348 = vld [vmem:[#allocation7 + $0xec0] sm:$0xff]
    %v4349 = vld [vmem:[#allocation7 + $0xec8] sm:$0xff]
    %v4350 = vld [vmem:[#allocation7 + $0xed0] sm:$0xff]
    %v4351 = vld [vmem:[#allocation7 + $0xed8] sm:$0xff]
    %v4352 = vld [vmem:[#allocation7 + $0xee0] sm:$0xff]
    %v4353 = vld [vmem:[#allocation7 + $0xee8] sm:$0xff]
    %v4354 = vld [vmem:[#allocation7 + $0xef0] sm:$0xff]
    %v4355 = vld [vmem:[#allocation7 + $0xef8] sm:$0xff]
    %v4356 = vld [vmem:[#allocation7 + $0xf00] sm:$0xff]
    %v4357 = vld [vmem:[#allocation7 + $0xf08] sm:$0xff]
    %v4358 = vld [vmem:[#allocation7 + $0xf10] sm:$0xff]
    %v4359 = vld [vmem:[#allocation7 + $0xf18] sm:$0xff]
    %v4360 = vld [vmem:[#allocation7 + $0xf20] sm:$0xff]
    %v4361 = vld [vmem:[#allocation7 + $0xf28] sm:$0xff]
    %v4362 = vld [vmem:[#allocation7 + $0xf30] sm:$0xff]
    %v4363 = vld [vmem:[#allocation7 + $0xf38] sm:$0xff]
    %v4364 = vld [vmem:[#allocation7 + $0xf40] sm:$0xff]
    %v4365 = vld [vmem:[#allocation7 + $0xf48] sm:$0xff]
    %v4366 = vld [vmem:[#allocation7 + $0xf50] sm:$0xff]
    %v4367 = vld [vmem:[#allocation7 + $0xf58] sm:$0xff]
    %v4368 = vld [vmem:[#allocation7 + $0xf60] sm:$0xff]
    %v4369 = vld [vmem:[#allocation7 + $0xf68] sm:$0xff]
    %v4370 = vld [vmem:[#allocation7 + $0xf70] sm:$0xff]
    %v4371 = vld [vmem:[#allocation7 + $0xf78] sm:$0xff]
    %v4372 = vld [vmem:[#allocation7 + $0xf80] sm:$0xff]
    %v4373 = vld [vmem:[#allocation7 + $0xf88] sm:$0xff]
    %v4374 = vld [vmem:[#allocation7 + $0xf90] sm:$0xff]
    %v4375 = vld [vmem:[#allocation7 + $0xf98] sm:$0xff]
    %v4376 = vld [vmem:[#allocation7 + $0xfa0] sm:$0xff]
    %v4377 = vld [vmem:[#allocation7 + $0xfa8] sm:$0xff]
    %v4378 = vld [vmem:[#allocation7 + $0xfb0] sm:$0xff]
    %v4379 = vld [vmem:[#allocation7 + $0xfb8] sm:$0xff]
    %v4380 = vld [vmem:[#allocation7 + $0xfc0] sm:$0xff]
    %v4381 = vld [vmem:[#allocation7 + $0xfc8] sm:$0xff]
    %v4382 = vld [vmem:[#allocation7 + $0xfd0] sm:$0xff]
    %v4383 = vld [vmem:[#allocation7 + $0xfd8] sm:$0xff]
    %v4384 = vld [vmem:[#allocation7 + $0xfe0] sm:$0xff]
    %v4385 = vld [vmem:[#allocation7 + $0xfe8] sm:$0xff]
    %v4386 = vld [vmem:[#allocation7 + $0xff0] sm:$0xff]
    %v4387 = vld [vmem:[#allocation7 + $0xff8] sm:$0xff]
    %v4900 = vunpack.c.l.b16 %v3876
    %v4901 = vunpack.c.h.b16 %v3876
    %v4902 = vunpack.c.l.b16 %v3877
    %v4903 = vunpack.c.h.b16 %v3877
    %v4904 = vunpack.c.l.b16 %v3878
    %v4905 = vunpack.c.h.b16 %v3878
    %v4906 = vunpack.c.l.b16 %v3879
    %v4907 = vunpack.c.h.b16 %v3879
    %v4908 = vunpack.c.l.b16 %v3880
    %v4909 = vunpack.c.h.b16 %v3880
    %v4910 = vunpack.c.l.b16 %v3881
    %v4911 = vunpack.c.h.b16 %v3881
    %v4912 = vunpack.c.l.b16 %v3882
    %v4913 = vunpack.c.h.b16 %v3882
    %v4914 = vunpack.c.l.b16 %v3883
    %v4915 = vunpack.c.h.b16 %v3883
    %v4916 = vunpack.c.l.b16 %v3884
    %v4917 = vunpack.c.h.b16 %v3884
    %v4918 = vunpack.c.l.b16 %v3885
    %v4919 = vunpack.c.h.b16 %v3885
    %v4920 = vunpack.c.l.b16 %v3886
    %v4921 = vunpack.c.h.b16 %v3886
    %v4922 = vunpack.c.l.b16 %v3887
    %v4923 = vunpack.c.h.b16 %v3887
    %v4924 = vunpack.c.l.b16 %v3888
    %v4925 = vunpack.c.h.b16 %v3888
    %v4926 = vunpack.c.l.b16 %v3889
    %v4927 = vunpack.c.h.b16 %v3889
    %v4928 = vunpack.c.l.b16 %v3890
    %v4929 = vunpack.c.h.b16 %v3890
    %v4930 = vunpack.c.l.b16 %v3891
    %v4931 = vunpack.c.h.b16 %v3891
    %v4932 = vunpack.c.l.b16 %v3892
    %v4933 = vunpack.c.h.b16 %v3892
    %v4934 = vunpack.c.l.b16 %v3893
    %v4935 = vunpack.c.h.b16 %v3893
    %v4936 = vunpack.c.l.b16 %v3894
    %v4937 = vunpack.c.h.b16 %v3894
    %v4938 = vunpack.c.l.b16 %v3895
    %v4939 = vunpack.c.h.b16 %v3895
    %v4940 = vunpack.c.l.b16 %v3896
    %v4941 = vunpack.c.h.b16 %v3896
    %v4942 = vunpack.c.l.b16 %v3897
    %v4943 = vunpack.c.h.b16 %v3897
    %v4944 = vunpack.c.l.b16 %v3898
    %v4945 = vunpack.c.h.b16 %v3898
    %v4946 = vunpack.c.l.b16 %v3899
    %v4947 = vunpack.c.h.b16 %v3899
    %v4948 = vunpack.c.l.b16 %v3900
    %v4949 = vunpack.c.h.b16 %v3900
    %v4950 = vunpack.c.l.b16 %v3901
    %v4951 = vunpack.c.h.b16 %v3901
    %v4952 = vunpack.c.l.b16 %v3902
    %v4953 = vunpack.c.h.b16 %v3902
    %v4954 = vunpack.c.l.b16 %v3903
    %v4955 = vunpack.c.h.b16 %v3903
    %v4956 = vunpack.c.l.b16 %v3904
    %v4957 = vunpack.c.h.b16 %v3904
    %v4958 = vunpack.c.l.b16 %v3905
    %v4959 = vunpack.c.h.b16 %v3905
    %v4960 = vunpack.c.l.b16 %v3906
    %v4961 = vunpack.c.h.b16 %v3906
    %v4962 = vunpack.c.l.b16 %v3907
    %v4963 = vunpack.c.h.b16 %v3907
    %v4964 = vunpack.c.l.b16 %v3908
    %v4965 = vunpack.c.h.b16 %v3908
    %v4966 = vunpack.c.l.b16 %v3909
    %v4967 = vunpack.c.h.b16 %v3909
    %v4968 = vunpack.c.l.b16 %v3910
    %v4969 = vunpack.c.h.b16 %v3910
    %v4970 = vunpack.c.l.b16 %v3911
    %v4971 = vunpack.c.h.b16 %v3911
    %v4972 = vunpack.c.l.b16 %v3912
    %v4973 = vunpack.c.h.b16 %v3912
    %v4974 = vunpack.c.l.b16 %v3913
    %v4975 = vunpack.c.h.b16 %v3913
    %v4976 = vunpack.c.l.b16 %v3914
    %v4977 = vunpack.c.h.b16 %v3914
    %v4978 = vunpack.c.l.b16 %v3915
    %v4979 = vunpack.c.h.b16 %v3915
    %v4980 = vunpack.c.l.b16 %v3916
    %v4981 = vunpack.c.h.b16 %v3916
    %v4982 = vunpack.c.l.b16 %v3917
    %v4983 = vunpack.c.h.b16 %v3917
    %v4984 = vunpack.c.l.b16 %v3918
    %v4985 = vunpack.c.h.b16 %v3918
    %v4986 = vunpack.c.l.b16 %v3919
    %v4987 = vunpack.c.h.b16 %v3919
    %v4988 = vunpack.c.l.b16 %v3920
    %v4989 = vunpack.c.h.b16 %v3920
    %v4990 = vunpack.c.l.b16 %v3921
    %v4991 = vunpack.c.h.b16 %v3921
    %v4992 = vunpack.c.l.b16 %v3922
    %v4993 = vunpack.c.h.b16 %v3922
    %v4994 = vunpack.c.l.b16 %v3923
    %v4995 = vunpack.c.h.b16 %v3923
    %v4996 = vunpack.c.l.b16 %v3924
    %v4997 = vunpack.c.h.b16 %v3924
    %v4998 = vunpack.c.l.b16 %v3925
    %v4999 = vunpack.c.h.b16 %v3925
    %v5000 = vunpack.c.l.b16 %v3926
    %v5001 = vunpack.c.h.b16 %v3926
    %v5002 = vunpack.c.l.b16 %v3927
    %v5003 = vunpack.c.h.b16 %v3927
    %v5004 = vunpack.c.l.b16 %v3928
    %v5005 = vunpack.c.h.b16 %v3928
    %v5006 = vunpack.c.l.b16 %v3929
    %v5007 = vunpack.c.h.b16 %v3929
    %v5008 = vunpack.c.l.b16 %v3930
    %v5009 = vunpack.c.h.b16 %v3930
    %v5010 = vunpack.c.l.b16 %v3931
    %v5011 = vunpack.c.h.b16 %v3931
    %v5012 = vunpack.c.l.b16 %v3932
    %v5013 = vunpack.c.h.b16 %v3932
    %v5014 = vunpack.c.l.b16 %v3933
    %v5015 = vunpack.c.h.b16 %v3933
    %v5016 = vunpack.c.l.b16 %v3934
    %v5017 = vunpack.c.h.b16 %v3934
    %v5018 = vunpack.c.l.b16 %v3935
    %v5019 = vunpack.c.h.b16 %v3935
    %v5020 = vunpack.c.l.b16 %v3936
    %v5021 = vunpack.c.h.b16 %v3936
    %v5022 = vunpack.c.l.b16 %v3937
    %v5023 = vunpack.c.h.b16 %v3937
    %v5024 = vunpack.c.l.b16 %v3938
    %v5025 = vunpack.c.h.b16 %v3938
    %v5026 = vunpack.c.l.b16 %v3939
    %v5027 = vunpack.c.h.b16 %v3939
    %v5028 = vunpack.c.l.b16 %v3940
    %v5029 = vunpack.c.h.b16 %v3940
    %v5030 = vunpack.c.l.b16 %v3941
    %v5031 = vunpack.c.h.b16 %v3941
    %v5032 = vunpack.c.l.b16 %v3942
    %v5033 = vunpack.c.h.b16 %v3942
    %v5034 = vunpack.c.l.b16 %v3943
    %v5035 = vunpack.c.h.b16 %v3943
    %v5036 = vunpack.c.l.b16 %v3944
    %v5037 = vunpack.c.h.b16 %v3944
    %v5038 = vunpack.c.l.b16 %v3945
    %v5039 = vunpack.c.h.b16 %v3945
    %v5040 = vunpack.c.l.b16 %v3946
    %v5041 = vunpack.c.h.b16 %v3946
    %v5042 = vunpack.c.l.b16 %v3947
    %v5043 = vunpack.c.h.b16 %v3947
    %v5044 = vunpack.c.l.b16 %v3948
    %v5045 = vunpack.c.h.b16 %v3948
    %v5046 = vunpack.c.l.b16 %v3949
    %v5047 = vunpack.c.h.b16 %v3949
    %v5048 = vunpack.c.l.b16 %v3950
    %v5049 = vunpack.c.h.b16 %v3950
    %v5050 = vunpack.c.l.b16 %v3951
    %v5051 = vunpack.c.h.b16 %v3951
    %v5052 = vunpack.c.l.b16 %v3952
    %v5053 = vunpack.c.h.b16 %v3952
    %v5054 = vunpack.c.l.b16 %v3953
    %v5055 = vunpack.c.h.b16 %v3953
    %v5056 = vunpack.c.l.b16 %v3954
    %v5057 = vunpack.c.h.b16 %v3954
    %v5058 = vunpack.c.l.b16 %v3955
    %v5059 = vunpack.c.h.b16 %v3955
    %v5060 = vunpack.c.l.b16 %v3956
    %v5061 = vunpack.c.h.b16 %v3956
    %v5062 = vunpack.c.l.b16 %v3957
    %v5063 = vunpack.c.h.b16 %v3957
    %v5064 = vunpack.c.l.b16 %v3958
    %v5065 = vunpack.c.h.b16 %v3958
    %v5066 = vunpack.c.l.b16 %v3959
    %v5067 = vunpack.c.h.b16 %v3959
    %v5068 = vunpack.c.l.b16 %v3960
    %v5069 = vunpack.c.h.b16 %v3960
    %v5070 = vunpack.c.l.b16 %v3961
    %v5071 = vunpack.c.h.b16 %v3961
    %v5072 = vunpack.c.l.b16 %v3962
    %v5073 = vunpack.c.h.b16 %v3962
    %v5074 = vunpack.c.l.b16 %v3963
    %v5075 = vunpack.c.h.b16 %v3963
    %v5076 = vunpack.c.l.b16 %v3964
    %v5077 = vunpack.c.h.b16 %v3964
    %v5078 = vunpack.c.l.b16 %v3965
    %v5079 = vunpack.c.h.b16 %v3965
    %v5080 = vunpack.c.l.b16 %v3966
    %v5081 = vunpack.c.h.b16 %v3966
    %v5082 = vunpack.c.l.b16 %v3967
    %v5083 = vunpack.c.h.b16 %v3967
    %v5084 = vunpack.c.l.b16 %v3968
    %v5085 = vunpack.c.h.b16 %v3968
    %v5086 = vunpack.c.l.b16 %v3969
    %v5087 = vunpack.c.h.b16 %v3969
    %v5088 = vunpack.c.l.b16 %v3970
    %v5089 = vunpack.c.h.b16 %v3970
    %v5090 = vunpack.c.l.b16 %v3971
    %v5091 = vunpack.c.h.b16 %v3971
    %v5092 = vunpack.c.l.b16 %v3972
    %v5093 = vunpack.c.h.b16 %v3972
    %v5094 = vunpack.c.l.b16 %v3973
    %v5095 = vunpack.c.h.b16 %v3973
    %v5096 = vunpack.c.l.b16 %v3974
    %v5097 = vunpack.c.h.b16 %v3974
    %v5098 = vunpack.c.l.b16 %v3975
    %v5099 = vunpack.c.h.b16 %v3975
    %v5100 = vunpack.c.l.b16 %v3976
    %v5101 = vunpack.c.h.b16 %v3976
    %v5102 = vunpack.c.l.b16 %v3977
    %v5103 = vunpack.c.h.b16 %v3977
    %v5104 = vunpack.c.l.b16 %v3978
    %v5105 = vunpack.c.h.b16 %v3978
    %v5106 = vunpack.c.l.b16 %v3979
    %v5107 = vunpack.c.h.b16 %v3979
    %v5108 = vunpack.c.l.b16 %v3980
    %v5109 = vunpack.c.h.b16 %v3980
    %v5110 = vunpack.c.l.b16 %v3981
    %v5111 = vunpack.c.h.b16 %v3981
    %v5112 = vunpack.c.l.b16 %v3982
    %v5113 = vunpack.c.h.b16 %v3982
    %v5114 = vunpack.c.l.b16 %v3983
    %v5115 = vunpack.c.h.b16 %v3983
    %v5116 = vunpack.c.l.b16 %v3984
    %v5117 = vunpack.c.h.b16 %v3984
    %v5118 = vunpack.c.l.b16 %v3985
    %v5119 = vunpack.c.h.b16 %v3985
    %v5120 = vunpack.c.l.b16 %v3986
    %v5121 = vunpack.c.h.b16 %v3986
    %v5122 = vunpack.c.l.b16 %v3987
    %v5123 = vunpack.c.h.b16 %v3987
    %v5124 = vunpack.c.l.b16 %v3988
    %v5125 = vunpack.c.h.b16 %v3988
    %v5126 = vunpack.c.l.b16 %v3989
    %v5127 = vunpack.c.h.b16 %v3989
    %v5128 = vunpack.c.l.b16 %v3990
    %v5129 = vunpack.c.h.b16 %v3990
    %v5130 = vunpack.c.l.b16 %v3991
    %v5131 = vunpack.c.h.b16 %v3991
    %v5132 = vunpack.c.l.b16 %v3992
    %v5133 = vunpack.c.h.b16 %v3992
    %v5134 = vunpack.c.l.b16 %v3993
    %v5135 = vunpack.c.h.b16 %v3993
    %v5136 = vunpack.c.l.b16 %v3994
    %v5137 = vunpack.c.h.b16 %v3994
    %v5138 = vunpack.c.l.b16 %v3995
    %v5139 = vunpack.c.h.b16 %v3995
    %v5140 = vunpack.c.l.b16 %v3996
    %v5141 = vunpack.c.h.b16 %v3996
    %v5142 = vunpack.c.l.b16 %v3997
    %v5143 = vunpack.c.h.b16 %v3997
    %v5144 = vunpack.c.l.b16 %v3998
    %v5145 = vunpack.c.h.b16 %v3998
    %v5146 = vunpack.c.l.b16 %v3999
    %v5147 = vunpack.c.h.b16 %v3999
    %v5148 = vunpack.c.l.b16 %v4000
    %v5149 = vunpack.c.h.b16 %v4000
    %v5150 = vunpack.c.l.b16 %v4001
    %v5151 = vunpack.c.h.b16 %v4001
    %v5152 = vunpack.c.l.b16 %v4002
    %v5153 = vunpack.c.h.b16 %v4002
    %v5154 = vunpack.c.l.b16 %v4003
    %v5155 = vunpack.c.h.b16 %v4003
    %v5156 = vunpack.c.l.b16 %v4004
    %v5157 = vunpack.c.h.b16 %v4004
    %v5158 = vunpack.c.l.b16 %v4005
    %v5159 = vunpack.c.h.b16 %v4005
    %v5160 = vunpack.c.l.b16 %v4006
    %v5161 = vunpack.c.h.b16 %v4006
    %v5162 = vunpack.c.l.b16 %v4007
    %v5163 = vunpack.c.h.b16 %v4007
    %v5164 = vunpack.c.l.b16 %v4008
    %v5165 = vunpack.c.h.b16 %v4008
    %v5166 = vunpack.c.l.b16 %v4009
    %v5167 = vunpack.c.h.b16 %v4009
    %v5168 = vunpack.c.l.b16 %v4010
    %v5169 = vunpack.c.h.b16 %v4010
    %v5170 = vunpack.c.l.b16 %v4011
    %v5171 = vunpack.c.h.b16 %v4011
    %v5172 = vunpack.c.l.b16 %v4012
    %v5173 = vunpack.c.h.b16 %v4012
    %v5174 = vunpack.c.l.b16 %v4013
    %v5175 = vunpack.c.h.b16 %v4013
    %v5176 = vunpack.c.l.b16 %v4014
    %v5177 = vunpack.c.h.b16 %v4014
    %v5178 = vunpack.c.l.b16 %v4015
    %v5179 = vunpack.c.h.b16 %v4015
    %v5180 = vunpack.c.l.b16 %v4016
    %v5181 = vunpack.c.h.b16 %v4016
    %v5182 = vunpack.c.l.b16 %v4017
    %v5183 = vunpack.c.h.b16 %v4017
    %v5184 = vunpack.c.l.b16 %v4018
    %v5185 = vunpack.c.h.b16 %v4018
    %v5186 = vunpack.c.l.b16 %v4019
    %v5187 = vunpack.c.h.b16 %v4019
    %v5188 = vunpack.c.l.b16 %v4020
    %v5189 = vunpack.c.h.b16 %v4020
    %v5190 = vunpack.c.l.b16 %v4021
    %v5191 = vunpack.c.h.b16 %v4021
    %v5192 = vunpack.c.l.b16 %v4022
    %v5193 = vunpack.c.h.b16 %v4022
    %v5194 = vunpack.c.l.b16 %v4023
    %v5195 = vunpack.c.h.b16 %v4023
    %v5196 = vunpack.c.l.b16 %v4024
    %v5197 = vunpack.c.h.b16 %v4024
    %v5198 = vunpack.c.l.b16 %v4025
    %v5199 = vunpack.c.h.b16 %v4025
    %v5200 = vunpack.c.l.b16 %v4026
    %v5201 = vunpack.c.h.b16 %v4026
    %v5202 = vunpack.c.l.b16 %v4027
    %v5203 = vunpack.c.h.b16 %v4027
    %v5204 = vunpack.c.l.b16 %v4028
    %v5205 = vunpack.c.h.b16 %v4028
    %v5206 = vunpack.c.l.b16 %v4029
    %v5207 = vunpack.c.h.b16 %v4029
    %v5208 = vunpack.c.l.b16 %v4030
    %v5209 = vunpack.c.h.b16 %v4030
    %v5210 = vunpack.c.l.b16 %v4031
    %v5211 = vunpack.c.h.b16 %v4031
    %v5212 = vunpack.c.l.b16 %v4032
    %v5213 = vunpack.c.h.b16 %v4032
    %v5214 = vunpack.c.l.b16 %v4033
    %v5215 = vunpack.c.h.b16 %v4033
    %v5216 = vunpack.c.l.b16 %v4034
    %v5217 = vunpack.c.h.b16 %v4034
    %v5218 = vunpack.c.l.b16 %v4035
    %v5219 = vunpack.c.h.b16 %v4035
    %v5220 = vunpack.c.l.b16 %v4036
    %v5221 = vunpack.c.h.b16 %v4036
    %v5222 = vunpack.c.l.b16 %v4037
    %v5223 = vunpack.c.h.b16 %v4037
    %v5224 = vunpack.c.l.b16 %v4038
    %v5225 = vunpack.c.h.b16 %v4038
    %v5226 = vunpack.c.l.b16 %v4039
    %v5227 = vunpack.c.h.b16 %v4039
    %v5228 = vunpack.c.l.b16 %v4040
    %v5229 = vunpack.c.h.b16 %v4040
    %v5230 = vunpack.c.l.b16 %v4041
    %v5231 = vunpack.c.h.b16 %v4041
    %v5232 = vunpack.c.l.b16 %v4042
    %v5233 = vunpack.c.h.b16 %v4042
    %v5234 = vunpack.c.l.b16 %v4043
    %v5235 = vunpack.c.h.b16 %v4043
    %v5236 = vunpack.c.l.b16 %v4044
    %v5237 = vunpack.c.h.b16 %v4044
    %v5238 = vunpack.c.l.b16 %v4045
    %v5239 = vunpack.c.h.b16 %v4045
    %v5240 = vunpack.c.l.b16 %v4046
    %v5241 = vunpack.c.h.b16 %v4046
    %v5242 = vunpack.c.l.b16 %v4047
    %v5243 = vunpack.c.h.b16 %v4047
    %v5244 = vunpack.c.l.b16 %v4048
    %v5245 = vunpack.c.h.b16 %v4048
    %v5246 = vunpack.c.l.b16 %v4049
    %v5247 = vunpack.c.h.b16 %v4049
    %v5248 = vunpack.c.l.b16 %v4050
    %v5249 = vunpack.c.h.b16 %v4050
    %v5250 = vunpack.c.l.b16 %v4051
    %v5251 = vunpack.c.h.b16 %v4051
    %v5252 = vunpack.c.l.b16 %v4052
    %v5253 = vunpack.c.h.b16 %v4052
    %v5254 = vunpack.c.l.b16 %v4053
    %v5255 = vunpack.c.h.b16 %v4053
    %v5256 = vunpack.c.l.b16 %v4054
    %v5257 = vunpack.c.h.b16 %v4054
    %v5258 = vunpack.c.l.b16 %v4055
    %v5259 = vunpack.c.h.b16 %v4055
    %v5260 = vunpack.c.l.b16 %v4056
    %v5261 = vunpack.c.h.b16 %v4056
    %v5262 = vunpack.c.l.b16 %v4057
    %v5263 = vunpack.c.h.b16 %v4057
    %v5264 = vunpack.c.l.b16 %v4058
    %v5265 = vunpack.c.h.b16 %v4058
    %v5266 = vunpack.c.l.b16 %v4059
    %v5267 = vunpack.c.h.b16 %v4059
    %v5268 = vunpack.c.l.b16 %v4060
    %v5269 = vunpack.c.h.b16 %v4060
    %v5270 = vunpack.c.l.b16 %v4061
    %v5271 = vunpack.c.h.b16 %v4061
    %v5272 = vunpack.c.l.b16 %v4062
    %v5273 = vunpack.c.h.b16 %v4062
    %v5274 = vunpack.c.l.b16 %v4063
    %v5275 = vunpack.c.h.b16 %v4063
    %v5276 = vunpack.c.l.b16 %v4064
    %v5277 = vunpack.c.h.b16 %v4064
    %v5278 = vunpack.c.l.b16 %v4065
    %v5279 = vunpack.c.h.b16 %v4065
    %v5280 = vunpack.c.l.b16 %v4066
    %v5281 = vunpack.c.h.b16 %v4066
    %v5282 = vunpack.c.l.b16 %v4067
    %v5283 = vunpack.c.h.b16 %v4067
    %v5284 = vunpack.c.l.b16 %v4068
    %v5285 = vunpack.c.h.b16 %v4068
    %v5286 = vunpack.c.l.b16 %v4069
    %v5287 = vunpack.c.h.b16 %v4069
    %v5288 = vunpack.c.l.b16 %v4070
    %v5289 = vunpack.c.h.b16 %v4070
    %v5290 = vunpack.c.l.b16 %v4071
    %v5291 = vunpack.c.h.b16 %v4071
    %v5292 = vunpack.c.l.b16 %v4072
    %v5293 = vunpack.c.h.b16 %v4072
    %v5294 = vunpack.c.l.b16 %v4073
    %v5295 = vunpack.c.h.b16 %v4073
    %v5296 = vunpack.c.l.b16 %v4074
    %v5297 = vunpack.c.h.b16 %v4074
    %v5298 = vunpack.c.l.b16 %v4075
    %v5299 = vunpack.c.h.b16 %v4075
    %v5300 = vunpack.c.l.b16 %v4076
    %v5301 = vunpack.c.h.b16 %v4076
    %v5302 = vunpack.c.l.b16 %v4077
    %v5303 = vunpack.c.h.b16 %v4077
    %v5304 = vunpack.c.l.b16 %v4078
    %v5305 = vunpack.c.h.b16 %v4078
    %v5306 = vunpack.c.l.b16 %v4079
    %v5307 = vunpack.c.h.b16 %v4079
    %v5308 = vunpack.c.l.b16 %v4080
    %v5309 = vunpack.c.h.b16 %v4080
    %v5310 = vunpack.c.l.b16 %v4081
    %v5311 = vunpack.c.h.b16 %v4081
    %v5312 = vunpack.c.l.b16 %v4082
    %v5313 = vunpack.c.h.b16 %v4082
    %v5314 = vunpack.c.l.b16 %v4083
    %v5315 = vunpack.c.h.b16 %v4083
    %v5316 = vunpack.c.l.b16 %v4084
    %v5317 = vunpack.c.h.b16 %v4084
    %v5318 = vunpack.c.l.b16 %v4085
    %v5319 = vunpack.c.h.b16 %v4085
    %v5320 = vunpack.c.l.b16 %v4086
    %v5321 = vunpack.c.h.b16 %v4086
    %v5322 = vunpack.c.l.b16 %v4087
    %v5323 = vunpack.c.h.b16 %v4087
    %v5324 = vunpack.c.l.b16 %v4088
    %v5325 = vunpack.c.h.b16 %v4088
    %v5326 = vunpack.c.l.b16 %v4089
    %v5327 = vunpack.c.h.b16 %v4089
    %v5328 = vunpack.c.l.b16 %v4090
    %v5329 = vunpack.c.h.b16 %v4090
    %v5330 = vunpack.c.l.b16 %v4091
    %v5331 = vunpack.c.h.b16 %v4091
    %v5332 = vunpack.c.l.b16 %v4092
    %v5333 = vunpack.c.h.b16 %v4092
    %v5334 = vunpack.c.l.b16 %v4093
    %v5335 = vunpack.c.h.b16 %v4093
    %v5336 = vunpack.c.l.b16 %v4094
    %v5337 = vunpack.c.h.b16 %v4094
    %v5338 = vunpack.c.l.b16 %v4095
    %v5339 = vunpack.c.h.b16 %v4095
    %v5340 = vunpack.c.l.b16 %v4096
    %v5341 = vunpack.c.h.b16 %v4096
    %v5342 = vunpack.c.l.b16 %v4097
    %v5343 = vunpack.c.h.b16 %v4097
    %v5344 = vunpack.c.l.b16 %v4098
    %v5345 = vunpack.c.h.b16 %v4098
    %v5346 = vunpack.c.l.b16 %v4099
    %v5347 = vunpack.c.h.b16 %v4099
    %v5348 = vunpack.c.l.b16 %v4100
    %v5349 = vunpack.c.h.b16 %v4100
    %v5350 = vunpack.c.l.b16 %v4101
    %v5351 = vunpack.c.h.b16 %v4101
    %v5352 = vunpack.c.l.b16 %v4102
    %v5353 = vunpack.c.h.b16 %v4102
    %v5354 = vunpack.c.l.b16 %v4103
    %v5355 = vunpack.c.h.b16 %v4103
    %v5356 = vunpack.c.l.b16 %v4104
    %v5357 = vunpack.c.h.b16 %v4104
    %v5358 = vunpack.c.l.b16 %v4105
    %v5359 = vunpack.c.h.b16 %v4105
    %v5360 = vunpack.c.l.b16 %v4106
    %v5361 = vunpack.c.h.b16 %v4106
    %v5362 = vunpack.c.l.b16 %v4107
    %v5363 = vunpack.c.h.b16 %v4107
    %v5364 = vunpack.c.l.b16 %v4108
    %v5365 = vunpack.c.h.b16 %v4108
    %v5366 = vunpack.c.l.b16 %v4109
    %v5367 = vunpack.c.h.b16 %v4109
    %v5368 = vunpack.c.l.b16 %v4110
    %v5369 = vunpack.c.h.b16 %v4110
    %v5370 = vunpack.c.l.b16 %v4111
    %v5371 = vunpack.c.h.b16 %v4111
    %v5372 = vunpack.c.l.b16 %v4112
    %v5373 = vunpack.c.h.b16 %v4112
    %v5374 = vunpack.c.l.b16 %v4113
    %v5375 = vunpack.c.h.b16 %v4113
    %v5376 = vunpack.c.l.b16 %v4114
    %v5377 = vunpack.c.h.b16 %v4114
    %v5378 = vunpack.c.l.b16 %v4115
    %v5379 = vunpack.c.h.b16 %v4115
    %v5380 = vunpack.c.l.b16 %v4116
    %v5381 = vunpack.c.h.b16 %v4116
    %v5382 = vunpack.c.l.b16 %v4117
    %v5383 = vunpack.c.h.b16 %v4117
    %v5384 = vunpack.c.l.b16 %v4118
    %v5385 = vunpack.c.h.b16 %v4118
    %v5386 = vunpack.c.l.b16 %v4119
    %v5387 = vunpack.c.h.b16 %v4119
    %v5388 = vunpack.c.l.b16 %v4120
    %v5389 = vunpack.c.h.b16 %v4120
    %v5390 = vunpack.c.l.b16 %v4121
    %v5391 = vunpack.c.h.b16 %v4121
    %v5392 = vunpack.c.l.b16 %v4122
    %v5393 = vunpack.c.h.b16 %v4122
    %v5394 = vunpack.c.l.b16 %v4123
    %v5395 = vunpack.c.h.b16 %v4123
    %v5396 = vunpack.c.l.b16 %v4124
    %v5397 = vunpack.c.h.b16 %v4124
    %v5398 = vunpack.c.l.b16 %v4125
    %v5399 = vunpack.c.h.b16 %v4125
    %v5400 = vunpack.c.l.b16 %v4126
    %v5401 = vunpack.c.h.b16 %v4126
    %v5402 = vunpack.c.l.b16 %v4127
    %v5403 = vunpack.c.h.b16 %v4127
    %v5404 = vunpack.c.l.b16 %v4128
    %v5405 = vunpack.c.h.b16 %v4128
    %v5406 = vunpack.c.l.b16 %v4129
    %v5407 = vunpack.c.h.b16 %v4129
    %v5408 = vunpack.c.l.b16 %v4130
    %v5409 = vunpack.c.h.b16 %v4130
    %v5410 = vunpack.c.l.b16 %v4131
    %v5411 = vunpack.c.h.b16 %v4131
    %v5412 = vunpack.c.l.b16 %v4132
    %v5413 = vunpack.c.h.b16 %v4132
    %v5414 = vunpack.c.l.b16 %v4133
    %v5415 = vunpack.c.h.b16 %v4133
    %v5416 = vunpack.c.l.b16 %v4134
    %v5417 = vunpack.c.h.b16 %v4134
    %v5418 = vunpack.c.l.b16 %v4135
    %v5419 = vunpack.c.h.b16 %v4135
    %v5420 = vunpack.c.l.b16 %v4136
    %v5421 = vunpack.c.h.b16 %v4136
    %v5422 = vunpack.c.l.b16 %v4137
    %v5423 = vunpack.c.h.b16 %v4137
    %v5424 = vunpack.c.l.b16 %v4138
    %v5425 = vunpack.c.h.b16 %v4138
    %v5426 = vunpack.c.l.b16 %v4139
    %v5427 = vunpack.c.h.b16 %v4139
    %v5428 = vunpack.c.l.b16 %v4140
    %v5429 = vunpack.c.h.b16 %v4140
    %v5430 = vunpack.c.l.b16 %v4141
    %v5431 = vunpack.c.h.b16 %v4141
    %v5432 = vunpack.c.l.b16 %v4142
    %v5433 = vunpack.c.h.b16 %v4142
    %v5434 = vunpack.c.l.b16 %v4143
    %v5435 = vunpack.c.h.b16 %v4143
    %v5436 = vunpack.c.l.b16 %v4144
    %v5437 = vunpack.c.h.b16 %v4144
    %v5438 = vunpack.c.l.b16 %v4145
    %v5439 = vunpack.c.h.b16 %v4145
    %v5440 = vunpack.c.l.b16 %v4146
    %v5441 = vunpack.c.h.b16 %v4146
    %v5442 = vunpack.c.l.b16 %v4147
    %v5443 = vunpack.c.h.b16 %v4147
    %v5444 = vunpack.c.l.b16 %v4148
    %v5445 = vunpack.c.h.b16 %v4148
    %v5446 = vunpack.c.l.b16 %v4149
    %v5447 = vunpack.c.h.b16 %v4149
    %v5448 = vunpack.c.l.b16 %v4150
    %v5449 = vunpack.c.h.b16 %v4150
    %v5450 = vunpack.c.l.b16 %v4151
    %v5451 = vunpack.c.h.b16 %v4151
    %v5452 = vunpack.c.l.b16 %v4152
    %v5453 = vunpack.c.h.b16 %v4152
    %v5454 = vunpack.c.l.b16 %v4153
    %v5455 = vunpack.c.h.b16 %v4153
    %v5456 = vunpack.c.l.b16 %v4154
    %v5457 = vunpack.c.h.b16 %v4154
    %v5458 = vunpack.c.l.b16 %v4155
    %v5459 = vunpack.c.h.b16 %v4155
    %v5460 = vunpack.c.l.b16 %v4156
    %v5461 = vunpack.c.h.b16 %v4156
    %v5462 = vunpack.c.l.b16 %v4157
    %v5463 = vunpack.c.h.b16 %v4157
    %v5464 = vunpack.c.l.b16 %v4158
    %v5465 = vunpack.c.h.b16 %v4158
    %v5466 = vunpack.c.l.b16 %v4159
    %v5467 = vunpack.c.h.b16 %v4159
    %v5468 = vunpack.c.l.b16 %v4160
    %v5469 = vunpack.c.h.b16 %v4160
    %v5470 = vunpack.c.l.b16 %v4161
    %v5471 = vunpack.c.h.b16 %v4161
    %v5472 = vunpack.c.l.b16 %v4162
    %v5473 = vunpack.c.h.b16 %v4162
    %v5474 = vunpack.c.l.b16 %v4163
    %v5475 = vunpack.c.h.b16 %v4163
    %v5476 = vunpack.c.l.b16 %v4164
    %v5477 = vunpack.c.h.b16 %v4164
    %v5478 = vunpack.c.l.b16 %v4165
    %v5479 = vunpack.c.h.b16 %v4165
    %v5480 = vunpack.c.l.b16 %v4166
    %v5481 = vunpack.c.h.b16 %v4166
    %v5482 = vunpack.c.l.b16 %v4167
    %v5483 = vunpack.c.h.b16 %v4167
    %v5484 = vunpack.c.l.b16 %v4168
    %v5485 = vunpack.c.h.b16 %v4168
    %v5486 = vunpack.c.l.b16 %v4169
    %v5487 = vunpack.c.h.b16 %v4169
    %v5488 = vunpack.c.l.b16 %v4170
    %v5489 = vunpack.c.h.b16 %v4170
    %v5490 = vunpack.c.l.b16 %v4171
    %v5491 = vunpack.c.h.b16 %v4171
    %v5492 = vunpack.c.l.b16 %v4172
    %v5493 = vunpack.c.h.b16 %v4172
    %v5494 = vunpack.c.l.b16 %v4173
    %v5495 = vunpack.c.h.b16 %v4173
    %v5496 = vunpack.c.l.b16 %v4174
    %v5497 = vunpack.c.h.b16 %v4174
    %v5498 = vunpack.c.l.b16 %v4175
    %v5499 = vunpack.c.h.b16 %v4175
    %v5500 = vunpack.c.l.b16 %v4176
    %v5501 = vunpack.c.h.b16 %v4176
    %v5502 = vunpack.c.l.b16 %v4177
    %v5503 = vunpack.c.h.b16 %v4177
    %v5504 = vunpack.c.l.b16 %v4178
    %v5505 = vunpack.c.h.b16 %v4178
    %v5506 = vunpack.c.l.b16 %v4179
    %v5507 = vunpack.c.h.b16 %v4179
    %v5508 = vunpack.c.l.b16 %v4180
    %v5509 = vunpack.c.h.b16 %v4180
    %v5510 = vunpack.c.l.b16 %v4181
    %v5511 = vunpack.c.h.b16 %v4181
    %v5512 = vunpack.c.l.b16 %v4182
    %v5513 = vunpack.c.h.b16 %v4182
    %v5514 = vunpack.c.l.b16 %v4183
    %v5515 = vunpack.c.h.b16 %v4183
    %v5516 = vunpack.c.l.b16 %v4184
    %v5517 = vunpack.c.h.b16 %v4184
    %v5518 = vunpack.c.l.b16 %v4185
    %v5519 = vunpack.c.h.b16 %v4185
    %v5520 = vunpack.c.l.b16 %v4186
    %v5521 = vunpack.c.h.b16 %v4186
    %v5522 = vunpack.c.l.b16 %v4187
    %v5523 = vunpack.c.h.b16 %v4187
    %v5524 = vunpack.c.l.b16 %v4188
    %v5525 = vunpack.c.h.b16 %v4188
    %v5526 = vunpack.c.l.b16 %v4189
    %v5527 = vunpack.c.h.b16 %v4189
    %v5528 = vunpack.c.l.b16 %v4190
    %v5529 = vunpack.c.h.b16 %v4190
    %v5530 = vunpack.c.l.b16 %v4191
    %v5531 = vunpack.c.h.b16 %v4191
    %v5532 = vunpack.c.l.b16 %v4192
    %v5533 = vunpack.c.h.b16 %v4192
    %v5534 = vunpack.c.l.b16 %v4193
    %v5535 = vunpack.c.h.b16 %v4193
    %v5536 = vunpack.c.l.b16 %v4194
    %v5537 = vunpack.c.h.b16 %v4194
    %v5538 = vunpack.c.l.b16 %v4195
    %v5539 = vunpack.c.h.b16 %v4195
    %v5540 = vunpack.c.l.b16 %v4196
    %v5541 = vunpack.c.h.b16 %v4196
    %v5542 = vunpack.c.l.b16 %v4197
    %v5543 = vunpack.c.h.b16 %v4197
    %v5544 = vunpack.c.l.b16 %v4198
    %v5545 = vunpack.c.h.b16 %v4198
    %v5546 = vunpack.c.l.b16 %v4199
    %v5547 = vunpack.c.h.b16 %v4199
    %v5548 = vunpack.c.l.b16 %v4200
    %v5549 = vunpack.c.h.b16 %v4200
    %v5550 = vunpack.c.l.b16 %v4201
    %v5551 = vunpack.c.h.b16 %v4201
    %v5552 = vunpack.c.l.b16 %v4202
    %v5553 = vunpack.c.h.b16 %v4202
    %v5554 = vunpack.c.l.b16 %v4203
    %v5555 = vunpack.c.h.b16 %v4203
    %v5556 = vunpack.c.l.b16 %v4204
    %v5557 = vunpack.c.h.b16 %v4204
    %v5558 = vunpack.c.l.b16 %v4205
    %v5559 = vunpack.c.h.b16 %v4205
    %v5560 = vunpack.c.l.b16 %v4206
    %v5561 = vunpack.c.h.b16 %v4206
    %v5562 = vunpack.c.l.b16 %v4207
    %v5563 = vunpack.c.h.b16 %v4207
    %v5564 = vunpack.c.l.b16 %v4208
    %v5565 = vunpack.c.h.b16 %v4208
    %v5566 = vunpack.c.l.b16 %v4209
    %v5567 = vunpack.c.h.b16 %v4209
    %v5568 = vunpack.c.l.b16 %v4210
    %v5569 = vunpack.c.h.b16 %v4210
    %v5570 = vunpack.c.l.b16 %v4211
    %v5571 = vunpack.c.h.b16 %v4211
    %v5572 = vunpack.c.l.b16 %v4212
    %v5573 = vunpack.c.h.b16 %v4212
    %v5574 = vunpack.c.l.b16 %v4213
    %v5575 = vunpack.c.h.b16 %v4213
    %v5576 = vunpack.c.l.b16 %v4214
    %v5577 = vunpack.c.h.b16 %v4214
    %v5578 = vunpack.c.l.b16 %v4215
    %v5579 = vunpack.c.h.b16 %v4215
    %v5580 = vunpack.c.l.b16 %v4216
    %v5581 = vunpack.c.h.b16 %v4216
    %v5582 = vunpack.c.l.b16 %v4217
    %v5583 = vunpack.c.h.b16 %v4217
    %v5584 = vunpack.c.l.b16 %v4218
    %v5585 = vunpack.c.h.b16 %v4218
    %v5586 = vunpack.c.l.b16 %v4219
    %v5587 = vunpack.c.h.b16 %v4219
    %v5588 = vunpack.c.l.b16 %v4220
    %v5589 = vunpack.c.h.b16 %v4220
    %v5590 = vunpack.c.l.b16 %v4221
    %v5591 = vunpack.c.h.b16 %v4221
    %v5592 = vunpack.c.l.b16 %v4222
    %v5593 = vunpack.c.h.b16 %v4222
    %v5594 = vunpack.c.l.b16 %v4223
    %v5595 = vunpack.c.h.b16 %v4223
    %v5596 = vunpack.c.l.b16 %v4224
    %v5597 = vunpack.c.h.b16 %v4224
    %v5598 = vunpack.c.l.b16 %v4225
    %v5599 = vunpack.c.h.b16 %v4225
    %v5600 = vunpack.c.l.b16 %v4226
    %v5601 = vunpack.c.h.b16 %v4226
    %v5602 = vunpack.c.l.b16 %v4227
    %v5603 = vunpack.c.h.b16 %v4227
    %v5604 = vunpack.c.l.b16 %v4228
    %v5605 = vunpack.c.h.b16 %v4228
    %v5606 = vunpack.c.l.b16 %v4229
    %v5607 = vunpack.c.h.b16 %v4229
    %v5608 = vunpack.c.l.b16 %v4230
    %v5609 = vunpack.c.h.b16 %v4230
    %v5610 = vunpack.c.l.b16 %v4231
    %v5611 = vunpack.c.h.b16 %v4231
    %v5612 = vunpack.c.l.b16 %v4232
    %v5613 = vunpack.c.h.b16 %v4232
    %v5614 = vunpack.c.l.b16 %v4233
    %v5615 = vunpack.c.h.b16 %v4233
    %v5616 = vunpack.c.l.b16 %v4234
    %v5617 = vunpack.c.h.b16 %v4234
    %v5618 = vunpack.c.l.b16 %v4235
    %v5619 = vunpack.c.h.b16 %v4235
    %v5620 = vunpack.c.l.b16 %v4236
    %v5621 = vunpack.c.h.b16 %v4236
    %v5622 = vunpack.c.l.b16 %v4237
    %v5623 = vunpack.c.h.b16 %v4237
    %v5624 = vunpack.c.l.b16 %v4238
    %v5625 = vunpack.c.h.b16 %v4238
    %v5626 = vunpack.c.l.b16 %v4239
    %v5627 = vunpack.c.h.b16 %v4239
    %v5628 = vunpack.c.l.b16 %v4240
    %v5629 = vunpack.c.h.b16 %v4240
    %v5630 = vunpack.c.l.b16 %v4241
    %v5631 = vunpack.c.h.b16 %v4241
    %v5632 = vunpack.c.l.b16 %v4242
    %v5633 = vunpack.c.h.b16 %v4242
    %v5634 = vunpack.c.l.b16 %v4243
    %v5635 = vunpack.c.h.b16 %v4243
    %v5636 = vunpack.c.l.b16 %v4244
    %v5637 = vunpack.c.h.b16 %v4244
    %v5638 = vunpack.c.l.b16 %v4245
    %v5639 = vunpack.c.h.b16 %v4245
    %v5640 = vunpack.c.l.b16 %v4246
    %v5641 = vunpack.c.h.b16 %v4246
    %v5642 = vunpack.c.l.b16 %v4247
    %v5643 = vunpack.c.h.b16 %v4247
    %v5644 = vunpack.c.l.b16 %v4248
    %v5645 = vunpack.c.h.b16 %v4248
    %v5646 = vunpack.c.l.b16 %v4249
    %v5647 = vunpack.c.h.b16 %v4249
    %v5648 = vunpack.c.l.b16 %v4250
    %v5649 = vunpack.c.h.b16 %v4250
    %v5650 = vunpack.c.l.b16 %v4251
    %v5651 = vunpack.c.h.b16 %v4251
    %v5652 = vunpack.c.l.b16 %v4252
    %v5653 = vunpack.c.h.b16 %v4252
    %v5654 = vunpack.c.l.b16 %v4253
    %v5655 = vunpack.c.h.b16 %v4253
    %v5656 = vunpack.c.l.b16 %v4254
    %v5657 = vunpack.c.h.b16 %v4254
    %v5658 = vunpack.c.l.b16 %v4255
    %v5659 = vunpack.c.h.b16 %v4255
    %v5660 = vunpack.c.l.b16 %v4256
    %v5661 = vunpack.c.h.b16 %v4256
    %v5662 = vunpack.c.l.b16 %v4257
    %v5663 = vunpack.c.h.b16 %v4257
    %v5664 = vunpack.c.l.b16 %v4258
    %v5665 = vunpack.c.h.b16 %v4258
    %v5666 = vunpack.c.l.b16 %v4259
    %v5667 = vunpack.c.h.b16 %v4259
    %v5668 = vunpack.c.l.b16 %v4260
    %v5669 = vunpack.c.h.b16 %v4260
    %v5670 = vunpack.c.l.b16 %v4261
    %v5671 = vunpack.c.h.b16 %v4261
    %v5672 = vunpack.c.l.b16 %v4262
    %v5673 = vunpack.c.h.b16 %v4262
    %v5674 = vunpack.c.l.b16 %v4263
    %v5675 = vunpack.c.h.b16 %v4263
    %v5676 = vunpack.c.l.b16 %v4264
    %v5677 = vunpack.c.h.b16 %v4264
    %v5678 = vunpack.c.l.b16 %v4265
    %v5679 = vunpack.c.h.b16 %v4265
    %v5680 = vunpack.c.l.b16 %v4266
    %v5681 = vunpack.c.h.b16 %v4266
    %v5682 = vunpack.c.l.b16 %v4267
    %v5683 = vunpack.c.h.b16 %v4267
    %v5684 = vunpack.c.l.b16 %v4268
    %v5685 = vunpack.c.h.b16 %v4268
    %v5686 = vunpack.c.l.b16 %v4269
    %v5687 = vunpack.c.h.b16 %v4269
    %v5688 = vunpack.c.l.b16 %v4270
    %v5689 = vunpack.c.h.b16 %v4270
    %v5690 = vunpack.c.l.b16 %v4271
    %v5691 = vunpack.c.h.b16 %v4271
    %v5692 = vunpack.c.l.b16 %v4272
    %v5693 = vunpack.c.h.b16 %v4272
    %v5694 = vunpack.c.l.b16 %v4273
    %v5695 = vunpack.c.h.b16 %v4273
    %v5696 = vunpack.c.l.b16 %v4274
    %v5697 = vunpack.c.h.b16 %v4274
    %v5698 = vunpack.c.l.b16 %v4275
    %v5699 = vunpack.c.h.b16 %v4275
    %v5700 = vunpack.c.l.b16 %v4276
    %v5701 = vunpack.c.h.b16 %v4276
    %v5702 = vunpack.c.l.b16 %v4277
    %v5703 = vunpack.c.h.b16 %v4277
    %v5704 = vunpack.c.l.b16 %v4278
    %v5705 = vunpack.c.h.b16 %v4278
    %v5706 = vunpack.c.l.b16 %v4279
    %v5707 = vunpack.c.h.b16 %v4279
    %v5708 = vunpack.c.l.b16 %v4280
    %v5709 = vunpack.c.h.b16 %v4280
    %v5710 = vunpack.c.l.b16 %v4281
    %v5711 = vunpack.c.h.b16 %v4281
    %v5712 = vunpack.c.l.b16 %v4282
    %v5713 = vunpack.c.h.b16 %v4282
    %v5714 = vunpack.c.l.b16 %v4283
    %v5715 = vunpack.c.h.b16 %v4283
    %v5716 = vunpack.c.l.b16 %v4284
    %v5717 = vunpack.c.h.b16 %v4284
    %v5718 = vunpack.c.l.b16 %v4285
    %v5719 = vunpack.c.h.b16 %v4285
    %v5720 = vunpack.c.l.b16 %v4286
    %v5721 = vunpack.c.h.b16 %v4286
    %v5722 = vunpack.c.l.b16 %v4287
    %v5723 = vunpack.c.h.b16 %v4287
    %v5724 = vunpack.c.l.b16 %v4288
    %v5725 = vunpack.c.h.b16 %v4288
    %v5726 = vunpack.c.l.b16 %v4289
    %v5727 = vunpack.c.h.b16 %v4289
    %v5728 = vunpack.c.l.b16 %v4290
    %v5729 = vunpack.c.h.b16 %v4290
    %v5730 = vunpack.c.l.b16 %v4291
    %v5731 = vunpack.c.h.b16 %v4291
    %v5732 = vunpack.c.l.b16 %v4292
    %v5733 = vunpack.c.h.b16 %v4292
    %v5734 = vunpack.c.l.b16 %v4293
    %v5735 = vunpack.c.h.b16 %v4293
    %v5736 = vunpack.c.l.b16 %v4294
    %v5737 = vunpack.c.h.b16 %v4294
    %v5738 = vunpack.c.l.b16 %v4295
    %v5739 = vunpack.c.h.b16 %v4295
    %v5740 = vunpack.c.l.b16 %v4296
    %v5741 = vunpack.c.h.b16 %v4296
    %v5742 = vunpack.c.l.b16 %v4297
    %v5743 = vunpack.c.h.b16 %v4297
    %v5744 = vunpack.c.l.b16 %v4298
    %v5745 = vunpack.c.h.b16 %v4298
    %v5746 = vunpack.c.l.b16 %v4299
    %v5747 = vunpack.c.h.b16 %v4299
    %v5748 = vunpack.c.l.b16 %v4300
    %v5749 = vunpack.c.h.b16 %v4300
    %v5750 = vunpack.c.l.b16 %v4301
    %v5751 = vunpack.c.h.b16 %v4301
    %v5752 = vunpack.c.l.b16 %v4302
    %v5753 = vunpack.c.h.b16 %v4302
    %v5754 = vunpack.c.l.b16 %v4303
    %v5755 = vunpack.c.h.b16 %v4303
    %v5756 = vunpack.c.l.b16 %v4304
    %v5757 = vunpack.c.h.b16 %v4304
    %v5758 = vunpack.c.l.b16 %v4305
    %v5759 = vunpack.c.h.b16 %v4305
    %v5760 = vunpack.c.l.b16 %v4306
    %v5761 = vunpack.c.h.b16 %v4306
    %v5762 = vunpack.c.l.b16 %v4307
    %v5763 = vunpack.c.h.b16 %v4307
    %v5764 = vunpack.c.l.b16 %v4308
    %v5765 = vunpack.c.h.b16 %v4308
    %v5766 = vunpack.c.l.b16 %v4309
    %v5767 = vunpack.c.h.b16 %v4309
    %v5768 = vunpack.c.l.b16 %v4310
    %v5769 = vunpack.c.h.b16 %v4310
    %v5770 = vunpack.c.l.b16 %v4311
    %v5771 = vunpack.c.h.b16 %v4311
    %v5772 = vunpack.c.l.b16 %v4312
    %v5773 = vunpack.c.h.b16 %v4312
    %v5774 = vunpack.c.l.b16 %v4313
    %v5775 = vunpack.c.h.b16 %v4313
    %v5776 = vunpack.c.l.b16 %v4314
    %v5777 = vunpack.c.h.b16 %v4314
    %v5778 = vunpack.c.l.b16 %v4315
    %v5779 = vunpack.c.h.b16 %v4315
    %v5780 = vunpack.c.l.b16 %v4316
    %v5781 = vunpack.c.h.b16 %v4316
    %v5782 = vunpack.c.l.b16 %v4317
    %v5783 = vunpack.c.h.b16 %v4317
    %v5784 = vunpack.c.l.b16 %v4318
    %v5785 = vunpack.c.h.b16 %v4318
    %v5786 = vunpack.c.l.b16 %v4319
    %v5787 = vunpack.c.h.b16 %v4319
    %v5788 = vunpack.c.l.b16 %v4320
    %v5789 = vunpack.c.h.b16 %v4320
    %v5790 = vunpack.c.l.b16 %v4321
    %v5791 = vunpack.c.h.b16 %v4321
    %v5792 = vunpack.c.l.b16 %v4322
    %v5793 = vunpack.c.h.b16 %v4322
    %v5794 = vunpack.c.l.b16 %v4323
    %v5795 = vunpack.c.h.b16 %v4323
    %v5796 = vunpack.c.l.b16 %v4324
    %v5797 = vunpack.c.h.b16 %v4324
    %v5798 = vunpack.c.l.b16 %v4325
    %v5799 = vunpack.c.h.b16 %v4325
    %v5800 = vunpack.c.l.b16 %v4326
    %v5801 = vunpack.c.h.b16 %v4326
    %v5802 = vunpack.c.l.b16 %v4327
    %v5803 = vunpack.c.h.b16 %v4327
    %v5804 = vunpack.c.l.b16 %v4328
    %v5805 = vunpack.c.h.b16 %v4328
    %v5806 = vunpack.c.l.b16 %v4329
    %v5807 = vunpack.c.h.b16 %v4329
    %v5808 = vunpack.c.l.b16 %v4330
    %v5809 = vunpack.c.h.b16 %v4330
    %v5810 = vunpack.c.l.b16 %v4331
    %v5811 = vunpack.c.h.b16 %v4331
    %v5812 = vunpack.c.l.b16 %v4332
    %v5813 = vunpack.c.h.b16 %v4332
    %v5814 = vunpack.c.l.b16 %v4333
    %v5815 = vunpack.c.h.b16 %v4333
    %v5816 = vunpack.c.l.b16 %v4334
    %v5817 = vunpack.c.h.b16 %v4334
    %v5818 = vunpack.c.l.b16 %v4335
    %v5819 = vunpack.c.h.b16 %v4335
    %v5820 = vunpack.c.l.b16 %v4336
    %v5821 = vunpack.c.h.b16 %v4336
    %v5822 = vunpack.c.l.b16 %v4337
    %v5823 = vunpack.c.h.b16 %v4337
    %v5824 = vunpack.c.l.b16 %v4338
    %v5825 = vunpack.c.h.b16 %v4338
    %v5826 = vunpack.c.l.b16 %v4339
    %v5827 = vunpack.c.h.b16 %v4339
    %v5828 = vunpack.c.l.b16 %v4340
    %v5829 = vunpack.c.h.b16 %v4340
    %v5830 = vunpack.c.l.b16 %v4341
    %v5831 = vunpack.c.h.b16 %v4341
    %v5832 = vunpack.c.l.b16 %v4342
    %v5833 = vunpack.c.h.b16 %v4342
    %v5834 = vunpack.c.l.b16 %v4343
    %v5835 = vunpack.c.h.b16 %v4343
    %v5836 = vunpack.c.l.b16 %v4344
    %v5837 = vunpack.c.h.b16 %v4344
    %v5838 = vunpack.c.l.b16 %v4345
    %v5839 = vunpack.c.h.b16 %v4345
    %v5840 = vunpack.c.l.b16 %v4346
    %v5841 = vunpack.c.h.b16 %v4346
    %v5842 = vunpack.c.l.b16 %v4347
    %v5843 = vunpack.c.h.b16 %v4347
    %v5844 = vunpack.c.l.b16 %v4348
    %v5845 = vunpack.c.h.b16 %v4348
    %v5846 = vunpack.c.l.b16 %v4349
    %v5847 = vunpack.c.h.b16 %v4349
    %v5848 = vunpack.c.l.b16 %v4350
    %v5849 = vunpack.c.h.b16 %v4350
    %v5850 = vunpack.c.l.b16 %v4351
    %v5851 = vunpack.c.h.b16 %v4351
    %v5852 = vunpack.c.l.b16 %v4352
    %v5853 = vunpack.c.h.b16 %v4352
    %v5854 = vunpack.c.l.b16 %v4353
    %v5855 = vunpack.c.h.b16 %v4353
    %v5856 = vunpack.c.l.b16 %v4354
    %v5857 = vunpack.c.h.b16 %v4354
    %v5858 = vunpack.c.l.b16 %v4355
    %v5859 = vunpack.c.h.b16 %v4355
    %v5860 = vunpack.c.l.b16 %v4356
    %v5861 = vunpack.c.h.b16 %v4356
    %v5862 = vunpack.c.l.b16 %v4357
    %v5863 = vunpack.c.h.b16 %v4357
    %v5864 = vunpack.c.l.b16 %v4358
    %v5865 = vunpack.c.h.b16 %v4358
    %v5866 = vunpack.c.l.b16 %v4359
    %v5867 = vunpack.c.h.b16 %v4359
    %v5868 = vunpack.c.l.b16 %v4360
    %v5869 = vunpack.c.h.b16 %v4360
    %v5870 = vunpack.c.l.b16 %v4361
    %v5871 = vunpack.c.h.b16 %v4361
    %v5872 = vunpack.c.l.b16 %v4362
    %v5873 = vunpack.c.h.b16 %v4362
    %v5874 = vunpack.c.l.b16 %v4363
    %v5875 = vunpack.c.h.b16 %v4363
    %v5876 = vunpack.c.l.b16 %v4364
    %v5877 = vunpack.c.h.b16 %v4364
    %v5878 = vunpack.c.l.b16 %v4365
    %v5879 = vunpack.c.h.b16 %v4365
    %v5880 = vunpack.c.l.b16 %v4366
    %v5881 = vunpack.c.h.b16 %v4366
    %v5882 = vunpack.c.l.b16 %v4367
    %v5883 = vunpack.c.h.b16 %v4367
    %v5884 = vunpack.c.l.b16 %v4368
    %v5885 = vunpack.c.h.b16 %v4368
    %v5886 = vunpack.c.l.b16 %v4369
    %v5887 = vunpack.c.h.b16 %v4369
    %v5888 = vunpack.c.l.b16 %v4370
    %v5889 = vunpack.c.h.b16 %v4370
    %v5890 = vunpack.c.l.b16 %v4371
    %v5891 = vunpack.c.h.b16 %v4371
    %v5892 = vunpack.c.l.b16 %v4372
    %v5893 = vunpack.c.h.b16 %v4372
    %v5894 = vunpack.c.l.b16 %v4373
    %v5895 = vunpack.c.h.b16 %v4373
    %v5896 = vunpack.c.l.b16 %v4374
    %v5897 = vunpack.c.h.b16 %v4374
    %v5898 = vunpack.c.l.b16 %v4375
    %v5899 = vunpack.c.h.b16 %v4375
    %v5900 = vunpack.c.l.b16 %v4376
    %v5901 = vunpack.c.h.b16 %v4376
    %v5902 = vunpack.c.l.b16 %v4377
    %v5903 = vunpack.c.h.b16 %v4377
    %v5904 = vunpack.c.l.b16 %v4378
    %v5905 = vunpack.c.h.b16 %v4378
    %v5906 = vunpack.c.l.b16 %v4379
    %v5907 = vunpack.c.h.b16 %v4379
    %v5908 = vunpack.c.l.b16 %v4380
    %v5909 = vunpack.c.h.b16 %v4380
    %v5910 = vunpack.c.l.b16 %v4381
    %v5911 = vunpack.c.h.b16 %v4381
    %v5912 = vunpack.c.l.b16 %v4382
    %v5913 = vunpack.c.h.b16 %v4382
    %v5914 = vunpack.c.l.b16 %v4383
    %v5915 = vunpack.c.h.b16 %v4383
    %v5916 = vunpack.c.l.b16 %v4384
    %v5917 = vunpack.c.h.b16 %v4384
    %v5918 = vunpack.c.l.b16 %v4385
    %v5919 = vunpack.c.h.b16 %v4385
    %v5920 = vunpack.c.l.b16 %v4386
    %v5921 = vunpack.c.h.b16 %v4386
    %v5922 = vunpack.c.l.b16 %v4387
    %v5923 = vunpack.c.h.b16 %v4387
    %v5924 = vpack.c.b16 %v4904, %v4900
    %v5925 = vpack.c.b16 %v4905, %v4901
    %v5926 = vpack.c.b16 %v4906, %v4902
    %v5927 = vpack.c.b16 %v4907, %v4903
    %v5928 = vpack.c.b16 %v4912, %v4908
    %v5929 = vpack.c.b16 %v4913, %v4909
    %v5930 = vpack.c.b16 %v4914, %v4910
    %v5931 = vpack.c.b16 %v4915, %v4911
    %v5932 = vpack.c.b16 %v4920, %v4916
    %v5933 = vpack.c.b16 %v4921, %v4917
    %v5934 = vpack.c.b16 %v4922, %v4918
    %v5935 = vpack.c.b16 %v4923, %v4919
    %v5936 = vpack.c.b16 %v4928, %v4924
    %v5937 = vpack.c.b16 %v4929, %v4925
    %v5938 = vpack.c.b16 %v4930, %v4926
    %v5939 = vpack.c.b16 %v4931, %v4927
    %v5940 = vpack.c.b16 %v4936, %v4932
    %v5941 = vpack.c.b16 %v4937, %v4933
    %v5942 = vpack.c.b16 %v4938, %v4934
    %v5943 = vpack.c.b16 %v4939, %v4935
    %v5944 = vpack.c.b16 %v4944, %v4940
    %v5945 = vpack.c.b16 %v4945, %v4941
    %v5946 = vpack.c.b16 %v4946, %v4942
    %v5947 = vpack.c.b16 %v4947, %v4943
    %v5948 = vpack.c.b16 %v4952, %v4948
    %v5949 = vpack.c.b16 %v4953, %v4949
    %v5950 = vpack.c.b16 %v4954, %v4950
    %v5951 = vpack.c.b16 %v4955, %v4951
    %v5952 = vpack.c.b16 %v4960, %v4956
    %v5953 = vpack.c.b16 %v4961, %v4957
    %v5954 = vpack.c.b16 %v4962, %v4958
    %v5955 = vpack.c.b16 %v4963, %v4959
    %v5956 = vpack.c.b16 %v4968, %v4964
    %v5957 = vpack.c.b16 %v4969, %v4965
    %v5958 = vpack.c.b16 %v4970, %v4966
    %v5959 = vpack.c.b16 %v4971, %v4967
    %v5960 = vpack.c.b16 %v4976, %v4972
    %v5961 = vpack.c.b16 %v4977, %v4973
    %v5962 = vpack.c.b16 %v4978, %v4974
    %v5963 = vpack.c.b16 %v4979, %v4975
    %v5964 = vpack.c.b16 %v4984, %v4980
    %v5965 = vpack.c.b16 %v4985, %v4981
    %v5966 = vpack.c.b16 %v4986, %v4982
    %v5967 = vpack.c.b16 %v4987, %v4983
    %v5968 = vpack.c.b16 %v4992, %v4988
    %v5969 = vpack.c.b16 %v4993, %v4989
    %v5970 = vpack.c.b16 %v4994, %v4990
    %v5971 = vpack.c.b16 %v4995, %v4991
    %v5972 = vpack.c.b16 %v5000, %v4996
    %v5973 = vpack.c.b16 %v5001, %v4997
    %v5974 = vpack.c.b16 %v5002, %v4998
    %v5975 = vpack.c.b16 %v5003, %v4999
    %v5976 = vpack.c.b16 %v5008, %v5004
    %v5977 = vpack.c.b16 %v5009, %v5005
    %v5978 = vpack.c.b16 %v5010, %v5006
    %v5979 = vpack.c.b16 %v5011, %v5007
    %v5980 = vpack.c.b16 %v5016, %v5012
    %v5981 = vpack.c.b16 %v5017, %v5013
    %v5982 = vpack.c.b16 %v5018, %v5014
    %v5983 = vpack.c.b16 %v5019, %v5015
    %v5984 = vpack.c.b16 %v5024, %v5020
    %v5985 = vpack.c.b16 %v5025, %v5021
    %v5986 = vpack.c.b16 %v5026, %v5022
    %v5987 = vpack.c.b16 %v5027, %v5023
    %v5988 = vpack.c.b16 %v5032, %v5028
    %v5989 = vpack.c.b16 %v5033, %v5029
    %v5990 = vpack.c.b16 %v5034, %v5030
    %v5991 = vpack.c.b16 %v5035, %v5031
    %v5992 = vpack.c.b16 %v5040, %v5036
    %v5993 = vpack.c.b16 %v5041, %v5037
    %v5994 = vpack.c.b16 %v5042, %v5038
    %v5995 = vpack.c.b16 %v5043, %v5039
    %v5996 = vpack.c.b16 %v5048, %v5044
    %v5997 = vpack.c.b16 %v5049, %v5045
    %v5998 = vpack.c.b16 %v5050, %v5046
    %v5999 = vpack.c.b16 %v5051, %v5047
    %v6000 = vpack.c.b16 %v5056, %v5052
    %v6001 = vpack.c.b16 %v5057, %v5053
    %v6002 = vpack.c.b16 %v5058, %v5054
    %v6003 = vpack.c.b16 %v5059, %v5055
    %v6004 = vpack.c.b16 %v5064, %v5060
    %v6005 = vpack.c.b16 %v5065, %v5061
    %v6006 = vpack.c.b16 %v5066, %v5062
    %v6007 = vpack.c.b16 %v5067, %v5063
    %v6008 = vpack.c.b16 %v5072, %v5068
    %v6009 = vpack.c.b16 %v5073, %v5069
    %v6010 = vpack.c.b16 %v5074, %v5070
    %v6011 = vpack.c.b16 %v5075, %v5071
    %v6012 = vpack.c.b16 %v5080, %v5076
    %v6013 = vpack.c.b16 %v5081, %v5077
    %v6014 = vpack.c.b16 %v5082, %v5078
    %v6015 = vpack.c.b16 %v5083, %v5079
    %v6016 = vpack.c.b16 %v5088, %v5084
    %v6017 = vpack.c.b16 %v5089, %v5085
    %v6018 = vpack.c.b16 %v5090, %v5086
    %v6019 = vpack.c.b16 %v5091, %v5087
    %v6020 = vpack.c.b16 %v5096, %v5092
    %v6021 = vpack.c.b16 %v5097, %v5093
    %v6022 = vpack.c.b16 %v5098, %v5094
    %v6023 = vpack.c.b16 %v5099, %v5095
    %v6024 = vpack.c.b16 %v5104, %v5100
    %v6025 = vpack.c.b16 %v5105, %v5101
    %v6026 = vpack.c.b16 %v5106, %v5102
    %v6027 = vpack.c.b16 %v5107, %v5103
    %v6028 = vpack.c.b16 %v5112, %v5108
    %v6029 = vpack.c.b16 %v5113, %v5109
    %v6030 = vpack.c.b16 %v5114, %v5110
    %v6031 = vpack.c.b16 %v5115, %v5111
    %v6032 = vpack.c.b16 %v5120, %v5116
    %v6033 = vpack.c.b16 %v5121, %v5117
    %v6034 = vpack.c.b16 %v5122, %v5118
    %v6035 = vpack.c.b16 %v5123, %v5119
    %v6036 = vpack.c.b16 %v5128, %v5124
    %v6037 = vpack.c.b16 %v5129, %v5125
    %v6038 = vpack.c.b16 %v5130, %v5126
    %v6039 = vpack.c.b16 %v5131, %v5127
    %v6040 = vpack.c.b16 %v5136, %v5132
    %v6041 = vpack.c.b16 %v5137, %v5133
    %v6042 = vpack.c.b16 %v5138, %v5134
    %v6043 = vpack.c.b16 %v5139, %v5135
    %v6044 = vpack.c.b16 %v5144, %v5140
    %v6045 = vpack.c.b16 %v5145, %v5141
    %v6046 = vpack.c.b16 %v5146, %v5142
    %v6047 = vpack.c.b16 %v5147, %v5143
    %v6048 = vpack.c.b16 %v5152, %v5148
    %v6049 = vpack.c.b16 %v5153, %v5149
    %v6050 = vpack.c.b16 %v5154, %v5150
    %v6051 = vpack.c.b16 %v5155, %v5151
    %v6052 = vpack.c.b16 %v5160, %v5156
    %v6053 = vpack.c.b16 %v5161, %v5157
    %v6054 = vpack.c.b16 %v5162, %v5158
    %v6055 = vpack.c.b16 %v5163, %v5159
    %v6056 = vpack.c.b16 %v5168, %v5164
    %v6057 = vpack.c.b16 %v5169, %v5165
    %v6058 = vpack.c.b16 %v5170, %v5166
    %v6059 = vpack.c.b16 %v5171, %v5167
    %v6060 = vpack.c.b16 %v5176, %v5172
    %v6061 = vpack.c.b16 %v5177, %v5173
    %v6062 = vpack.c.b16 %v5178, %v5174
    %v6063 = vpack.c.b16 %v5179, %v5175
    %v6064 = vpack.c.b16 %v5184, %v5180
    %v6065 = vpack.c.b16 %v5185, %v5181
    %v6066 = vpack.c.b16 %v5186, %v5182
    %v6067 = vpack.c.b16 %v5187, %v5183
    %v6068 = vpack.c.b16 %v5192, %v5188
    %v6069 = vpack.c.b16 %v5193, %v5189
    %v6070 = vpack.c.b16 %v5194, %v5190
    %v6071 = vpack.c.b16 %v5195, %v5191
    %v6072 = vpack.c.b16 %v5200, %v5196
    %v6073 = vpack.c.b16 %v5201, %v5197
    %v6074 = vpack.c.b16 %v5202, %v5198
    %v6075 = vpack.c.b16 %v5203, %v5199
    %v6076 = vpack.c.b16 %v5208, %v5204
    %v6077 = vpack.c.b16 %v5209, %v5205
    %v6078 = vpack.c.b16 %v5210, %v5206
    %v6079 = vpack.c.b16 %v5211, %v5207
    %v6080 = vpack.c.b16 %v5216, %v5212
    %v6081 = vpack.c.b16 %v5217, %v5213
    %v6082 = vpack.c.b16 %v5218, %v5214
    %v6083 = vpack.c.b16 %v5219, %v5215
    %v6084 = vpack.c.b16 %v5224, %v5220
    %v6085 = vpack.c.b16 %v5225, %v5221
    %v6086 = vpack.c.b16 %v5226, %v5222
    %v6087 = vpack.c.b16 %v5227, %v5223
    %v6088 = vpack.c.b16 %v5232, %v5228
    %v6089 = vpack.c.b16 %v5233, %v5229
    %v6090 = vpack.c.b16 %v5234, %v5230
    %v6091 = vpack.c.b16 %v5235, %v5231
    %v6092 = vpack.c.b16 %v5240, %v5236
    %v6093 = vpack.c.b16 %v5241, %v5237
    %v6094 = vpack.c.b16 %v5242, %v5238
    %v6095 = vpack.c.b16 %v5243, %v5239
    %v6096 = vpack.c.b16 %v5248, %v5244
    %v6097 = vpack.c.b16 %v5249, %v5245
    %v6098 = vpack.c.b16 %v5250, %v5246
    %v6099 = vpack.c.b16 %v5251, %v5247
    %v6100 = vpack.c.b16 %v5256, %v5252
    %v6101 = vpack.c.b16 %v5257, %v5253
    %v6102 = vpack.c.b16 %v5258, %v5254
    %v6103 = vpack.c.b16 %v5259, %v5255
    %v6104 = vpack.c.b16 %v5264, %v5260
    %v6105 = vpack.c.b16 %v5265, %v5261
    %v6106 = vpack.c.b16 %v5266, %v5262
    %v6107 = vpack.c.b16 %v5267, %v5263
    %v6108 = vpack.c.b16 %v5272, %v5268
    %v6109 = vpack.c.b16 %v5273, %v5269
    %v6110 = vpack.c.b16 %v5274, %v5270
    %v6111 = vpack.c.b16 %v5275, %v5271
    %v6112 = vpack.c.b16 %v5280, %v5276
    %v6113 = vpack.c.b16 %v5281, %v5277
    %v6114 = vpack.c.b16 %v5282, %v5278
    %v6115 = vpack.c.b16 %v5283, %v5279
    %v6116 = vpack.c.b16 %v5288, %v5284
    %v6117 = vpack.c.b16 %v5289, %v5285
    %v6118 = vpack.c.b16 %v5290, %v5286
    %v6119 = vpack.c.b16 %v5291, %v5287
    %v6120 = vpack.c.b16 %v5296, %v5292
    %v6121 = vpack.c.b16 %v5297, %v5293
    %v6122 = vpack.c.b16 %v5298, %v5294
    %v6123 = vpack.c.b16 %v5299, %v5295
    %v6124 = vpack.c.b16 %v5304, %v5300
    %v6125 = vpack.c.b16 %v5305, %v5301
    %v6126 = vpack.c.b16 %v5306, %v5302
    %v6127 = vpack.c.b16 %v5307, %v5303
    %v6128 = vpack.c.b16 %v5312, %v5308
    %v6129 = vpack.c.b16 %v5313, %v5309
    %v6130 = vpack.c.b16 %v5314, %v5310
    %v6131 = vpack.c.b16 %v5315, %v5311
    %v6132 = vpack.c.b16 %v5320, %v5316
    %v6133 = vpack.c.b16 %v5321, %v5317
    %v6134 = vpack.c.b16 %v5322, %v5318
    %v6135 = vpack.c.b16 %v5323, %v5319
    %v6136 = vpack.c.b16 %v5328, %v5324
    %v6137 = vpack.c.b16 %v5329, %v5325
    %v6138 = vpack.c.b16 %v5330, %v5326
    %v6139 = vpack.c.b16 %v5331, %v5327
    %v6140 = vpack.c.b16 %v5336, %v5332
    %v6141 = vpack.c.b16 %v5337, %v5333
    %v6142 = vpack.c.b16 %v5338, %v5334
    %v6143 = vpack.c.b16 %v5339, %v5335
    %v6144 = vpack.c.b16 %v5344, %v5340
    %v6145 = vpack.c.b16 %v5345, %v5341
    %v6146 = vpack.c.b16 %v5346, %v5342
    %v6147 = vpack.c.b16 %v5347, %v5343
    %v6148 = vpack.c.b16 %v5352, %v5348
    %v6149 = vpack.c.b16 %v5353, %v5349
    %v6150 = vpack.c.b16 %v5354, %v5350
    %v6151 = vpack.c.b16 %v5355, %v5351
    %v6152 = vpack.c.b16 %v5360, %v5356
    %v6153 = vpack.c.b16 %v5361, %v5357
    %v6154 = vpack.c.b16 %v5362, %v5358
    %v6155 = vpack.c.b16 %v5363, %v5359
    %v6156 = vpack.c.b16 %v5368, %v5364
    %v6157 = vpack.c.b16 %v5369, %v5365
    %v6158 = vpack.c.b16 %v5370, %v5366
    %v6159 = vpack.c.b16 %v5371, %v5367
    %v6160 = vpack.c.b16 %v5376, %v5372
    %v6161 = vpack.c.b16 %v5377, %v5373
    %v6162 = vpack.c.b16 %v5378, %v5374
    %v6163 = vpack.c.b16 %v5379, %v5375
    %v6164 = vpack.c.b16 %v5384, %v5380
    %v6165 = vpack.c.b16 %v5385, %v5381
    %v6166 = vpack.c.b16 %v5386, %v5382
    %v6167 = vpack.c.b16 %v5387, %v5383
    %v6168 = vpack.c.b16 %v5392, %v5388
    %v6169 = vpack.c.b16 %v5393, %v5389
    %v6170 = vpack.c.b16 %v5394, %v5390
    %v6171 = vpack.c.b16 %v5395, %v5391
    %v6172 = vpack.c.b16 %v5400, %v5396
    %v6173 = vpack.c.b16 %v5401, %v5397
    %v6174 = vpack.c.b16 %v5402, %v5398
    %v6175 = vpack.c.b16 %v5403, %v5399
    %v6176 = vpack.c.b16 %v5408, %v5404
    %v6177 = vpack.c.b16 %v5409, %v5405
    %v6178 = vpack.c.b16 %v5410, %v5406
    %v6179 = vpack.c.b16 %v5411, %v5407
    %v6180 = vpack.c.b16 %v5416, %v5412
    %v6181 = vpack.c.b16 %v5417, %v5413
    %v6182 = vpack.c.b16 %v5418, %v5414
    %v6183 = vpack.c.b16 %v5419, %v5415
    %v6184 = vpack.c.b16 %v5424, %v5420
    %v6185 = vpack.c.b16 %v5425, %v5421
    %v6186 = vpack.c.b16 %v5426, %v5422
    %v6187 = vpack.c.b16 %v5427, %v5423
    %v6188 = vpack.c.b16 %v5432, %v5428
    %v6189 = vpack.c.b16 %v5433, %v5429
    %v6190 = vpack.c.b16 %v5434, %v5430
    %v6191 = vpack.c.b16 %v5435, %v5431
    %v6192 = vpack.c.b16 %v5440, %v5436
    %v6193 = vpack.c.b16 %v5441, %v5437
    %v6194 = vpack.c.b16 %v5442, %v5438
    %v6195 = vpack.c.b16 %v5443, %v5439
    %v6196 = vpack.c.b16 %v5448, %v5444
    %v6197 = vpack.c.b16 %v5449, %v5445
    %v6198 = vpack.c.b16 %v5450, %v5446
    %v6199 = vpack.c.b16 %v5451, %v5447
    %v6200 = vpack.c.b16 %v5456, %v5452
    %v6201 = vpack.c.b16 %v5457, %v5453
    %v6202 = vpack.c.b16 %v5458, %v5454
    %v6203 = vpack.c.b16 %v5459, %v5455
    %v6204 = vpack.c.b16 %v5464, %v5460
    %v6205 = vpack.c.b16 %v5465, %v5461
    %v6206 = vpack.c.b16 %v5466, %v5462
    %v6207 = vpack.c.b16 %v5467, %v5463
    %v6208 = vpack.c.b16 %v5472, %v5468
    %v6209 = vpack.c.b16 %v5473, %v5469
    %v6210 = vpack.c.b16 %v5474, %v5470
    %v6211 = vpack.c.b16 %v5475, %v5471
    %v6212 = vpack.c.b16 %v5480, %v5476
    %v6213 = vpack.c.b16 %v5481, %v5477
    %v6214 = vpack.c.b16 %v5482, %v5478
    %v6215 = vpack.c.b16 %v5483, %v5479
    %v6216 = vpack.c.b16 %v5488, %v5484
    %v6217 = vpack.c.b16 %v5489, %v5485
    %v6218 = vpack.c.b16 %v5490, %v5486
    %v6219 = vpack.c.b16 %v5491, %v5487
    %v6220 = vpack.c.b16 %v5496, %v5492
    %v6221 = vpack.c.b16 %v5497, %v5493
    %v6222 = vpack.c.b16 %v5498, %v5494
    %v6223 = vpack.c.b16 %v5499, %v5495
    %v6224 = vpack.c.b16 %v5504, %v5500
    %v6225 = vpack.c.b16 %v5505, %v5501
    %v6226 = vpack.c.b16 %v5506, %v5502
    %v6227 = vpack.c.b16 %v5507, %v5503
    %v6228 = vpack.c.b16 %v5512, %v5508
    %v6229 = vpack.c.b16 %v5513, %v5509
    %v6230 = vpack.c.b16 %v5514, %v5510
    %v6231 = vpack.c.b16 %v5515, %v5511
    %v6232 = vpack.c.b16 %v5520, %v5516
    %v6233 = vpack.c.b16 %v5521, %v5517
    %v6234 = vpack.c.b16 %v5522, %v5518
    %v6235 = vpack.c.b16 %v5523, %v5519
    %v6236 = vpack.c.b16 %v5528, %v5524
    %v6237 = vpack.c.b16 %v5529, %v5525
    %v6238 = vpack.c.b16 %v5530, %v5526
    %v6239 = vpack.c.b16 %v5531, %v5527
    %v6240 = vpack.c.b16 %v5536, %v5532
    %v6241 = vpack.c.b16 %v5537, %v5533
    %v6242 = vpack.c.b16 %v5538, %v5534
    %v6243 = vpack.c.b16 %v5539, %v5535
    %v6244 = vpack.c.b16 %v5544, %v5540
    %v6245 = vpack.c.b16 %v5545, %v5541
    %v6246 = vpack.c.b16 %v5546, %v5542
    %v6247 = vpack.c.b16 %v5547, %v5543
    %v6248 = vpack.c.b16 %v5552, %v5548
    %v6249 = vpack.c.b16 %v5553, %v5549
    %v6250 = vpack.c.b16 %v5554, %v5550
    %v6251 = vpack.c.b16 %v5555, %v5551
    %v6252 = vpack.c.b16 %v5560, %v5556
    %v6253 = vpack.c.b16 %v5561, %v5557
    %v6254 = vpack.c.b16 %v5562, %v5558
    %v6255 = vpack.c.b16 %v5563, %v5559
    %v6256 = vpack.c.b16 %v5568, %v5564
    %v6257 = vpack.c.b16 %v5569, %v5565
    %v6258 = vpack.c.b16 %v5570, %v5566
    %v6259 = vpack.c.b16 %v5571, %v5567
    %v6260 = vpack.c.b16 %v5576, %v5572
    %v6261 = vpack.c.b16 %v5577, %v5573
    %v6262 = vpack.c.b16 %v5578, %v5574
    %v6263 = vpack.c.b16 %v5579, %v5575
    %v6264 = vpack.c.b16 %v5584, %v5580
    %v6265 = vpack.c.b16 %v5585, %v5581
    %v6266 = vpack.c.b16 %v5586, %v5582
    %v6267 = vpack.c.b16 %v5587, %v5583
    %v6268 = vpack.c.b16 %v5592, %v5588
    %v6269 = vpack.c.b16 %v5593, %v5589
    %v6270 = vpack.c.b16 %v5594, %v5590
    %v6271 = vpack.c.b16 %v5595, %v5591
    %v6272 = vpack.c.b16 %v5600, %v5596
    %v6273 = vpack.c.b16 %v5601, %v5597
    %v6274 = vpack.c.b16 %v5602, %v5598
    %v6275 = vpack.c.b16 %v5603, %v5599
    %v6276 = vpack.c.b16 %v5608, %v5604
    %v6277 = vpack.c.b16 %v5609, %v5605
    %v6278 = vpack.c.b16 %v5610, %v5606
    %v6279 = vpack.c.b16 %v5611, %v5607
    %v6280 = vpack.c.b16 %v5616, %v5612
    %v6281 = vpack.c.b16 %v5617, %v5613
    %v6282 = vpack.c.b16 %v5618, %v5614
    %v6283 = vpack.c.b16 %v5619, %v5615
    %v6284 = vpack.c.b16 %v5624, %v5620
    %v6285 = vpack.c.b16 %v5625, %v5621
    %v6286 = vpack.c.b16 %v5626, %v5622
    %v6287 = vpack.c.b16 %v5627, %v5623
    %v6288 = vpack.c.b16 %v5632, %v5628
    %v6289 = vpack.c.b16 %v5633, %v5629
    %v6290 = vpack.c.b16 %v5634, %v5630
    %v6291 = vpack.c.b16 %v5635, %v5631
    %v6292 = vpack.c.b16 %v5640, %v5636
    %v6293 = vpack.c.b16 %v5641, %v5637
    %v6294 = vpack.c.b16 %v5642, %v5638
    %v6295 = vpack.c.b16 %v5643, %v5639
    %v6296 = vpack.c.b16 %v5648, %v5644
    %v6297 = vpack.c.b16 %v5649, %v5645
    %v6298 = vpack.c.b16 %v5650, %v5646
    %v6299 = vpack.c.b16 %v5651, %v5647
    %v6300 = vpack.c.b16 %v5656, %v5652
    %v6301 = vpack.c.b16 %v5657, %v5653
    %v6302 = vpack.c.b16 %v5658, %v5654
    %v6303 = vpack.c.b16 %v5659, %v5655
    %v6304 = vpack.c.b16 %v5664, %v5660
    %v6305 = vpack.c.b16 %v5665, %v5661
    %v6306 = vpack.c.b16 %v5666, %v5662
    %v6307 = vpack.c.b16 %v5667, %v5663
    %v6308 = vpack.c.b16 %v5672, %v5668
    %v6309 = vpack.c.b16 %v5673, %v5669
    %v6310 = vpack.c.b16 %v5674, %v5670
    %v6311 = vpack.c.b16 %v5675, %v5671
    %v6312 = vpack.c.b16 %v5680, %v5676
    %v6313 = vpack.c.b16 %v5681, %v5677
    %v6314 = vpack.c.b16 %v5682, %v5678
    %v6315 = vpack.c.b16 %v5683, %v5679
    %v6316 = vpack.c.b16 %v5688, %v5684
    %v6317 = vpack.c.b16 %v5689, %v5685
    %v6318 = vpack.c.b16 %v5690, %v5686
    %v6319 = vpack.c.b16 %v5691, %v5687
    %v6320 = vpack.c.b16 %v5696, %v5692
    %v6321 = vpack.c.b16 %v5697, %v5693
    %v6322 = vpack.c.b16 %v5698, %v5694
    %v6323 = vpack.c.b16 %v5699, %v5695
    %v6324 = vpack.c.b16 %v5704, %v5700
    %v6325 = vpack.c.b16 %v5705, %v5701
    %v6326 = vpack.c.b16 %v5706, %v5702
    %v6327 = vpack.c.b16 %v5707, %v5703
    %v6328 = vpack.c.b16 %v5712, %v5708
    %v6329 = vpack.c.b16 %v5713, %v5709
    %v6330 = vpack.c.b16 %v5714, %v5710
    %v6331 = vpack.c.b16 %v5715, %v5711
    %v6332 = vpack.c.b16 %v5720, %v5716
    %v6333 = vpack.c.b16 %v5721, %v5717
    %v6334 = vpack.c.b16 %v5722, %v5718
    %v6335 = vpack.c.b16 %v5723, %v5719
    %v6336 = vpack.c.b16 %v5728, %v5724
    %v6337 = vpack.c.b16 %v5729, %v5725
    %v6338 = vpack.c.b16 %v5730, %v5726
    %v6339 = vpack.c.b16 %v5731, %v5727
    %v6340 = vpack.c.b16 %v5736, %v5732
    %v6341 = vpack.c.b16 %v5737, %v5733
    %v6342 = vpack.c.b16 %v5738, %v5734
    %v6343 = vpack.c.b16 %v5739, %v5735
    %v6344 = vpack.c.b16 %v5744, %v5740
    %v6345 = vpack.c.b16 %v5745, %v5741
    %v6346 = vpack.c.b16 %v5746, %v5742
    %v6347 = vpack.c.b16 %v5747, %v5743
    %v6348 = vpack.c.b16 %v5752, %v5748
    %v6349 = vpack.c.b16 %v5753, %v5749
    %v6350 = vpack.c.b16 %v5754, %v5750
    %v6351 = vpack.c.b16 %v5755, %v5751
    %v6352 = vpack.c.b16 %v5760, %v5756
    %v6353 = vpack.c.b16 %v5761, %v5757
    %v6354 = vpack.c.b16 %v5762, %v5758
    %v6355 = vpack.c.b16 %v5763, %v5759
    %v6356 = vpack.c.b16 %v5768, %v5764
    %v6357 = vpack.c.b16 %v5769, %v5765
    %v6358 = vpack.c.b16 %v5770, %v5766
    %v6359 = vpack.c.b16 %v5771, %v5767
    %v6360 = vpack.c.b16 %v5776, %v5772
    %v6361 = vpack.c.b16 %v5777, %v5773
    %v6362 = vpack.c.b16 %v5778, %v5774
    %v6363 = vpack.c.b16 %v5779, %v5775
    %v6364 = vpack.c.b16 %v5784, %v5780
    %v6365 = vpack.c.b16 %v5785, %v5781
    %v6366 = vpack.c.b16 %v5786, %v5782
    %v6367 = vpack.c.b16 %v5787, %v5783
    %v6368 = vpack.c.b16 %v5792, %v5788
    %v6369 = vpack.c.b16 %v5793, %v5789
    %v6370 = vpack.c.b16 %v5794, %v5790
    %v6371 = vpack.c.b16 %v5795, %v5791
    %v6372 = vpack.c.b16 %v5800, %v5796
    %v6373 = vpack.c.b16 %v5801, %v5797
    %v6374 = vpack.c.b16 %v5802, %v5798
    %v6375 = vpack.c.b16 %v5803, %v5799
    %v6376 = vpack.c.b16 %v5808, %v5804
    %v6377 = vpack.c.b16 %v5809, %v5805
    %v6378 = vpack.c.b16 %v5810, %v5806
    %v6379 = vpack.c.b16 %v5811, %v5807
    %v6380 = vpack.c.b16 %v5816, %v5812
    %v6381 = vpack.c.b16 %v5817, %v5813
    %v6382 = vpack.c.b16 %v5818, %v5814
    %v6383 = vpack.c.b16 %v5819, %v5815
    %v6384 = vpack.c.b16 %v5824, %v5820
    %v6385 = vpack.c.b16 %v5825, %v5821
    %v6386 = vpack.c.b16 %v5826, %v5822
    %v6387 = vpack.c.b16 %v5827, %v5823
    %v6388 = vpack.c.b16 %v5832, %v5828
    %v6389 = vpack.c.b16 %v5833, %v5829
    %v6390 = vpack.c.b16 %v5834, %v5830
    %v6391 = vpack.c.b16 %v5835, %v5831
    %v6392 = vpack.c.b16 %v5840, %v5836
    %v6393 = vpack.c.b16 %v5841, %v5837
    %v6394 = vpack.c.b16 %v5842, %v5838
    %v6395 = vpack.c.b16 %v5843, %v5839
    %v6396 = vpack.c.b16 %v5848, %v5844
    %v6397 = vpack.c.b16 %v5849, %v5845
    %v6398 = vpack.c.b16 %v5850, %v5846
    %v6399 = vpack.c.b16 %v5851, %v5847
    %v6400 = vpack.c.b16 %v5856, %v5852
    %v6401 = vpack.c.b16 %v5857, %v5853
    %v6402 = vpack.c.b16 %v5858, %v5854
    %v6403 = vpack.c.b16 %v5859, %v5855
    %v6404 = vpack.c.b16 %v5864, %v5860
    %v6405 = vpack.c.b16 %v5865, %v5861
    %v6406 = vpack.c.b16 %v5866, %v5862
    %v6407 = vpack.c.b16 %v5867, %v5863
    %v6408 = vpack.c.b16 %v5872, %v5868
    %v6409 = vpack.c.b16 %v5873, %v5869
    %v6410 = vpack.c.b16 %v5874, %v5870
    %v6411 = vpack.c.b16 %v5875, %v5871
    %v6412 = vpack.c.b16 %v5880, %v5876
    %v6413 = vpack.c.b16 %v5881, %v5877
    %v6414 = vpack.c.b16 %v5882, %v5878
    %v6415 = vpack.c.b16 %v5883, %v5879
    %v6416 = vpack.c.b16 %v5888, %v5884
    %v6417 = vpack.c.b16 %v5889, %v5885
    %v6418 = vpack.c.b16 %v5890, %v5886
    %v6419 = vpack.c.b16 %v5891, %v5887
    %v6420 = vpack.c.b16 %v5896, %v5892
    %v6421 = vpack.c.b16 %v5897, %v5893
    %v6422 = vpack.c.b16 %v5898, %v5894
    %v6423 = vpack.c.b16 %v5899, %v5895
    %v6424 = vpack.c.b16 %v5904, %v5900
    %v6425 = vpack.c.b16 %v5905, %v5901
    %v6426 = vpack.c.b16 %v5906, %v5902
    %v6427 = vpack.c.b16 %v5907, %v5903
    %v6428 = vpack.c.b16 %v5912, %v5908
    %v6429 = vpack.c.b16 %v5913, %v5909
    %v6430 = vpack.c.b16 %v5914, %v5910
    %v6431 = vpack.c.b16 %v5915, %v5911
    %v6432 = vpack.c.b16 %v5920, %v5916
    %v6433 = vpack.c.b16 %v5921, %v5917
    %v6434 = vpack.c.b16 %v5922, %v5918
    %v6435 = vpack.c.b16 %v5923, %v5919
    %6948 = vmatprep.subr.bf16.mxu0 %v5925
    %6949 = vmatpush1.bf16.msra.mxu0 %v5924
    %6950 = vmatprep.subr.bf16.mxu0 %v5929
    %6951 = vmatpush1.bf16.msra.mxu0 %v5928
    %6952 = vmatprep.subr.bf16.mxu0 %v5933
    %6953 = vmatpush1.bf16.msra.mxu0 %v5932
    %6954 = vmatprep.subr.bf16.mxu0 %v5937
    %6955 = vmatpush1.bf16.msra.mxu0 %v5936
    %6956 = vmatprep.subr.bf16.mxu0 %v5941
    %6957 = vmatpush1.bf16.msra.mxu0 %v5940
    %6958 = vmatprep.subr.bf16.mxu0 %v5945
    %6959 = vmatpush1.bf16.msra.mxu0 %v5944
    %6960 = vmatprep.subr.bf16.mxu0 %v5949
    %6961 = vmatpush1.bf16.msra.mxu0 %v5948
    %6962 = vmatprep.subr.bf16.mxu0 %v5953
    %6963 = vmatpush1.bf16.msra.mxu0 %v5952
    %6964 = vmatprep.subr.bf16.mxu0 %v5957
    %6965 = vmatpush1.bf16.msra.mxu0 %v5956
    %6966 = vmatprep.subr.bf16.mxu0 %v5961
    %6967 = vmatpush1.bf16.msra.mxu0 %v5960
    %6968 = vmatprep.subr.bf16.mxu0 %v5965
    %6969 = vmatpush1.bf16.msra.mxu0 %v5964
    %6970 = vmatprep.subr.bf16.mxu0 %v5969
    %6971 = vmatpush1.bf16.msra.mxu0 %v5968
    %6972 = vmatprep.subr.bf16.mxu0 %v5973
    %6973 = vmatpush1.bf16.msra.mxu0 %v5972
    %6974 = vmatprep.subr.bf16.mxu0 %v5977
    %6975 = vmatpush1.bf16.msra.mxu0 %v5976
    %6976 = vmatprep.subr.bf16.mxu0 %v5981
    %6977 = vmatpush1.bf16.msra.mxu0 %v5980
    %6978 = vmatprep.subr.bf16.mxu0 %v5985
    %6979 = vmatpush1.bf16.msra.mxu0 %v5984
    %6980 = vmatprep.mubr.bf16.mxu0 %v3861
    %6981 = vmatmul.mubr.bf16.gmra.mrb[0].mxu0 %v3860
    %v6982 = vpop.f32.mrb[0].mxu0
    %v6983 = vadd.f32 %v56, %v6982
    %v6984 = vpop.f32.mrb[0].mxu0
    %v6985 = vadd.f32 %v57, %v6984
    %v6986 = vpop.f32.mrb[0].mxu0
    %v6987 = vadd.f32 %v60, %v6986
    %v6988 = vpop.f32.mrb[0].mxu0
    %v6989 = vadd.f32 %v61, %v6988
    %6990 = vdwg.mxu0
    %6991 = vmatprep.subr.bf16.mxu0 %v5989
    %6992 = vmatpush1.bf16.msra.mxu0 %v5988
    %6993 = vmatprep.subr.bf16.mxu0 %v5993
    %6994 = vmatpush1.bf16.msra.mxu0 %v5992
    %6995 = vmatprep.subr.bf16.mxu0 %v5997
    %6996 = vmatpush1.bf16.msra.mxu0 %v5996
    %6997 = vmatprep.subr.bf16.mxu0 %v6001
    %6998 = vmatpush1.bf16.msra.mxu0 %v6000
    %6999 = vmatprep.subr.bf16.mxu0 %v6005
    %7000 = vmatpush1.bf16.msra.mxu0 %v6004
    %7001 = vmatprep.subr.bf16.mxu0 %v6009
    %7002 = vmatpush1.bf16.msra.mxu0 %v6008
    %7003 = vmatprep.subr.bf16.mxu0 %v6013
    %7004 = vmatpush1.bf16.msra.mxu0 %v6012
    %7005 = vmatprep.subr.bf16.mxu0 %v6017
    %7006 = vmatpush1.bf16.msra.mxu0 %v6016
    %7007 = vmatprep.subr.bf16.mxu0 %v6021
    %7008 = vmatpush1.bf16.msra.mxu0 %v6020
    %7009 = vmatprep.subr.bf16.mxu0 %v6025
    %7010 = vmatpush1.bf16.msra.mxu0 %v6024
    %7011 = vmatprep.subr.bf16.mxu0 %v6029
    %7012 = vmatpush1.bf16.msra.mxu0 %v6028
    %7013 = vmatprep.subr.bf16.mxu0 %v6033
    %7014 = vmatpush1.bf16.msra.mxu0 %v6032
    %7015 = vmatprep.subr.bf16.mxu0 %v6037
    %7016 = vmatpush1.bf16.msra.mxu0 %v6036
    %7017 = vmatprep.subr.bf16.mxu0 %v6041
    %7018 = vmatpush1.bf16.msra.mxu0 %v6040
    %7019 = vmatprep.subr.bf16.mxu0 %v6045
    %7020 = vmatpush1.bf16.msra.mxu0 %v6044
    %7021 = vmatprep.subr.bf16.mxu0 %v6049
    %7022 = vmatpush1.bf16.msra.mxu0 %v6048
    %7023 = vmatprep.mubr.bf16.mxu0 %v3863
    %7024 = vmatmul.mubr.bf16.gmra.mrb[0].mxu0 %v3862
    %v7025 = vpop.f32.mrb[0].mxu0
    %v7026 = vadd.f32 %v6983, %v7025
    %v7027 = vpop.f32.mrb[0].mxu0
    %v7028 = vadd.f32 %v6985, %v7027
    %v7029 = vpop.f32.mrb[0].mxu0
    %v7030 = vadd.f32 %v6987, %v7029
    %v7031 = vpop.f32.mrb[0].mxu0
    %v7032 = vadd.f32 %v6989, %v7031
    %7033 = vdwg.mxu0
    %7034 = vmatprep.subr.bf16.mxu0 %v6053
    %7035 = vmatpush1.bf16.msra.mxu0 %v6052
    %7036 = vmatprep.subr.bf16.mxu0 %v6057
    %7037 = vmatpush1.bf16.msra.mxu0 %v6056
    %7038 = vmatprep.subr.bf16.mxu0 %v6061
    %7039 = vmatpush1.bf16.msra.mxu0 %v6060
    %7040 = vmatprep.subr.bf16.mxu0 %v6065
    %7041 = vmatpush1.bf16.msra.mxu0 %v6064
    %7042 = vmatprep.subr.bf16.mxu0 %v6069
    %7043 = vmatpush1.bf16.msra.mxu0 %v6068
    %7044 = vmatprep.subr.bf16.mxu0 %v6073
    %7045 = vmatpush1.bf16.msra.mxu0 %v6072
    %7046 = vmatprep.subr.bf16.mxu0 %v6077
    %7047 = vmatpush1.bf16.msra.mxu0 %v6076
    %7048 = vmatprep.subr.bf16.mxu0 %v6081
    %7049 = vmatpush1.bf16.msra.mxu0 %v6080
    %7050 = vmatprep.subr.bf16.mxu0 %v6085
    %7051 = vmatpush1.bf16.msra.mxu0 %v6084
    %7052 = vmatprep.subr.bf16.mxu0 %v6089
    %7053 = vmatpush1.bf16.msra.mxu0 %v6088
    %7054 = vmatprep.subr.bf16.mxu0 %v6093
    %7055 = vmatpush1.bf16.msra.mxu0 %v6092
    %7056 = vmatprep.subr.bf16.mxu0 %v6097
    %7057 = vmatpush1.bf16.msra.mxu0 %v6096
    %7058 = vmatprep.subr.bf16.mxu0 %v6101
    %7059 = vmatpush1.bf16.msra.mxu0 %v6100
    %7060 = vmatprep.subr.bf16.mxu0 %v6105
    %7061 = vmatpush1.bf16.msra.mxu0 %v6104
    %7062 = vmatprep.subr.bf16.mxu0 %v6109
    %7063 = vmatpush1.bf16.msra.mxu0 %v6108
    %7064 = vmatprep.subr.bf16.mxu0 %v6113
    %7065 = vmatpush1.bf16.msra.mxu0 %v6112
    %7066 = vmatprep.mubr.bf16.mxu0 %v3865
    %7067 = vmatmul.mubr.bf16.gmra.mrb[0].mxu0 %v3864
    %v7068 = vpop.f32.mrb[0].mxu0
    %v7069 = vadd.f32 %v7026, %v7068
    %v7070 = vpop.f32.mrb[0].mxu0
    %v7071 = vadd.f32 %v7028, %v7070
    %v7072 = vpop.f32.mrb[0].mxu0
    %v7073 = vadd.f32 %v7030, %v7072
    %v7074 = vpop.f32.mrb[0].mxu0
    %v7075 = vadd.f32 %v7032, %v7074
    %7076 = vdwg.mxu0
    %7077 = vmatprep.subr.bf16.mxu0 %v6117
    %7078 = vmatpush1.bf16.msra.mxu0 %v6116
    %7079 = vmatprep.subr.bf16.mxu0 %v6121
    %7080 = vmatpush1.bf16.msra.mxu0 %v6120
    %7081 = vmatprep.subr.bf16.mxu0 %v6125
    %7082 = vmatpush1.bf16.msra.mxu0 %v6124
    %7083 = vmatprep.subr.bf16.mxu0 %v6129
    %7084 = vmatpush1.bf16.msra.mxu0 %v6128
    %7085 = vmatprep.subr.bf16.mxu0 %v6133
    %7086 = vmatpush1.bf16.msra.mxu0 %v6132
    %7087 = vmatprep.subr.bf16.mxu0 %v6137
    %7088 = vmatpush1.bf16.msra.mxu0 %v6136
    %7089 = vmatprep.subr.bf16.mxu0 %v6141
    %7090 = vmatpush1.bf16.msra.mxu0 %v6140
    %7091 = vmatprep.subr.bf16.mxu0 %v6145
    %7092 = vmatpush1.bf16.msra.mxu0 %v6144
    %7093 = vmatprep.subr.bf16.mxu0 %v6149
    %7094 = vmatpush1.bf16.msra.mxu0 %v6148
    %7095 = vmatprep.subr.bf16.mxu0 %v6153
    %7096 = vmatpush1.bf16.msra.mxu0 %v6152
    %7097 = vmatprep.subr.bf16.mxu0 %v6157
    %7098 = vmatpush1.bf16.msra.mxu0 %v6156
    %7099 = vmatprep.subr.bf16.mxu0 %v6161
    %7100 = vmatpush1.bf16.msra.mxu0 %v6160
    %7101 = vmatprep.subr.bf16.mxu0 %v6165
    %7102 = vmatpush1.bf16.msra.mxu0 %v6164
    %7103 = vmatprep.subr.bf16.mxu0 %v6169
    %7104 = vmatpush1.bf16.msra.mxu0 %v6168
    %7105 = vmatprep.subr.bf16.mxu0 %v6173
    %7106 = vmatpush1.bf16.msra.mxu0 %v6172
    %7107 = vmatprep.subr.bf16.mxu0 %v6177
    %7108 = vmatpush1.bf16.msra.mxu0 %v6176
    %7109 = vmatprep.mubr.bf16.mxu0 %v3867
    %7110 = vmatmul.mubr.bf16.gmra.mrb[0].mxu0 %v3866
    %v7111 = vpop.f32.mrb[0].mxu0
    %v7112 = vadd.f32 %v7069, %v7111
    %v7113 = vpop.f32.mrb[0].mxu0
    %v7114 = vadd.f32 %v7071, %v7113
    %v7115 = vpop.f32.mrb[0].mxu0
    %v7116 = vadd.f32 %v7073, %v7115
    %v7117 = vpop.f32.mrb[0].mxu0
    %v7118 = vadd.f32 %v7075, %v7117
    %7119 = vdwg.mxu0
    %7120 = vmatprep.subr.bf16.mxu0 %v6181
    %7121 = vmatpush1.bf16.msra.mxu0 %v6180
    %7122 = vmatprep.subr.bf16.mxu0 %v6185
    %7123 = vmatpush1.bf16.msra.mxu0 %v6184
    %7124 = vmatprep.subr.bf16.mxu0 %v6189
    %7125 = vmatpush1.bf16.msra.mxu0 %v6188
    %7126 = vmatprep.subr.bf16.mxu0 %v6193
    %7127 = vmatpush1.bf16.msra.mxu0 %v6192
    %7128 = vmatprep.subr.bf16.mxu0 %v6197
    %7129 = vmatpush1.bf16.msra.mxu0 %v6196
    %7130 = vmatprep.subr.bf16.mxu0 %v6201
    %7131 = vmatpush1.bf16.msra.mxu0 %v6200
    %7132 = vmatprep.subr.bf16.mxu0 %v6205
    %7133 = vmatpush1.bf16.msra.mxu0 %v6204
    %7134 = vmatprep.subr.bf16.mxu0 %v6209
    %7135 = vmatpush1.bf16.msra.mxu0 %v6208
    %7136 = vmatprep.subr.bf16.mxu0 %v6213
    %7137 = vmatpush1.bf16.msra.mxu0 %v6212
    %7138 = vmatprep.subr.bf16.mxu0 %v6217
    %7139 = vmatpush1.bf16.msra.mxu0 %v6216
    %7140 = vmatprep.subr.bf16.mxu0 %v6221
    %7141 = vmatpush1.bf16.msra.mxu0 %v6220
    %7142 = vmatprep.subr.bf16.mxu0 %v6225
    %7143 = vmatpush1.bf16.msra.mxu0 %v6224
    %7144 = vmatprep.subr.bf16.mxu0 %v6229
    %7145 = vmatpush1.bf16.msra.mxu0 %v6228
    %7146 = vmatprep.subr.bf16.mxu0 %v6233
    %7147 = vmatpush1.bf16.msra.mxu0 %v6232
    %7148 = vmatprep.subr.bf16.mxu0 %v6237
    %7149 = vmatpush1.bf16.msra.mxu0 %v6236
    %7150 = vmatprep.subr.bf16.mxu0 %v6241
    %7151 = vmatpush1.bf16.msra.mxu0 %v6240
    %7152 = vmatprep.mubr.bf16.mxu0 %v3869
    %7153 = vmatmul.mubr.bf16.gmra.mrb[0].mxu0 %v3868
    %v7154 = vpop.f32.mrb[0].mxu0
    %v7155 = vadd.f32 %v7112, %v7154
    %v7156 = vpop.f32.mrb[0].mxu0
    %v7157 = vadd.f32 %v7114, %v7156
    %v7158 = vpop.f32.mrb[0].mxu0
    %v7159 = vadd.f32 %v7116, %v7158
    %v7160 = vpop.f32.mrb[0].mxu0
    %v7161 = vadd.f32 %v7118, %v7160
    %7162 = vdwg.mxu0
    %7163 = vmatprep.subr.bf16.mxu0 %v6245
    %7164 = vmatpush1.bf16.msra.mxu0 %v6244
    %7165 = vmatprep.subr.bf16.mxu0 %v6249
    %7166 = vmatpush1.bf16.msra.mxu0 %v6248
    %7167 = vmatprep.subr.bf16.mxu0 %v6253
    %7168 = vmatpush1.bf16.msra.mxu0 %v6252
    %7169 = vmatprep.subr.bf16.mxu0 %v6257
    %7170 = vmatpush1.bf16.msra.mxu0 %v6256
    %7171 = vmatprep.subr.bf16.mxu0 %v6261
    %7172 = vmatpush1.bf16.msra.mxu0 %v6260
    %7173 = vmatprep.subr.bf16.mxu0 %v6265
    %7174 = vmatpush1.bf16.msra.mxu0 %v6264
    %7175 = vmatprep.subr.bf16.mxu0 %v6269
    %7176 = vmatpush1.bf16.msra.mxu0 %v6268
    %7177 = vmatprep.subr.bf16.mxu0 %v6273
    %7178 = vmatpush1.bf16.msra.mxu0 %v6272
    %7179 = vmatprep.subr.bf16.mxu0 %v6277
    %7180 = vmatpush1.bf16.msra.mxu0 %v6276
    %7181 = vmatprep.subr.bf16.mxu0 %v6281
    %7182 = vmatpush1.bf16.msra.mxu0 %v6280
    %7183 = vmatprep.subr.bf16.mxu0 %v6285
    %7184 = vmatpush1.bf16.msra.mxu0 %v6284
    %7185 = vmatprep.subr.bf16.mxu0 %v6289
    %7186 = vmatpush1.bf16.msra.mxu0 %v6288
    %7187 = vmatprep.subr.bf16.mxu0 %v6293
    %7188 = vmatpush1.bf16.msra.mxu0 %v6292
    %7189 = vmatprep.subr.bf16.mxu0 %v6297
    %7190 = vmatpush1.bf16.msra.mxu0 %v6296
    %7191 = vmatprep.subr.bf16.mxu0 %v6301
    %7192 = vmatpush1.bf16.msra.mxu0 %v6300
    %7193 = vmatprep.subr.bf16.mxu0 %v6305
    %7194 = vmatpush1.bf16.msra.mxu0 %v6304
    %7195 = vmatprep.mubr.bf16.mxu0 %v3871
    %7196 = vmatmul.mubr.bf16.gmra.mrb[0].mxu0 %v3870
    %v7197 = vpop.f32.mrb[0].mxu0
    %v7198 = vadd.f32 %v7155, %v7197
    %v7199 = vpop.f32.mrb[0].mxu0
    %v7200 = vadd.f32 %v7157, %v7199
    %v7201 = vpop.f32.mrb[0].mxu0
    %v7202 = vadd.f32 %v7159, %v7201
    %v7203 = vpop.f32.mrb[0].mxu0
    %v7204 = vadd.f32 %v7161, %v7203
    %7205 = vdwg.mxu0
    %7206 = vmatprep.subr.bf16.mxu0 %v6309
    %7207 = vmatpush1.bf16.msra.mxu0 %v6308
    %7208 = vmatprep.subr.bf16.mxu0 %v6313
    %7209 = vmatpush1.bf16.msra.mxu0 %v6312
    %7210 = vmatprep.subr.bf16.mxu0 %v6317
    %7211 = vmatpush1.bf16.msra.mxu0 %v6316
    %7212 = vmatprep.subr.bf16.mxu0 %v6321
    %7213 = vmatpush1.bf16.msra.mxu0 %v6320
    %7214 = vmatprep.subr.bf16.mxu0 %v6325
    %7215 = vmatpush1.bf16.msra.mxu0 %v6324
    %7216 = vmatprep.subr.bf16.mxu0 %v6329
    %7217 = vmatpush1.bf16.msra.mxu0 %v6328
    %7218 = vmatprep.subr.bf16.mxu0 %v6333
    %7219 = vmatpush1.bf16.msra.mxu0 %v6332
    %7220 = vmatprep.subr.bf16.mxu0 %v6337
    %7221 = vmatpush1.bf16.msra.mxu0 %v6336
    %7222 = vmatprep.subr.bf16.mxu0 %v6341
    %7223 = vmatpush1.bf16.msra.mxu0 %v6340
    %7224 = vmatprep.subr.bf16.mxu0 %v6345
    %7225 = vmatpush1.bf16.msra.mxu0 %v6344
    %7226 = vmatprep.subr.bf16.mxu0 %v6349
    %7227 = vmatpush1.bf16.msra.mxu0 %v6348
    %7228 = vmatprep.subr.bf16.mxu0 %v6353
    %7229 = vmatpush1.bf16.msra.mxu0 %v6352
    %7230 = vmatprep.subr.bf16.mxu0 %v6357
    %7231 = vmatpush1.bf16.msra.mxu0 %v6356
    %7232 = vmatprep.subr.bf16.mxu0 %v6361
    %7233 = vmatpush1.bf16.msra.mxu0 %v6360
    %7234 = vmatprep.subr.bf16.mxu0 %v6365
    %7235 = vmatpush1.bf16.msra.mxu0 %v6364
    %7236 = vmatprep.subr.bf16.mxu0 %v6369
    %7237 = vmatpush1.bf16.msra.mxu0 %v6368
    %7238 = vmatprep.mubr.bf16.mxu0 %v3873
    %7239 = vmatmul.mubr.bf16.gmra.mrb[0].mxu0 %v3872
    %v7240 = vpop.f32.mrb[0].mxu0
    %v7241 = vadd.f32 %v7198, %v7240
    %v7242 = vpop.f32.mrb[0].mxu0
    %v7243 = vadd.f32 %v7200, %v7242
    %v7244 = vpop.f32.mrb[0].mxu0
    %v7245 = vadd.f32 %v7202, %v7244
    %v7246 = vpop.f32.mrb[0].mxu0
    %v7247 = vadd.f32 %v7204, %v7246
    %7248 = vdwg.mxu0
    %7249 = vmatprep.subr.bf16.mxu0 %v6373
    %7250 = vmatpush1.bf16.msra.mxu0 %v6372
    %7251 = vmatprep.subr.bf16.mxu0 %v6377
    %7252 = vmatpush1.bf16.msra.mxu0 %v6376
    %7253 = vmatprep.subr.bf16.mxu0 %v6381
    %7254 = vmatpush1.bf16.msra.mxu0 %v6380
    %7255 = vmatprep.subr.bf16.mxu0 %v6385
    %7256 = vmatpush1.bf16.msra.mxu0 %v6384
    %7257 = vmatprep.subr.bf16.mxu0 %v6389
    %7258 = vmatpush1.bf16.msra.mxu0 %v6388
    %7259 = vmatprep.subr.bf16.mxu0 %v6393
    %7260 = vmatpush1.bf16.msra.mxu0 %v6392
    %7261 = vmatprep.subr.bf16.mxu0 %v6397
    %7262 = vmatpush1.bf16.msra.mxu0 %v6396
    %7263 = vmatprep.subr.bf16.mxu0 %v6401
    %7264 = vmatpush1.bf16.msra.mxu0 %v6400
    %7265 = vmatprep.subr.bf16.mxu0 %v6405
    %7266 = vmatpush1.bf16.msra.mxu0 %v6404
    %7267 = vmatprep.subr.bf16.mxu0 %v6409
    %7268 = vmatpush1.bf16.msra.mxu0 %v6408
    %7269 = vmatprep.subr.bf16.mxu0 %v6413
    %7270 = vmatpush1.bf16.msra.mxu0 %v6412
    %7271 = vmatprep.subr.bf16.mxu0 %v6417
    %7272 = vmatpush1.bf16.msra.mxu0 %v6416
    %7273 = vmatprep.subr.bf16.mxu0 %v6421
    %7274 = vmatpush1.bf16.msra.mxu0 %v6420
    %7275 = vmatprep.subr.bf16.mxu0 %v6425
    %7276 = vmatpush1.bf16.msra.mxu0 %v6424
    %7277 = vmatprep.subr.bf16.mxu0 %v6429
    %7278 = vmatpush1.bf16.msra.mxu0 %v6428
    %7279 = vmatprep.subr.bf16.mxu0 %v6433
    %7280 = vmatpush1.bf16.msra.mxu0 %v6432
    %7281 = vmatprep.mubr.bf16.mxu0 %v3875
    %7282 = vmatmul.mubr.bf16.gmra.mrb[0].mxu0 %v3874
    %v7283 = vpop.f32.mrb[0].mxu0
    %v7284 = vadd.f32 %v7241, %v7283
    %v7285 = vpop.f32.mrb[0].mxu0
    %v7286 = vadd.f32 %v7243, %v7285
    %v7287 = vpop.f32.mrb[0].mxu0
    %v7288 = vadd.f32 %v7245, %v7287
    %v7289 = vpop.f32.mrb[0].mxu0
    %v7290 = vadd.f32 %v7247, %v7289
    %7291 = vdwg.mxu0
    %7292 = vmatprep.subr.bf16.mxu0 %v5927
    %7293 = vmatpush1.bf16.msra.mxu0 %v5926
    %7294 = vmatprep.subr.bf16.mxu0 %v5931
    %7295 = vmatpush1.bf16.msra.mxu0 %v5930
    %7296 = vmatprep.subr.bf16.mxu0 %v5935
    %7297 = vmatpush1.bf16.msra.mxu0 %v5934
    %7298 = vmatprep.subr.bf16.mxu0 %v5939
    %7299 = vmatpush1.bf16.msra.mxu0 %v5938
    %7300 = vmatprep.subr.bf16.mxu0 %v5943
    %7301 = vmatpush1.bf16.msra.mxu0 %v5942
    %7302 = vmatprep.subr.bf16.mxu0 %v5947
    %7303 = vmatpush1.bf16.msra.mxu0 %v5946
    %7304 = vmatprep.subr.bf16.mxu0 %v5951
    %7305 = vmatpush1.bf16.msra.mxu0 %v5950
    %7306 = vmatprep.subr.bf16.mxu0 %v5955
    %7307 = vmatpush1.bf16.msra.mxu0 %v5954
    %7308 = vmatprep.subr.bf16.mxu0 %v5959
    %7309 = vmatpush1.bf16.msra.mxu0 %v5958
    %7310 = vmatprep.subr.bf16.mxu0 %v5963
    %7311 = vmatpush1.bf16.msra.mxu0 %v5962
    %7312 = vmatprep.subr.bf16.mxu0 %v5967
    %7313 = vmatpush1.bf16.msra.mxu0 %v5966
    %7314 = vmatprep.subr.bf16.mxu0 %v5971
    %7315 = vmatpush1.bf16.msra.mxu0 %v5970
    %7316 = vmatprep.subr.bf16.mxu0 %v5975
    %7317 = vmatpush1.bf16.msra.mxu0 %v5974
    %7318 = vmatprep.subr.bf16.mxu0 %v5979
    %7319 = vmatpush1.bf16.msra.mxu0 %v5978
    %7320 = vmatprep.subr.bf16.mxu0 %v5983
    %7321 = vmatpush1.bf16.msra.mxu0 %v5982
    %7322 = vmatprep.subr.bf16.mxu0 %v5987
    %7323 = vmatpush1.bf16.msra.mxu0 %v5986
    %7324 = vmatprep.mubr.bf16.mxu0 %v3861
    %7325 = vmatmul.mubr.bf16.gmra.mrb[0].mxu0 %v3860
    %v7326 = vpop.f32.mrb[0].mxu0
    %v7327 = vadd.f32 %v58, %v7326
    %v7328 = vpop.f32.mrb[0].mxu0
    %v7329 = vadd.f32 %v59, %v7328
    %v7330 = vpop.f32.mrb[0].mxu0
    %v7331 = vadd.f32 %v62, %v7330
    %v7332 = vpop.f32.mrb[0].mxu0
    %v7333 = vadd.f32 %v63, %v7332
    %7334 = vdwg.mxu0
    %7335 = vmatprep.subr.bf16.mxu0 %v5991
    %7336 = vmatpush1.bf16.msra.mxu0 %v5990
    %7337 = vmatprep.subr.bf16.mxu0 %v5995
    %7338 = vmatpush1.bf16.msra.mxu0 %v5994
    %7339 = vmatprep.subr.bf16.mxu0 %v5999
    %7340 = vmatpush1.bf16.msra.mxu0 %v5998
    %7341 = vmatprep.subr.bf16.mxu0 %v6003
    %7342 = vmatpush1.bf16.msra.mxu0 %v6002
    %7343 = vmatprep.subr.bf16.mxu0 %v6007
    %7344 = vmatpush1.bf16.msra.mxu0 %v6006
    %7345 = vmatprep.subr.bf16.mxu0 %v6011
    %7346 = vmatpush1.bf16.msra.mxu0 %v6010
    %7347 = vmatprep.subr.bf16.mxu0 %v6015
    %7348 = vmatpush1.bf16.msra.mxu0 %v6014
    %7349 = vmatprep.subr.bf16.mxu0 %v6019
    %7350 = vmatpush1.bf16.msra.mxu0 %v6018
    %7351 = vmatprep.subr.bf16.mxu0 %v6023
    %7352 = vmatpush1.bf16.msra.mxu0 %v6022
    %7353 = vmatprep.subr.bf16.mxu0 %v6027
    %7354 = vmatpush1.bf16.msra.mxu0 %v6026
    %7355 = vmatprep.subr.bf16.mxu0 %v6031
    %7356 = vmatpush1.bf16.msra.mxu0 %v6030
    %7357 = vmatprep.subr.bf16.mxu0 %v6035
    %7358 = vmatpush1.bf16.msra.mxu0 %v6034
    %7359 = vmatprep.subr.bf16.mxu0 %v6039
    %7360 = vmatpush1.bf16.msra.mxu0 %v6038
    %7361 = vmatprep.subr.bf16.mxu0 %v6043
    %7362 = vmatpush1.bf16.msra.mxu0 %v6042
    %7363 = vmatprep.subr.bf16.mxu0 %v6047
    %7364 = vmatpush1.bf16.msra.mxu0 %v6046
    %7365 = vmatprep.subr.bf16.mxu0 %v6051
    %7366 = vmatpush1.bf16.msra.mxu0 %v6050
    %7367 = vmatprep.mubr.bf16.mxu0 %v3863
    %7368 = vmatmul.mubr.bf16.gmra.mrb[0].mxu0 %v3862
    %v7369 = vpop.f32.mrb[0].mxu0
    %v7370 = vadd.f32 %v7327, %v7369
    %v7371 = vpop.f32.mrb[0].mxu0
    %v7372 = vadd.f32 %v7329, %v7371
    %v7373 = vpop.f32.mrb[0].mxu0
    %v7374 = vadd.f32 %v7331, %v7373
    %v7375 = vpop.f32.mrb[0].mxu0
    %v7376 = vadd.f32 %v7333, %v7375
    %7377 = vdwg.mxu0
    %7378 = vmatprep.subr.bf16.mxu0 %v6055
    %7379 = vmatpush1.bf16.msra.mxu0 %v6054
    %7380 = vmatprep.subr.bf16.mxu0 %v6059
    %7381 = vmatpush1.bf16.msra.mxu0 %v6058
    %7382 = vmatprep.subr.bf16.mxu0 %v6063
    %7383 = vmatpush1.bf16.msra.mxu0 %v6062
    %7384 = vmatprep.subr.bf16.mxu0 %v6067
    %7385 = vmatpush1.bf16.msra.mxu0 %v6066
    %7386 = vmatprep.subr.bf16.mxu0 %v6071
    %7387 = vmatpush1.bf16.msra.mxu0 %v6070
    %7388 = vmatprep.subr.bf16.mxu0 %v6075
    %7389 = vmatpush1.bf16.msra.mxu0 %v6074
    %7390 = vmatprep.subr.bf16.mxu0 %v6079
    %7391 = vmatpush1.bf16.msra.mxu0 %v6078
    %7392 = vmatprep.subr.bf16.mxu0 %v6083
    %7393 = vmatpush1.bf16.msra.mxu0 %v6082
    %7394 = vmatprep.subr.bf16.mxu0 %v6087
    %7395 = vmatpush1.bf16.msra.mxu0 %v6086
    %7396 = vmatprep.subr.bf16.mxu0 %v6091
    %7397 = vmatpush1.bf16.msra.mxu0 %v6090
    %7398 = vmatprep.subr.bf16.mxu0 %v6095
    %7399 = vmatpush1.bf16.msra.mxu0 %v6094
    %7400 = vmatprep.subr.bf16.mxu0 %v6099
    %7401 = vmatpush1.bf16.msra.mxu0 %v6098
    %7402 = vmatprep.subr.bf16.mxu0 %v6103
    %7403 = vmatpush1.bf16.msra.mxu0 %v6102
    %7404 = vmatprep.subr.bf16.mxu0 %v6107
    %7405 = vmatpush1.bf16.msra.mxu0 %v6106
    %7406 = vmatprep.subr.bf16.mxu0 %v6111
    %7407 = vmatpush1.bf16.msra.mxu0 %v6110
    %7408 = vmatprep.subr.bf16.mxu0 %v6115
    %7409 = vmatpush1.bf16.msra.mxu0 %v6114
    %7410 = vmatprep.mubr.bf16.mxu0 %v3865
    %7411 = vmatmul.mubr.bf16.gmra.mrb[0].mxu0 %v3864
    %v7412 = vpop.f32.mrb[0].mxu0
    %v7413 = vadd.f32 %v7370, %v7412
    %v7414 = vpop.f32.mrb[0].mxu0
    %v7415 = vadd.f32 %v7372, %v7414
    %v7416 = vpop.f32.mrb[0].mxu0
    %v7417 = vadd.f32 %v7374, %v7416
    %v7418 = vpop.f32.mrb[0].mxu0
    %v7419 = vadd.f32 %v7376, %v7418
    %7420 = vdwg.mxu0
    %7421 = vmatprep.subr.bf16.mxu0 %v6119
    %7422 = vmatpush1.bf16.msra.mxu0 %v6118
    %7423 = vmatprep.subr.bf16.mxu0 %v6123
    %7424 = vmatpush1.bf16.msra.mxu0 %v6122
    %7425 = vmatprep.subr.bf16.mxu0 %v6127
    %7426 = vmatpush1.bf16.msra.mxu0 %v6126
    %7427 = vmatprep.subr.bf16.mxu0 %v6131
    %7428 = vmatpush1.bf16.msra.mxu0 %v6130
    %7429 = vmatprep.subr.bf16.mxu0 %v6135
    %7430 = vmatpush1.bf16.msra.mxu0 %v6134
    %7431 = vmatprep.subr.bf16.mxu0 %v6139
    %7432 = vmatpush1.bf16.msra.mxu0 %v6138
    %7433 = vmatprep.subr.bf16.mxu0 %v6143
    %7434 = vmatpush1.bf16.msra.mxu0 %v6142
    %7435 = vmatprep.subr.bf16.mxu0 %v6147
    %7436 = vmatpush1.bf16.msra.mxu0 %v6146
    %7437 = vmatprep.subr.bf16.mxu0 %v6151
    %7438 = vmatpush1.bf16.msra.mxu0 %v6150
    %7439 = vmatprep.subr.bf16.mxu0 %v6155
    %7440 = vmatpush1.bf16.msra.mxu0 %v6154
    %7441 = vmatprep.subr.bf16.mxu0 %v6159
    %7442 = vmatpush1.bf16.msra.mxu0 %v6158
    %7443 = vmatprep.subr.bf16.mxu0 %v6163
    %7444 = vmatpush1.bf16.msra.mxu0 %v6162
    %7445 = vmatprep.subr.bf16.mxu0 %v6167
    %7446 = vmatpush1.bf16.msra.mxu0 %v6166
    %7447 = vmatprep.subr.bf16.mxu0 %v6171
    %7448 = vmatpush1.bf16.msra.mxu0 %v6170
    %7449 = vmatprep.subr.bf16.mxu0 %v6175
    %7450 = vmatpush1.bf16.msra.mxu0 %v6174
    %7451 = vmatprep.subr.bf16.mxu0 %v6179
    %7452 = vmatpush1.bf16.msra.mxu0 %v6178
    %7453 = vmatprep.mubr.bf16.mxu0 %v3867
    %7454 = vmatmul.mubr.bf16.gmra.mrb[0].mxu0 %v3866
    %v7455 = vpop.f32.mrb[0].mxu0
    %v7456 = vadd.f32 %v7413, %v7455
    %v7457 = vpop.f32.mrb[0].mxu0
    %v7458 = vadd.f32 %v7415, %v7457
    %v7459 = vpop.f32.mrb[0].mxu0
    %v7460 = vadd.f32 %v7417, %v7459
    %v7461 = vpop.f32.mrb[0].mxu0
    %v7462 = vadd.f32 %v7419, %v7461
    %7463 = vdwg.mxu0
    %7464 = vmatprep.subr.bf16.mxu0 %v6183
    %7465 = vmatpush1.bf16.msra.mxu0 %v6182
    %7466 = vmatprep.subr.bf16.mxu0 %v6187
    %7467 = vmatpush1.bf16.msra.mxu0 %v6186
    %7468 = vmatprep.subr.bf16.mxu0 %v6191
    %7469 = vmatpush1.bf16.msra.mxu0 %v6190
    %7470 = vmatprep.subr.bf16.mxu0 %v6195
    %7471 = vmatpush1.bf16.msra.mxu0 %v6194
    %7472 = vmatprep.subr.bf16.mxu0 %v6199
    %7473 = vmatpush1.bf16.msra.mxu0 %v6198
    %7474 = vmatprep.subr.bf16.mxu0 %v6203
    %7475 = vmatpush1.bf16.msra.mxu0 %v6202
    %7476 = vmatprep.subr.bf16.mxu0 %v6207
    %7477 = vmatpush1.bf16.msra.mxu0 %v6206
    %7478 = vmatprep.subr.bf16.mxu0 %v6211
    %7479 = vmatpush1.bf16.msra.mxu0 %v6210
    %7480 = vmatprep.subr.bf16.mxu0 %v6215
    %7481 = vmatpush1.bf16.msra.mxu0 %v6214
    %7482 = vmatprep.subr.bf16.mxu0 %v6219
    %7483 = vmatpush1.bf16.msra.mxu0 %v6218
    %7484 = vmatprep.subr.bf16.mxu0 %v6223
    %7485 = vmatpush1.bf16.msra.mxu0 %v6222
    %7486 = vmatprep.subr.bf16.mxu0 %v6227
    %7487 = vmatpush1.bf16.msra.mxu0 %v6226
    %7488 = vmatprep.subr.bf16.mxu0 %v6231
    %7489 = vmatpush1.bf16.msra.mxu0 %v6230
    %7490 = vmatprep.subr.bf16.mxu0 %v6235
    %7491 = vmatpush1.bf16.msra.mxu0 %v6234
    %7492 = vmatprep.subr.bf16.mxu0 %v6239
    %7493 = vmatpush1.bf16.msra.mxu0 %v6238
    %7494 = vmatprep.subr.bf16.mxu0 %v6243
    %7495 = vmatpush1.bf16.msra.mxu0 %v6242
    %7496 = vmatprep.mubr.bf16.mxu0 %v3869
    %7497 = vmatmul.mubr.bf16.gmra.mrb[0].mxu0 %v3868
    %v7498 = vpop.f32.mrb[0].mxu0
    %v7499 = vadd.f32 %v7456, %v7498
    %v7500 = vpop.f32.mrb[0].mxu0
    %v7501 = vadd.f32 %v7458, %v7500
    %v7502 = vpop.f32.mrb[0].mxu0
    %v7503 = vadd.f32 %v7460, %v7502
    %v7504 = vpop.f32.mrb[0].mxu0
    %v7505 = vadd.f32 %v7462, %v7504
    %7506 = vdwg.mxu0
    %7507 = vmatprep.subr.bf16.mxu0 %v6247
    %7508 = vmatpush1.bf16.msra.mxu0 %v6246
    %7509 = vmatprep.subr.bf16.mxu0 %v6251
    %7510 = vmatpush1.bf16.msra.mxu0 %v6250
    %7511 = vmatprep.subr.bf16.mxu0 %v6255
    %7512 = vmatpush1.bf16.msra.mxu0 %v6254
    %7513 = vmatprep.subr.bf16.mxu0 %v6259
    %7514 = vmatpush1.bf16.msra.mxu0 %v6258
    %7515 = vmatprep.subr.bf16.mxu0 %v6263
    %7516 = vmatpush1.bf16.msra.mxu0 %v6262
    %7517 = vmatprep.subr.bf16.mxu0 %v6267
    %7518 = vmatpush1.bf16.msra.mxu0 %v6266
    %7519 = vmatprep.subr.bf16.mxu0 %v6271
    %7520 = vmatpush1.bf16.msra.mxu0 %v6270
    %7521 = vmatprep.subr.bf16.mxu0 %v6275
    %7522 = vmatpush1.bf16.msra.mxu0 %v6274
    %7523 = vmatprep.subr.bf16.mxu0 %v6279
    %7524 = vmatpush1.bf16.msra.mxu0 %v6278
    %7525 = vmatprep.subr.bf16.mxu0 %v6283
    %7526 = vmatpush1.bf16.msra.mxu0 %v6282
    %7527 = vmatprep.subr.bf16.mxu0 %v6287
    %7528 = vmatpush1.bf16.msra.mxu0 %v6286
    %7529 = vmatprep.subr.bf16.mxu0 %v6291
    %7530 = vmatpush1.bf16.msra.mxu0 %v6290
    %7531 = vmatprep.subr.bf16.mxu0 %v6295
    %7532 = vmatpush1.bf16.msra.mxu0 %v6294
    %7533 = vmatprep.subr.bf16.mxu0 %v6299
    %7534 = vmatpush1.bf16.msra.mxu0 %v6298
    %7535 = vmatprep.subr.bf16.mxu0 %v6303
    %7536 = vmatpush1.bf16.msra.mxu0 %v6302
    %7537 = vmatprep.subr.bf16.mxu0 %v6307
    %7538 = vmatpush1.bf16.msra.mxu0 %v6306
    %7539 = vmatprep.mubr.bf16.mxu0 %v3871
    %7540 = vmatmul.mubr.bf16.gmra.mrb[0].mxu0 %v3870
    %v7541 = vpop.f32.mrb[0].mxu0
    %v7542 = vadd.f32 %v7499, %v7541
    %v7543 = vpop.f32.mrb[0].mxu0
    %v7544 = vadd.f32 %v7501, %v7543
    %v7545 = vpop.f32.mrb[0].mxu0
    %v7546 = vadd.f32 %v7503, %v7545
    %v7547 = vpop.f32.mrb[0].mxu0
    %v7548 = vadd.f32 %v7505, %v7547
    %7549 = vdwg.mxu0
    %7550 = vmatprep.subr.bf16.mxu0 %v6311
    %7551 = vmatpush1.bf16.msra.mxu0 %v6310
    %7552 = vmatprep.subr.bf16.mxu0 %v6315
    %7553 = vmatpush1.bf16.msra.mxu0 %v6314
    %7554 = vmatprep.subr.bf16.mxu0 %v6319
    %7555 = vmatpush1.bf16.msra.mxu0 %v6318
    %7556 = vmatprep.subr.bf16.mxu0 %v6323
    %7557 = vmatpush1.bf16.msra.mxu0 %v6322
    %7558 = vmatprep.subr.bf16.mxu0 %v6327
    %7559 = vmatpush1.bf16.msra.mxu0 %v6326
    %7560 = vmatprep.subr.bf16.mxu0 %v6331
    %7561 = vmatpush1.bf16.msra.mxu0 %v6330
    %7562 = vmatprep.subr.bf16.mxu0 %v6335
    %7563 = vmatpush1.bf16.msra.mxu0 %v6334
    %7564 = vmatprep.subr.bf16.mxu0 %v6339
    %7565 = vmatpush1.bf16.msra.mxu0 %v6338
    %7566 = vmatprep.subr.bf16.mxu0 %v6343
    %7567 = vmatpush1.bf16.msra.mxu0 %v6342
    %7568 = vmatprep.subr.bf16.mxu0 %v6347
    %7569 = vmatpush1.bf16.msra.mxu0 %v6346
    %7570 = vmatprep.subr.bf16.mxu0 %v6351
    %7571 = vmatpush1.bf16.msra.mxu0 %v6350
    %7572 = vmatprep.subr.bf16.mxu0 %v6355
    %7573 = vmatpush1.bf16.msra.mxu0 %v6354
    %7574 = vmatprep.subr.bf16.mxu0 %v6359
    %7575 = vmatpush1.bf16.msra.mxu0 %v6358
    %7576 = vmatprep.subr.bf16.mxu0 %v6363
    %7577 = vmatpush1.bf16.msra.mxu0 %v6362
    %7578 = vmatprep.subr.bf16.mxu0 %v6367
    %7579 = vmatpush1.bf16.msra.mxu0 %v6366
    %7580 = vmatprep.subr.bf16.mxu0 %v6371
    %7581 = vmatpush1.bf16.msra.mxu0 %v6370
    %7582 = vmatprep.mubr.bf16.mxu0 %v3873
    %7583 = vmatmul.mubr.bf16.gmra.mrb[0].mxu0 %v3872
    %v7584 = vpop.f32.mrb[0].mxu0
    %v7585 = vadd.f32 %v7542, %v7584
    %v7586 = vpop.f32.mrb[0].mxu0
    %v7587 = vadd.f32 %v7544, %v7586
    %v7588 = vpop.f32.mrb[0].mxu0
    %v7589 = vadd.f32 %v7546, %v7588
    %v7590 = vpop.f32.mrb[0].mxu0
    %v7591 = vadd.f32 %v7548, %v7590
    %7592 = vdwg.mxu0
    %7593 = vmatprep.subr.bf16.mxu0 %v6375
    %7594 = vmatpush1.bf16.msra.mxu0 %v6374
    %7595 = vmatprep.subr.bf16.mxu0 %v6379
    %7596 = vmatpush1.bf16.msra.mxu0 %v6378
    %7597 = vmatprep.subr.bf16.mxu0 %v6383
    %7598 = vmatpush1.bf16.msra.mxu0 %v6382
    %7599 = vmatprep.subr.bf16.mxu0 %v6387
    %7600 = vmatpush1.bf16.msra.mxu0 %v6386
    %7601 = vmatprep.subr.bf16.mxu0 %v6391
    %7602 = vmatpush1.bf16.msra.mxu0 %v6390
    %7603 = vmatprep.subr.bf16.mxu0 %v6395
    %7604 = vmatpush1.bf16.msra.mxu0 %v6394
    %7605 = vmatprep.subr.bf16.mxu0 %v6399
    %7606 = vmatpush1.bf16.msra.mxu0 %v6398
    %7607 = vmatprep.subr.bf16.mxu0 %v6403
    %7608 = vmatpush1.bf16.msra.mxu0 %v6402
    %7609 = vmatprep.subr.bf16.mxu0 %v6407
    %7610 = vmatpush1.bf16.msra.mxu0 %v6406
    %7611 = vmatprep.subr.bf16.mxu0 %v6411
    %7612 = vmatpush1.bf16.msra.mxu0 %v6410
    %7613 = vmatprep.subr.bf16.mxu0 %v6415
    %7614 = vmatpush1.bf16.msra.mxu0 %v6414
    %7615 = vmatprep.subr.bf16.mxu0 %v6419
    %7616 = vmatpush1.bf16.msra.mxu0 %v6418
    %7617 = vmatprep.subr.bf16.mxu0 %v6423
    %7618 = vmatpush1.bf16.msra.mxu0 %v6422
    %7619 = vmatprep.subr.bf16.mxu0 %v6427
    %7620 = vmatpush1.bf16.msra.mxu0 %v6426
    %7621 = vmatprep.subr.bf16.mxu0 %v6431
    %7622 = vmatpush1.bf16.msra.mxu0 %v6430
    %7623 = vmatprep.subr.bf16.mxu0 %v6435
    %7624 = vmatpush1.bf16.msra.mxu0 %v6434
    %7625 = vmatprep.mubr.bf16.mxu0 %v3875
    %7626 = vmatmul.mubr.bf16.gmra.mrb[0].mxu0 %v3874
    %v7627 = vpop.f32.mrb[0].mxu0
    %v7628 = vadd.f32 %v7585, %v7627
    %v7629 = vpop.f32.mrb[0].mxu0
    %v7630 = vadd.f32 %v7587, %v7629
    %v7631 = vpop.f32.mrb[0].mxu0
    %v7632 = vadd.f32 %v7589, %v7631
    %v7633 = vpop.f32.mrb[0].mxu0
    %v7634 = vadd.f32 %v7591, %v7633
    %7635 = vdwg.mxu0
    %v7636 = vadd.f32 %v7284, %v7286
    %v7637 = vadd.f32 %v7636, %v7628
    %v7638 = vadd.f32 %v7637, %v7630
    %7639 = vadd.xlane.f32.xlu0 %v7638
    %v7640 = vpop.xlane.xlu0 %7639
    %v7641 = vadd.f32 %v7288, %v7290
    %v7642 = vadd.f32 %v7641, %v7632
    %v7643 = vadd.f32 %v7642, %v7634
    %7644 = vadd.xlane.f32.xlu0 %v7643
    %v7645 = vpop.xlane.xlu0 %7644
    %v7646 = vrcp.pop 512.0
    %v7647 = vmul.f32 %v7640, %v7646
    %v7648 = vmul.f32 %v7645, %v7646
    %v7649 = vsub.f32 %v7284, %v7647
    %v7650 = vsub.f32 %v7286, %v7647
    %v7651 = vsub.f32 %v7628, %v7647
    %v7652 = vsub.f32 %v7630, %v7647
    %v7653 = vsub.f32 %v7288, %v7648
    %v7654 = vsub.f32 %v7290, %v7648
    %v7655 = vsub.f32 %v7632, %v7648
    %v7656 = vsub.f32 %v7634, %v7648
    %v7657 = vmul.f32 %v7649, %v7649
    %v7658 = vmul.f32 %v7650, %v7650
    %v7659 = vmul.f32 %v7651, %v7651
    %v7660 = vmul.f32 %v7652, %v7652
    %v7661 = vmul.f32 %v7653, %v7653
    %v7662 = vmul.f32 %v7654, %v7654
    %v7663 = vmul.f32 %v7655, %v7655
    %v7664 = vmul.f32 %v7656, %v7656
    %v7665 = vadd.f32 %v7657, %v7658
    %v7666 = vadd.f32 %v7665, %v7659
    %v7667 = vadd.f32 %v7666, %v7660
    %7668 = vadd.xlane.f32.xlu0 %v7667
    %v7669 = vpop.xlane.xlu0 %7668
    %v7670 = vadd.f32 %v7661, %v7662
    %v7671 = vadd.f32 %v7670, %v7663
    %v7672 = vadd.f32 %v7671, %v7664
    %7673 = vadd.xlane.f32.xlu0 %v7672
    %v7674 = vpop.xlane.xlu0 %7673
    %v7675 = vmul.f32 %v7669, %v7646
    %v7676 = vmul.f32 %v7674, %v7646
    %v7677 = vadd.f32 %v7675, 1e-05
    %v7678 = vadd.f32 %v7676, 1e-05
    %v7679 = vrsqrt.pop %v7677
    %v7680 = vrsqrt.pop %v7678
    %v7681 = vmul.f32 %v7649, %v7679
    %v7682 = vmul.f32 %v7650, %v7679
    %v7683 = vmul.f32 %v7651, %v7679
    %v7684 = vmul.f32 %v7652, %v7679
    %v7685 = vmul.f32 %v7653, %v7680
    %v7686 = vmul.f32 %v7654, %v7680
    %v7687 = vmul.f32 %v7655, %v7680
    %v7688 = vmul.f32 %v7656, %v7680
    %7689 = vst [vmem:[#allocation8] sm:$0xff] %v7681
    %7690 = vst [vmem:[#allocation8 + $0x8] sm:$0xff] %v7682
    %7691 = vst [vmem:[#allocation8 + $0x10] sm:$0xff] %v7683
    %7692 = vst [vmem:[#allocation8 + $0x18] sm:$0xff] %v7684
    %7693 = vst [vmem:[#allocation8 + $0x20] sm:$0xff] %v7685
    %7694 = vst [vmem:[#allocation8 + $0x28] sm:$0xff] %v7686
    %7695 = vst [vmem:[#allocation8 + $0x30] sm:$0xff] %v7687
    %7696 = vst [vmem:[#allocation8 + $0x38] sm:$0xff] %v7688
    // Predicated region
    $region26: #{_ffn_pallas.1} parent=1 // pred_check
      _
    $region27: #{_ffn_pallas.1} parent=1 // pred_check_branch
      %7698 = sbr.rel (0) target = $region29
    $region28: #{_ffn_pallas.1} parent=1 // pred_region
      %s7700 = ssub.s32 1024, 1024
      %7701 = vsyncadd [#allocation4], %s7700
      %s7702 = sshll.u32 [#allocation8], 4
      %s7703 = int_to_ptr.vmem [resolvable:$true] %s7702
      %7708 = dma.vmem_to_hbm [thread:$0]  %s7703, 1024, %s3, [#allocation4], 512, 512, 32
    $region29: #{_ffn_pallas.1} parent=1 // pred_fallthru
      _
    // Predicated region
    $region30: #{_ffn_pallas.1} parent=1 // pred_check
      _
    $region31: #{_ffn_pallas.1} parent=1 // pred_check_branch
      %7710 = sbr.rel (0) target = $region33
    $region32: #{_ffn_pallas.1} parent=1 // pred_region
      %7711 = dma.done [#allocation4], 1024
    $region33: #{_ffn_pallas.1} parent=1 // pred_fallthru
      _
    %7712 = vsyncpa [#allocation3], 1
    %7713 = vsyncpa [#allocation6], 1
    %7714 = vsyncpa [#allocation4], 1

// kernel: _ffn_pallas.1
$region0: #{_ffn_pallas.1}
  #allocation0 [shape = 'u32[]', space=smem, size = 0x4, offset = 0x4, fixed_abs, tag = 'smem constant byte address 0x4 - core index']
  #allocation1 [shape = 'u32[144,128]{1,0:T(1,128)}', space=vmem, size = 0x12000, scoped, tag = 'internal scratch']
  %s0 = inlined_call_operand.hbm [shape: f32[16,512], index: 0, kind: input, shape index: {}]
  %s1 = inlined_call_operand.hbm [shape: bf16[512,2048], index: 1, kind: input, shape index: {}]
  %s2 = inlined_call_operand.hbm [shape: bf16[2048,512], index: 2, kind: input, shape index: {}]
  %s3 = inlined_call_operand.hbm [shape: f32[16,512], index: 3, kind: output, shape index: {}]
  %s4 = sld [smem:[#allocation0]]
  $region34: #{_ffn_pallas.1} parent=0
    _
  %s6 = ssub.s32 1, %s4
  %s7 = scalar_select 0, %s6, %s4
  $region1: #{_ffn_pallas.1} parent=0
    #allocation2 [shape = 'u8[32768]{0}', space=vmem, size = 0x8000, scoped, tag = 'input window, operand 0, single buffered']
    #allocation3 [shape = 's32[1]{0}', space=sflag, size = 0x4, scoped, tag = 'scoped memory for _ffn_pallas.1']
    #allocation4 [shape = 's32[1]{0}', space=sflag, size = 0x4, scoped, tag = 'scoped memory for _ffn_pallas.1']
    #allocation5 [shape = 'u8[2097152]{0}', space=vmem, size = 0x200000, scoped, tag = 'input window, operand 1, single buffered']
    #allocation6 [shape = 's32[1]{0}', space=sflag, size = 0x4, scoped, tag = 'scoped memory for _ffn_pallas.1']
    #allocation7 [shape = 'u8[2097152]{0}', space=vmem, size = 0x200000, scoped, tag = 'input window, operand 2, single buffered']
    #allocation8 [shape = 'u8[32768]{0}', space=vmem, size = 0x8000, scoped, tag = 'output window, operand 0, single buffered']
    %8 = vsyncpa [#allocation3], 0
    %9 = vsyncpa [#allocation6], 0
    %10 = vsyncpa [#allocation4], 0
    // Predicated region
    $region2: #{_ffn_pallas.1} parent=1 // pred_check
      _
    $region3: #{_ffn_pallas.1} parent=1 // pred_check_branch
      %12 = sbr.rel (0) target = $region5
    $region4: #{_ffn_pallas.1} parent=1 // pred_region
      %s14 = ssub.s32 1024, 1024
      %15 = vsyncadd [#allocation3], %s14
      %s16 = sshll.u32 [#allocation2], 4
      %s17 = int_to_ptr.vmem [resolvable:$true] %s16
      %22 = dma.hbm_to_vmem [thread:$0]  %s0, 1024, %s17, [#allocation3], 512, 512, 32
    $region5: #{_ffn_pallas.1} parent=1 // pred_fallthru
      _
    // Predicated region
    $region6: #{_ffn_pallas.1} parent=1 // pred_check
      _
    $region7: #{_ffn_pallas.1} parent=1 // pred_check_branch
      %24 = sbr.rel (0) target = $region9
    $region8: #{_ffn_pallas.1} parent=1 // pred_region
      %s26 = ssub.s32 65536, 65536
      %27 = vsyncadd [#allocation6], %s26
      %s28 = sshll.u32 [#allocation5], 4
      %s29 = int_to_ptr.vmem [resolvable:$true] %s28
      %34 = dma.hbm_to_vmem [thread:$0]  %s1, 65536, %s29, [#allocation6], 1024, 1024, 64
    $region9: #{_ffn_pallas.1} parent=1 // pred_fallthru
      _
    // Predicated region
    $region10: #{_ffn_pallas.1} parent=1 // pred_check
      _
    $region11: #{_ffn_pallas.1} parent=1 // pred_check_branch
      %36 = sbr.rel (0) target = $region13
    $region12: #{_ffn_pallas.1} parent=1 // pred_region
      %s38 = ssub.s32 65536, 65536
      %39 = vsyncadd [#allocation6], %s38
      %s40 = sshll.u32 [#allocation7], 4
      %s41 = int_to_ptr.vmem [resolvable:$true] %s40
      %46 = dma.hbm_to_vmem [thread:$0]  %s2, 65536, %s41, [#allocation6], 256, 256, 16
    $region13: #{_ffn_pallas.1} parent=1 // pred_fallthru
      _
    // Predicated region
    $region14: #{_ffn_pallas.1} parent=1 // pred_check
      _
    $region15: #{_ffn_pallas.1} parent=1 // pred_check_branch
      %48 = sbr.rel (0) target = $region17
    $region16: #{_ffn_pallas.1} parent=1 // pred_region
      %49 = dma.done [#allocation3], 1024
    $region17: #{_ffn_pallas.1} parent=1 // pred_fallthru
      _
    // Predicated region
    $region18: #{_ffn_pallas.1} parent=1 // pred_check
      _
    $region19: #{_ffn_pallas.1} parent=1 // pred_check_branch
      %51 = sbr.rel (0) target = $region21
    $region20: #{_ffn_pallas.1} parent=1 // pred_region
      %52 = dma.done [#allocation6], 65536
    $region21: #{_ffn_pallas.1} parent=1 // pred_fallthru
      _
    // Predicated region
    $region22: #{_ffn_pallas.1} parent=1 // pred_check
      _
    $region23: #{_ffn_pallas.1} parent=1 // pred_check_branch
      %54 = sbr.rel (0) target = $region25
    $region24: #{_ffn_pallas.1} parent=1 // pred_region
      %55 = dma.done [#allocation6], 65536
    $region25: #{_ffn_pallas.1} parent=1 // pred_fallthru
      _
    %v56 = vld [vmem:[#allocation2] sm:$0xff]
    %v57 = vld [vmem:[#allocation2 + $0x8] sm:$0xff]
    %v58 = vld [vmem:[#allocation2 + $0x10] sm:$0xff]
    %v59 = vld [vmem:[#allocation2 + $0x18] sm:$0xff]
    %v60 = vld [vmem:[#allocation2 + $0x20] sm:$0xff]
    %v61 = vld [vmem:[#allocation2 + $0x28] sm:$0xff]
    %v62 = vld [vmem:[#allocation2 + $0x30] sm:$0xff]
    %v63 = vld [vmem:[#allocation2 + $0x38] sm:$0xff]
    %v64 = vpack.c.bf16 %v60, %v56
    %v65 = vpack.c.bf16 %v61, %v57
    %v66 = vpack.c.bf16 %v62, %v58
    %v67 = vpack.c.bf16 %v63, %v59
    %v68 = vld [vmem:[#allocation5] sm:$0xff]
    %v69 = vld [vmem:[#allocation5 + $0x8] sm:$0xff]
    %v70 = vld [vmem:[#allocation5 + $0x10] sm:$0xff]
    %v71 = vld [vmem:[#allocation5 + $0x18] sm:$0xff]
    %v72 = vld [vmem:[#allocation5 + $0x20] sm:$0xff]
    %v73 = vld [vmem:[#allocation5 + $0x28] sm:$0xff]
    %v74 = vld [vmem:[#allocation5 + $0x30] sm:$0xff]
    %v75 = vld [vmem:[#allocation5 + $0x38] sm:$0xff]
    %v76 = vld [vmem:[#allocation5 + $0x40] sm:$0xff]
    %v77 = vld [vmem:[#allocation5 + $0x48] sm:$0xff]
    %v78 = vld [vmem:[#allocation5 + $0x50] sm:$0xff]
    %v79 = vld [vmem:[#allocation5 + $0x58] sm:$0xff]
    %v80 = vld [vmem:[#allocation5 + $0x60] sm:$0xff]
    %v81 = vld [vmem:[#allocation5 + $0x68] sm:$0xff]
    %v82 = vld [vmem:[#allocation5 + $0x70] sm:$0xff]
    %v83 = vld [vmem:[#allocation5 + $0x78] sm:$0xff]
    %v84 = vld [vmem:[#allocation5 + $0x80] sm:$0xff]
    %v85 = vld [vmem:[#allocation5 + $0x88] sm:$0xff]
    %v86 = vld [vmem:[#allocation5 + $0x90] sm:$0xff]
    %v87 = vld [vmem:[#allocation5 + $0x98] sm:$0xff]
    %v88 = vld [vmem:[#allocation5 + $0xa0] sm:$0xff]
    %v89 = vld [vmem:[#allocation5 + $0xa8] sm:$0xff]
    %v90 = vld [vmem:[#allocation5 + $0xb0] sm:$0xff]
    %v91 = vld [vmem:[#allocation5 + $0xb8] sm:$0xff]
    %v92 = vld [vmem:[#allocation5 + $0xc0] sm:$0xff]
    %v93 = vld [vmem:[#allocation5 + $0xc8] sm:$0xff]
    %v94 = vld [vmem:[#allocation5 + $0xd0] sm:$0xff]
    %v95 = vld [vmem:[#allocation5 + $0xd8] sm:$0xff]
    %v96 = vld [vmem:[#allocation5 + $0xe0] sm:$0xff]
    %v97 = vld [vmem:[#allocation5 + $0xe8] sm:$0xff]
    %v98 = vld [vmem:[#allocation5 + $0xf0] sm:$0xff]
    %v99 = vld [vmem:[#allocation5 + $0xf8] sm:$0xff]
    %v100 = vld [vmem:[#allocation5 + $0x100] sm:$0xff]
    %v101 = vld [vmem:[#allocation5 + $0x108] sm:$0xff]
    %v102 = vld [vmem:[#allocation5 + $0x110] sm:$0xff]
    %v103 = vld [vmem:[#allocation5 + $0x118] sm:$0xff]
    %v104 = vld [vmem:[#allocation5 + $0x120] sm:$0xff]
    %v105 = vld [vmem:[#allocation5 + $0x128] sm:$0xff]
    %v106 = vld [vmem:[#allocation5 + $0x130] sm:$0xff]
    %v107 = vld [vmem:[#allocation5 + $0x138] sm:$0xff]
    %v108 = vld [vmem:[#allocation5 + $0x140] sm:$0xff]
    %v109 = vld [vmem:[#allocation5 + $0x148] sm:$0xff]
    %v110 = vld [vmem:[#allocation5 + $0x150] sm:$0xff]
    %v111 = vld [vmem:[#allocation5 + $0x158] sm:$0xff]
    %v112 = vld [vmem:[#allocation5 + $0x160] sm:$0xff]
    %v113 = vld [vmem:[#allocation5 + $0x168] sm:$0xff]
    %v114 = vld [vmem:[#allocation5 + $0x170] sm:$0xff]
    %v115 = vld [vmem:[#allocation5 + $0x178] sm:$0xff]
    %v116 = vld [vmem:[#allocation5 + $0x180] sm:$0xff]
    %v117 = vld [vmem:[#allocation5 + $0x188] sm:$0xff]
    %v118 = vld [vmem:[#allocation5 + $0x190] sm:$0xff]
    %v119 = vld [vmem:[#allocation5 + $0x198] sm:$0xff]
    %v120 = vld [vmem:[#allocation5 + $0x1a0] sm:$0xff]
    %v121 = vld [vmem:[#allocation5 + $0x1a8] sm:$0xff]
    %v122 = vld [vmem:[#allocation5 + $0x1b0] sm:$0xff]
    %v123 = vld [vmem:[#allocation5 + $0x1b8] sm:$0xff]
    %v124 = vld [vmem:[#allocation5 + $0x1c0] sm:$0xff]
    %v125 = vld [vmem:[#allocation5 + $0x1c8] sm:$0xff]
    %v126 = vld [vmem:[#allocation5 + $0x1d0] sm:$0xff]
    %v127 = vld [vmem:[#allocation5 + $0x1d8] sm:$0xff]
    %v128 = vld [vmem:[#allocation5 + $0x1e0] sm:$0xff]
    %v129 = vld [vmem:[#allocation5 + $0x1e8] sm:$0xff]
    %v130 = vld [vmem:[#allocation5 + $0x1f0] sm:$0xff]
    %v131 = vld [vmem:[#allocation5 + $0x1f8] sm:$0xff]
    %v132 = vld [vmem:[#allocation5 + $0x200] sm:$0xff]
    %v133 = vld [vmem:[#allocation5 + $0x208] sm:$0xff]
    %v134 = vld [vmem:[#allocation5 + $0x210] sm:$0xff]
    %v135 = vld [vmem:[#allocation5 + $0x218] sm:$0xff]
    %v136 = vld [vmem:[#allocation5 + $0x220] sm:$0xff]
    %v137 = vld [vmem:[#allocation5 + $0x228] sm:$0xff]
    %v138 = vld [vmem:[#allocation5 + $0x230] sm:$0xff]
    %v139 = vld [vmem:[#allocation5 + $0x238] sm:$0xff]
    %v140 = vld [vmem:[#allocation5 + $0x240] sm:$0xff]
    %v141 = vld [vmem:[#allocation5 + $0x248] sm:$0xff]
    %v142 = vld [vmem:[#allocation5 + $0x250] sm:$0xff]
    %v143 = vld [vmem:[#allocation5 + $0x258] sm:$0xff]
    %v144 = vld [vmem:[#allocation5 + $0x260] sm:$0xff]
    %v145 = vld [vmem:[#allocation5 + $0x268] sm:$0xff]
    %v146 = vld [vmem:[#allocation5 + $0x270] sm:$0xff]
    %v147 = vld [vmem:[#allocation5 + $0x278] sm:$0xff]
    %v148 = vld [vmem:[#allocation5 + $0x280] sm:$0xff]
    %v149 = vld [vmem:[#allocation5 + $0x288] sm:$0xff]
    %v150 = vld [vmem:[#allocation5 + $0x290] sm:$0xff]
    %v151 = vld [vmem:[#allocation5 + $0x298] sm:$0xff]
    %v152 = vld [vmem:[#allocation5 + $0x2a0] sm:$0xff]
    %v153 = vld [vmem:[#allocation5 + $0x2a8] sm:$0xff]
    %v154 = vld [vmem:[#allocation5 + $0x2b0] sm:$0xff]
    %v155 = vld [vmem:[#allocation5 + $0x2b8] sm:$0xff]
    %v156 = vld [vmem:[#allocation5 + $0x2c0] sm:$0xff]
    %v157 = vld [vmem:[#allocation5 + $0x2c8] sm:$0xff]
    %v158 = vld [vmem:[#allocation5 + $0x2d0] sm:$0xff]
    %v159 = vld [vmem:[#allocation5 + $0x2d8] sm:$0xff]
    %v160 = vld [vmem:[#allocation5 + $0x2e0] sm:$0xff]
    %v161 = vld [vmem:[#allocation5 + $0x2e8] sm:$0xff]
    %v162 = vld [vmem:[#allocation5 + $0x2f0] sm:$0xff]
    %v163 = vld [vmem:[#allocation5 + $0x2f8] sm:$0xff]
    %v164 = vld [vmem:[#allocation5 + $0x300] sm:$0xff]
    %v165 = vld [vmem:[#allocation5 + $0x308] sm:$0xff]
    %v166 = vld [vmem:[#allocation5 + $0x310] sm:$0xff]
    %v167 = vld [vmem:[#allocation5 + $0x318] sm:$0xff]
    %v168 = vld [vmem:[#allocation5 + $0x320] sm:$0xff]
    %v169 = vld [vmem:[#allocation5 + $0x328] sm:$0xff]
    %v170 = vld [vmem:[#allocation5 + $0x330] sm:$0xff]
    %v171 = vld [vmem:[#allocation5 + $0x338] sm:$0xff]
    %v172 = vld [vmem:[#allocation5 + $0x340] sm:$0xff]
    %v173 = vld [vmem:[#allocation5 + $0x348] sm:$0xff]
    %v174 = vld [vmem:[#allocation5 + $0x350] sm:$0xff]
    %v175 = vld [vmem:[#allocation5 + $0x358] sm:$0xff]
    %v176 = vld [vmem:[#allocation5 + $0x360] sm:$0xff]
    %v177 = vld [vmem:[#allocation5 + $0x368] sm:$0xff]
    %v178 = vld [vmem:[#allocation5 + $0x370] sm:$0xff]
    %v179 = vld [vmem:[#allocation5 + $0x378] sm:$0xff]
    %v180 = vld [vmem:[#allocation5 + $0x380] sm:$0xff]
    %v181 = vld [vmem:[#allocation5 + $0x388] sm:$0xff]
    %v182 = vld [vmem:[#allocation5 + $0x390] sm:$0xff]
    %v183 = vld [vmem:[#allocation5 + $0x398] sm:$0xff]
    %v184 = vld [vmem:[#allocation5 + $0x3a0] sm:$0xff]
    %v185 = vld [vmem:[#allocation5 + $0x3a8] sm:$0xff]
    %v186 = vld [vmem:[#allocation5 + $0x3b0] sm:$0xff]
    %v187 = vld [vmem:[#allocation5 + $0x3b8] sm:$0xff]
    %v188 = vld [vmem:[#allocation5 + $0x3c0] sm:$0xff]
    %v189 = vld [vmem:[#allocation5 + $0x3c8] sm:$0xff]
    %v190 = vld [vmem:[#allocation5 + $0x3d0] sm:$0xff]
    %v191 = vld [vmem:[#allocation5 + $0x3d8] sm:$0xff]
    %v192 = vld [vmem:[#allocation5 + $0x3e0] sm:$0xff]
    %v193 = vld [vmem:[#allocation5 + $0x3e8] sm:$0xff]
    %v194 = vld [vmem:[#allocation5 + $0x3f0] sm:$0xff]
    %v195 = vld [vmem:[#allocation5 + $0x3f8] sm:$0xff]
    %v196 = vld [vmem:[#allocation5 + $0x400] sm:$0xff]
    %v197 = vld [vmem:[#allocation5 + $0x408] sm:$0xff]
    %v198 = vld [vmem:[#allocation5 + $0x410] sm:$0xff]
    %v199 = vld [vmem:[#allocation5 + $0x418] sm:$0xff]
    %v200 = vld [vmem:[#allocation5 + $0x420] sm:$0xff]
    %v201 = vld [vmem:[#allocation5 + $0x428] sm:$0xff]
    %v202 = vld [vmem:[#allocation5 + $0x430] sm:$0xff]
    %v203 = vld [vmem:[#allocation5 + $0x438] sm:$0xff]
    %v204 = vld [vmem:[#allocation5 + $0x440] sm:$0xff]
    %v205 = vld [vmem:[#allocation5 + $0x448] sm:$0xff]
    %v206 = vld [vmem:[#allocation5 + $0x450] sm:$0xff]
    %v207 = vld [vmem:[#allocation5 + $0x458] sm:$0xff]
    %v208 = vld [vmem:[#allocation5 + $0x460] sm:$0xff]
    %v209 = vld [vmem:[#allocation5 + $0x468] sm:$0xff]
    %v210 = vld [vmem:[#allocation5 + $0x470] sm:$0xff]
    %v211 = vld [vmem:[#allocation5 + $0x478] sm:$0xff]
    %v212 = vld [vmem:[#allocation5 + $0x480] sm:$0xff]
    %v213 = vld [vmem:[#allocation5 + $0x488] sm:$0xff]
    %v214 = vld [vmem:[#allocation5 + $0x490] sm:$0xff]
    %v215 = vld [vmem:[#allocation5 + $0x498] sm:$0xff]
    %v216 = vld [vmem:[#allocation5 + $0x4a0] sm:$0xff]
    %v217 = vld [vmem:[#allocation5 + $0x4a8] sm:$0xff]
    %v218 = vld [vmem:[#allocation5 + $0x4b0] sm:$0xff]
    %v219 = vld [vmem:[#allocation5 + $0x4b8] sm:$0xff]
    %v220 = vld [vmem:[#allocation5 + $0x4c0] sm:$0xff]
    %v221 = vld [vmem:[#allocation5 + $0x4c8] sm:$0xff]
    %v222 = vld [vmem:[#allocation5 + $0x4d0] sm:$0xff]
    %v223 = vld [vmem:[#allocation5 + $0x4d8] sm:$0xff]
    %v224 = vld [vmem:[#allocation5 + $0x4e0] sm:$0xff]
    %v225 = vld [vmem:[#allocation5 + $0x4e8] sm:$0xff]
    %v226 = vld [vmem:[#allocation5 + $0x4f0] sm:$0xff]
    %v227 = vld [vmem:[#allocation5 + $0x4f8] sm:$0xff]
    %v228 = vld [vmem:[#allocation5 + $0x500] sm:$0xff]
    %v229 = vld [vmem:[#allocation5 + $0x508] sm:$0xff]
    %v230 = vld [vmem:[#allocation5 + $0x510] sm:$0xff]
    %v231 = vld [vmem:[#allocation5 + $0x518] sm:$0xff]
    %v232 = vld [vmem:[#allocation5 + $0x520] sm:$0xff]
    %v233 = vld [vmem:[#allocation5 + $0x528] sm:$0xff]
    %v234 = vld [vmem:[#allocation5 + $0x530] sm:$0xff]
    %v235 = vld [vmem:[#allocation5 + $0x538] sm:$0xff]
    %v236 = vld [vmem:[#allocation5 + $0x540] sm:$0xff]
    %v237 = vld [vmem:[#allocation5 + $0x548] sm:$0xff]
    %v238 = vld [vmem:[#allocation5 + $0x550] sm:$0xff]
    %v239 = vld [vmem:[#allocation5 + $0x558] sm:$0xff]
    %v240 = vld [vmem:[#allocation5 + $0x560] sm:$0xff]
    %v241 = vld [vmem:[#allocation5 + $0x568] sm:$0xff]
    %v242 = vld [vmem:[#allocation5 + $0x570] sm:$0xff]
    %v243 = vld [vmem:[#allocation5 + $0x578] sm:$0xff]
    %v244 = vld [vmem:[#allocation5 + $0x580] sm:$0xff]
    %v245 = vld [vmem:[#allocation5 + $0x588] sm:$0xff]
    %v246 = vld [vmem:[#allocation5 + $0x590] sm:$0xff]
    %v247 = vld [vmem:[#allocation5 + $0x598] sm:$0xff]
    %v248 = vld [vmem:[#allocation5 + $0x5a0] sm:$0xff]
    %v249 = vld [vmem:[#allocation5 + $0x5a8] sm:$0xff]
    %v250 = vld [vmem:[#allocation5 + $0x5b0] sm:$0xff]
    %v251 = vld [vmem:[#allocation5 + $0x5b8] sm:$0xff]
    %v252 = vld [vmem:[#allocation5 + $0x5c0] sm:$0xff]
    %v253 = vld [vmem:[#allocation5 + $0x5c8] sm:$0xff]
    %v254 = vld [vmem:[#allocation5 + $0x5d0] sm:$0xff]
    %v255 = vld [vmem:[#allocation5 + $0x5d8] sm:$0xff]
    %v256 = vld [vmem:[#allocation5 + $0x5e0] sm:$0xff]
    %v257 = vld [vmem:[#allocation5 + $0x5e8] sm:$0xff]
    %v258 = vld [vmem:[#allocation5 + $0x5f0] sm:$0xff]
    %v259 = vld [vmem:[#allocation5 + $0x5f8] sm:$0xff]
    %v260 = vld [vmem:[#allocation5 + $0x600] sm:$0xff]
    %v261 = vld [vmem:[#allocation5 + $0x608] sm:$0xff]
    %v262 = vld [vmem:[#allocation5 + $0x610] sm:$0xff]
    %v263 = vld [vmem:[#allocation5 + $0x618] sm:$0xff]
    %v264 = vld [vmem:[#allocation5 + $0x620] sm:$0xff]
    %v265 = vld [vmem:[#allocation5 + $0x628] sm:$0xff]
    %v266 = vld [vmem:[#allocation5 + $0x630] sm:$0xff]
    %v267 = vld [vmem:[#allocation5 + $0x638] sm:$0xff]
    %v268 = vld [vmem:[#allocation5 + $0x640] sm:$0xff]
    %v269 = vld [vmem:[#allocation5 + $0x648] sm:$0xff]
    %v270 = vld [vmem:[#allocation5 + $0x650] sm:$0xff]
    %v271 = vld [vmem:[#allocation5 + $0x658] sm:$0xff]
    %v272 = vld [vmem:[#allocation5 + $0x660] sm:$0xff]
    %v273 = vld [vmem:[#allocation5 + $0x668] sm:$0xff]
    %v274 = vld [vmem:[#allocation5 + $0x670] sm:$0xff]
    %v275 = vld [vmem:[#allocation5 + $0x678] sm:$0xff]
    %v276 = vld [vmem:[#allocation5 + $0x680] sm:$0xff]
    %v277 = vld [vmem:[#allocation5 + $0x688] sm:$0xff]
    %v278 = vld [vmem:[#allocation5 + $0x690] sm:$0xff]
    %v279 = vld [vmem:[#allocation5 + $0x698] sm:$0xff]
    %v280 = vld [vmem:[#allocation5 + $0x6a0] sm:$0xff]
    %v281 = vld [vmem:[#allocation5 + $0x6a8] sm:$0xff]
    %v282 = vld [vmem:[#allocation5 + $0x6b0] sm:$0xff]
    %v283 = vld [vmem:[#allocation5 + $0x6b8] sm:$0xff]
    %v284 = vld [vmem:[#allocation5 + $0x6c0] sm:$0xff]
    %v285 = vld [vmem:[#allocation5 + $0x6c8] sm:$0xff]
    %v286 = vld [vmem:[#allocation5 + $0x6d0] sm:$0xff]
    %v287 = vld [vmem:[#allocation5 + $0x6d8] sm:$0xff]
    %v288 = vld [vmem:[#allocation5 + $0x6e0] sm:$0xff]
    %v289 = vld [vmem:[#allocation5 + $0x6e8] sm:$0xff]
    %v290 = vld [vmem:[#allocation5 + $0x6f0] sm:$0xff]
    %v291 = vld [vmem:[#allocation5 + $0x6f8] sm:$0xff]
    %v292 = vld [vmem:[#allocation5 + $0x700] sm:$0xff]
    %v293 = vld [vmem:[#allocation5 + $0x708] sm:$0xff]
    %v294 = vld [vmem:[#allocation5 + $0x710] sm:$0xff]
    %v295 = vld [vmem:[#allocation5 + $0x718] sm:$0xff]
    %v296 = vld [vmem:[#allocation5 + $0x720] sm:$0xff]
    %v297 = vld [vmem:[#allocation5 + $0x728] sm:$0xff]
    %v298 = vld [vmem:[#allocation5 + $0x730] sm:$0xff]
    %v299 = vld [vmem:[#allocation5 + $0x738] sm:$0xff]
    %v300 = vld [vmem:[#allocation5 + $0x740] sm:$0xff]
    %v301 = vld [vmem:[#allocation5 + $0x748] sm:$0xff]
    %v302 = vld [vmem:[#allocation5 + $0x750] sm:$0xff]
    %v303 = vld [vmem:[#allocation5 + $0x758] sm:$0xff]
    %v304 = vld [vmem:[#allocation5 + $0x760] sm:$0xff]
    %v305 = vld [vmem:[#allocation5 + $0x768] sm:$0xff]
    %v306 = vld [vmem:[#allocation5 + $0x770] sm:$0xff]
    %v307 = vld [vmem:[#allocation5 + $0x778] sm:$0xff]
    %v308 = vld [vmem:[#allocation5 + $0x780] sm:$0xff]
    %v309 = vld [vmem:[#allocation5 + $0x788] sm:$0xff]
    %v310 = vld [vmem:[#allocation5 + $0x790] sm:$0xff]
    %v311 = vld [vmem:[#allocation5 + $0x798] sm:$0xff]
    %v312 = vld [vmem:[#allocation5 + $0x7a0] sm:$0xff]
    %v313 = vld [vmem:[#allocation5 + $0x7a8] sm:$0xff]
    %v314 = vld [vmem:[#allocation5 + $0x7b0] sm:$0xff]
    %v315 = vld [vmem:[#allocation5 + $0x7b8] sm:$0xff]
    %v316 = vld [vmem:[#allocation5 + $0x7c0] sm:$0xff]
    %v317 = vld [vmem:[#allocation5 + $0x7c8] sm:$0xff]
    %v318 = vld [vmem:[#allocation5 + $0x7d0] sm:$0xff]
    %v319 = vld [vmem:[#allocation5 + $0x7d8] sm:$0xff]
    %v320 = vld [vmem:[#allocation5 + $0x7e0] sm:$0xff]
    %v321 = vld [vmem:[#allocation5 + $0x7e8] sm:$0xff]
    %v322 = vld [vmem:[#allocation5 + $0x7f0] sm:$0xff]
    %v323 = vld [vmem:[#allocation5 + $0x7f8] sm:$0xff]
    %v324 = vld [vmem:[#allocation5 + $0x800] sm:$0xff]
    %v325 = vld [vmem:[#allocation5 + $0x808] sm:$0xff]
    %v326 = vld [vmem:[#allocation5 + $0x810] sm:$0xff]
    %v327 = vld [vmem:[#allocation5 + $0x818] sm:$0xff]
    %v328 = vld [vmem:[#allocation5 + $0x820] sm:$0xff]
    %v329 = vld [vmem:[#allocation5 + $0x828] sm:$0xff]
    %v330 = vld [vmem:[#allocation5 + $0x830] sm:$0xff]
    %v331 = vld [vmem:[#allocation5 + $0x838] sm:$0xff]
    %v332 = vld [vmem:[#allocation5 + $0x840] sm:$0xff]
    %v333 = vld [vmem:[#allocation5 + $0x848] sm:$0xff]
    %v334 = vld [vmem:[#allocation5 + $0x850] sm:$0xff]
    %v335 = vld [vmem:[#allocation5 + $0x858] sm:$0xff]
    %v336 = vld [vmem:[#allocation5 + $0x860] sm:$0xff]
    %v337 = vld [vmem:[#allocation5 + $0x868] sm:$0xff]
    %v338 = vld [vmem:[#allocation5 + $0x870] sm:$0xff]
    %v339 = vld [vmem:[#allocation5 + $0x878] sm:$0xff]
    %v340 = vld [vmem:[#allocation5 + $0x880] sm:$0xff]
    %v341 = vld [vmem:[#allocation5 + $0x888] sm:$0xff]
    %v342 = vld [vmem:[#allocation5 + $0x890] sm:$0xff]
    %v343 = vld [vmem:[#allocation5 + $0x898] sm:$0xff]
    %v344 = vld [vmem:[#allocation5 + $0x8a0] sm:$0xff]
    %v345 = vld [vmem:[#allocation5 + $0x8a8] sm:$0xff]
    %v346 = vld [vmem:[#allocation5 + $0x8b0] sm:$0xff]
    %v347 = vld [vmem:[#allocation5 + $0x8b8] sm:$0xff]
    %v348 = vld [vmem:[#allocation5 + $0x8c0] sm:$0xff]
    %v349 = vld [vmem:[#allocation5 + $0x8c8] sm:$0xff]
    %v350 = vld [vmem:[#allocation5 + $0x8d0] sm:$0xff]
    %v351 = vld [vmem:[#allocation5 + $0x8d8] sm:$0xff]
    %v352 = vld [vmem:[#allocation5 + $0x8e0] sm:$0xff]
    %v353 = vld [vmem:[#allocation5 + $0x8e8] sm:$0xff]
    %v354 = vld [vmem:[#allocation5 + $0x8f0] sm:$0xff]
    %v355 = vld [vmem:[#allocation5 + $0x8f8] sm:$0xff]
    %v356 = vld [vmem:[#allocation5 + $0x900] sm:$0xff]
    %v357 = vld [vmem:[#allocation5 + $0x908] sm:$0xff]
    %v358 = vld [vmem:[#allocation5 + $0x910] sm:$0xff]
    %v359 = vld [vmem:[#allocation5 + $0x918] sm:$0xff]
    %v360 = vld [vmem:[#allocation5 + $0x920] sm:$0xff]
    %v361 = vld [vmem:[#allocation5 + $0x928] sm:$0xff]
    %v362 = vld [vmem:[#allocation5 + $0x930] sm:$0xff]
    %v363 = vld [vmem:[#allocation5 + $0x938] sm:$0xff]
    %v364 = vld [vmem:[#allocation5 + $0x940] sm:$0xff]
    %v365 = vld [vmem:[#allocation5 + $0x948] sm:$0xff]
    %v366 = vld [vmem:[#allocation5 + $0x950] sm:$0xff]
    %v367 = vld [vmem:[#allocation5 + $0x958] sm:$0xff]
    %v368 = vld [vmem:[#allocation5 + $0x960] sm:$0xff]
    %v369 = vld [vmem:[#allocation5 + $0x968] sm:$0xff]
    %v370 = vld [vmem:[#allocation5 + $0x970] sm:$0xff]
    %v371 = vld [vmem:[#allocation5 + $0x978] sm:$0xff]
    %v372 = vld [vmem:[#allocation5 + $0x980] sm:$0xff]
    %v373 = vld [vmem:[#allocation5 + $0x988] sm:$0xff]
    %v374 = vld [vmem:[#allocation5 + $0x990] sm:$0xff]
    %v375 = vld [vmem:[#allocation5 + $0x998] sm:$0xff]
    %v376 = vld [vmem:[#allocation5 + $0x9a0] sm:$0xff]
    %v377 = vld [vmem:[#allocation5 + $0x9a8] sm:$0xff]
    %v378 = vld [vmem:[#allocation5 + $0x9b0] sm:$0xff]
    %v379 = vld [vmem:[#allocation5 + $0x9b8] sm:$0xff]
    %v380 = vld [vmem:[#allocation5 + $0x9c0] sm:$0xff]
    %v381 = vld [vmem:[#allocation5 + $0x9c8] sm:$0xff]
    %v382 = vld [vmem:[#allocation5 + $0x9d0] sm:$0xff]
    %v383 = vld [vmem:[#allocation5 + $0x9d8] sm:$0xff]
    %v384 = vld [vmem:[#allocation5 + $0x9e0] sm:$0xff]
    %v385 = vld [vmem:[#allocation5 + $0x9e8] sm:$0xff]
    %v386 = vld [vmem:[#allocation5 + $0x9f0] sm:$0xff]
    %v387 = vld [vmem:[#allocation5 + $0x9f8] sm:$0xff]
    %v388 = vld [vmem:[#allocation5 + $0xa00] sm:$0xff]
    %v389 = vld [vmem:[#allocation5 + $0xa08] sm:$0xff]
    %v390 = vld [vmem:[#allocation5 + $0xa10] sm:$0xff]
    %v391 = vld [vmem:[#allocation5 + $0xa18] sm:$0xff]
    %v392 = vld [vmem:[#allocation5 + $0xa20] sm:$0xff]
    %v393 = vld [vmem:[#allocation5 + $0xa28] sm:$0xff]
    %v394 = vld [vmem:[#allocation5 + $0xa30] sm:$0xff]
    %v395 = vld [vmem:[#allocation5 + $0xa38] sm:$0xff]
    %v396 = vld [vmem:[#allocation5 + $0xa40] sm:$0xff]
    %v397 = vld [vmem:[#allocation5 + $0xa48] sm:$0xff]
    %v398 = vld [vmem:[#allocation5 + $0xa50] sm:$0xff]
    %v399 = vld [vmem:[#allocation5 + $0xa58] sm:$0xff]
    %v400 = vld [vmem:[#allocation5 + $0xa60] sm:$0xff]
    %v401 = vld [vmem:[#allocation5 + $0xa68] sm:$0xff]
    %v402 = vld [vmem:[#allocation5 + $0xa70] sm:$0xff]
    %v403 = vld [vmem:[#allocation5 + $0xa78] sm:$0xff]
    %v404 = vld [vmem:[#allocation5 + $0xa80] sm:$0xff]
    %v405 = vld [vmem:[#allocation5 + $0xa88] sm:$0xff]
    %v406 = vld [vmem:[#allocation5 + $0xa90] sm:$0xff]
    %v407 = vld [vmem:[#allocation5 + $0xa98] sm:$0xff]
    %v408 = vld [vmem:[#allocation5 + $0xaa0] sm:$0xff]
    %v409 = vld [vmem:[#allocation5 + $0xaa8] sm:$0xff]
    %v410 = vld [vmem:[#allocation5 + $0xab0] sm:$0xff]
    %v411 = vld [vmem:[#allocation5 + $0xab8] sm:$0xff]
    %v412 = vld [vmem:[#allocation5 + $0xac0] sm:$0xff]
    %v413 = vld [vmem:[#allocation5 + $0xac8] sm:$0xff]
    %v414 = vld [vmem:[#allocation5 + $0xad0] sm:$0xff]
    %v415 = vld [vmem:[#allocation5 + $0xad8] sm:$0xff]
    %v416 = vld [vmem:[#allocation5 + $0xae0] sm:$0xff]
    %v417 = vld [vmem:[#allocation5 + $0xae8] sm:$0xff]
    %v418 = vld [vmem:[#allocation5 + $0xaf0] sm:$0xff]
    %v419 = vld [vmem:[#allocation5 + $0xaf8] sm:$0xff]
    %v420 = vld [vmem:[#allocation5 + $0xb00] sm:$0xff]
    %v421 = vld [vmem:[#allocation5 + $0xb08] sm:$0xff]
    %v422 = vld [vmem:[#allocation5 + $0xb10] sm:$0xff]
    %v423 = vld [vmem:[#allocation5 + $0xb18] sm:$0xff]
    %v424 = vld [vmem:[#allocation5 + $0xb20] sm:$0xff]
    %v425 = vld [vmem:[#allocation5 + $0xb28] sm:$0xff]
    %v426 = vld [vmem:[#allocation5 + $0xb30] sm:$0xff]
    %v427 = vld [vmem:[#allocation5 + $0xb38] sm:$0xff]
    %v428 = vld [vmem:[#allocation5 + $0xb40] sm:$0xff]
    %v429 = vld [vmem:[#allocation5 + $0xb48] sm:$0xff]
    %v430 = vld [vmem:[#allocation5 + $0xb50] sm:$0xff]
    %v431 = vld [vmem:[#allocation5 + $0xb58] sm:$0xff]
    %v432 = vld [vmem:[#allocation5 + $0xb60] sm:$0xff]
    %v433 = vld [vmem:[#allocation5 + $0xb68] sm:$0xff]
    %v434 = vld [vmem:[#allocation5 + $0xb70] sm:$0xff]
    %v435 = vld [vmem:[#allocation5 + $0xb78] sm:$0xff]
    %v436 = vld [vmem:[#allocation5 + $0xb80] sm:$0xff]
    %v437 = vld [vmem:[#allocation5 + $0xb88] sm:$0xff]
    %v438 = vld [vmem:[#allocation5 + $0xb90] sm:$0xff]
    %v439 = vld [vmem:[#allocation5 + $0xb98] sm:$0xff]
    %v440 = vld [vmem:[#allocation5 + $0xba0] sm:$0xff]
    %v441 = vld [vmem:[#allocation5 + $0xba8] sm:$0xff]
    %v442 = vld [vmem:[#allocation5 + $0xbb0] sm:$0xff]
    %v443 = vld [vmem:[#allocation5 + $0xbb8] sm:$0xff]
    %v444 = vld [vmem:[#allocation5 + $0xbc0] sm:$0xff]
    %v445 = vld [vmem:[#allocation5 + $0xbc8] sm:$0xff]
    %v446 = vld [vmem:[#allocation5 + $0xbd0] sm:$0xff]
    %v447 = vld [vmem:[#allocation5 + $0xbd8] sm:$0xff]
    %v448 = vld [vmem:[#allocation5 + $0xbe0] sm:$0xff]
    %v449 = vld [vmem:[#allocation5 + $0xbe8] sm:$0xff]
    %v450 = vld [vmem:[#allocation5 + $0xbf0] sm:$0xff]
    %v451 = vld [vmem:[#allocation5 + $0xbf8] sm:$0xff]
    %v452 = vld [vmem:[#allocation5 + $0xc00] sm:$0xff]
    %v453 = vld [vmem:[#allocation5 + $0xc08] sm:$0xff]
    %v454 = vld [vmem:[#allocation5 + $0xc10] sm:$0xff]
    %v455 = vld [vmem:[#allocation5 + $0xc18] sm:$0xff]
    %v456 = vld [vmem:[#allocation5 + $0xc20] sm:$0xff]
    %v457 = vld [vmem:[#allocation5 + $0xc28] sm:$0xff]
    %v458 = vld [vmem:[#allocation5 + $0xc30] sm:$0xff]
    %v459 = vld [vmem:[#allocation5 + $0xc38] sm:$0xff]
    %v460 = vld [vmem:[#allocation5 + $0xc40] sm:$0xff]
    %v461 = vld [vmem:[#allocation5 + $0xc48] sm:$0xff]
    %v462 = vld [vmem:[#allocation5 + $0xc50] sm:$0xff]
    %v463 = vld [vmem:[#allocation5 + $0xc58] sm:$0xff]
    %v464 = vld [vmem:[#allocation5 + $0xc60] sm:$0xff]
    %v465 = vld [vmem:[#allocation5 + $0xc68] sm:$0xff]
    %v466 = vld [vmem:[#allocation5 + $0xc70] sm:$0xff]
    %v467 = vld [vmem:[#allocation5 + $0xc78] sm:$0xff]
    %v468 = vld [vmem:[#allocation5 + $0xc80] sm:$0xff]
    %v469 = vld [vmem:[#allocation5 + $0xc88] sm:$0xff]
    %v470 = vld [vmem:[#allocation5 + $0xc90] sm:$0xff]
    %v471 = vld [vmem:[#allocation5 + $0xc98] sm:$0xff]
    %v472 = vld [vmem:[#allocation5 + $0xca0] sm:$0xff]
    %v473 = vld [vmem:[#allocation5 + $0xca8] sm:$0xff]
    %v474 = vld [vmem:[#allocation5 + $0xcb0] sm:$0xff]
    %v475 = vld [vmem:[#allocation5 + $0xcb8] sm:$0xff]
    %v476 = vld [vmem:[#allocation5 + $0xcc0] sm:$0xff]
    %v477 = vld [vmem:[#allocation5 + $0xcc8] sm:$0xff]
    %v478 = vld [vmem:[#allocation5 + $0xcd0] sm:$0xff]
    %v479 = vld [vmem:[#allocation5 + $0xcd8] sm:$0xff]
    %v480 = vld [vmem:[#allocation5 + $0xce0] sm:$0xff]
    %v481 = vld [vmem:[#allocation5 + $0xce8] sm:$0xff]
    %v482 = vld [vmem:[#allocation5 + $0xcf0] sm:$0xff]
    %v483 = vld [vmem:[#allocation5 + $0xcf8] sm:$0xff]
    %v484 = vld [vmem:[#allocation5 + $0xd00] sm:$0xff]
    %v485 = vld [vmem:[#allocation5 + $0xd08] sm:$0xff]
    %v486 = vld [vmem:[#allocation5 + $0xd10] sm:$0xff]
    %v487 = vld [vmem:[#allocation5 + $0xd18] sm:$0xff]
    %v488 = vld [vmem:[#allocation5 + $0xd20] sm:$0xff]
    %v489 = vld [vmem:[#allocation5 + $0xd28] sm:$0xff]
    %v490 = vld [vmem:[#allocation5 + $0xd30] sm:$0xff]
    %v491 = vld [vmem:[#allocation5 + $0xd38] sm:$0xff]
    %v492 = vld [vmem:[#allocation5 + $0xd40] sm:$0xff]
    %v493 = vld [vmem:[#allocation5 + $0xd48] sm:$0xff]
    %v494 = vld [vmem:[#allocation5 + $0xd50] sm:$0xff]
    %v495 = vld [vmem:[#allocation5 + $0xd58] sm:$0xff]
    %v496 = vld [vmem:[#allocation5 + $0xd60] sm:$0xff]
    %v497 = vld [vmem:[#allocation5 + $0xd68] sm:$0xff]
    %v498 = vld [vmem:[#allocation5 + $0xd70] sm:$0xff]
    %v499 = vld [vmem:[#allocation5 + $0xd78] sm:$0xff]
    %v500 = vld [vmem:[#allocation5 + $0xd80] sm:$0xff]
    %v501 = vld [vmem:[#allocation5 + $0xd88] sm:$0xff]
    %v502 = vld [vmem:[#allocation5 + $0xd90] sm:$0xff]
    %v503 = vld [vmem:[#allocation5 + $0xd98] sm:$0xff]
    %v504 = vld [vmem:[#allocation5 + $0xda0] sm:$0xff]
    %v505 = vld [vmem:[#allocation5 + $0xda8] sm:$0xff]
    %v506 = vld [vmem:[#allocation5 + $0xdb0] sm:$0xff]
    %v507 = vld [vmem:[#allocation5 + $0xdb8] sm:$0xff]
    %v508 = vld [vmem:[#allocation5 + $0xdc0] sm:$0xff]
    %v509 = vld [vmem:[#allocation5 + $0xdc8] sm:$0xff]
    %v510 = vld [vmem:[#allocation5 + $0xdd0] sm:$0xff]
    %v511 = vld [vmem:[#allocation5 + $0xdd8] sm:$0xff]
    %v512 = vld [vmem:[#allocation5 + $0xde0] sm:$0xff]
    %v513 = vld [vmem:[#allocation5 + $0xde8] sm:$0xff]
    %v514 = vld [vmem:[#allocation5 + $0xdf0] sm:$0xff]
    %v515 = vld [vmem:[#allocation5 + $0xdf8] sm:$0xff]
    %v516 = vld [vmem:[#allocation5 + $0xe00] sm:$0xff]
    %v517 = vld [vmem:[#allocation5 + $0xe08] sm:$0xff]
    %v518 = vld [vmem:[#allocation5 + $0xe10] sm:$0xff]
    %v519 = vld [vmem:[#allocation5 + $0xe18] sm:$0xff]
    %v520 = vld [vmem:[#allocation5 + $0xe20] sm:$0xff]
    %v521 = vld [vmem:[#allocation5 + $0xe28] sm:$0xff]
    %v522 = vld [vmem:[#allocation5 + $0xe30] sm:$0xff]
    %v523 = vld [vmem:[#allocation5 + $0xe38] sm:$0xff]
    %v524 = vld [vmem:[#allocation5 + $0xe40] sm:$0xff]
    %v525 = vld [vmem:[#allocation5 + $0xe48] sm:$0xff]
    %v526 = vld [vmem:[#allocation5 + $0xe50] sm:$0xff]
    %v527 = vld [vmem:[#allocation5 + $0xe58] sm:$0xff]
    %v528 = vld [vmem:[#allocation5 + $0xe60] sm:$0xff]
    %v529 = vld [vmem:[#allocation5 + $0xe68] sm:$0xff]
    %v530 = vld [vmem:[#allocation5 + $0xe70] sm:$0xff]
    %v531 = vld [vmem:[#allocation5 + $0xe78] sm:$0xff]
    %v532 = vld [vmem:[#allocation5 + $0xe80] sm:$0xff]
    %v533 = vld [vmem:[#allocation5 + $0xe88] sm:$0xff]
    %v534 = vld [vmem:[#allocation5 + $0xe90] sm:$0xff]
    %v535 = vld [vmem:[#allocation5 + $0xe98] sm:$0xff]
    %v536 = vld [vmem:[#allocation5 + $0xea0] sm:$0xff]
    %v537 = vld [vmem:[#allocation5 + $0xea8] sm:$0xff]
    %v538 = vld [vmem:[#allocation5 + $0xeb0] sm:$0xff]
    %v539 = vld [vmem:[#allocation5 + $0xeb8] sm:$0xff]
    %v540 = vld [vmem:[#allocation5 + $0xec0] sm:$0xff]
    %v541 = vld [vmem:[#allocation5 + $0xec8] sm:$0xff]
    %v542 = vld [vmem:[#allocation5 + $0xed0] sm:$0xff]
    %v543 = vld [vmem:[#allocation5 + $0xed8] sm:$0xff]
    %v544 = vld [vmem:[#allocation5 + $0xee0] sm:$0xff]
    %v545 = vld [vmem:[#allocation5 + $0xee8] sm:$0xff]
    %v546 = vld [vmem:[#allocation5 + $0xef0] sm:$0xff]
    %v547 = vld [vmem:[#allocation5 + $0xef8] sm:$0xff]
    %v548 = vld [vmem:[#allocation5 + $0xf00] sm:$0xff]
    %v549 = vld [vmem:[#allocation5 + $0xf08] sm:$0xff]
    %v550 = vld [vmem:[#allocation5 + $0xf10] sm:$0xff]
    %v551 = vld [vmem:[#allocation5 + $0xf18] sm:$0xff]
    %v552 = vld [vmem:[#allocation5 + $0xf20] sm:$0xff]
    %v553 = vld [vmem:[#allocation5 + $0xf28] sm:$0xff]
    %v554 = vld [vmem:[#allocation5 + $0xf30] sm:$0xff]
    %v555 = vld [vmem:[#allocation5 + $0xf38] sm:$0xff]
    %v556 = vld [vmem:[#allocation5 + $0xf40] sm:$0xff]
    %v557 = vld [vmem:[#allocation5 + $0xf48] sm:$0xff]
    %v558 = vld [vmem:[#allocation5 + $0xf50] sm:$0xff]
    %v559 = vld [vmem:[#allocation5 + $0xf58] sm:$0xff]
    %v560 = vld [vmem:[#allocation5 + $0xf60] sm:$0xff]
    %v561 = vld [vmem:[#allocation5 + $0xf68] sm:$0xff]
    %v562 = vld [vmem:[#allocation5 + $0xf70] sm:$0xff]
    %v563 = vld [vmem:[#allocation5 + $0xf78] sm:$0xff]
    %v564 = vld [vmem:[#allocation5 + $0xf80] sm:$0xff]
    %v565 = vld [vmem:[#allocation5 + $0xf88] sm:$0xff]
    %v566 = vld [vmem:[#allocation5 + $0xf90] sm:$0xff]
    %v567 = vld [vmem:[#allocation5 + $0xf98] sm:$0xff]
    %v568 = vld [vmem:[#allocation5 + $0xfa0] sm:$0xff]
    %v569 = vld [vmem:[#allocation5 + $0xfa8] sm:$0xff]
    %v570 = vld [vmem:[#allocation5 + $0xfb0] sm:$0xff]
    %v571 = vld [vmem:[#allocation5 + $0xfb8] sm:$0xff]
    %v572 = vld [vmem:[#allocation5 + $0xfc0] sm:$0xff]
    %v573 = vld [vmem:[#allocation5 + $0xfc8] sm:$0xff]
    %v574 = vld [vmem:[#allocation5 + $0xfd0] sm:$0xff]
    %v575 = vld [vmem:[#allocation5 + $0xfd8] sm:$0xff]
    %v576 = vld [vmem:[#allocation5 + $0xfe0] sm:$0xff]
    %v577 = vld [vmem:[#allocation5 + $0xfe8] sm:$0xff]
    %v578 = vld [vmem:[#allocation5 + $0xff0] sm:$0xff]
    %v579 = vld [vmem:[#allocation5 + $0xff8] sm:$0xff]
    %v1092 = vunpack.c.l.b16 %v68
    %v1093 = vunpack.c.h.b16 %v68
    %v1094 = vunpack.c.l.b16 %v69
    %v1095 = vunpack.c.h.b16 %v69
    %v1096 = vunpack.c.l.b16 %v70
    %v1097 = vunpack.c.h.b16 %v70
    %v1098 = vunpack.c.l.b16 %v71
    %v1099 = vunpack.c.h.b16 %v71
    %v1100 = vunpack.c.l.b16 %v72
    %v1101 = vunpack.c.h.b16 %v72
    %v1102 = vunpack.c.l.b16 %v73
    %v1103 = vunpack.c.h.b16 %v73
    %v1104 = vunpack.c.l.b16 %v74
    %v1105 = vunpack.c.h.b16 %v74
    %v1106 = vunpack.c.l.b16 %v75
    %v1107 = vunpack.c.h.b16 %v75
    %v1108 = vunpack.c.l.b16 %v76
    %v1109 = vunpack.c.h.b16 %v76
    %v1110 = vunpack.c.l.b16 %v77
    %v1111 = vunpack.c.h.b16 %v77
    %v1112 = vunpack.c.l.b16 %v78
    %v1113 = vunpack.c.h.b16 %v78
    %v1114 = vunpack.c.l.b16 %v79
    %v1115 = vunpack.c.h.b16 %v79
    %v1116 = vunpack.c.l.b16 %v80
    %v1117 = vunpack.c.h.b16 %v80
    %v1118 = vunpack.c.l.b16 %v81
    %v1119 = vunpack.c.h.b16 %v81
    %v1120 = vunpack.c.l.b16 %v82
    %v1121 = vunpack.c.h.b16 %v82
    %v1122 = vunpack.c.l.b16 %v83
    %v1123 = vunpack.c.h.b16 %v83
    %v1124 = vunpack.c.l.b16 %v84
    %v1125 = vunpack.c.h.b16 %v84
    %v1126 = vunpack.c.l.b16 %v85
    %v1127 = vunpack.c.h.b16 %v85
    %v1128 = vunpack.c.l.b16 %v86
    %v1129 = vunpack.c.h.b16 %v86
    %v1130 = vunpack.c.l.b16 %v87
    %v1131 = vunpack.c.h.b16 %v87
    %v1132 = vunpack.c.l.b16 %v88
    %v1133 = vunpack.c.h.b16 %v88
    %v1134 = vunpack.c.l.b16 %v89
    %v1135 = vunpack.c.h.b16 %v89
    %v1136 = vunpack.c.l.b16 %v90
    %v1137 = vunpack.c.h.b16 %v90
    %v1138 = vunpack.c.l.b16 %v91
    %v1139 = vunpack.c.h.b16 %v91
    %v1140 = vunpack.c.l.b16 %v92
    %v1141 = vunpack.c.h.b16 %v92
    %v1142 = vunpack.c.l.b16 %v93
    %v1143 = vunpack.c.h.b16 %v93
    %v1144 = vunpack.c.l.b16 %v94
    %v1145 = vunpack.c.h.b16 %v94
    %v1146 = vunpack.c.l.b16 %v95
    %v1147 = vunpack.c.h.b16 %v95
    %v1148 = vunpack.c.l.b16 %v96
    %v1149 = vunpack.c.h.b16 %v96
    %v1150 = vunpack.c.l.b16 %v97
    %v1151 = vunpack.c.h.b16 %v97
    %v1152 = vunpack.c.l.b16 %v98
    %v1153 = vunpack.c.h.b16 %v98
    %v1154 = vunpack.c.l.b16 %v99
    %v1155 = vunpack.c.h.b16 %v99
    %v1156 = vunpack.c.l.b16 %v100
    %v1157 = vunpack.c.h.b16 %v100
    %v1158 = vunpack.c.l.b16 %v101
    %v1159 = vunpack.c.h.b16 %v101
    %v1160 = vunpack.c.l.b16 %v102
    %v1161 = vunpack.c.h.b16 %v102
    %v1162 = vunpack.c.l.b16 %v103
    %v1163 = vunpack.c.h.b16 %v103
    %v1164 = vunpack.c.l.b16 %v104
    %v1165 = vunpack.c.h.b16 %v104
    %v1166 = vunpack.c.l.b16 %v105
    %v1167 = vunpack.c.h.b16 %v105
    %v1168 = vunpack.c.l.b16 %v106
    %v1169 = vunpack.c.h.b16 %v106
    %v1170 = vunpack.c.l.b16 %v107
    %v1171 = vunpack.c.h.b16 %v107
    %v1172 = vunpack.c.l.b16 %v108
    %v1173 = vunpack.c.h.b16 %v108
    %v1174 = vunpack.c.l.b16 %v109
    %v1175 = vunpack.c.h.b16 %v109
    %v1176 = vunpack.c.l.b16 %v110
    %v1177 = vunpack.c.h.b16 %v110
    %v1178 = vunpack.c.l.b16 %v111
    %v1179 = vunpack.c.h.b16 %v111
    %v1180 = vunpack.c.l.b16 %v112
    %v1181 = vunpack.c.h.b16 %v112
    %v1182 = vunpack.c.l.b16 %v113
    %v1183 = vunpack.c.h.b16 %v113
    %v1184 = vunpack.c.l.b16 %v114
    %v1185 = vunpack.c.h.b16 %v114
    %v1186 = vunpack.c.l.b16 %v115
    %v1187 = vunpack.c.h.b16 %v115
    %v1188 = vunpack.c.l.b16 %v116
    %v1189 = vunpack.c.h.b16 %v116
    %v1190 = vunpack.c.l.b16 %v117
    %v1191 = vunpack.c.h.b16 %v117
    %v1192 = vunpack.c.l.b16 %v118
    %v1193 = vunpack.c.h.b16 %v118
    %v1194 = vunpack.c.l.b16 %v119
    %v1195 = vunpack.c.h.b16 %v119
    %v1196 = vunpack.c.l.b16 %v120
    %v1197 = vunpack.c.h.b16 %v120
    %v1198 = vunpack.c.l.b16 %v121
    %v1199 = vunpack.c.h.b16 %v121
    %v1200 = vunpack.c.l.b16 %v122
    %v1201 = vunpack.c.h.b16 %v122
    %v1202 = vunpack.c.l.b16 %v123
    %v1203 = vunpack.c.h.b16 %v123
    %v1204 = vunpack.c.l.b16 %v124
    %v1205 = vunpack.c.h.b16 %v124
    %v1206 = vunpack.c.l.b16 %v125
    %v1207 = vunpack.c.h.b16 %v125
    %v1208 = vunpack.c.l.b16 %v126
    %v1209 = vunpack.c.h.b16 %v126
    %v1210 = vunpack.c.l.b16 %v127
    %v1211 = vunpack.c.h.b16 %v127
    %v1212 = vunpack.c.l.b16 %v128
    %v1213 = vunpack.c.h.b16 %v128
    %v1214 = vunpack.c.l.b16 %v129
    %v1215 = vunpack.c.h.b16 %v129
    %v1216 = vunpack.c.l.b16 %v130
    %v1217 = vunpack.c.h.b16 %v130
    %v1218 = vunpack.c.l.b16 %v131
    %v1219 = vunpack.c.h.b16 %v131
    %v1220 = vunpack.c.l.b16 %v132
    %v1221 = vunpack.c.h.b16 %v132
    %v1222 = vunpack.c.l.b16 %v133
    %v1223 = vunpack.c.h.b16 %v133
    %v1224 = vunpack.c.l.b16 %v134
    %v1225 = vunpack.c.h.b16 %v134
    %v1226 = vunpack.c.l.b16 %v135
    %v1227 = vunpack.c.h.b16 %v135
    %v1228 = vunpack.c.l.b16 %v136
    %v1229 = vunpack.c.h.b16 %v136
    %v1230 = vunpack.c.l.b16 %v137
    %v1231 = vunpack.c.h.b16 %v137
    %v1232 = vunpack.c.l.b16 %v138
    %v1233 = vunpack.c.h.b16 %v138
    %v1234 = vunpack.c.l.b16 %v139
    %v1235 = vunpack.c.h.b16 %v139
    %v1236 = vunpack.c.l.b16 %v140
    %v1237 = vunpack.c.h.b16 %v140
    %v1238 = vunpack.c.l.b16 %v141
    %v1239 = vunpack.c.h.b16 %v141
    %v1240 = vunpack.c.l.b16 %v142
    %v1241 = vunpack.c.h.b16 %v142
    %v1242 = vunpack.c.l.b16 %v143
    %v1243 = vunpack.c.h.b16 %v143
    %v1244 = vunpack.c.l.b16 %v144
    %v1245 = vunpack.c.h.b16 %v144
    %v1246 = vunpack.c.l.b16 %v145
    %v1247 = vunpack.c.h.b16 %v145
    %v1248 = vunpack.c.l.b16 %v146
    %v1249 = vunpack.c.h.b16 %v146
    %v1250 = vunpack.c.l.b16 %v147
    %v1251 = vunpack.c.h.b16 %v147
    %v1252 = vunpack.c.l.b16 %v148
    %v1253 = vunpack.c.h.b16 %v148
    %v1254 = vunpack.c.l.b16 %v149
    %v1255 = vunpack.c.h.b16 %v149
    %v1256 = vunpack.c.l.b16 %v150
    %v1257 = vunpack.c.h.b16 %v150
    %v1258 = vunpack.c.l.b16 %v151
    %v1259 = vunpack.c.h.b16 %v151
    %v1260 = vunpack.c.l.b16 %v152
    %v1261 = vunpack.c.h.b16 %v152
    %v1262 = vunpack.c.l.b16 %v153
    %v1263 = vunpack.c.h.b16 %v153
    %v1264 = vunpack.c.l.b16 %v154
    %v1265 = vunpack.c.h.b16 %v154
    %v1266 = vunpack.c.l.b16 %v155
    %v1267 = vunpack.c.h.b16 %v155
    %v1268 = vunpack.c.l.b16 %v156
    %v1269 = vunpack.c.h.b16 %v156
    %v1270 = vunpack.c.l.b16 %v157
    %v1271 = vunpack.c.h.b16 %v157
    %v1272 = vunpack.c.l.b16 %v158
    %v1273 = vunpack.c.h.b16 %v158
    %v1274 = vunpack.c.l.b16 %v159
    %v1275 = vunpack.c.h.b16 %v159
    %v1276 = vunpack.c.l.b16 %v160
    %v1277 = vunpack.c.h.b16 %v160
    %v1278 = vunpack.c.l.b16 %v161
    %v1279 = vunpack.c.h.b16 %v161
    %v1280 = vunpack.c.l.b16 %v162
    %v1281 = vunpack.c.h.b16 %v162
    %v1282 = vunpack.c.l.b16 %v163
    %v1283 = vunpack.c.h.b16 %v163
    %v1284 = vunpack.c.l.b16 %v164
    %v1285 = vunpack.c.h.b16 %v164
    %v1286 = vunpack.c.l.b16 %v165
    %v1287 = vunpack.c.h.b16 %v165
    %v1288 = vunpack.c.l.b16 %v166
    %v1289 = vunpack.c.h.b16 %v166
    %v1290 = vunpack.c.l.b16 %v167
    %v1291 = vunpack.c.h.b16 %v167
    %v1292 = vunpack.c.l.b16 %v168
    %v1293 = vunpack.c.h.b16 %v168
    %v1294 = vunpack.c.l.b16 %v169
    %v1295 = vunpack.c.h.b16 %v169
    %v1296 = vunpack.c.l.b16 %v170
    %v1297 = vunpack.c.h.b16 %v170
    %v1298 = vunpack.c.l.b16 %v171
    %v1299 = vunpack.c.h.b16 %v171
    %v1300 = vunpack.c.l.b16 %v172
    %v1301 = vunpack.c.h.b16 %v172
    %v1302 = vunpack.c.l.b16 %v173
    %v1303 = vunpack.c.h.b16 %v173
    %v1304 = vunpack.c.l.b16 %v174
    %v1305 = vunpack.c.h.b16 %v174
    %v1306 = vunpack.c.l.b16 %v175
    %v1307 = vunpack.c.h.b16 %v175
    %v1308 = vunpack.c.l.b16 %v176
    %v1309 = vunpack.c.h.b16 %v176
    %v1310 = vunpack.c.l.b16 %v177
    %v1311 = vunpack.c.h.b16 %v177
    %v1312 = vunpack.c.l.b16 %v178
    %v1313 = vunpack.c.h.b16 %v178
    %v1314 = vunpack.c.l.b16 %v179
    %v1315 = vunpack.c.h.b16 %v179
    %v1316 = vunpack.c.l.b16 %v180
    %v1317 = vunpack.c.h.b16 %v180
    %v1318 = vunpack.c.l.b16 %v181
    %v1319 = vunpack.c.h.b16 %v181
    %v1320 = vunpack.c.l.b16 %v182
    %v1321 = vunpack.c.h.b16 %v182
    %v1322 = vunpack.c.l.b16 %v183
    %v1323 = vunpack.c.h.b16 %v183
    %v1324 = vunpack.c.l.b16 %v184
    %v1325 = vunpack.c.h.b16 %v184
    %v1326 = vunpack.c.l.b16 %v185
    %v1327 = vunpack.c.h.b16 %v185
    %v1328 = vunpack.c.l.b16 %v186
    %v1329 = vunpack.c.h.b16 %v186
    %v1330 = vunpack.c.l.b16 %v187
    %v1331 = vunpack.c.h.b16 %v187
    %v1332 = vunpack.c.l.b16 %v188
    %v1333 = vunpack.c.h.b16 %v188
    %v1334 = vunpack.c.l.b16 %v189
    %v1335 = vunpack.c.h.b16 %v189
    %v1336 = vunpack.c.l.b16 %v190
    %v1337 = vunpack.c.h.b16 %v190
    %v1338 = vunpack.c.l.b16 %v191
    %v1339 = vunpack.c.h.b16 %v191
    %v1340 = vunpack.c.l.b16 %v192
    %v1341 = vunpack.c.h.b16 %v192
    %v1342 = vunpack.c.l.b16 %v193
    %v1343 = vunpack.c.h.b16 %v193
    %v1344 = vunpack.c.l.b16 %v194
    %v1345 = vunpack.c.h.b16 %v194
    %v1346 = vunpack.c.l.b16 %v195
    %v1347 = vunpack.c.h.b16 %v195
    %v1348 = vunpack.c.l.b16 %v196
    %v1349 = vunpack.c.h.b16 %v196
    %v1350 = vunpack.c.l.b16 %v197
    %v1351 = vunpack.c.h.b16 %v197
    %v1352 = vunpack.c.l.b16 %v198
    %v1353 = vunpack.c.h.b16 %v198
    %v1354 = vunpack.c.l.b16 %v199
    %v1355 = vunpack.c.h.b16 %v199
    %v1356 = vunpack.c.l.b16 %v200
    %v1357 = vunpack.c.h.b16 %v200
    %v1358 = vunpack.c.l.b16 %v201
    %v1359 = vunpack.c.h.b16 %v201
    %v1360 = vunpack.c.l.b16 %v202
    %v1361 = vunpack.c.h.b16 %v202
    %v1362 = vunpack.c.l.b16 %v203
    %v1363 = vunpack.c.h.b16 %v203
    %v1364 = vunpack.c.l.b16 %v204
    %v1365 = vunpack.c.h.b16 %v204
    %v1366 = vunpack.c.l.b16 %v205
    %v1367 = vunpack.c.h.b16 %v205
    %v1368 = vunpack.c.l.b16 %v206
    %v1369 = vunpack.c.h.b16 %v206
    %v1370 = vunpack.c.l.b16 %v207
    %v1371 = vunpack.c.h.b16 %v207
    %v1372 = vunpack.c.l.b16 %v208
    %v1373 = vunpack.c.h.b16 %v208
    %v1374 = vunpack.c.l.b16 %v209
    %v1375 = vunpack.c.h.b16 %v209
    %v1376 = vunpack.c.l.b16 %v210
    %v1377 = vunpack.c.h.b16 %v210
    %v1378 = vunpack.c.l.b16 %v211
    %v1379 = vunpack.c.h.b16 %v211
    %v1380 = vunpack.c.l.b16 %v212
    %v1381 = vunpack.c.h.b16 %v212
    %v1382 = vunpack.c.l.b16 %v213
    %v1383 = vunpack.c.h.b16 %v213
    %v1384 = vunpack.c.l.b16 %v214
    %v1385 = vunpack.c.h.b16 %v214
    %v1386 = vunpack.c.l.b16 %v215
    %v1387 = vunpack.c.h.b16 %v215
    %v1388 = vunpack.c.l.b16 %v216
    %v1389 = vunpack.c.h.b16 %v216
    %v1390 = vunpack.c.l.b16 %v217
    %v1391 = vunpack.c.h.b16 %v217
    %v1392 = vunpack.c.l.b16 %v218
    %v1393 = vunpack.c.h.b16 %v218
    %v1394 = vunpack.c.l.b16 %v219
    %v1395 = vunpack.c.h.b16 %v219
    %v1396 = vunpack.c.l.b16 %v220
    %v1397 = vunpack.c.h.b16 %v220
    %v1398 = vunpack.c.l.b16 %v221
    %v1399 = vunpack.c.h.b16 %v221
    %v1400 = vunpack.c.l.b16 %v222
    %v1401 = vunpack.c.h.b16 %v222
    %v1402 = vunpack.c.l.b16 %v223
    %v1403 = vunpack.c.h.b16 %v223
    %v1404 = vunpack.c.l.b16 %v224
    %v1405 = vunpack.c.h.b16 %v224
    %v1406 = vunpack.c.l.b16 %v225
    %v1407 = vunpack.c.h.b16 %v225
    %v1408 = vunpack.c.l.b16 %v226
    %v1409 = vunpack.c.h.b16 %v226
    %v1410 = vunpack.c.l.b16 %v227
    %v1411 = vunpack.c.h.b16 %v227
    %v1412 = vunpack.c.l.b16 %v228
    %v1413 = vunpack.c.h.b16 %v228
    %v1414 = vunpack.c.l.b16 %v229
    %v1415 = vunpack.c.h.b16 %v229
    %v1416 = vunpack.c.l.b16 %v230
    %v1417 = vunpack.c.h.b16 %v230
    %v1418 = vunpack.c.l.b16 %v231
    %v1419 = vunpack.c.h.b16 %v231
    %v1420 = vunpack.c.l.b16 %v232
    %v1421 = vunpack.c.h.b16 %v232
    %v1422 = vunpack.c.l.b16 %v233
    %v1423 = vunpack.c.h.b16 %v233
    %v1424 = vunpack.c.l.b16 %v234
    %v1425 = vunpack.c.h.b16 %v234
    %v1426 = vunpack.c.l.b16 %v235
    %v1427 = vunpack.c.h.b16 %v235
    %v1428 = vunpack.c.l.b16 %v236
    %v1429 = vunpack.c.h.b16 %v236
    %v1430 = vunpack.c.l.b16 %v237
    %v1431 = vunpack.c.h.b16 %v237
    %v1432 = vunpack.c.l.b16 %v238
    %v1433 = vunpack.c.h.b16 %v238
    %v1434 = vunpack.c.l.b16 %v239
    %v1435 = vunpack.c.h.b16 %v239
    %v1436 = vunpack.c.l.b16 %v240
    %v1437 = vunpack.c.h.b16 %v240
    %v1438 = vunpack.c.l.b16 %v241
    %v1439 = vunpack.c.h.b16 %v241
    %v1440 = vunpack.c.l.b16 %v242
    %v1441 = vunpack.c.h.b16 %v242
    %v1442 = vunpack.c.l.b16 %v243
    %v1443 = vunpack.c.h.b16 %v243
    %v1444 = vunpack.c.l.b16 %v244
    %v1445 = vunpack.c.h.b16 %v244
    %v1446 = vunpack.c.l.b16 %v245
    %v1447 = vunpack.c.h.b16 %v245
    %v1448 = vunpack.c.l.b16 %v246
    %v1449 = vunpack.c.h.b16 %v246
    %v1450 = vunpack.c.l.b16 %v247
    %v1451 = vunpack.c.h.b16 %v247
    %v1452 = vunpack.c.l.b16 %v248
    %v1453 = vunpack.c.h.b16 %v248
    %v1454 = vunpack.c.l.b16 %v249
    %v1455 = vunpack.c.h.b16 %v249
    %v1456 = vunpack.c.l.b16 %v250
    %v1457 = vunpack.c.h.b16 %v250
    %v1458 = vunpack.c.l.b16 %v251
    %v1459 = vunpack.c.h.b16 %v251
    %v1460 = vunpack.c.l.b16 %v252
    %v1461 = vunpack.c.h.b16 %v252
    %v1462 = vunpack.c.l.b16 %v253
    %v1463 = vunpack.c.h.b16 %v253
    %v1464 = vunpack.c.l.b16 %v254
    %v1465 = vunpack.c.h.b16 %v254
    %v1466 = vunpack.c.l.b16 %v255
    %v1467 = vunpack.c.h.b16 %v255
    %v1468 = vunpack.c.l.b16 %v256
    %v1469 = vunpack.c.h.b16 %v256
    %v1470 = vunpack.c.l.b16 %v257
    %v1471 = vunpack.c.h.b16 %v257
    %v1472 = vunpack.c.l.b16 %v258
    %v1473 = vunpack.c.h.b16 %v258
    %v1474 = vunpack.c.l.b16 %v259
    %v1475 = vunpack.c.h.b16 %v259
    %v1476 = vunpack.c.l.b16 %v260
    %v1477 = vunpack.c.h.b16 %v260
    %v1478 = vunpack.c.l.b16 %v261
    %v1479 = vunpack.c.h.b16 %v261
    %v1480 = vunpack.c.l.b16 %v262
    %v1481 = vunpack.c.h.b16 %v262
    %v1482 = vunpack.c.l.b16 %v263
    %v1483 = vunpack.c.h.b16 %v263
    %v1484 = vunpack.c.l.b16 %v264
    %v1485 = vunpack.c.h.b16 %v264
    %v1486 = vunpack.c.l.b16 %v265
    %v1487 = vunpack.c.h.b16 %v265
    %v1488 = vunpack.c.l.b16 %v266
    %v1489 = vunpack.c.h.b16 %v266
    %v1490 = vunpack.c.l.b16 %v267
    %v1491 = vunpack.c.h.b16 %v267
    %v1492 = vunpack.c.l.b16 %v268
    %v1493 = vunpack.c.h.b16 %v268
    %v1494 = vunpack.c.l.b16 %v269
    %v1495 = vunpack.c.h.b16 %v269
    %v1496 = vunpack.c.l.b16 %v270
    %v1497 = vunpack.c.h.b16 %v270
    %v1498 = vunpack.c.l.b16 %v271
    %v1499 = vunpack.c.h.b16 %v271
    %v1500 = vunpack.c.l.b16 %v272
    %v1501 = vunpack.c.h.b16 %v272
    %v1502 = vunpack.c.l.b16 %v273
    %v1503 = vunpack.c.h.b16 %v273
    %v1504 = vunpack.c.l.b16 %v274
    %v1505 = vunpack.c.h.b16 %v274
    %v1506 = vunpack.c.l.b16 %v275
    %v1507 = vunpack.c.h.b16 %v275
    %v1508 = vunpack.c.l.b16 %v276
    %v1509 = vunpack.c.h.b16 %v276
    %v1510 = vunpack.c.l.b16 %v277
    %v1511 = vunpack.c.h.b16 %v277
    %v1512 = vunpack.c.l.b16 %v278
    %v1513 = vunpack.c.h.b16 %v278
    %v1514 = vunpack.c.l.b16 %v279
    %v1515 = vunpack.c.h.b16 %v279
    %v1516 = vunpack.c.l.b16 %v280
    %v1517 = vunpack.c.h.b16 %v280
    %v1518 = vunpack.c.l.b16 %v281
    %v1519 = vunpack.c.h.b16 %v281
    %v1520 = vunpack.c.l.b16 %v282
    %v1521 = vunpack.c.h.b16 %v282
    %v1522 = vunpack.c.l.b16 %v283
    %v1523 = vunpack.c.h.b16 %v283
    %v1524 = vunpack.c.l.b16 %v284
    %v1525 = vunpack.c.h.b16 %v284
    %v1526 = vunpack.c.l.b16 %v285
    %v1527 = vunpack.c.h.b16 %v285
    %v1528 = vunpack.c.l.b16 %v286
    %v1529 = vunpack.c.h.b16 %v286
    %v1530 = vunpack.c.l.b16 %v287
    %v1531 = vunpack.c.h.b16 %v287
    %v1532 = vunpack.c.l.b16 %v288
    %v1533 = vunpack.c.h.b16 %v288
    %v1534 = vunpack.c.l.b16 %v289
    %v1535 = vunpack.c.h.b16 %v289
    %v1536 = vunpack.c.l.b16 %v290
    %v1537 = vunpack.c.h.b16 %v290
    %v1538 = vunpack.c.l.b16 %v291
    %v1539 = vunpack.c.h.b16 %v291
    %v1540 = vunpack.c.l.b16 %v292
    %v1541 = vunpack.c.h.b16 %v292
    %v1542 = vunpack.c.l.b16 %v293
    %v1543 = vunpack.c.h.b16 %v293
    %v1544 = vunpack.c.l.b16 %v294
    %v1545 = vunpack.c.h.b16 %v294
    %v1546 = vunpack.c.l.b16 %v295
    %v1547 = vunpack.c.h.b16 %v295
    %v1548 = vunpack.c.l.b16 %v296
    %v1549 = vunpack.c.h.b16 %v296
    %v1550 = vunpack.c.l.b16 %v297
    %v1551 = vunpack.c.h.b16 %v297
    %v1552 = vunpack.c.l.b16 %v298
    %v1553 = vunpack.c.h.b16 %v298
    %v1554 = vunpack.c.l.b16 %v299
    %v1555 = vunpack.c.h.b16 %v299
    %v1556 = vunpack.c.l.b16 %v300
    %v1557 = vunpack.c.h.b16 %v300
    %v1558 = vunpack.c.l.b16 %v301
    %v1559 = vunpack.c.h.b16 %v301
    %v1560 = vunpack.c.l.b16 %v302
    %v1561 = vunpack.c.h.b16 %v302
    %v1562 = vunpack.c.l.b16 %v303
    %v1563 = vunpack.c.h.b16 %v303
    %v1564 = vunpack.c.l.b16 %v304
    %v1565 = vunpack.c.h.b16 %v304
    %v1566 = vunpack.c.l.b16 %v305
    %v1567 = vunpack.c.h.b16 %v305
    %v1568 = vunpack.c.l.b16 %v306
    %v1569 = vunpack.c.h.b16 %v306
    %v1570 = vunpack.c.l.b16 %v307
    %v1571 = vunpack.c.h.b16 %v307
    %v1572 = vunpack.c.l.b16 %v308
    %v1573 = vunpack.c.h.b16 %v308
    %v1574 = vunpack.c.l.b16 %v309
    %v1575 = vunpack.c.h.b16 %v309
    %v1576 = vunpack.c.l.b16 %v310
    %v1577 = vunpack.c.h.b16 %v310
    %v1578 = vunpack.c.l.b16 %v311
    %v1579 = vunpack.c.h.b16 %v311
    %v1580 = vunpack.c.l.b16 %v312
    %v1581 = vunpack.c.h.b16 %v312
    %v1582 = vunpack.c.l.b16 %v313
    %v1583 = vunpack.c.h.b16 %v313
    %v1584 = vunpack.c.l.b16 %v314
    %v1585 = vunpack.c.h.b16 %v314
    %v1586 = vunpack.c.l.b16 %v315
    %v1587 = vunpack.c.h.b16 %v315
    %v1588 = vunpack.c.l.b16 %v316
    %v1589 = vunpack.c.h.b16 %v316
    %v1590 = vunpack.c.l.b16 %v317
    %v1591 = vunpack.c.h.b16 %v317
    %v1592 = vunpack.c.l.b16 %v318
    %v1593 = vunpack.c.h.b16 %v318
    %v1594 = vunpack.c.l.b16 %v319
    %v1595 = vunpack.c.h.b16 %v319
    %v1596 = vunpack.c.l.b16 %v320
    %v1597 = vunpack.c.h.b16 %v320
    %v1598 = vunpack.c.l.b16 %v321
    %v1599 = vunpack.c.h.b16 %v321
    %v1600 = vunpack.c.l.b16 %v322
    %v1601 = vunpack.c.h.b16 %v322
    %v1602 = vunpack.c.l.b16 %v323
    %v1603 = vunpack.c.h.b16 %v323
    %v1604 = vunpack.c.l.b16 %v324
    %v1605 = vunpack.c.h.b16 %v324
    %v1606 = vunpack.c.l.b16 %v325
    %v1607 = vunpack.c.h.b16 %v325
    %v1608 = vunpack.c.l.b16 %v326
    %v1609 = vunpack.c.h.b16 %v326
    %v1610 = vunpack.c.l.b16 %v327
    %v1611 = vunpack.c.h.b16 %v327
    %v1612 = vunpack.c.l.b16 %v328
    %v1613 = vunpack.c.h.b16 %v328
    %v1614 = vunpack.c.l.b16 %v329
    %v1615 = vunpack.c.h.b16 %v329
    %v1616 = vunpack.c.l.b16 %v330
    %v1617 = vunpack.c.h.b16 %v330
    %v1618 = vunpack.c.l.b16 %v331
    %v1619 = vunpack.c.h.b16 %v331
    %v1620 = vunpack.c.l.b16 %v332
    %v1621 = vunpack.c.h.b16 %v332
    %v1622 = vunpack.c.l.b16 %v333
    %v1623 = vunpack.c.h.b16 %v333
    %v1624 = vunpack.c.l.b16 %v334
    %v1625 = vunpack.c.h.b16 %v334
    %v1626 = vunpack.c.l.b16 %v335
    %v1627 = vunpack.c.h.b16 %v335
    %v1628 = vunpack.c.l.b16 %v336
    %v1629 = vunpack.c.h.b16 %v336
    %v1630 = vunpack.c.l.b16 %v337
    %v1631 = vunpack.c.h.b16 %v337
    %v1632 = vunpack.c.l.b16 %v338
    %v1633 = vunpack.c.h.b16 %v338
    %v1634 = vunpack.c.l.b16 %v339
    %v1635 = vunpack.c.h.b16 %v339
    %v1636 = vunpack.c.l.b16 %v340
    %v1637 = vunpack.c.h.b16 %v340
    %v1638 = vunpack.c.l.b16 %v341
    %v1639 = vunpack.c.h.b16 %v341
    %v1640 = vunpack.c.l.b16 %v342
    %v1641 = vunpack.c.h.b16 %v342
    %v1642 = vunpack.c.l.b16 %v343
    %v1643 = vunpack.c.h.b16 %v343
    %v1644 = vunpack.c.l.b16 %v344
    %v1645 = vunpack.c.h.b16 %v344
    %v1646 = vunpack.c.l.b16 %v345
    %v1647 = vunpack.c.h.b16 %v345
    %v1648 = vunpack.c.l.b16 %v346
    %v1649 = vunpack.c.h.b16 %v346
    %v1650 = vunpack.c.l.b16 %v347
    %v1651 = vunpack.c.h.b16 %v347
    %v1652 = vunpack.c.l.b16 %v348
    %v1653 = vunpack.c.h.b16 %v348
    %v1654 = vunpack.c.l.b16 %v349
    %v1655 = vunpack.c.h.b16 %v349
    %v1656 = vunpack.c.l.b16 %v350
    %v1657 = vunpack.c.h.b16 %v350
    %v1658 = vunpack.c.l.b16 %v351
    %v1659 = vunpack.c.h.b16 %v351
    %v1660 = vunpack.c.l.b16 %v352
    %v1661 = vunpack.c.h.b16 %v352
    %v1662 = vunpack.c.l.b16 %v353
    %v1663 = vunpack.c.h.b16 %v353
    %v1664 = vunpack.c.l.b16 %v354
    %v1665 = vunpack.c.h.b16 %v354
    %v1666 = vunpack.c.l.b16 %v355
    %v1667 = vunpack.c.h.b16 %v355
    %v1668 = vunpack.c.l.b16 %v356
    %v1669 = vunpack.c.h.b16 %v356
    %v1670 = vunpack.c.l.b16 %v357
    %v1671 = vunpack.c.h.b16 %v357
    %v1672 = vunpack.c.l.b16 %v358
    %v1673 = vunpack.c.h.b16 %v358
    %v1674 = vunpack.c.l.b16 %v359
    %v1675 = vunpack.c.h.b16 %v359
    %v1676 = vunpack.c.l.b16 %v360
    %v1677 = vunpack.c.h.b16 %v360
    %v1678 = vunpack.c.l.b16 %v361
    %v1679 = vunpack.c.h.b16 %v361
    %v1680 = vunpack.c.l.b16 %v362
    %v1681 = vunpack.c.h.b16 %v362
    %v1682 = vunpack.c.l.b16 %v363
    %v1683 = vunpack.c.h.b16 %v363
    %v1684 = vunpack.c.l.b16 %v364
    %v1685 = vunpack.c.h.b16 %v364
    %v1686 = vunpack.c.l.b16 %v365
    %v1687 = vunpack.c.h.b16 %v365
    %v1688 = vunpack.c.l.b16 %v366
    %v1689 = vunpack.c.h.b16 %v366
    %v1690 = vunpack.c.l.b16 %v367
    %v1691 = vunpack.c.h.b16 %v367
    %v1692 = vunpack.c.l.b16 %v368
    %v1693 = vunpack.c.h.b16 %v368
    %v1694 = vunpack.c.l.b16 %v369
    %v1695 = vunpack.c.h.b16 %v369
    %v1696 = vunpack.c.l.b16 %v370
    %v1697 = vunpack.c.h.b16 %v370
    %v1698 = vunpack.c.l.b16 %v371
    %v1699 = vunpack.c.h.b16 %v371
    %v1700 = vunpack.c.l.b16 %v372
    %v1701 = vunpack.c.h.b16 %v372
    %v1702 = vunpack.c.l.b16 %v373
    %v1703 = vunpack.c.h.b16 %v373
    %v1704 = vunpack.c.l.b16 %v374
    %v1705 = vunpack.c.h.b16 %v374
    %v1706 = vunpack.c.l.b16 %v375
    %v1707 = vunpack.c.h.b16 %v375
    %v1708 = vunpack.c.l.b16 %v376
    %v1709 = vunpack.c.h.b16 %v376
    %v1710 = vunpack.c.l.b16 %v377
    %v1711 = vunpack.c.h.b16 %v377
    %v1712 = vunpack.c.l.b16 %v378
    %v1713 = vunpack.c.h.b16 %v378
    %v1714 = vunpack.c.l.b16 %v379
    %v1715 = vunpack.c.h.b16 %v379
    %v1716 = vunpack.c.l.b16 %v380
    %v1717 = vunpack.c.h.b16 %v380
    %v1718 = vunpack.c.l.b16 %v381
    %v1719 = vunpack.c.h.b16 %v381
    %v1720 = vunpack.c.l.b16 %v382
    %v1721 = vunpack.c.h.b16 %v382
    %v1722 = vunpack.c.l.b16 %v383
    %v1723 = vunpack.c.h.b16 %v383
    %v1724 = vunpack.c.l.b16 %v384
    %v1725 = vunpack.c.h.b16 %v384
    %v1726 = vunpack.c.l.b16 %v385
    %v1727 = vunpack.c.h.b16 %v385
    %v1728 = vunpack.c.l.b16 %v386
    %v1729 = vunpack.c.h.b16 %v386
    %v1730 = vunpack.c.l.b16 %v387
    %v1731 = vunpack.c.h.b16 %v387
    %v1732 = vunpack.c.l.b16 %v388
    %v1733 = vunpack.c.h.b16 %v388
    %v1734 = vunpack.c.l.b16 %v389
    %v1735 = vunpack.c.h.b16 %v389
    %v1736 = vunpack.c.l.b16 %v390
    %v1737 = vunpack.c.h.b16 %v390
    %v1738 = vunpack.c.l.b16 %v391
    %v1739 = vunpack.c.h.b16 %v391
    %v1740 = vunpack.c.l.b16 %v392
    %v1741 = vunpack.c.h.b16 %v392
    %v1742 = vunpack.c.l.b16 %v393
    %v1743 = vunpack.c.h.b16 %v393
    %v1744 = vunpack.c.l.b16 %v394
    %v1745 = vunpack.c.h.b16 %v394
    %v1746 = vunpack.c.l.b16 %v395
    %v1747 = vunpack.c.h.b16 %v395
    %v1748 = vunpack.c.l.b16 %v396
    %v1749 = vunpack.c.h.b16 %v396
    %v1750 = vunpack.c.l.b16 %v397
    %v1751 = vunpack.c.h.b16 %v397
    %v1752 = vunpack.c.l.b16 %v398
    %v1753 = vunpack.c.h.b16 %v398
    %v1754 = vunpack.c.l.b16 %v399
    %v1755 = vunpack.c.h.b16 %v399
    %v1756 = vunpack.c.l.b16 %v400
    %v1757 = vunpack.c.h.b16 %v400
    %v1758 = vunpack.c.l.b16 %v401
    %v1759 = vunpack.c.h.b16 %v401
    %v1760 = vunpack.c.l.b16 %v402
    %v1761 = vunpack.c.h.b16 %v402
    %v1762 = vunpack.c.l.b16 %v403
    %v1763 = vunpack.c.h.b16 %v403
    %v1764 = vunpack.c.l.b16 %v404
    %v1765 = vunpack.c.h.b16 %v404
    %v1766 = vunpack.c.l.b16 %v405
    %v1767 = vunpack.c.h.b16 %v405
    %v1768 = vunpack.c.l.b16 %v406
    %v1769 = vunpack.c.h.b16 %v406
    %v1770 = vunpack.c.l.b16 %v407
    %v1771 = vunpack.c.h.b16 %v407
    %v1772 = vunpack.c.l.b16 %v408
    %v1773 = vunpack.c.h.b16 %v408
    %v1774 = vunpack.c.l.b16 %v409
    %v1775 = vunpack.c.h.b16 %v409
    %v1776 = vunpack.c.l.b16 %v410
    %v1777 = vunpack.c.h.b16 %v410
    %v1778 = vunpack.c.l.b16 %v411
    %v1779 = vunpack.c.h.b16 %v411
    %v1780 = vunpack.c.l.b16 %v412
    %v1781 = vunpack.c.h.b16 %v412
    %v1782 = vunpack.c.l.b16 %v413
    %v1783 = vunpack.c.h.b16 %v413
    %v1784 = vunpack.c.l.b16 %v414
    %v1785 = vunpack.c.h.b16 %v414
    %v1786 = vunpack.c.l.b16 %v415
    %v1787 = vunpack.c.h.b16 %v415
    %v1788 = vunpack.c.l.b16 %v416
    %v1789 = vunpack.c.h.b16 %v416
    %v1790 = vunpack.c.l.b16 %v417
    %v1791 = vunpack.c.h.b16 %v417
    %v1792 = vunpack.c.l.b16 %v418
    %v1793 = vunpack.c.h.b16 %v418
    %v1794 = vunpack.c.l.b16 %v419
    %v1795 = vunpack.c.h.b16 %v419
    %v1796 = vunpack.c.l.b16 %v420
    %v1797 = vunpack.c.h.b16 %v420
    %v1798 = vunpack.c.l.b16 %v421
    %v1799 = vunpack.c.h.b16 %v421
    %v1800 = vunpack.c.l.b16 %v422
    %v1801 = vunpack.c.h.b16 %v422
    %v1802 = vunpack.c.l.b16 %v423
    %v1803 = vunpack.c.h.b16 %v423
    %v1804 = vunpack.c.l.b16 %v424
    %v1805 = vunpack.c.h.b16 %v424
    %v1806 = vunpack.c.l.b16 %v425
    %v1807 = vunpack.c.h.b16 %v425
    %v1808 = vunpack.c.l.b16 %v426
    %v1809 = vunpack.c.h.b16 %v426
    %v1810 = vunpack.c.l.b16 %v427
    %v1811 = vunpack.c.h.b16 %v427
    %v1812 = vunpack.c.l.b16 %v428
    %v1813 = vunpack.c.h.b16 %v428
    %v1814 = vunpack.c.l.b16 %v429
    %v1815 = vunpack.c.h.b16 %v429
    %v1816 = vunpack.c.l.b16 %v430
    %v1817 = vunpack.c.h.b16 %v430
    %v1818 = vunpack.c.l.b16 %v431
    %v1819 = vunpack.c.h.b16 %v431
    %v1820 = vunpack.c.l.b16 %v432
    %v1821 = vunpack.c.h.b16 %v432
    %v1822 = vunpack.c.l.b16 %v433
    %v1823 = vunpack.c.h.b16 %v433
    %v1824 = vunpack.c.l.b16 %v434
    %v1825 = vunpack.c.h.b16 %v434
    %v1826 = vunpack.c.l.b16 %v435
    %v1827 = vunpack.c.h.b16 %v435
    %v1828 = vunpack.c.l.b16 %v436
    %v1829 = vunpack.c.h.b16 %v436
    %v1830 = vunpack.c.l.b16 %v437
    %v1831 = vunpack.c.h.b16 %v437
    %v1832 = vunpack.c.l.b16 %v438
    %v1833 = vunpack.c.h.b16 %v438
    %v1834 = vunpack.c.l.b16 %v439
    %v1835 = vunpack.c.h.b16 %v439
    %v1836 = vunpack.c.l.b16 %v440
    %v1837 = vunpack.c.h.b16 %v440
    %v1838 = vunpack.c.l.b16 %v441
    %v1839 = vunpack.c.h.b16 %v441
    %v1840 = vunpack.c.l.b16 %v442
    %v1841 = vunpack.c.h.b16 %v442
    %v1842 = vunpack.c.l.b16 %v443
    %v1843 = vunpack.c.h.b16 %v443
    %v1844 = vunpack.c.l.b16 %v444
    %v1845 = vunpack.c.h.b16 %v444
    %v1846 = vunpack.c.l.b16 %v445
    %v1847 = vunpack.c.h.b16 %v445
    %v1848 = vunpack.c.l.b16 %v446
    %v1849 = vunpack.c.h.b16 %v446
    %v1850 = vunpack.c.l.b16 %v447
    %v1851 = vunpack.c.h.b16 %v447
    %v1852 = vunpack.c.l.b16 %v448
    %v1853 = vunpack.c.h.b16 %v448
    %v1854 = vunpack.c.l.b16 %v449
    %v1855 = vunpack.c.h.b16 %v449
    %v1856 = vunpack.c.l.b16 %v450
    %v1857 = vunpack.c.h.b16 %v450
    %v1858 = vunpack.c.l.b16 %v451
    %v1859 = vunpack.c.h.b16 %v451
    %v1860 = vunpack.c.l.b16 %v452
    %v1861 = vunpack.c.h.b16 %v452
    %v1862 = vunpack.c.l.b16 %v453
    %v1863 = vunpack.c.h.b16 %v453
    %v1864 = vunpack.c.l.b16 %v454
    %v1865 = vunpack.c.h.b16 %v454
    %v1866 = vunpack.c.l.b16 %v455
    %v1867 = vunpack.c.h.b16 %v455
    %v1868 = vunpack.c.l.b16 %v456
    %v1869 = vunpack.c.h.b16 %v456
    %v1870 = vunpack.c.l.b16 %v457
    %v1871 = vunpack.c.h.b16 %v457
    %v1872 = vunpack.c.l.b16 %v458
    %v1873 = vunpack.c.h.b16 %v458
    %v1874 = vunpack.c.l.b16 %v459
    %v1875 = vunpack.c.h.b16 %v459
    %v1876 = vunpack.c.l.b16 %v460
    %v1877 = vunpack.c.h.b16 %v460
    %v1878 = vunpack.c.l.b16 %v461
    %v1879 = vunpack.c.h.b16 %v461
    %v1880 = vunpack.c.l.b16 %v462
    %v1881 = vunpack.c.h.b16 %v462
    %v1882 = vunpack.c.l.b16 %v463
    %v1883 = vunpack.c.h.b16 %v463
    %v1884 = vunpack.c.l.b16 %v464
    %v1885 = vunpack.c.h.b16 %v464
    %v1886 = vunpack.c.l.b16 %v465
    %v1887 = vunpack.c.h.b16 %v465
    %v1888 = vunpack.c.l.b16 %v466
    %v1889 = vunpack.c.h.b16 %v466
    %v1890 = vunpack.c.l.b16 %v467
    %v1891 = vunpack.c.h.b16 %v467
    %v1892 = vunpack.c.l.b16 %v468
    %v1893 = vunpack.c.h.b16 %v468
    %v1894 = vunpack.c.l.b16 %v469
    %v1895 = vunpack.c.h.b16 %v469
    %v1896 = vunpack.c.l.b16 %v470
    %v1897 = vunpack.c.h.b16 %v470
    %v1898 = vunpack.c.l.b16 %v471
    %v1899 = vunpack.c.h.b16 %v471
    %v1900 = vunpack.c.l.b16 %v472
    %v1901 = vunpack.c.h.b16 %v472
    %v1902 = vunpack.c.l.b16 %v473
    %v1903 = vunpack.c.h.b16 %v473
    %v1904 = vunpack.c.l.b16 %v474
    %v1905 = vunpack.c.h.b16 %v474
    %v1906 = vunpack.c.l.b16 %v475
    %v1907 = vunpack.c.h.b16 %v475
    %v1908 = vunpack.c.l.b16 %v476
    %v1909 = vunpack.c.h.b16 %v476
    %v1910 = vunpack.c.l.b16 %v477
    %v1911 = vunpack.c.h.b16 %v477
    %v1912 = vunpack.c.l.b16 %v478
    %v1913 = vunpack.c.h.b16 %v478
    %v1914 = vunpack.c.l.b16 %v479
    %v1915 = vunpack.c.h.b16 %v479
    %v1916 = vunpack.c.l.b16 %v480
    %v1917 = vunpack.c.h.b16 %v480
    %v1918 = vunpack.c.l.b16 %v481
    %v1919 = vunpack.c.h.b16 %v481
    %v1920 = vunpack.c.l.b16 %v482
    %v1921 = vunpack.c.h.b16 %v482
    %v1922 = vunpack.c.l.b16 %v483
    %v1923 = vunpack.c.h.b16 %v483
    %v1924 = vunpack.c.l.b16 %v484
    %v1925 = vunpack.c.h.b16 %v484
    %v1926 = vunpack.c.l.b16 %v485
    %v1927 = vunpack.c.h.b16 %v485
    %v1928 = vunpack.c.l.b16 %v486
    %v1929 = vunpack.c.h.b16 %v486
    %v1930 = vunpack.c.l.b16 %v487
    %v1931 = vunpack.c.h.b16 %v487
    %v1932 = vunpack.c.l.b16 %v488
    %v1933 = vunpack.c.h.b16 %v488
    %v1934 = vunpack.c.l.b16 %v489
    %v1935 = vunpack.c.h.b16 %v489
    %v1936 = vunpack.c.l.b16 %v490
    %v1937 = vunpack.c.h.b16 %v490
    %v1938 = vunpack.c.l.b16 %v491
    %v1939 = vunpack.c.h.b16 %v491
    %v1940 = vunpack.c.l.b16 %v492
    %v1941 = vunpack.c.h.b16 %v492
    %v1942 = vunpack.c.l.b16 %v493
    %v1943 = vunpack.c.h.b16 %v493
    %v1944 = vunpack.c.l.b16 %v494
    %v1945 = vunpack.c.h.b16 %v494
    %v1946 = vunpack.c.l.b16 %v495
    %v1947 = vunpack.c.h.b16 %v495
    %v1948 = vunpack.c.l.b16 %v496
    %v1949 = vunpack.c.h.b16 %v496
    %v1950 = vunpack.c.l.b16 %v497
    %v1951 = vunpack.c.h.b16 %v497
    %v1952 = vunpack.c.l.b16 %v498
    %v1953 = vunpack.c.h.b16 %v498
    %v1954 = vunpack.c.l.b16 %v499
    %v1955 = vunpack.c.h.b16 %v499
    %v1956 = vunpack.c.l.b16 %v500
    %v1957 = vunpack.c.h.b16 %v500
    %v1958 = vunpack.c.l.b16 %v501
    %v1959 = vunpack.c.h.b16 %v501
    %v1960 = vunpack.c.l.b16 %v502
    %v1961 = vunpack.c.h.b16 %v502
    %v1962 = vunpack.c.l.b16 %v503
    %v1963 = vunpack.c.h.b16 %v503
    %v1964 = vunpack.c.l.b16 %v504
    %v1965 = vunpack.c.h.b16 %v504
    %v1966 = vunpack.c.l.b16 %v505
    %v1967 = vunpack.c.h.b16 %v505
    %v1968 = vunpack.c.l.b16 %v506
    %v1969 = vunpack.c.h.b16 %v506
    %v1970 = vunpack.c.l.b16 %v507
    %v1971 = vunpack.c.h.b16 %v507
    %v1972 = vunpack.c.l.b16 %v508
    %v1973 = vunpack.c.h.b16 %v508
    %v1974 = vunpack.c.l.b16 %v509
    %v1975 = vunpack.c.h.b16 %v509
    %v1976 = vunpack.c.l.b16 %v510
    %v1977 = vunpack.c.h.b16 %v510
    %v1978 = vunpack.c.l.b16 %v511
    %v1979 = vunpack.c.h.b16 %v511
    %v1980 = vunpack.c.l.b16 %v512
    %v1981 = vunpack.c.h.b16 %v512
    %v1982 = vunpack.c.l.b16 %v513
    %v1983 = vunpack.c.h.b16 %v513
    %v1984 = vunpack.c.l.b16 %v514
    %v1985 = vunpack.c.h.b16 %v514
    %v1986 = vunpack.c.l.b16 %v515
    %v1987 = vunpack.c.h.b16 %v515
    %v1988 = vunpack.c.l.b16 %v516
    %v1989 = vunpack.c.h.b16 %v516
    %v1990 = vunpack.c.l.b16 %v517
    %v1991 = vunpack.c.h.b16 %v517
    %v1992 = vunpack.c.l.b16 %v518
    %v1993 = vunpack.c.h.b16 %v518
    %v1994 = vunpack.c.l.b16 %v519
    %v1995 = vunpack.c.h.b16 %v519
    %v1996 = vunpack.c.l.b16 %v520
    %v1997 = vunpack.c.h.b16 %v520
    %v1998 = vunpack.c.l.b16 %v521
    %v1999 = vunpack.c.h.b16 %v521
    %v2000 = vunpack.c.l.b16 %v522
    %v2001 = vunpack.c.h.b16 %v522
    %v2002 = vunpack.c.l.b16 %v523
    %v2003 = vunpack.c.h.b16 %v523
    %v2004 = vunpack.c.l.b16 %v524
    %v2005 = vunpack.c.h.b16 %v524
    %v2006 = vunpack.c.l.b16 %v525
    %v2007 = vunpack.c.h.b16 %v525
    %v2008 = vunpack.c.l.b16 %v526
    %v2009 = vunpack.c.h.b16 %v526
    %v2010 = vunpack.c.l.b16 %v527
    %v2011 = vunpack.c.h.b16 %v527
    %v2012 = vunpack.c.l.b16 %v528
    %v2013 = vunpack.c.h.b16 %v528
    %v2014 = vunpack.c.l.b16 %v529
    %v2015 = vunpack.c.h.b16 %v529
    %v2016 = vunpack.c.l.b16 %v530
    %v2017 = vunpack.c.h.b16 %v530
    %v2018 = vunpack.c.l.b16 %v531
    %v2019 = vunpack.c.h.b16 %v531
    %v2020 = vunpack.c.l.b16 %v532
    %v2021 = vunpack.c.h.b16 %v532
    %v2022 = vunpack.c.l.b16 %v533
    %v2023 = vunpack.c.h.b16 %v533
    %v2024 = vunpack.c.l.b16 %v534
    %v2025 = vunpack.c.h.b16 %v534
    %v2026 = vunpack.c.l.b16 %v535
    %v2027 = vunpack.c.h.b16 %v535
    %v2028 = vunpack.c.l.b16 %v536
    %v2029 = vunpack.c.h.b16 %v536
    %v2030 = vunpack.c.l.b16 %v537
    %v2031 = vunpack.c.h.b16 %v537
    %v2032 = vunpack.c.l.b16 %v538
    %v2033 = vunpack.c.h.b16 %v538
    %v2034 = vunpack.c.l.b16 %v539
    %v2035 = vunpack.c.h.b16 %v539
    %v2036 = vunpack.c.l.b16 %v540
    %v2037 = vunpack.c.h.b16 %v540
    %v2038 = vunpack.c.l.b16 %v541
    %v2039 = vunpack.c.h.b16 %v541
    %v2040 = vunpack.c.l.b16 %v542
    %v2041 = vunpack.c.h.b16 %v542
    %v2042 = vunpack.c.l.b16 %v543
    %v2043 = vunpack.c.h.b16 %v543
    %v2044 = vunpack.c.l.b16 %v544
    %v2045 = vunpack.c.h.b16 %v544
    %v2046 = vunpack.c.l.b16 %v545
    %v2047 = vunpack.c.h.b16 %v545
    %v2048 = vunpack.c.l.b16 %v546
    %v2049 = vunpack.c.h.b16 %v546
    %v2050 = vunpack.c.l.b16 %v547
    %v2051 = vunpack.c.h.b16 %v547
    %v2052 = vunpack.c.l.b16 %v548
    %v2053 = vunpack.c.h.b16 %v548
    %v2054 = vunpack.c.l.b16 %v549
    %v2055 = vunpack.c.h.b16 %v549
    %v2056 = vunpack.c.l.b16 %v550
    %v2057 = vunpack.c.h.b16 %v550
    %v2058 = vunpack.c.l.b16 %v551
    %v2059 = vunpack.c.h.b16 %v551
    %v2060 = vunpack.c.l.b16 %v552
    %v2061 = vunpack.c.h.b16 %v552
    %v2062 = vunpack.c.l.b16 %v553
    %v2063 = vunpack.c.h.b16 %v553
    %v2064 = vunpack.c.l.b16 %v554
    %v2065 = vunpack.c.h.b16 %v554
    %v2066 = vunpack.c.l.b16 %v555
    %v2067 = vunpack.c.h.b16 %v555
    %v2068 = vunpack.c.l.b16 %v556
    %v2069 = vunpack.c.h.b16 %v556
    %v2070 = vunpack.c.l.b16 %v557
    %v2071 = vunpack.c.h.b16 %v557
    %v2072 = vunpack.c.l.b16 %v558
    %v2073 = vunpack.c.h.b16 %v558
    %v2074 = vunpack.c.l.b16 %v559
    %v2075 = vunpack.c.h.b16 %v559
    %v2076 = vunpack.c.l.b16 %v560
    %v2077 = vunpack.c.h.b16 %v560
    %v2078 = vunpack.c.l.b16 %v561
    %v2079 = vunpack.c.h.b16 %v561
    %v2080 = vunpack.c.l.b16 %v562
    %v2081 = vunpack.c.h.b16 %v562
    %v2082 = vunpack.c.l.b16 %v563
    %v2083 = vunpack.c.h.b16 %v563
    %v2084 = vunpack.c.l.b16 %v564
    %v2085 = vunpack.c.h.b16 %v564
    %v2086 = vunpack.c.l.b16 %v565
    %v2087 = vunpack.c.h.b16 %v565
    %v2088 = vunpack.c.l.b16 %v566
    %v2089 = vunpack.c.h.b16 %v566
    %v2090 = vunpack.c.l.b16 %v567
    %v2091 = vunpack.c.h.b16 %v567
    %v2092 = vunpack.c.l.b16 %v568
    %v2093 = vunpack.c.h.b16 %v568
    %v2094 = vunpack.c.l.b16 %v569
    %v2095 = vunpack.c.h.b16 %v569
    %v2096 = vunpack.c.l.b16 %v570
    %v2097 = vunpack.c.h.b16 %v570
    %v2098 = vunpack.c.l.b16 %v571
    %v2099 = vunpack.c.h.b16 %v571
    %v2100 = vunpack.c.l.b16 %v572
    %v2101 = vunpack.c.h.b16 %v572
    %v2102 = vunpack.c.l.b16 %v573
    %v2103 = vunpack.c.h.b16 %v573
    %v2104 = vunpack.c.l.b16 %v574
    %v2105 = vunpack.c.h.b16 %v574
    %v2106 = vunpack.c.l.b16 %v575
    %v2107 = vunpack.c.h.b16 %v575
    %v2108 = vunpack.c.l.b16 %v576
    %v2109 = vunpack.c.h.b16 %v576
    %v2110 = vunpack.c.l.b16 %v577
    %v2111 = vunpack.c.h.b16 %v577
    %v2112 = vunpack.c.l.b16 %v578
    %v2113 = vunpack.c.h.b16 %v578
    %v2114 = vunpack.c.l.b16 %v579
    %v2115 = vunpack.c.h.b16 %v579
    %v2116 = vpack.c.b16 %v1108, %v1092
    %v2117 = vpack.c.b16 %v1109, %v1093
    %v2118 = vpack.c.b16 %v1110, %v1094
    %v2119 = vpack.c.b16 %v1111, %v1095
    %v2120 = vpack.c.b16 %v1112, %v1096
    %v2121 = vpack.c.b16 %v1113, %v1097
    %v2122 = vpack.c.b16 %v1114, %v1098
    %v2123 = vpack.c.b16 %v1115, %v1099
    %v2124 = vpack.c.b16 %v1116, %v1100
    %v2125 = vpack.c.b16 %v1117, %v1101
    %v2126 = vpack.c.b16 %v1118, %v1102
    %v2127 = vpack.c.b16 %v1119, %v1103
    %v2128 = vpack.c.b16 %v1120, %v1104
    %v2129 = vpack.c.b16 %v1121, %v1105
    %v2130 = vpack.c.b16 %v1122, %v1106
    %v2131 = vpack.c.b16 %v1123, %v1107
    %v2132 = vpack.c.b16 %v1140, %v1124
    %v2133 = vpack.c.b16 %v1141, %v1125
    %v2134 = vpack.c.b16 %v1142, %v1126
    %v2135 = vpack.c.b16 %v1143, %v1127
    %v2136 = vpack.c.b16 %v1144, %v1128
    %v2137 = vpack.c.b16 %v1145, %v1129
    %v2138 = vpack.c.b16 %v1146, %v1130
    %v2139 = vpack.c.b16 %v1147, %v1131
    %v2140 = vpack.c.b16 %v1148, %v1132
    %v2141 = vpack.c.b16 %v1149, %v1133
    %v2142 = vpack.c.b16 %v1150, %v1134
    %v2143 = vpack.c.b16 %v1151, %v1135
    %v2144 = vpack.c.b16 %v1152, %v1136
    %v2145 = vpack.c.b16 %v1153, %v1137
    %v2146 = vpack.c.b16 %v1154, %v1138
    %v2147 = vpack.c.b16 %v1155, %v1139
    %v2148 = vpack.c.b16 %v1172, %v1156
    %v2149 = vpack.c.b16 %v1173, %v1157
    %v2150 = vpack.c.b16 %v1174, %v1158
    %v2151 = vpack.c.b16 %v1175, %v1159
    %v2152 = vpack.c.b16 %v1176, %v1160
    %v2153 = vpack.c.b16 %v1177, %v1161
    %v2154 = vpack.c.b16 %v1178, %v1162
    %v2155 = vpack.c.b16 %v1179, %v1163
    %v2156 = vpack.c.b16 %v1180, %v1164
    %v2157 = vpack.c.b16 %v1181, %v1165
    %v2158 = vpack.c.b16 %v1182, %v1166
    %v2159 = vpack.c.b16 %v1183, %v1167
    %v2160 = vpack.c.b16 %v1184, %v1168
    %v2161 = vpack.c.b16 %v1185, %v1169
    %v2162 = vpack.c.b16 %v1186, %v1170
    %v2163 = vpack.c.b16 %v1187, %v1171
    %v2164 = vpack.c.b16 %v1204, %v1188
    %v2165 = vpack.c.b16 %v1205, %v1189
    %v2166 = vpack.c.b16 %v1206, %v1190
    %v2167 = vpack.c.b16 %v1207, %v1191
    %v2168 = vpack.c.b16 %v1208, %v1192
    %v2169 = vpack.c.b16 %v1209, %v1193
    %v2170 = vpack.c.b16 %v1210, %v1194
    %v2171 = vpack.c.b16 %v1211, %v1195
    %v2172 = vpack.c.b16 %v1212, %v1196
    %v2173 = vpack.c.b16 %v1213, %v1197
    %v2174 = vpack.c.b16 %v1214, %v1198
    %v2175 = vpack.c.b16 %v1215, %v1199
    %v2176 = vpack.c.b16 %v1216, %v1200
    %v2177 = vpack.c.b16 %v1217, %v1201
    %v2178 = vpack.c.b16 %v1218, %v1202
    %v2179 = vpack.c.b16 %v1219, %v1203
    %v2180 = vpack.c.b16 %v1236, %v1220
    %v2181 = vpack.c.b16 %v1237, %v1221
    %v2182 = vpack.c.b16 %v1238, %v1222
    %v2183 = vpack.c.b16 %v1239, %v1223
    %v2184 = vpack.c.b16 %v1240, %v1224
    %v2185 = vpack.c.b16 %v1241, %v1225
    %v2186 = vpack.c.b16 %v1242, %v1226
    %v2187 = vpack.c.b16 %v1243, %v1227
    %v2188 = vpack.c.b16 %v1244, %v1228
    %v2189 = vpack.c.b16 %v1245, %v1229
    %v2190 = vpack.c.b16 %v1246, %v1230
    %v2191 = vpack.c.b16 %v1247, %v1231
    %v2192 = vpack.c.b16 %v1248, %v1232
    %v2193 = vpack.c.b16 %v1249, %v1233
    %v2194 = vpack.c.b16 %v1250, %v1234
    %v2195 = vpack.c.b16 %v1251, %v1235
    %v2196 = vpack.c.b16 %v1268, %v1252
    %v2197 = vpack.c.b16 %v1269, %v1253
    %v2198 = vpack.c.b16 %v1270, %v1254
    %v2199 = vpack.c.b16 %v1271, %v1255
    %v2200 = vpack.c.b16 %v1272, %v1256
    %v2201 = vpack.c.b16 %v1273, %v1257
    %v2202 = vpack.c.b16 %v1274, %v1258
    %v2203 = vpack.c.b16 %v1275, %v1259
    %v2204 = vpack.c.b16 %v1276, %v1260
    %v2205 = vpack.c.b16 %v1277, %v1261
    %v2206 = vpack.c.b16 %v1278, %v1262
    %v2207 = vpack.c.b16 %v1279, %v1263
    %v2208 = vpack.c.b16 %v1280, %v1264
    %v2209 = vpack.c.b16 %v1281, %v1265
    %v2210 = vpack.c.b16 %v1282, %v1266
    %v2211 = vpack.c.b16 %v1283, %v1267
    %v2212 = vpack.c.b16 %v1300, %v1284
    %v2213 = vpack.c.b16 %v1301, %v1285
    %v2214 = vpack.c.b16 %v1302, %v1286
    %v2215 = vpack.c.b16 %v1303, %v1287
    %v2216 = vpack.c.b16 %v1304, %v1288
    %v2217 = vpack.c.b16 %v1305, %v1289
    %v2218 = vpack.c.b16 %v1306, %v1290
    %v2219 = vpack.c.b16 %v1307, %v1291
    %v2220 = vpack.c.b16 %v1308, %v1292
    %v2221 = vpack.c.b16 %v1309, %v1293
    %v2222 = vpack.c.b16 %v1310, %v1294
    %v2223 = vpack.c.b16 %v1311, %v1295
    %v2224 = vpack.c.b16 %v1312, %v1296
    %v2225 = vpack.c.b16 %v1313, %v1297
    %v2226 = vpack.c.b16 %v1314, %v1298
    %v2227 = vpack.c.b16 %v1315, %v1299
    %v2228 = vpack.c.b16 %v1332, %v1316
    %v2229 = vpack.c.b16 %v1333, %v1317
    %v2230 = vpack.c.b16 %v1334, %v1318
    %v2231 = vpack.c.b16 %v1335, %v1319
    %v2232 = vpack.c.b16 %v1336, %v1320
    %v2233 = vpack.c.b16 %v1337, %v1321
    %v2234 = vpack.c.b16 %v1338, %v1322
    %v2235 = vpack.c.b16 %v1339, %v1323
    %v2236 = vpack.c.b16 %v1340, %v1324
    %v2237 = vpack.c.b16 %v1341, %v1325
    %v2238 = vpack.c.b16 %v1342, %v1326
    %v2239 = vpack.c.b16 %v1343, %v1327
    %v2240 = vpack.c.b16 %v1344, %v1328
    %v2241 = vpack.c.b16 %v1345, %v1329
    %v2242 = vpack.c.b16 %v1346, %v1330
    %v2243 = vpack.c.b16 %v1347, %v1331
    %v2244 = vpack.c.b16 %v1364, %v1348
    %v2245 = vpack.c.b16 %v1365, %v1349
    %v2246 = vpack.c.b16 %v1366, %v1350
    %v2247 = vpack.c.b16 %v1367, %v1351
    %v2248 = vpack.c.b16 %v1368, %v1352
    %v2249 = vpack.c.b16 %v1369, %v1353
    %v2250 = vpack.c.b16 %v1370, %v1354
    %v2251 = vpack.c.b16 %v1371, %v1355
    %v2252 = vpack.c.b16 %v1372, %v1356
    %v2253 = vpack.c.b16 %v1373, %v1357
    %v2254 = vpack.c.b16 %v1374, %v1358
    %v2255 = vpack.c.b16 %v1375, %v1359
    %v2256 = vpack.c.b16 %v1376, %v1360
    %v2257 = vpack.c.b16 %v1377, %v1361
    %v2258 = vpack.c.b16 %v1378, %v1362
    %v2259 = vpack.c.b16 %v1379, %v1363
    %v2260 = vpack.c.b16 %v1396, %v1380
    %v2261 = vpack.c.b16 %v1397, %v1381
    %v2262 = vpack.c.b16 %v1398, %v1382
    %v2263 = vpack.c.b16 %v1399, %v1383
    %v2264 = vpack.c.b16 %v1400, %v1384
    %v2265 = vpack.c.b16 %v1401, %v1385
    %v2266 = vpack.c.b16 %v1402, %v1386
    %v2267 = vpack.c.b16 %v1403, %v1387
    %v2268 = vpack.c.b16 %v1404, %v1388
    %v2269 = vpack.c.b16 %v1405, %v1389
    %v2270 = vpack.c.b16 %v1406, %v1390
    %v2271 = vpack.c.b16 %v1407, %v1391
    %v2272 = vpack.c.b16 %v1408, %v1392
    %v2273 = vpack.c.b16 %v1409, %v1393
    %v2274 = vpack.c.b16 %v1410, %v1394
    %v2275 = vpack.c.b16 %v1411, %v1395
    %v2276 = vpack.c.b16 %v1428, %v1412
    %v2277 = vpack.c.b16 %v1429, %v1413
    %v2278 = vpack.c.b16 %v1430, %v1414
    %v2279 = vpack.c.b16 %v1431, %v1415
    %v2280 = vpack.c.b16 %v1432, %v1416
    %v2281 = vpack.c.b16 %v1433, %v1417
    %v2282 = vpack.c.b16 %v1434, %v1418
    %v2283 = vpack.c.b16 %v1435, %v1419
    %v2284 = vpack.c.b16 %v1436, %v1420
    %v2285 = vpack.c.b16 %v1437, %v1421
    %v2286 = vpack.c.b16 %v1438, %v1422
    %v2287 = vpack.c.b16 %v1439, %v1423
    %v2288 = vpack.c.b16 %v1440, %v1424
    %v2289 = vpack.c.b16 %v1441, %v1425
    %v2290 = vpack.c.b16 %v1442, %v1426
    %v2291 = vpack.c.b16 %v1443, %v1427
    %v2292 = vpack.c.b16 %v1460, %v1444
    %v2293 = vpack.c.b16 %v1461, %v1445
    %v2294 = vpack.c.b16 %v1462, %v1446
    %v2295 = vpack.c.b16 %v1463, %v1447
    %v2296 = vpack.c.b16 %v1464, %v1448
    %v2297 = vpack.c.b16 %v1465, %v1449
    %v2298 = vpack.c.b16 %v1466, %v1450
    %v2299 = vpack.c.b16 %v1467, %v1451
    %v2300 = vpack.c.b16 %v1468, %v1452
    %v2301 = vpack.c.b16 %v1469, %v1453
    %v2302 = vpack.c.b16 %v1470, %v1454
    %v2303 = vpack.c.b16 %v1471, %v1455
    %v2304 = vpack.c.b16 %v1472, %v1456
    %v2305 = vpack.c.b16 %v1473, %v1457
    %v2306 = vpack.c.b16 %v1474, %v1458
    %v2307 = vpack.c.b16 %v1475, %v1459
    %v2308 = vpack.c.b16 %v1492, %v1476
    %v2309 = vpack.c.b16 %v1493, %v1477
    %v2310 = vpack.c.b16 %v1494, %v1478
    %v2311 = vpack.c.b16 %v1495, %v1479
    %v2312 = vpack.c.b16 %v1496, %v1480
    %v2313 = vpack.c.b16 %v1497, %v1481
    %v2314 = vpack.c.b16 %v1498, %v1482
    %v2315 = vpack.c.b16 %v1499, %v1483
    %v2316 = vpack.c.b16 %v1500, %v1484
    %v2317 = vpack.c.b16 %v1501, %v1485
    %v2318 = vpack.c.b16 %v1502, %v1486
    %v2319 = vpack.c.b16 %v1503, %v1487
    %v2320 = vpack.c.b16 %v1504, %v1488
    %v2321 = vpack.c.b16 %v1505, %v1489
    %v2322 = vpack.c.b16 %v1506, %v1490
    %v2323 = vpack.c.b16 %v1507, %v1491
    %v2324 = vpack.c.b16 %v1524, %v1508
    %v2325 = vpack.c.b16 %v1525, %v1509
    %v2326 = vpack.c.b16 %v1526, %v1510
    %v2327 = vpack.c.b16 %v1527, %v1511
    %v2328 = vpack.c.b16 %v1528, %v1512
    %v2329 = vpack.c.b16 %v1529, %v1513
    %v2330 = vpack.c.b16 %v1530, %v1514
    %v2331 = vpack.c.b16 %v1531, %v1515
    %v2332 = vpack.c.b16 %v1532, %v1516
    %v2333 = vpack.c.b16 %v1533, %v1517
    %v2334 = vpack.c.b16 %v1534, %v1518
    %v2335 = vpack.c.b16 %v1535, %v1519
    %v2336 = vpack.c.b16 %v1536, %v1520
    %v2337 = vpack.c.b16 %v1537, %v1521
    %v2338 = vpack.c.b16 %v1538, %v1522
    %v2339 = vpack.c.b16 %v1539, %v1523
    %v2340 = vpack.c.b16 %v1556, %v1540
    %v2341 = vpack.c.b16 %v1557, %v1541
    %v2342 = vpack.c.b16 %v1558, %v1542
    %v2343 = vpack.c.b16 %v1559, %v1543
    %v2344 = vpack.c.b16 %v1560, %v1544
    %v2345 = vpack.c.b16 %v1561, %v1545
    %v2346 = vpack.c.b16 %v1562, %v1546
    %v2347 = vpack.c.b16 %v1563, %v1547
    %v2348 = vpack.c.b16 %v1564, %v1548
    %v2349 = vpack.c.b16 %v1565, %v1549
    %v2350 = vpack.c.b16 %v1566, %v1550
    %v2351 = vpack.c.b16 %v1567, %v1551
    %v2352 = vpack.c.b16 %v1568, %v1552
    %v2353 = vpack.c.b16 %v1569, %v1553
    %v2354 = vpack.c.b16 %v1570, %v1554
    %v2355 = vpack.c.b16 %v1571, %v1555
    %v2356 = vpack.c.b16 %v1588, %v1572
    %v2357 = vpack.c.b16 %v1589, %v1573
    %v2358 = vpack.c.b16 %v1590, %v1574
    %v2359 = vpack.c.b16 %v1591, %v1575
    %v2360 = vpack.c.b16 %v1592, %v1576
    %v2361 = vpack.c.b16 %v1593, %v1577
    %v2362 = vpack.c.b16 %v1594, %v1578
    %v2363 = vpack.c.b16 %v1595, %v1579
    %v2364 = vpack.c.b16 %v1596, %v1580
    %v2365 = vpack.c.b16 %v1597, %v1581
    %v2366 = vpack.c.b16 %v1598, %v1582
    %v2367 = vpack.c.b16 %v1599, %v1583
    %v2368 = vpack.c.b16 %v1600, %v1584
    %v2369 = vpack.c.b16 %v1601, %v1585
    %v2370 = vpack.c.b16 %v1602, %v1586
    %v2371 = vpack.c.b16 %v1603, %v1587
    %v2372 = vpack.c.b16 %v1620, %v1604
    %v2373 = vpack.c.b16 %v1621, %v1605
    %v2374 = vpack.c.b16 %v1622, %v1606
    %v2375 = vpack.c.b16 %v1623, %v1607
    %v2376 = vpack.c.b16 %v1624, %v1608
    %v2377 = vpack.c.b16 %v1625, %v1609
    %v2378 = vpack.c.b16 %v1626, %v1610
    %v2379 = vpack.c.b16 %v1627, %v1611
    %v2380 = vpack.c.b16 %v1628, %v1612
    %v2381 = vpack.c.b16 %v1629, %v1613
    %v2382 = vpack.c.b16 %v1630, %v1614
    %v2383 = vpack.c.b16 %v1631, %v1615
    %v2384 = vpack.c.b16 %v1632, %v1616
    %v2385 = vpack.c.b16 %v1633, %v1617
    %v2386 = vpack.c.b16 %v1634, %v1618
    %v2387 = vpack.c.b16 %v1635, %v1619
    %v2388 = vpack.c.b16 %v1652, %v1636
    %v2389 = vpack.c.b16 %v1653, %v1637
    %v2390 = vpack.c.b16 %v1654, %v1638
    %v2391 = vpack.c.b16 %v1655, %v1639
    %v2392 = vpack.c.b16 %v1656, %v1640
    %v2393 = vpack.c.b16 %v1657, %v1641
    %v2394 = vpack.c.b16 %v1658, %v1642
    %v2395 = vpack.c.b16 %v1659, %v1643
    %v2396 = vpack.c.b16 %v1660, %v1644
    %v2397 = vpack.c.b16 %v1661, %v1645
    %v2398 = vpack.c.b16 %v1662, %v1646
    %v2399 = vpack.c.b16 %v1663, %v1647
    %v2400 = vpack.c.b16 %v1664, %v1648
    %v2401 = vpack.c.b16 %v1665, %v1649
    %v2402 = vpack.c.b16 %v1666, %v1650
    %v2403 = vpack.c.b16 %v1667, %v1651
    %v2404 = vpack.c.b16 %v1684, %v1668
    %v2405 = vpack.c.b16 %v1685, %v1669
    %v2406 = vpack.c.b16 %v1686, %v1670
    %v2407 = vpack.c.b16 %v1687, %v1671
    %v2408 = vpack.c.b16 %v1688, %v1672
    %v2409 = vpack.c.b16 %v1689, %v1673
    %v2410 = vpack.c.b16 %v1690, %v1674
    %v2411 = vpack.c.b16 %v1691, %v1675
    %v2412 = vpack.c.b16 %v1692, %v1676
    %v2413 = vpack.c.b16 %v1693, %v1677
    %v2414 = vpack.c.b16 %v1694, %v1678
    %v2415 = vpack.c.b16 %v1695, %v1679
    %v2416 = vpack.c.b16 %v1696, %v1680
    %v2417 = vpack.c.b16 %v1697, %v1681
    %v2418 = vpack.c.b16 %v1698, %v1682
    %v2419 = vpack.c.b16 %v1699, %v1683
    %v2420 = vpack.c.b16 %v1716, %v1700
    %v2421 = vpack.c.b16 %v1717, %v1701
    %v2422 = vpack.c.b16 %v1718, %v1702
    %v2423 = vpack.c.b16 %v1719, %v1703
    %v2424 = vpack.c.b16 %v1720, %v1704
    %v2425 = vpack.c.b16 %v1721, %v1705
    %v2426 = vpack.c.b16 %v1722, %v1706
    %v2427 = vpack.c.b16 %v1723, %v1707
    %v2428 = vpack.c.b16 %v1724, %v1708
    %v2429 = vpack.c.b16 %v1725, %v1709
    %v2430 = vpack.c.b16 %v1726, %v1710
    %v2431 = vpack.c.b16 %v1727, %v1711
    %v2432 = vpack.c.b16 %v1728, %v1712
    %v2433 = vpack.c.b16 %v1729, %v1713
    %v2434 = vpack.c.b16 %v1730, %v1714
    %v2435 = vpack.c.b16 %v1731, %v1715
    %v2436 = vpack.c.b16 %v1748, %v1732
    %v2437 = vpack.c.b16 %v1749, %v1733
    %v2438 = vpack.c.b16 %v1750, %v1734
    %v2439 = vpack.c.b16 %v1751, %v1735
    %v2440 = vpack.c.b16 %v1752, %v1736
    %v2441 = vpack.c.b16 %v1753, %v1737
    %v2442 = vpack.c.b16 %v1754, %v1738
    %v2443 = vpack.c.b16 %v1755, %v1739
    %v2444 = vpack.c.b16 %v1756, %v1740
    %v2445 = vpack.c.b16 %v1757, %v1741
    %v2446 = vpack.c.b16 %v1758, %v1742
    %v2447 = vpack.c.b16 %v1759, %v1743
    %v2448 = vpack.c.b16 %v1760, %v1744
    %v2449 = vpack.c.b16 %v1761, %v1745
    %v2450 = vpack.c.b16 %v1762, %v1746
    %v2451 = vpack.c.b16 %v1763, %v1747
    %v2452 = vpack.c.b16 %v1780, %v1764
    %v2453 = vpack.c.b16 %v1781, %v1765
    %v2454 = vpack.c.b16 %v1782, %v1766
    %v2455 = vpack.c.b16 %v1783, %v1767
    %v2456 = vpack.c.b16 %v1784, %v1768
    %v2457 = vpack.c.b16 %v1785, %v1769
    %v2458 = vpack.c.b16 %v1786, %v1770
    %v2459 = vpack.c.b16 %v1787, %v1771
    %v2460 = vpack.c.b16 %v1788, %v1772
    %v2461 = vpack.c.b16 %v1789, %v1773
    %v2462 = vpack.c.b16 %v1790, %v1774
    %v2463 = vpack.c.b16 %v1791, %v1775
    %v2464 = vpack.c.b16 %v1792, %v1776
    %v2465 = vpack.c.b16 %v1793, %v1777
    %v2466 = vpack.c.b16 %v1794, %v1778
    %v2467 = vpack.c.b16 %v1795, %v1779
    %v2468 = vpack.c.b16 %v1812, %v1796
    %v2469 = vpack.c.b16 %v1813, %v1797
    %v2470 = vpack.c.b16 %v1814, %v1798
    %v2471 = vpack.c.b16 %v1815, %v1799
    %v2472 = vpack.c.b16 %v1816, %v1800
    %v2473 = vpack.c.b16 %v1817, %v1801
    %v2474 = vpack.c.b16 %v1818, %v1802
    %v2475 = vpack.c.b16 %v1819, %v1803
    %v2476 = vpack.c.b16 %v1820, %v1804
    %v2477 = vpack.c.b16 %v1821, %v1805
    %v2478 = vpack.c.b16 %v1822, %v1806
    %v2479 = vpack.c.b16 %v1823, %v1807
    %v2480 = vpack.c.b16 %v1824, %v1808
    %v2481 = vpack.c.b16 %v1825, %v1809
    %v2482 = vpack.c.b16 %v1826, %v1810
    %v2483 = vpack.c.b16 %v1827, %v1811
    %v2484 = vpack.c.b16 %v1844, %v1828
    %v2485 = vpack.c.b16 %v1845, %v1829
    %v2486 = vpack.c.b16 %v1846, %v1830
    %v2487 = vpack.c.b16 %v1847, %v1831
    %v2488 = vpack.c.b16 %v1848, %v1832
    %v2489 = vpack.c.b16 %v1849, %v1833
    %v2490 = vpack.c.b16 %v1850, %v1834
    %v2491 = vpack.c.b16 %v1851, %v1835
    %v2492 = vpack.c.b16 %v1852, %v1836
    %v2493 = vpack.c.b16 %v1853, %v1837
    %v2494 = vpack.c.b16 %v1854, %v1838
    %v2495 = vpack.c.b16 %v1855, %v1839
    %v2496 = vpack.c.b16 %v1856, %v1840
    %v2497 = vpack.c.b16 %v1857, %v1841
    %v2498 = vpack.c.b16 %v1858, %v1842
    %v2499 = vpack.c.b16 %v1859, %v1843
    %v2500 = vpack.c.b16 %v1876, %v1860
    %v2501 = vpack.c.b16 %v1877, %v1861
    %v2502 = vpack.c.b16 %v1878, %v1862
    %v2503 = vpack.c.b16 %v1879, %v1863
    %v2504 = vpack.c.b16 %v1880, %v1864
    %v2505 = vpack.c.b16 %v1881, %v1865
    %v2506 = vpack.c.b16 %v1882, %v1866
    %v2507 = vpack.c.b16 %v1883, %v1867
    %v2508 = vpack.c.b16 %v1884, %v1868
    %v2509 = vpack.c.b16 %v1885, %v1869
    %v2510 = vpack.c.b16 %v1886, %v1870
    %v2511 = vpack.c.b16 %v1887, %v1871
    %v2512 = vpack.c.b16 %v1888, %v1872
    %v2513 = vpack.c.b16 %v1889, %v1873
    %v2514 = vpack.c.b16 %v1890, %v1874
    %v2515 = vpack.c.b16 %v1891, %v1875
    %v2516 = vpack.c.b16 %v1908, %v1892
    %v2517 = vpack.c.b16 %v1909, %v1893
    %v2518 = vpack.c.b16 %v1910, %v1894
    %v2519 = vpack.c.b16 %v1911, %v1895
    %v2520 = vpack.c.b16 %v1912, %v1896
    %v2521 = vpack.c.b16 %v1913, %v1897
    %v2522 = vpack.c.b16 %v1914, %v1898
    %v2523 = vpack.c.b16 %v1915, %v1899
    %v2524 = vpack.c.b16 %v1916, %v1900
    %v2525 = vpack.c.b16 %v1917, %v1901
    %v2526 = vpack.c.b16 %v1918, %v1902
    %v2527 = vpack.c.b16 %v1919, %v1903
    %v2528 = vpack.c.b16 %v1920, %v1904
    %v2529 = vpack.c.b16 %v1921, %v1905
    %v2530 = vpack.c.b16 %v1922, %v1906
    %v2531 = vpack.c.b16 %v1923, %v1907
    %v2532 = vpack.c.b16 %v1940, %v1924
    %v2533 = vpack.c.b16 %v1941, %v1925
    %v2534 = vpack.c.b16 %v1942, %v1926
    %v2535 = vpack.c.b16 %v1943, %v1927
    %v2536 = vpack.c.b16 %v1944, %v1928
    %v2537 = vpack.c.b16 %v1945, %v1929
    %v2538 = vpack.c.b16 %v1946, %v1930
    %v2539 = vpack.c.b16 %v1947, %v1931
    %v2540 = vpack.c.b16 %v1948, %v1932
    %v2541 = vpack.c.b16 %v1949, %v1933
    %v2542 = vpack.c.b16 %v1950, %v1934
    %v2543 = vpack.c.b16 %v1951, %v1935
    %v2544 = vpack.c.b16 %v1952, %v1936
    %v2545 = vpack.c.b16 %v1953, %v1937
    %v2546 = vpack.c.b16 %v1954, %v1938
    %v2547 = vpack.c.b16 %v1955, %v1939
    %v2548 = vpack.c.b16 %v1972, %v1956
    %v2549 = vpack.c.b16 %v1973, %v1957
    %v2550 = vpack.c.b16 %v1974, %v1958
    %v2551 = vpack.c.b16 %v1975, %v1959
    %v2552 = vpack.c.b16 %v1976, %v1960
    %v2553 = vpack.c.b16 %v1977, %v1961
    %v2554 = vpack.c.b16 %v1978, %v1962
    %v2555 = vpack.c.b16 %v1979, %v1963
    %v2556 = vpack.c.b16 %v1980, %v1964
    %v2557 = vpack.c.b16 %v1981, %v1965
    %v2558 = vpack.c.b16 %v1982, %v1966
    %v2559 = vpack.c.b16 %v1983, %v1967
    %v2560 = vpack.c.b16 %v1984, %v1968
    %v2561 = vpack.c.b16 %v1985, %v1969
    %v2562 = vpack.c.b16 %v1986, %v1970
    %v2563 = vpack.c.b16 %v1987, %v1971
    %v2564 = vpack.c.b16 %v2004, %v1988
    %v2565 = vpack.c.b16 %v2005, %v1989
    %v2566 = vpack.c.b16 %v2006, %v1990
    %v2567 = vpack.c.b16 %v2007, %v1991
    %v2568 = vpack.c.b16 %v2008, %v1992
    %v2569 = vpack.c.b16 %v2009, %v1993
    %v2570 = vpack.c.b16 %v2010, %v1994
    %v2571 = vpack.c.b16 %v2011, %v1995
    %v2572 = vpack.c.b16 %v2012, %v1996
    %v2573 = vpack.c.b16 %v2013, %v1997
    %v2574 = vpack.c.b16 %v2014, %v1998
    %v2575 = vpack.c.b16 %v2015, %v1999
    %v2576 = vpack.c.b16 %v2016, %v2000
    %v2577 = vpack.c.b16 %v2017, %v2001
    %v2578 = vpack.c.b16 %v2018, %v2002
    %v2579 = vpack.c.b16 %v2019, %v2003
    %v2580 = vpack.c.b16 %v2036, %v2020
    %v2581 = vpack.c.b16 %v2037, %v2021
    %v2582 = vpack.c.b16 %v2038, %v2022
    %v2583 = vpack.c.b16 %v2039, %v2023
    %v2584 = vpack.c.b16 %v2040, %v2024
    %v2585 = vpack.c.b16 %v2041, %v2025
    %v2586 = vpack.c.b16 %v2042, %v2026
    %v2587 = vpack.c.b16 %v2043, %v2027
    %v2588 = vpack.c.b16 %v2044, %v2028
    %v2589 = vpack.c.b16 %v2045, %v2029
    %v2590 = vpack.c.b16 %v2046, %v2030
    %v2591 = vpack.c.b16 %v2047, %v2031
    %v2592 = vpack.c.b16 %v2048, %v2032
    %v2593 = vpack.c.b16 %v2049, %v2033
    %v2594 = vpack.c.b16 %v2050, %v2034
    %v2595 = vpack.c.b16 %v2051, %v2035
    %v2596 = vpack.c.b16 %v2068, %v2052
    %v2597 = vpack.c.b16 %v2069, %v2053
    %v2598 = vpack.c.b16 %v2070, %v2054
    %v2599 = vpack.c.b16 %v2071, %v2055
    %v2600 = vpack.c.b16 %v2072, %v2056
    %v2601 = vpack.c.b16 %v2073, %v2057
    %v2602 = vpack.c.b16 %v2074, %v2058
    %v2603 = vpack.c.b16 %v2075, %v2059
    %v2604 = vpack.c.b16 %v2076, %v2060
    %v2605 = vpack.c.b16 %v2077, %v2061
    %v2606 = vpack.c.b16 %v2078, %v2062
    %v2607 = vpack.c.b16 %v2079, %v2063
    %v2608 = vpack.c.b16 %v2080, %v2064
    %v2609 = vpack.c.b16 %v2081, %v2065
    %v2610 = vpack.c.b16 %v2082, %v2066
    %v2611 = vpack.c.b16 %v2083, %v2067
    %v2612 = vpack.c.b16 %v2100, %v2084
    %v2613 = vpack.c.b16 %v2101, %v2085
    %v2614 = vpack.c.b16 %v2102, %v2086
    %v2615 = vpack.c.b16 %v2103, %v2087
    %v2616 = vpack.c.b16 %v2104, %v2088
    %v2617 = vpack.c.b16 %v2105, %v2089
    %v2618 = vpack.c.b16 %v2106, %v2090
    %v2619 = vpack.c.b16 %v2107, %v2091
    %v2620 = vpack.c.b16 %v2108, %v2092
    %v2621 = vpack.c.b16 %v2109, %v2093
    %v2622 = vpack.c.b16 %v2110, %v2094
    %v2623 = vpack.c.b16 %v2111, %v2095
    %v2624 = vpack.c.b16 %v2112, %v2096
    %v2625 = vpack.c.b16 %v2113, %v2097
    %v2626 = vpack.c.b16 %v2114, %v2098
    %v2627 = vpack.c.b16 %v2115, %v2099
    %3140 = vmatprep.subr.bf16.mxu0 %v2117
    %3141 = vmatpush1.bf16.msra.mxu0 %v2116
    %3142 = vmatprep.subr.bf16.mxu0 %v2133
    %3143 = vmatpush1.bf16.msra.mxu0 %v2132
    %3144 = vmatprep.subr.bf16.mxu0 %v2149
    %3145 = vmatpush1.bf16.msra.mxu0 %v2148
    %3146 = vmatprep.subr.bf16.mxu0 %v2165
    %3147 = vmatpush1.bf16.msra.mxu0 %v2164
    %3148 = vmatprep.subr.bf16.mxu0 %v2181
    %3149 = vmatpush1.bf16.msra.mxu0 %v2180
    %3150 = vmatprep.subr.bf16.mxu0 %v2197
    %3151 = vmatpush1.bf16.msra.mxu0 %v2196
    %3152 = vmatprep.subr.bf16.mxu0 %v2213
    %3153 = vmatpush1.bf16.msra.mxu0 %v2212
    %3154 = vmatprep.subr.bf16.mxu0 %v2229
    %3155 = vmatpush1.bf16.msra.mxu0 %v2228
    %3156 = vmatprep.subr.bf16.mxu0 %v2245
    %3157 = vmatpush1.bf16.msra.mxu0 %v2244
    %3158 = vmatprep.subr.bf16.mxu0 %v2261
    %3159 = vmatpush1.bf16.msra.mxu0 %v2260
    %3160 = vmatprep.subr.bf16.mxu0 %v2277
    %3161 = vmatpush1.bf16.msra.mxu0 %v2276
    %3162 = vmatprep.subr.bf16.mxu0 %v2293
    %3163 = vmatpush1.bf16.msra.mxu0 %v2292
    %3164 = vmatprep.subr.bf16.mxu0 %v2309
    %3165 = vmatpush1.bf16.msra.mxu0 %v2308
    %3166 = vmatprep.subr.bf16.mxu0 %v2325
    %3167 = vmatpush1.bf16.msra.mxu0 %v2324
    %3168 = vmatprep.subr.bf16.mxu0 %v2341
    %3169 = vmatpush1.bf16.msra.mxu0 %v2340
    %3170 = vmatprep.subr.bf16.mxu0 %v2357
    %3171 = vmatpush1.bf16.msra.mxu0 %v2356
    %3172 = vmatprep.mubr.bf16.mxu0 %v65
    %3173 = vmatmul.mubr.bf16.gmra.mrb[0].mxu0 %v64
    %v3174 = vpop.f32.mrb[0].mxu0
    %v3175 = vadd.f32 0.0, %v3174
    %v3176 = vpop.f32.mrb[0].mxu0
    %v3177 = vadd.f32 0.0, %v3176
    %v3178 = vpop.f32.mrb[0].mxu0
    %v3179 = vadd.f32 0.0, %v3178
    %v3180 = vpop.f32.mrb[0].mxu0
    %v3181 = vadd.f32 0.0, %v3180
    %3182 = vdwg.mxu0
    %3183 = vmatprep.subr.bf16.mxu0 %v2373
    %3184 = vmatpush1.bf16.msra.mxu0 %v2372
    %3185 = vmatprep.subr.bf16.mxu0 %v2389
    %3186 = vmatpush1.bf16.msra.mxu0 %v2388
    %3187 = vmatprep.subr.bf16.mxu0 %v2405
    %3188 = vmatpush1.bf16.msra.mxu0 %v2404
    %3189 = vmatprep.subr.bf16.mxu0 %v2421
    %3190 = vmatpush1.bf16.msra.mxu0 %v2420
    %3191 = vmatprep.subr.bf16.mxu0 %v2437
    %3192 = vmatpush1.bf16.msra.mxu0 %v2436
    %3193 = vmatprep.subr.bf16.mxu0 %v2453
    %3194 = vmatpush1.bf16.msra.mxu0 %v2452
    %3195 = vmatprep.subr.bf16.mxu0 %v2469
    %3196 = vmatpush1.bf16.msra.mxu0 %v2468
    %3197 = vmatprep.subr.bf16.mxu0 %v2485
    %3198 = vmatpush1.bf16.msra.mxu0 %v2484
    %3199 = vmatprep.subr.bf16.mxu0 %v2501
    %3200 = vmatpush1.bf16.msra.mxu0 %v2500
    %3201 = vmatprep.subr.bf16.mxu0 %v2517
    %3202 = vmatpush1.bf16.msra.mxu0 %v2516
    %3203 = vmatprep.subr.bf16.mxu0 %v2533
    %3204 = vmatpush1.bf16.msra.mxu0 %v2532
    %3205 = vmatprep.subr.bf16.mxu0 %v2549
    %3206 = vmatpush1.bf16.msra.mxu0 %v2548
    %3207 = vmatprep.subr.bf16.mxu0 %v2565
    %3208 = vmatpush1.bf16.msra.mxu0 %v2564
    %3209 = vmatprep.subr.bf16.mxu0 %v2581
    %3210 = vmatpush1.bf16.msra.mxu0 %v2580
    %3211 = vmatprep.subr.bf16.mxu0 %v2597
    %3212 = vmatpush1.bf16.msra.mxu0 %v2596
    %3213 = vmatprep.subr.bf16.mxu0 %v2613
    %3214 = vmatpush1.bf16.msra.mxu0 %v2612
    %3215 = vmatprep.mubr.bf16.mxu0 %v67
    %3216 = vmatmul.mubr.bf16.gmra.mrb[0].mxu0 %v66
    %v3217 = vpop.f32.mrb[0].mxu0
    %v3218 = vadd.f32 %v3175, %v3217
    %v3219 = vpop.f32.mrb[0].mxu0
    %v3220 = vadd.f32 %v3177, %v3219
    %v3221 = vpop.f32.mrb[0].mxu0
    %v3222 = vadd.f32 %v3179, %v3221
    %v3223 = vpop.f32.mrb[0].mxu0
    %v3224 = vadd.f32 %v3181, %v3223
    %3225 = vdwg.mxu0
    %3226 = vmatprep.subr.bf16.mxu0 %v2119
    %3227 = vmatpush1.bf16.msra.mxu0 %v2118
    %3228 = vmatprep.subr.bf16.mxu0 %v2135
    %3229 = vmatpush1.bf16.msra.mxu0 %v2134
    %3230 = vmatprep.subr.bf16.mxu0 %v2151
    %3231 = vmatpush1.bf16.msra.mxu0 %v2150
    %3232 = vmatprep.subr.bf16.mxu0 %v2167
    %3233 = vmatpush1.bf16.msra.mxu0 %v2166
    %3234 = vmatprep.subr.bf16.mxu0 %v2183
    %3235 = vmatpush1.bf16.msra.mxu0 %v2182
    %3236 = vmatprep.subr.bf16.mxu0 %v2199
    %3237 = vmatpush1.bf16.msra.mxu0 %v2198
    %3238 = vmatprep.subr.bf16.mxu0 %v2215
    %3239 = vmatpush1.bf16.msra.mxu0 %v2214
    %3240 = vmatprep.subr.bf16.mxu0 %v2231
    %3241 = vmatpush1.bf16.msra.mxu0 %v2230
    %3242 = vmatprep.subr.bf16.mxu0 %v2247
    %3243 = vmatpush1.bf16.msra.mxu0 %v2246
    %3244 = vmatprep.subr.bf16.mxu0 %v2263
    %3245 = vmatpush1.bf16.msra.mxu0 %v2262
    %3246 = vmatprep.subr.bf16.mxu0 %v2279
    %3247 = vmatpush1.bf16.msra.mxu0 %v2278
    %3248 = vmatprep.subr.bf16.mxu0 %v2295
    %3249 = vmatpush1.bf16.msra.mxu0 %v2294
    %3250 = vmatprep.subr.bf16.mxu0 %v2311
    %3251 = vmatpush1.bf16.msra.mxu0 %v2310
    %3252 = vmatprep.subr.bf16.mxu0 %v2327
    %3253 = vmatpush1.bf16.msra.mxu0 %v2326
    %3254 = vmatprep.subr.bf16.mxu0 %v2343
    %3255 = vmatpush1.bf16.msra.mxu0 %v2342
    %3256 = vmatprep.subr.bf16.mxu0 %v2359
    %3257 = vmatpush1.bf16.msra.mxu0 %v2358
    %3258 = vmatprep.mubr.bf16.mxu0 %v65
    %3259 = vmatmul.mubr.bf16.gmra.mrb[0].mxu0 %v64
    %v3260 = vpop.f32.mrb[0].mxu0
    %v3261 = vadd.f32 0.0, %v3260
    %v3262 = vpop.f32.mrb[0].mxu0
    %v3263 = vadd.f32 0.0, %v3262
    %v3264 = vpop.f32.mrb[0].mxu0
    %v3265 = vadd.f32 0.0, %v3264
    %v3266 = vpop.f32.mrb[0].mxu0
    %v3267 = vadd.f32 0.0, %v3266
    %3268 = vdwg.mxu0
    %3269 = vmatprep.subr.bf16.mxu0 %v2375
    %3270 = vmatpush1.bf16.msra.mxu0 %v2374
    %3271 = vmatprep.subr.bf16.mxu0 %v2391
    %3272 = vmatpush1.bf16.msra.mxu0 %v2390
    %3273 = vmatprep.subr.bf16.mxu0 %v2407
    %3274 = vmatpush1.bf16.msra.mxu0 %v2406
    %3275 = vmatprep.subr.bf16.mxu0 %v2423
    %3276 = vmatpush1.bf16.msra.mxu0 %v2422
    %3277 = vmatprep.subr.bf16.mxu0 %v2439
    %3278 = vmatpush1.bf16.msra.mxu0 %v2438
    %3279 = vmatprep.subr.bf16.mxu0 %v2455
    %3280 = vmatpush1.bf16.msra.mxu0 %v2454
    %3281 = vmatprep.subr.bf16.mxu0 %v2471
    %3282 = vmatpush1.bf16.msra.mxu0 %v2470
    %3283 = vmatprep.subr.bf16.mxu0 %v2487
    %3284 = vmatpush1.bf16.msra.mxu0 %v2486
    %3285 = vmatprep.subr.bf16.mxu0 %v2503
    %3286 = vmatpush1.bf16.msra.mxu0 %v2502
    %3287 = vmatprep.subr.bf16.mxu0 %v2519
    %3288 = vmatpush1.bf16.msra.mxu0 %v2518
    %3289 = vmatprep.subr.bf16.mxu0 %v2535
    %3290 = vmatpush1.bf16.msra.mxu0 %v2534
    %3291 = vmatprep.subr.bf16.mxu0 %v2551
    %3292 = vmatpush1.bf16.msra.mxu0 %v2550
    %3293 = vmatprep.subr.bf16.mxu0 %v2567
    %3294 = vmatpush1.bf16.msra.mxu0 %v2566
    %3295 = vmatprep.subr.bf16.mxu0 %v2583
    %3296 = vmatpush1.bf16.msra.mxu0 %v2582
    %3297 = vmatprep.subr.bf16.mxu0 %v2599
    %3298 = vmatpush1.bf16.msra.mxu0 %v2598
    %3299 = vmatprep.subr.bf16.mxu0 %v2615
    %3300 = vmatpush1.bf16.msra.mxu0 %v2614
    %3301 = vmatprep.mubr.bf16.mxu0 %v67
    %3302 = vmatmul.mubr.bf16.gmra.mrb[0].mxu0 %v66
    %v3303 = vpop.f32.mrb[0].mxu0
    %v3304 = vadd.f32 %v3261, %v3303
    %v3305 = vpop.f32.mrb[0].mxu0
    %v3306 = vadd.f32 %v3263, %v3305
    %v3307 = vpop.f32.mrb[0].mxu0
    %v3308 = vadd.f32 %v3265, %v3307
    %v3309 = vpop.f32.mrb[0].mxu0
    %v3310 = vadd.f32 %v3267, %v3309
    %3311 = vdwg.mxu0
    %3312 = vmatprep.subr.bf16.mxu0 %v2121
    %3313 = vmatpush1.bf16.msra.mxu0 %v2120
    %3314 = vmatprep.subr.bf16.mxu0 %v2137
    %3315 = vmatpush1.bf16.msra.mxu0 %v2136
    %3316 = vmatprep.subr.bf16.mxu0 %v2153
    %3317 = vmatpush1.bf16.msra.mxu0 %v2152
    %3318 = vmatprep.subr.bf16.mxu0 %v2169
    %3319 = vmatpush1.bf16.msra.mxu0 %v2168
    %3320 = vmatprep.subr.bf16.mxu0 %v2185
    %3321 = vmatpush1.bf16.msra.mxu0 %v2184
    %3322 = vmatprep.subr.bf16.mxu0 %v2201
    %3323 = vmatpush1.bf16.msra.mxu0 %v2200
    %3324 = vmatprep.subr.bf16.mxu0 %v2217
    %3325 = vmatpush1.bf16.msra.mxu0 %v2216
    %3326 = vmatprep.subr.bf16.mxu0 %v2233
    %3327 = vmatpush1.bf16.msra.mxu0 %v2232
    %3328 = vmatprep.subr.bf16.mxu0 %v2249
    %3329 = vmatpush1.bf16.msra.mxu0 %v2248
    %3330 = vmatprep.subr.bf16.mxu0 %v2265
    %3331 = vmatpush1.bf16.msra.mxu0 %v2264
    %3332 = vmatprep.subr.bf16.mxu0 %v2281
    %3333 = vmatpush1.bf16.msra.mxu0 %v2280
    %3334 = vmatprep.subr.bf16.mxu0 %v2297
    %3335 = vmatpush1.bf16.msra.mxu0 %v2296
    %3336 = vmatprep.subr.bf16.mxu0 %v2313
    %3337 = vmatpush1.bf16.msra.mxu0 %v2312
    %3338 = vmatprep.subr.bf16.mxu0 %v2329
    %3339 = vmatpush1.bf16.msra.mxu0 %v2328
    %3340 = vmatprep.subr.bf16.mxu0 %v2345
    %3341 = vmatpush1.bf16.msra.mxu0 %v2344
    %3342 = vmatprep.subr.bf16.mxu0 %v2361
    %3343 = vmatpush1.bf16.msra.mxu0 %v2360
    %3344 = vmatprep.mubr.bf16.mxu0 %v65
    %3345 = vmatmul.mubr.bf16.gmra.mrb[0].mxu0 %v64
    %v3346 = vpop.f32.mrb[0].mxu0
    %v3347 = vadd.f32 0.0, %v3346
    %v3348 = vpop.f32.mrb[0].mxu0
    %v3349 = vadd.f32 0.0, %v3348
    %v3350 = vpop.f32.mrb[0].mxu0
    %v3351 = vadd.f32 0.0, %v3350
    %v3352 = vpop.f32.mrb[0].mxu0
    %v3353 = vadd.f32 0.0, %v3352
    %3354 = vdwg.mxu0
    %3355 = vmatprep.subr.bf16.mxu0 %v2377
    %3356 = vmatpush1.bf16.msra.mxu0 %v2376
    %3357 = vmatprep.subr.bf16.mxu0 %v2393
    %3358 = vmatpush1.bf16.msra.mxu0 %v2392
    %3359 = vmatprep.subr.bf16.mxu0 %v2409
    %3360 = vmatpush1.bf16.msra.mxu0 %v2408
    %3361 = vmatprep.subr.bf16.mxu0 %v2425
    %3362 = vmatpush1.bf16.msra.mxu0 %v2424
    %3363 = vmatprep.subr.bf16.mxu0 %v2441
    %3364 = vmatpush1.bf16.msra.mxu0 %v2440
    %3365 = vmatprep.subr.bf16.mxu0 %v2457
    %3366 = vmatpush1.bf16.msra.mxu0 %v2456
    %3367 = vmatprep.subr.bf16.mxu0 %v2473
    %3368 = vmatpush1.bf16.msra.mxu0 %v2472
    %3369 = vmatprep.subr.bf16.mxu0 %v2489
    %3370 = vmatpush1.bf16.msra.mxu0 %v2488
    %3371 = vmatprep.subr.bf16.mxu0 %v2505
    %3372 = vmatpush1.bf16.msra.mxu0 %v2504
    %3373 = vmatprep.subr.bf16.mxu0 %v2521
    %3374 = vmatpush1.bf16.msra.mxu0 %v2520
    %3375 = vmatprep.subr.bf16.mxu0 %v2537
    %3376 = vmatpush1.bf16.msra.mxu0 %v2536
    %3377 = vmatprep.subr.bf16.mxu0 %v2553
    %3378 = vmatpush1.bf16.msra.mxu0 %v2552
    %3379 = vmatprep.subr.bf16.mxu0 %v2569
    %3380 = vmatpush1.bf16.msra.mxu0 %v2568
    %3381 = vmatprep.subr.bf16.mxu0 %v2585
    %3382 = vmatpush1.bf16.msra.mxu0 %v2584
    %3383 = vmatprep.subr.bf16.mxu0 %v2601
    %3384 = vmatpush1.bf16.msra.mxu0 %v2600
    %3385 = vmatprep.subr.bf16.mxu0 %v2617
    %3386 = vmatpush1.bf16.msra.mxu0 %v2616
    %3387 = vmatprep.mubr.bf16.mxu0 %v67
    %3388 = vmatmul.mubr.bf16.gmra.mrb[0].mxu0 %v66
    %v3389 = vpop.f32.mrb[0].mxu0
    %v3390 = vadd.f32 %v3347, %v3389
    %v3391 = vpop.f32.mrb[0].mxu0
    %v3392 = vadd.f32 %v3349, %v3391
    %v3393 = vpop.f32.mrb[0].mxu0
    %v3394 = vadd.f32 %v3351, %v3393
    %v3395 = vpop.f32.mrb[0].mxu0
    %v3396 = vadd.f32 %v3353, %v3395
    %3397 = vdwg.mxu0
    %3398 = vmatprep.subr.bf16.mxu0 %v2123
    %3399 = vmatpush1.bf16.msra.mxu0 %v2122
    %3400 = vmatprep.subr.bf16.mxu0 %v2139
    %3401 = vmatpush1.bf16.msra.mxu0 %v2138
    %3402 = vmatprep.subr.bf16.mxu0 %v2155
    %3403 = vmatpush1.bf16.msra.mxu0 %v2154
    %3404 = vmatprep.subr.bf16.mxu0 %v2171
    %3405 = vmatpush1.bf16.msra.mxu0 %v2170
    %3406 = vmatprep.subr.bf16.mxu0 %v2187
    %3407 = vmatpush1.bf16.msra.mxu0 %v2186
    %3408 = vmatprep.subr.bf16.mxu0 %v2203
    %3409 = vmatpush1.bf16.msra.mxu0 %v2202
    %3410 = vmatprep.subr.bf16.mxu0 %v2219
    %3411 = vmatpush1.bf16.msra.mxu0 %v2218
    %3412 = vmatprep.subr.bf16.mxu0 %v2235
    %3413 = vmatpush1.bf16.msra.mxu0 %v2234
    %3414 = vmatprep.subr.bf16.mxu0 %v2251
    %3415 = vmatpush1.bf16.msra.mxu0 %v2250
    %3416 = vmatprep.subr.bf16.mxu0 %v2267
    %3417 = vmatpush1.bf16.msra.mxu0 %v2266
    %3418 = vmatprep.subr.bf16.mxu0 %v2283
    %3419 = vmatpush1.bf16.msra.mxu0 %v2282
    %3420 = vmatprep.subr.bf16.mxu0 %v2299
    %3421 = vmatpush1.bf16.msra.mxu0 %v2298
    %3422 = vmatprep.subr.bf16.mxu0 %v2315
    %3423 = vmatpush1.bf16.msra.mxu0 %v2314
    %3424 = vmatprep.subr.bf16.mxu0 %v2331
    %3425 = vmatpush1.bf16.msra.mxu0 %v2330
    %3426 = vmatprep.subr.bf16.mxu0 %v2347
    %3427 = vmatpush1.bf16.msra.mxu0 %v2346
    %3428 = vmatprep.subr.bf16.mxu0 %v2363
    %3429 = vmatpush1.bf16.msra.mxu0 %v2362
    %3430 = vmatprep.mubr.bf16.mxu0 %v65
    %3431 = vmatmul.mubr.bf16.gmra.mrb[0].mxu0 %v64
    %v3432 = vpop.f32.mrb[0].mxu0
    %v3433 = vadd.f32 0.0, %v3432
    %v3434 = vpop.f32.mrb[0].mxu0
    %v3435 = vadd.f32 0.0, %v3434
    %v3436 = vpop.f32.mrb[0].mxu0
    %v3437 = vadd.f32 0.0, %v3436
    %v3438 = vpop.f32.mrb[0].mxu0
    %v3439 = vadd.f32 0.0, %v3438
    %3440 = vdwg.mxu0
    %3441 = vmatprep.subr.bf16.mxu0 %v2379
    %3442 = vmatpush1.bf16.msra.mxu0 %v2378
    %3443 = vmatprep.subr.bf16.mxu0 %v2395
    %3444 = vmatpush1.bf16.msra.mxu0 %v2394
    %3445 = vmatprep.subr.bf16.mxu0 %v2411
    %3446 = vmatpush1.bf16.msra.mxu0 %v2410
    %3447 = vmatprep.subr.bf16.mxu0 %v2427
    %3448 = vmatpush1.bf16.msra.mxu0 %v2426
    %3449 = vmatprep.subr.bf16.mxu0 %v2443
    %3450 = vmatpush1.bf16.msra.mxu0 %v2442
    %3451 = vmatprep.subr.bf16.mxu0 %v2459
    %3452 = vmatpush1.bf16.msra.mxu0 %v2458
    %3453 = vmatprep.subr.bf16.mxu0 %v2475
    %3454 = vmatpush1.bf16.msra.mxu0 %v2474
    %3455 = vmatprep.subr.bf16.mxu0 %v2491
    %3456 = vmatpush1.bf16.msra.mxu0 %v2490
    %3457 = vmatprep.subr.bf16.mxu0 %v2507
    %3458 = vmatpush1.bf16.msra.mxu0 %v2506
    %3459 = vmatprep.subr.bf16.mxu0 %v2523
    %3460 = vmatpush1.bf16.msra.mxu0 %v2522
    %3461 = vmatprep.subr.bf16.mxu0 %v2539
    %3462 = vmatpush1.bf16.msra.mxu0 %v2538
    %3463 = vmatprep.subr.bf16.mxu0 %v2555
    %3464 = vmatpush1.bf16.msra.mxu0 %v2554
    %3465 = vmatprep.subr.bf16.mxu0 %v2571
    %3466 = vmatpush1.bf16.msra.mxu0 %v2570
    %3467 = vmatprep.subr.bf16.mxu0 %v2587
    %3468 = vmatpush1.bf16.msra.mxu0 %v2586
    %3469 = vmatprep.subr.bf16.mxu0 %v2603
    %3470 = vmatpush1.bf16.msra.mxu0 %v2602
    %3471 = vmatprep.subr.bf16.mxu0 %v2619
    %3472 = vmatpush1.bf16.msra.mxu0 %v2618
    %3473 = vmatprep.mubr.bf16.mxu0 %v67
    %3474 = vmatmul.mubr.bf16.gmra.mrb[0].mxu0 %v66
    %v3475 = vpop.f32.mrb[0].mxu0
    %v3476 = vadd.f32 %v3433, %v3475
    %v3477 = vpop.f32.mrb[0].mxu0
    %v3478 = vadd.f32 %v3435, %v3477
    %v3479 = vpop.f32.mrb[0].mxu0
    %v3480 = vadd.f32 %v3437, %v3479
    %v3481 = vpop.f32.mrb[0].mxu0
    %v3482 = vadd.f32 %v3439, %v3481
    %3483 = vdwg.mxu0
    %3484 = vmatprep.subr.bf16.mxu0 %v2125
    %3485 = vmatpush1.bf16.msra.mxu0 %v2124
    %3486 = vmatprep.subr.bf16.mxu0 %v2141
    %3487 = vmatpush1.bf16.msra.mxu0 %v2140
    %3488 = vmatprep.subr.bf16.mxu0 %v2157
    %3489 = vmatpush1.bf16.msra.mxu0 %v2156
    %3490 = vmatprep.subr.bf16.mxu0 %v2173
    %3491 = vmatpush1.bf16.msra.mxu0 %v2172
    %3492 = vmatprep.subr.bf16.mxu0 %v2189
    %3493 = vmatpush1.bf16.msra.mxu0 %v2188
    %3494 = vmatprep.subr.bf16.mxu0 %v2205
    %3495 = vmatpush1.bf16.msra.mxu0 %v2204
    %3496 = vmatprep.subr.bf16.mxu0 %v2221
    %3497 = vmatpush1.bf16.msra.mxu0 %v2220
    %3498 = vmatprep.subr.bf16.mxu0 %v2237
    %3499 = vmatpush1.bf16.msra.mxu0 %v2236
    %3500 = vmatprep.subr.bf16.mxu0 %v2253
    %3501 = vmatpush1.bf16.msra.mxu0 %v2252
    %3502 = vmatprep.subr.bf16.mxu0 %v2269
    %3503 = vmatpush1.bf16.msra.mxu0 %v2268
    %3504 = vmatprep.subr.bf16.mxu0 %v2285
    %3505 = vmatpush1.bf16.msra.mxu0 %v2284
    %3506 = vmatprep.subr.bf16.mxu0 %v2301
    %3507 = vmatpush1.bf16.msra.mxu0 %v2300
    %3508 = vmatprep.subr.bf16.mxu0 %v2317
    %3509 = vmatpush1.bf16.msra.mxu0 %v2316
    %3510 = vmatprep.subr.bf16.mxu0 %v2333
    %3511 = vmatpush1.bf16.msra.mxu0 %v2332
    %3512 = vmatprep.subr.bf16.mxu0 %v2349
    %3513 = vmatpush1.bf16.msra.mxu0 %v2348
    %3514 = vmatprep.subr.bf16.mxu0 %v2365
    %3515 = vmatpush1.bf16.msra.mxu0 %v2364
    %3516 = vmatprep.mubr.bf16.mxu0 %v65
    %3517 = vmatmul.mubr.bf16.gmra.mrb[0].mxu0 %v64
    %v3518 = vpop.f32.mrb[0].mxu0
    %v3519 = vadd.f32 0.0, %v3518
    %v3520 = vpop.f32.mrb[0].mxu0
    %v3521 = vadd.f32 0.0, %v3520
    %v3522 = vpop.f32.mrb[0].mxu0
    %v3523 = vadd.f32 0.0, %v3522
    %v3524 = vpop.f32.mrb[0].mxu0
    %v3525 = vadd.f32 0.0, %v3524
    %3526 = vdwg.mxu0
    %3527 = vmatprep.subr.bf16.mxu0 %v2381
    %3528 = vmatpush1.bf16.msra.mxu0 %v2380
    %3529 = vmatprep.subr.bf16.mxu0 %v2397
    %3530 = vmatpush1.bf16.msra.mxu0 %v2396
    %3531 = vmatprep.subr.bf16.mxu0 %v2413
    %3532 = vmatpush1.bf16.msra.mxu0 %v2412
    %3533 = vmatprep.subr.bf16.mxu0 %v2429
    %3534 = vmatpush1.bf16.msra.mxu0 %v2428
    %3535 = vmatprep.subr.bf16.mxu0 %v2445
    %3536 = vmatpush1.bf16.msra.mxu0 %v2444
    %3537 = vmatprep.subr.bf16.mxu0 %v2461
    %3538 = vmatpush1.bf16.msra.mxu0 %v2460
    %3539 = vmatprep.subr.bf16.mxu0 %v2477
    %3540 = vmatpush1.bf16.msra.mxu0 %v2476
    %3541 = vmatprep.subr.bf16.mxu0 %v2493
    %3542 = vmatpush1.bf16.msra.mxu0 %v2492
    %3543 = vmatprep.subr.bf16.mxu0 %v2509
    %3544 = vmatpush1.bf16.msra.mxu0 %v2508
    %3545 = vmatprep.subr.bf16.mxu0 %v2525
    %3546 = vmatpush1.bf16.msra.mxu0 %v2524
    %3547 = vmatprep.subr.bf16.mxu0 %v2541
    %3548 = vmatpush1.bf16.msra.mxu0 %v2540
    %3549 = vmatprep.subr.bf16.mxu0 %v2557
    %3550 = vmatpush1.bf16.msra.mxu0 %v2556
    %3551 = vmatprep.subr.bf16.mxu0 %v2573
    %3552 = vmatpush1.bf16.msra.mxu0 %v2572
    %3553 = vmatprep.subr.bf16.mxu0 %v2589
    %3554 = vmatpush1.bf16.msra.mxu0 %v2588
    %3555 = vmatprep.subr.bf16.mxu0 %v2605
    %3556 = vmatpush1.bf16.msra.mxu0 %v2604
    %3557 = vmatprep.subr.bf16.mxu0 %v2621
    %3558 = vmatpush1.bf16.msra.mxu0 %v2620
    %3559 = vmatprep.mubr.bf16.mxu0 %v67
    %3560 = vmatmul.mubr.bf16.gmra.mrb[0].mxu0 %v66
    %v3561 = vpop.f32.mrb[0].mxu0
    %v3562 = vadd.f32 %v3519, %v3561
    %v3563 = vpop.f32.mrb[0].mxu0
    %v3564 = vadd.f32 %v3521, %v3563
    %v3565 = vpop.f32.mrb[0].mxu0
    %v3566 = vadd.f32 %v3523, %v3565
    %v3567 = vpop.f32.mrb[0].mxu0
    %v3568 = vadd.f32 %v3525, %v3567
    %3569 = vdwg.mxu0
    %3570 = vmatprep.subr.bf16.mxu0 %v2127
    %3571 = vmatpush1.bf16.msra.mxu0 %v2126
    %3572 = vmatprep.subr.bf16.mxu0 %v2143
    %3573 = vmatpush1.bf16.msra.mxu0 %v2142
    %3574 = vmatprep.subr.bf16.mxu0 %v2159
    %3575 = vmatpush1.bf16.msra.mxu0 %v2158
    %3576 = vmatprep.subr.bf16.mxu0 %v2175
    %3577 = vmatpush1.bf16.msra.mxu0 %v2174
    %3578 = vmatprep.subr.bf16.mxu0 %v2191
    %3579 = vmatpush1.bf16.msra.mxu0 %v2190
    %3580 = vmatprep.subr.bf16.mxu0 %v2207
    %3581 = vmatpush1.bf16.msra.mxu0 %v2206
    %3582 = vmatprep.subr.bf16.mxu0 %v2223
    %3583 = vmatpush1.bf16.msra.mxu0 %v2222
    %3584 = vmatprep.subr.bf16.mxu0 %v2239
    %3585 = vmatpush1.bf16.msra.mxu0 %v2238
    %3586 = vmatprep.subr.bf16.mxu0 %v2255
    %3587 = vmatpush1.bf16.msra.mxu0 %v2254
    %3588 = vmatprep.subr.bf16.mxu0 %v2271
    %3589 = vmatpush1.bf16.msra.mxu0 %v2270
    %3590 = vmatprep.subr.bf16.mxu0 %v2287
    %3591 = vmatpush1.bf16.msra.mxu0 %v2286
    %3592 = vmatprep.subr.bf16.mxu0 %v2303
    %3593 = vmatpush1.bf16.msra.mxu0 %v2302
    %3594 = vmatprep.subr.bf16.mxu0 %v2319
    %3595 = vmatpush1.bf16.msra.mxu0 %v2318
    %3596 = vmatprep.subr.bf16.mxu0 %v2335
    %3597 = vmatpush1.bf16.msra.mxu0 %v2334
    %3598 = vmatprep.subr.bf16.mxu0 %v2351
    %3599 = vmatpush1.bf16.msra.mxu0 %v2350
    %3600 = vmatprep.subr.bf16.mxu0 %v2367
    %3601 = vmatpush1.bf16.msra.mxu0 %v2366
    %3602 = vmatprep.mubr.bf16.mxu0 %v65
    %3603 = vmatmul.mubr.bf16.gmra.mrb[0].mxu0 %v64
    %v3604 = vpop.f32.mrb[0].mxu0
    %v3605 = vadd.f32 0.0, %v3604
    %v3606 = vpop.f32.mrb[0].mxu0
    %v3607 = vadd.f32 0.0, %v3606
    %v3608 = vpop.f32.mrb[0].mxu0
    %v3609 = vadd.f32 0.0, %v3608
    %v3610 = vpop.f32.mrb[0].mxu0
    %v3611 = vadd.f32 0.0, %v3610
    %3612 = vdwg.mxu0
    %3613 = vmatprep.subr.bf16.mxu0 %v2383
    %3614 = vmatpush1.bf16.msra.mxu0 %v2382
    %3615 = vmatprep.subr.bf16.mxu0 %v2399
    %3616 = vmatpush1.bf16.msra.mxu0 %v2398
    %3617 = vmatprep.subr.bf16.mxu0 %v2415
    %3618 = vmatpush1.bf16.msra.mxu0 %v2414
    %3619 = vmatprep.subr.bf16.mxu0 %v2431
    %3620 = vmatpush1.bf16.msra.mxu0 %v2430
    %3621 = vmatprep.subr.bf16.mxu0 %v2447
    %3622 = vmatpush1.bf16.msra.mxu0 %v2446
    %3623 = vmatprep.subr.bf16.mxu0 %v2463
    %3624 = vmatpush1.bf16.msra.mxu0 %v2462
    %3625 = vmatprep.subr.bf16.mxu0 %v2479
    %3626 = vmatpush1.bf16.msra.mxu0 %v2478
    %3627 = vmatprep.subr.bf16.mxu0 %v2495
    %3628 = vmatpush1.bf16.msra.mxu0 %v2494
    %3629 = vmatprep.subr.bf16.mxu0 %v2511
    %3630 = vmatpush1.bf16.msra.mxu0 %v2510
    %3631 = vmatprep.subr.bf16.mxu0 %v2527
    %3632 = vmatpush1.bf16.msra.mxu0 %v2526
    %3633 = vmatprep.subr.bf16.mxu0 %v2543
    %3634 = vmatpush1.bf16.msra.mxu0 %v2542
    %3635 = vmatprep.subr.bf16.mxu0 %v2559
    %3636 = vmatpush1.bf16.msra.mxu0 %v2558
    %3637 = vmatprep.subr.bf16.mxu0 %v2575
    %3638 = vmatpush1.bf16.msra.mxu0 %v2574
    %3639 = vmatprep.subr.bf16.mxu0 %v2591
    %3640 = vmatpush1.bf16.msra.mxu0 %v2590
    %3641 = vmatprep.subr.bf16.mxu0 %v2607
    %3642 = vmatpush1.bf16.msra.mxu0 %v2606
    %3643 = vmatprep.subr.bf16.mxu0 %v2623
    %3644 = vmatpush1.bf16.msra.mxu0 %v2622
    %3645 = vmatprep.mubr.bf16.mxu0 %v67
    %3646 = vmatmul.mubr.bf16.gmra.mrb[0].mxu0 %v66
    %v3647 = vpop.f32.mrb[0].mxu0
    %v3648 = vadd.f32 %v3605, %v3647
    %v3649 = vpop.f32.mrb[0].mxu0
    %v3650 = vadd.f32 %v3607, %v3649
    %v3651 = vpop.f32.mrb[0].mxu0
    %v3652 = vadd.f32 %v3609, %v3651
    %v3653 = vpop.f32.mrb[0].mxu0
    %v3654 = vadd.f32 %v3611, %v3653
    %3655 = vdwg.mxu0
    %3656 = vmatprep.subr.bf16.mxu0 %v2129
    %3657 = vmatpush1.bf16.msra.mxu0 %v2128
    %3658 = vmatprep.subr.bf16.mxu0 %v2145
    %3659 = vmatpush1.bf16.msra.mxu0 %v2144
    %3660 = vmatprep.subr.bf16.mxu0 %v2161
    %3661 = vmatpush1.bf16.msra.mxu0 %v2160
    %3662 = vmatprep.subr.bf16.mxu0 %v2177
    %3663 = vmatpush1.bf16.msra.mxu0 %v2176
    %3664 = vmatprep.subr.bf16.mxu0 %v2193
    %3665 = vmatpush1.bf16.msra.mxu0 %v2192
    %3666 = vmatprep.subr.bf16.mxu0 %v2209
    %3667 = vmatpush1.bf16.msra.mxu0 %v2208
    %3668 = vmatprep.subr.bf16.mxu0 %v2225
    %3669 = vmatpush1.bf16.msra.mxu0 %v2224
    %3670 = vmatprep.subr.bf16.mxu0 %v2241
    %3671 = vmatpush1.bf16.msra.mxu0 %v2240
    %3672 = vmatprep.subr.bf16.mxu0 %v2257
    %3673 = vmatpush1.bf16.msra.mxu0 %v2256
    %3674 = vmatprep.subr.bf16.mxu0 %v2273
    %3675 = vmatpush1.bf16.msra.mxu0 %v2272
    %3676 = vmatprep.subr.bf16.mxu0 %v2289
    %3677 = vmatpush1.bf16.msra.mxu0 %v2288
    %3678 = vmatprep.subr.bf16.mxu0 %v2305
    %3679 = vmatpush1.bf16.msra.mxu0 %v2304
    %3680 = vmatprep.subr.bf16.mxu0 %v2321
    %3681 = vmatpush1.bf16.msra.mxu0 %v2320
    %3682 = vmatprep.subr.bf16.mxu0 %v2337
    %3683 = vmatpush1.bf16.msra.mxu0 %v2336
    %3684 = vmatprep.subr.bf16.mxu0 %v2353
    %3685 = vmatpush1.bf16.msra.mxu0 %v2352
    %3686 = vmatprep.subr.bf16.mxu0 %v2369
    %3687 = vmatpush1.bf16.msra.mxu0 %v2368
    %3688 = vmatprep.mubr.bf16.mxu0 %v65
    %3689 = vmatmul.mubr.bf16.gmra.mrb[0].mxu0 %v64
    %v3690 = vpop.f32.mrb[0].mxu0
    %v3691 = vadd.f32 0.0, %v3690
    %v3692 = vpop.f32.mrb[0].mxu0
    %v3693 = vadd.f32 0.0, %v3692
    %v3694 = vpop.f32.mrb[0].mxu0
    %v3695 = vadd.f32 0.0, %v3694
    %v3696 = vpop.f32.mrb[0].mxu0
    %v3697 = vadd.f32 0.0, %v3696
    %3698 = vdwg.mxu0
    %3699 = vmatprep.subr.bf16.mxu0 %v2385
    %3700 = vmatpush1.bf16.msra.mxu0 %v2384
    %3701 = vmatprep.subr.bf16.mxu0 %v2401
    %3702 = vmatpush1.bf16.msra.mxu0 %v2400
    %3703 = vmatprep.subr.bf16.mxu0 %v2417
    %3704 = vmatpush1.bf16.msra.mxu0 %v2416
    %3705 = vmatprep.subr.bf16.mxu0 %v2433
    %3706 = vmatpush1.bf16.msra.mxu0 %v2432
    %3707 = vmatprep.subr.bf16.mxu0 %v2449
    %3708 = vmatpush1.bf16.msra.mxu0 %v2448
    %3709 = vmatprep.subr.bf16.mxu0 %v2465
    %3710 = vmatpush1.bf16.msra.mxu0 %v2464
    %3711 = vmatprep.subr.bf16.mxu0 %v2481
    %3712 = vmatpush1.bf16.msra.mxu0 %v2480
    %3713 = vmatprep.subr.bf16.mxu0 %v2497
    %3714 = vmatpush1.bf16.msra.mxu0 %v2496
    %3715 = vmatprep.subr.bf16.mxu0 %v2513
    %3716 = vmatpush1.bf16.msra.mxu0 %v2512
    %3717 = vmatprep.subr.bf16.mxu0 %v2529
    %3718 = vmatpush1.bf16.msra.mxu0 %v2528
    %3719 = vmatprep.subr.bf16.mxu0 %v2545
    %3720 = vmatpush1.bf16.msra.mxu0 %v2544
    %3721 = vmatprep.subr.bf16.mxu0 %v2561
    %3722 = vmatpush1.bf16.msra.mxu0 %v2560
    %3723 = vmatprep.subr.bf16.mxu0 %v2577
    %3724 = vmatpush1.bf16.msra.mxu0 %v2576
    %3725 = vmatprep.subr.bf16.mxu0 %v2593
    %3726 = vmatpush1.bf16.msra.mxu0 %v2592
    %3727 = vmatprep.subr.bf16.mxu0 %v2609
    %3728 = vmatpush1.bf16.msra.mxu0 %v2608
    %3729 = vmatprep.subr.bf16.mxu0 %v2625
    %3730 = vmatpush1.bf16.msra.mxu0 %v2624
    %3731 = vmatprep.mubr.bf16.mxu0 %v67
    %3732 = vmatmul.mubr.bf16.gmra.mrb[0].mxu0 %v66
    %v3733 = vpop.f32.mrb[0].mxu0
    %v3734 = vadd.f32 %v3691, %v3733
    %v3735 = vpop.f32.mrb[0].mxu0
    %v3736 = vadd.f32 %v3693, %v3735
    %v3737 = vpop.f32.mrb[0].mxu0
    %v3738 = vadd.f32 %v3695, %v3737
    %v3739 = vpop.f32.mrb[0].mxu0
    %v3740 = vadd.f32 %v3697, %v3739
    %3741 = vdwg.mxu0
    %3742 = vmatprep.subr.bf16.mxu0 %v2131
    %3743 = vmatpush1.bf16.msra.mxu0 %v2130
    %3744 = vmatprep.subr.bf16.mxu0 %v2147
    %3745 = vmatpush1.bf16.msra.mxu0 %v2146
    %3746 = vmatprep.subr.bf16.mxu0 %v2163
    %3747 = vmatpush1.bf16.msra.mxu0 %v2162
    %3748 = vmatprep.subr.bf16.mxu0 %v2179
    %3749 = vmatpush1.bf16.msra.mxu0 %v2178
    %3750 = vmatprep.subr.bf16.mxu0 %v2195
    %3751 = vmatpush1.bf16.msra.mxu0 %v2194
    %3752 = vmatprep.subr.bf16.mxu0 %v2211
    %3753 = vmatpush1.bf16.msra.mxu0 %v2210
    %3754 = vmatprep.subr.bf16.mxu0 %v2227
    %3755 = vmatpush1.bf16.msra.mxu0 %v2226
    %3756 = vmatprep.subr.bf16.mxu0 %v2243
    %3757 = vmatpush1.bf16.msra.mxu0 %v2242
    %3758 = vmatprep.subr.bf16.mxu0 %v2259
    %3759 = vmatpush1.bf16.msra.mxu0 %v2258
    %3760 = vmatprep.subr.bf16.mxu0 %v2275
    %3761 = vmatpush1.bf16.msra.mxu0 %v2274
    %3762 = vmatprep.subr.bf16.mxu0 %v2291
    %3763 = vmatpush1.bf16.msra.mxu0 %v2290
    %3764 = vmatprep.subr.bf16.mxu0 %v2307
    %3765 = vmatpush1.bf16.msra.mxu0 %v2306
    %3766 = vmatprep.subr.bf16.mxu0 %v2323
    %3767 = vmatpush1.bf16.msra.mxu0 %v2322
    %3768 = vmatprep.subr.bf16.mxu0 %v2339
    %3769 = vmatpush1.bf16.msra.mxu0 %v2338
    %3770 = vmatprep.subr.bf16.mxu0 %v2355
    %3771 = vmatpush1.bf16.msra.mxu0 %v2354
    %3772 = vmatprep.subr.bf16.mxu0 %v2371
    %3773 = vmatpush1.bf16.msra.mxu0 %v2370
    %3774 = vmatprep.mubr.bf16.mxu0 %v65
    %3775 = vmatmul.mubr.bf16.gmra.mrb[0].mxu0 %v64
    %v3776 = vpop.f32.mrb[0].mxu0
    %v3777 = vadd.f32 0.0, %v3776
    %v3778 = vpop.f32.mrb[0].mxu0
    %v3779 = vadd.f32 0.0, %v3778
    %v3780 = vpop.f32.mrb[0].mxu0
    %v3781 = vadd.f32 0.0, %v3780
    %v3782 = vpop.f32.mrb[0].mxu0
    %v3783 = vadd.f32 0.0, %v3782
    %3784 = vdwg.mxu0
    %3785 = vmatprep.subr.bf16.mxu0 %v2387
    %3786 = vmatpush1.bf16.msra.mxu0 %v2386
    %3787 = vmatprep.subr.bf16.mxu0 %v2403
    %3788 = vmatpush1.bf16.msra.mxu0 %v2402
    %3789 = vmatprep.subr.bf16.mxu0 %v2419
    %3790 = vmatpush1.bf16.msra.mxu0 %v2418
    %3791 = vmatprep.subr.bf16.mxu0 %v2435
    %3792 = vmatpush1.bf16.msra.mxu0 %v2434
    %3793 = vmatprep.subr.bf16.mxu0 %v2451
    %3794 = vmatpush1.bf16.msra.mxu0 %v2450
    %3795 = vmatprep.subr.bf16.mxu0 %v2467
    %3796 = vmatpush1.bf16.msra.mxu0 %v2466
    %3797 = vmatprep.subr.bf16.mxu0 %v2483
    %3798 = vmatpush1.bf16.msra.mxu0 %v2482
    %3799 = vmatprep.subr.bf16.mxu0 %v2499
    %3800 = vmatpush1.bf16.msra.mxu0 %v2498
    %3801 = vmatprep.subr.bf16.mxu0 %v2515
    %3802 = vmatpush1.bf16.msra.mxu0 %v2514
    %3803 = vmatprep.subr.bf16.mxu0 %v2531
    %3804 = vmatpush1.bf16.msra.mxu0 %v2530
    %3805 = vmatprep.subr.bf16.mxu0 %v2547
    %3806 = vmatpush1.bf16.msra.mxu0 %v2546
    %3807 = vmatprep.subr.bf16.mxu0 %v2563
    %3808 = vmatpush1.bf16.msra.mxu0 %v2562
    %3809 = vmatprep.subr.bf16.mxu0 %v2579
    %3810 = vmatpush1.bf16.msra.mxu0 %v2578
    %3811 = vmatprep.subr.bf16.mxu0 %v2595
    %3812 = vmatpush1.bf16.msra.mxu0 %v2594
    %3813 = vmatprep.subr.bf16.mxu0 %v2611
    %3814 = vmatpush1.bf16.msra.mxu0 %v2610
    %3815 = vmatprep.subr.bf16.mxu0 %v2627
    %3816 = vmatpush1.bf16.msra.mxu0 %v2626
    %3817 = vmatprep.mubr.bf16.mxu0 %v67
    %3818 = vmatmul.mubr.bf16.gmra.mrb[0].mxu0 %v66
    %v3819 = vpop.f32.mrb[0].mxu0
    %v3820 = vadd.f32 %v3777, %v3819
    %v3821 = vpop.f32.mrb[0].mxu0
    %v3822 = vadd.f32 %v3779, %v3821
    %v3823 = vpop.f32.mrb[0].mxu0
    %v3824 = vadd.f32 %v3781, %v3823
    %v3825 = vpop.f32.mrb[0].mxu0
    %v3826 = vadd.f32 %v3783, %v3825
    %3827 = vdwg.mxu0
    %v3828 = vmax.f32 %v3218, 0.0
    %v3829 = vmax.f32 %v3220, 0.0
    %v3830 = vmax.f32 %v3304, 0.0
    %v3831 = vmax.f32 %v3306, 0.0
    %v3832 = vmax.f32 %v3390, 0.0
    %v3833 = vmax.f32 %v3392, 0.0
    %v3834 = vmax.f32 %v3476, 0.0
    %v3835 = vmax.f32 %v3478, 0.0
    %v3836 = vmax.f32 %v3562, 0.0
    %v3837 = vmax.f32 %v3564, 0.0
    %v3838 = vmax.f32 %v3648, 0.0
    %v3839 = vmax.f32 %v3650, 0.0
    %v3840 = vmax.f32 %v3734, 0.0
    %v3841 = vmax.f32 %v3736, 0.0
    %v3842 = vmax.f32 %v3820, 0.0
    %v3843 = vmax.f32 %v3822, 0.0
    %v3844 = vmax.f32 %v3222, 0.0
    %v3845 = vmax.f32 %v3224, 0.0
    %v3846 = vmax.f32 %v3308, 0.0
    %v3847 = vmax.f32 %v3310, 0.0
    %v3848 = vmax.f32 %v3394, 0.0
    %v3849 = vmax.f32 %v3396, 0.0
    %v3850 = vmax.f32 %v3480, 0.0
    %v3851 = vmax.f32 %v3482, 0.0
    %v3852 = vmax.f32 %v3566, 0.0
    %v3853 = vmax.f32 %v3568, 0.0
    %v3854 = vmax.f32 %v3652, 0.0
    %v3855 = vmax.f32 %v3654, 0.0
    %v3856 = vmax.f32 %v3738, 0.0
    %v3857 = vmax.f32 %v3740, 0.0
    %v3858 = vmax.f32 %v3824, 0.0
    %v3859 = vmax.f32 %v3826, 0.0
    %v3860 = vpack.c.bf16 %v3844, %v3828
    %v3861 = vpack.c.bf16 %v3845, %v3829
    %v3862 = vpack.c.bf16 %v3846, %v3830
    %v3863 = vpack.c.bf16 %v3847, %v3831
    %v3864 = vpack.c.bf16 %v3848, %v3832
    %v3865 = vpack.c.bf16 %v3849, %v3833
    %v3866 = vpack.c.bf16 %v3850, %v3834
    %v3867 = vpack.c.bf16 %v3851, %v3835
    %v3868 = vpack.c.bf16 %v3852, %v3836
    %v3869 = vpack.c.bf16 %v3853, %v3837
    %v3870 = vpack.c.bf16 %v3854, %v3838
    %v3871 = vpack.c.bf16 %v3855, %v3839
    %v3872 = vpack.c.bf16 %v3856, %v3840
    %v3873 = vpack.c.bf16 %v3857, %v3841
    %v3874 = vpack.c.bf16 %v3858, %v3842
    %v3875 = vpack.c.bf16 %v3859, %v3843
    %v3876 = vld [vmem:[#allocation7] sm:$0xff]
    %v3877 = vld [vmem:[#allocation7 + $0x8] sm:$0xff]
    %v3878 = vld [vmem:[#allocation7 + $0x10] sm:$0xff]
    %v3879 = vld [vmem:[#allocation7 + $0x18] sm:$0xff]
    %v3880 = vld [vmem:[#allocation7 + $0x20] sm:$0xff]
    %v3881 = vld [vmem:[#allocation7 + $0x28] sm:$0xff]
    %v3882 = vld [vmem:[#allocation7 + $0x30] sm:$0xff]
    %v3883 = vld [vmem:[#allocation7 + $0x38] sm:$0xff]
    %v3884 = vld [vmem:[#allocation7 + $0x40] sm:$0xff]
    %v3885 = vld [vmem:[#allocation7 + $0x48] sm:$0xff]
    %v3886 = vld [vmem:[#allocation7 + $0x50] sm:$0xff]
    %v3887 = vld [vmem:[#allocation7 + $0x58] sm:$0xff]
    %v3888 = vld [vmem:[#allocation7 + $0x60] sm:$0xff]
    %v3889 = vld [vmem:[#allocation7 + $0x68] sm:$0xff]
    %v3890 = vld [vmem:[#allocation7 + $0x70] sm:$0xff]
    %v3891 = vld [vmem:[#allocation7 + $0x78] sm:$0xff]
    %v3892 = vld [vmem:[#allocation7 + $0x80] sm:$0xff]
    %v3893 = vld [vmem:[#allocation7 + $0x88] sm:$0xff]
    %v3894 = vld [vmem:[#allocation7 + $0x90] sm:$0xff]
    %v3895 = vld [vmem:[#allocation7 + $0x98] sm:$0xff]
    %v3896 = vld [vmem:[#allocation7 + $0xa0] sm:$0xff]
    %v3897 = vld [vmem:[#allocation7 + $0xa8] sm:$0xff]
    %v3898 = vld [vmem:[#allocation7 + $0xb0] sm:$0xff]
    %v3899 = vld [vmem:[#allocation7 + $0xb8] sm:$0xff]
    %v3900 = vld [vmem:[#allocation7 + $0xc0] sm:$0xff]
    %v3901 = vld [vmem:[#allocation7 + $0xc8] sm:$0xff]
    %v3902 = vld [vmem:[#allocation7 + $0xd0] sm:$0xff]
    %v3903 = vld [vmem:[#allocation7 + $0xd8] sm:$0xff]
    %v3904 = vld [vmem:[#allocation7 + $0xe0] sm:$0xff]
    %v3905 = vld [vmem:[#allocation7 + $0xe8] sm:$0xff]
    %v3906 = vld [vmem:[#allocation7 + $0xf0] sm:$0xff]
    %v3907 = vld [vmem:[#allocation7 + $0xf8] sm:$0xff]
    %v3908 = vld [vmem:[#allocation7 + $0x100] sm:$0xff]
    %v3909 = vld [vmem:[#allocation7 + $0x108] sm:$0xff]
    %v3910 = vld [vmem:[#allocation7 + $0x110] sm:$0xff]
    %v3911 = vld [vmem:[#allocation7 + $0x118] sm:$0xff]
    %v3912 = vld [vmem:[#allocation7 + $0x120] sm:$0xff]
    %v3913 = vld [vmem:[#allocation7 + $0x128] sm:$0xff]
    %v3914 = vld [vmem:[#allocation7 + $0x130] sm:$0xff]
    %v3915 = vld [vmem:[#allocation7 + $0x138] sm:$0xff]
    %v3916 = vld [vmem:[#allocation7 + $0x140] sm:$0xff]
    %v3917 = vld [vmem:[#allocation7 + $0x148] sm:$0xff]
    %v3918 = vld [vmem:[#allocation7 + $0x150] sm:$0xff]
    %v3919 = vld [vmem:[#allocation7 + $0x158] sm:$0xff]
    %v3920 = vld [vmem:[#allocation7 + $0x160] sm:$0xff]
    %v3921 = vld [vmem:[#allocation7 + $0x168] sm:$0xff]
    %v3922 = vld [vmem:[#allocation7 + $0x170] sm:$0xff]
    %v3923 = vld [vmem:[#allocation7 + $0x178] sm:$0xff]
    %v3924 = vld [vmem:[#allocation7 + $0x180] sm:$0xff]
    %v3925 = vld [vmem:[#allocation7 + $0x188] sm:$0xff]
    %v3926 = vld [vmem:[#allocation7 + $0x190] sm:$0xff]
    %v3927 = vld [vmem:[#allocation7 + $0x198] sm:$0xff]
    %v3928 = vld [vmem:[#allocation7 + $0x1a0] sm:$0xff]
    %v3929 = vld [vmem:[#allocation7 + $0x1a8] sm:$0xff]
    %v3930 = vld [vmem:[#allocation7 + $0x1b0] sm:$0xff]
    %v3931 = vld [vmem:[#allocation7 + $0x1b8] sm:$0xff]
    %v3932 = vld [vmem:[#allocation7 + $0x1c0] sm:$0xff]
    %v3933 = vld [vmem:[#allocation7 + $0x1c8] sm:$0xff]
    %v3934 = vld [vmem:[#allocation7 + $0x1d0] sm:$0xff]
    %v3935 = vld [vmem:[#allocation7 + $0x1d8] sm:$0xff]
    %v3936 = vld [vmem:[#allocation7 + $0x1e0] sm:$0xff]
    %v3937 = vld [vmem:[#allocation7 + $0x1e8] sm:$0xff]
    %v3938 = vld [vmem:[#allocation7 + $0x1f0] sm:$0xff]
    %v3939 = vld [vmem:[#allocation7 + $0x1f8] sm:$0xff]
    %v3940 = vld [vmem:[#allocation7 + $0x200] sm:$0xff]
    %v3941 = vld [vmem:[#allocation7 + $0x208] sm:$0xff]
    %v3942 = vld [vmem:[#allocation7 + $0x210] sm:$0xff]
    %v3943 = vld [vmem:[#allocation7 + $0x218] sm:$0xff]
    %v3944 = vld [vmem:[#allocation7 + $0x220] sm:$0xff]
    %v3945 = vld [vmem:[#allocation7 + $0x228] sm:$0xff]
    %v3946 = vld [vmem:[#allocation7 + $0x230] sm:$0xff]
    %v3947 = vld [vmem:[#allocation7 + $0x238] sm:$0xff]
    %v3948 = vld [vmem:[#allocation7 + $0x240] sm:$0xff]
    %v3949 = vld [vmem:[#allocation7 + $0x248] sm:$0xff]
    %v3950 = vld [vmem:[#allocation7 + $0x250] sm:$0xff]
    %v3951 = vld [vmem:[#allocation7 + $0x258] sm:$0xff]
    %v3952 = vld [vmem:[#allocation7 + $0x260] sm:$0xff]
    %v3953 = vld [vmem:[#allocation7 + $0x268] sm:$0xff]
    %v3954 = vld [vmem:[#allocation7 + $0x270] sm:$0xff]
    %v3955 = vld [vmem:[#allocation7 + $0x278] sm:$0xff]
    %v3956 = vld [vmem:[#allocation7 + $0x280] sm:$0xff]
    %v3957 = vld [vmem:[#allocation7 + $0x288] sm:$0xff]
    %v3958 = vld [vmem:[#allocation7 + $0x290] sm:$0xff]
    %v3959 = vld [vmem:[#allocation7 + $0x298] sm:$0xff]
    %v3960 = vld [vmem:[#allocation7 + $0x2a0] sm:$0xff]
    %v3961 = vld [vmem:[#allocation7 + $0x2a8] sm:$0xff]
    %v3962 = vld [vmem:[#allocation7 + $0x2b0] sm:$0xff]
    %v3963 = vld [vmem:[#allocation7 + $0x2b8] sm:$0xff]
    %v3964 = vld [vmem:[#allocation7 + $0x2c0] sm:$0xff]
    %v3965 = vld [vmem:[#allocation7 + $0x2c8] sm:$0xff]
    %v3966 = vld [vmem:[#allocation7 + $0x2d0] sm:$0xff]
    %v3967 = vld [vmem:[#allocation7 + $0x2d8] sm:$0xff]
    %v3968 = vld [vmem:[#allocation7 + $0x2e0] sm:$0xff]
    %v3969 = vld [vmem:[#allocation7 + $0x2e8] sm:$0xff]
    %v3970 = vld [vmem:[#allocation7 + $0x2f0] sm:$0xff]
    %v3971 = vld [vmem:[#allocation7 + $0x2f8] sm:$0xff]
    %v3972 = vld [vmem:[#allocation7 + $0x300] sm:$0xff]
    %v3973 = vld [vmem:[#allocation7 + $0x308] sm:$0xff]
    %v3974 = vld [vmem:[#allocation7 + $0x310] sm:$0xff]
    %v3975 = vld [vmem:[#allocation7 + $0x318] sm:$0xff]
    %v3976 = vld [vmem:[#allocation7 + $0x320] sm:$0xff]
    %v3977 = vld [vmem:[#allocation7 + $0x328] sm:$0xff]
    %v3978 = vld [vmem:[#allocation7 + $0x330] sm:$0xff]
    %v3979 = vld [vmem:[#allocation7 + $0x338] sm:$0xff]
    %v3980 = vld [vmem:[#allocation7 + $0x340] sm:$0xff]
    %v3981 = vld [vmem:[#allocation7 + $0x348] sm:$0xff]
    %v3982 = vld [vmem:[#allocation7 + $0x350] sm:$0xff]
    %v3983 = vld [vmem:[#allocation7 + $0x358] sm:$0xff]
    %v3984 = vld [vmem:[#allocation7 + $0x360] sm:$0xff]
    %v3985 = vld [vmem:[#allocation7 + $0x368] sm:$0xff]
    %v3986 = vld [vmem:[#allocation7 + $0x370] sm:$0xff]
    %v3987 = vld [vmem:[#allocation7 + $0x378] sm:$0xff]
    %v3988 = vld [vmem:[#allocation7 + $0x380] sm:$0xff]
    %v3989 = vld [vmem:[#allocation7 + $0x388] sm:$0xff]
    %v3990 = vld [vmem:[#allocation7 + $0x390] sm:$0xff]
    %v3991 = vld [vmem:[#allocation7 + $0x398] sm:$0xff]
    %v3992 = vld [vmem:[#allocation7 + $0x3a0] sm:$0xff]
    %v3993 = vld [vmem:[#allocation7 + $0x3a8] sm:$0xff]
    %v3994 = vld [vmem:[#allocation7 + $0x3b0] sm:$0xff]
    %v3995 = vld [vmem:[#allocation7 + $0x3b8] sm:$0xff]
    %v3996 = vld [vmem:[#allocation7 + $0x3c0] sm:$0xff]
    %v3997 = vld [vmem:[#allocation7 + $0x3c8] sm:$0xff]
    %v3998 = vld [vmem:[#allocation7 + $0x3d0] sm:$0xff]
    %v3999 = vld [vmem:[#allocation7 + $0x3d8] sm:$0xff]
    %v4000 = vld [vmem:[#allocation7 + $0x3e0] sm:$0xff]
    %v4001 = vld [vmem:[#allocation7 + $0x3e8] sm:$0xff]
    %v4002 = vld [vmem:[#allocation7 + $0x3f0] sm:$0xff]
    %v4003 = vld [vmem:[#allocation7 + $0x3f8] sm:$0xff]
    %v4004 = vld [vmem:[#allocation7 + $0x400] sm:$0xff]
    %v4005 = vld [vmem:[#allocation7 + $0x408] sm:$0xff]
    %v4006 = vld [vmem:[#allocation7 + $0x410] sm:$0xff]
    %v4007 = vld [vmem:[#allocation7 + $0x418] sm:$0xff]
    %v4008 = vld [vmem:[#allocation7 + $0x420] sm:$0xff]
    %v4009 = vld [vmem:[#allocation7 + $0x428] sm:$0xff]
    %v4010 = vld [vmem:[#allocation7 + $0x430] sm:$0xff]
    %v4011 = vld [vmem:[#allocation7 + $0x438] sm:$0xff]
    %v4012 = vld [vmem:[#allocation7 + $0x440] sm:$0xff]
    %v4013 = vld [vmem:[#allocation7 + $0x448] sm:$0xff]
    %v4014 = vld [vmem:[#allocation7 + $0x450] sm:$0xff]
    %v4015 = vld [vmem:[#allocation7 + $0x458] sm:$0xff]
    %v4016 = vld [vmem:[#allocation7 + $0x460] sm:$0xff]
    %v4017 = vld [vmem:[#allocation7 + $0x468] sm:$0xff]
    %v4018 = vld [vmem:[#allocation7 + $0x470] sm:$0xff]
    %v4019 = vld [vmem:[#allocation7 + $0x478] sm:$0xff]
    %v4020 = vld [vmem:[#allocation7 + $0x480] sm:$0xff]
    %v4021 = vld [vmem:[#allocation7 + $0x488] sm:$0xff]
    %v4022 = vld [vmem:[#allocation7 + $0x490] sm:$0xff]
    %v4023 = vld [vmem:[#allocation7 + $0x498] sm:$0xff]
    %v4024 = vld [vmem:[#allocation7 + $0x4a0] sm:$0xff]
    %v4025 = vld [vmem:[#allocation7 + $0x4a8] sm:$0xff]
    %v4026 = vld [vmem:[#allocation7 + $0x4b0] sm:$0xff]
    %v4027 = vld [vmem:[#allocation7 + $0x4b8] sm:$0xff]
    %v4028 = vld [vmem:[#allocation7 + $0x4c0] sm:$0xff]
    %v4029 = vld [vmem:[#allocation7 + $0x4c8] sm:$0xff]
    %v4030 = vld [vmem:[#allocation7 + $0x4d0] sm:$0xff]
    %v4031 = vld [vmem:[#allocation7 + $0x4d8] sm:$0xff]
    %v4032 = vld [vmem:[#allocation7 + $0x4e0] sm:$0xff]
    %v4033 = vld [vmem:[#allocation7 + $0x4e8] sm:$0xff]
    %v4034 = vld [vmem:[#allocation7 + $0x4f0] sm:$0xff]
    %v4035 = vld [vmem:[#allocation7 + $0x4f8] sm:$0xff]
    %v4036 = vld [vmem:[#allocation7 + $0x500] sm:$0xff]
    %v4037 = vld [vmem:[#allocation7 + $0x508] sm:$0xff]
    %v4038 = vld [vmem:[#allocation7 + $0x510] sm:$0xff]
    %v4039 = vld [vmem:[#allocation7 + $0x518] sm:$0xff]
    %v4040 = vld [vmem:[#allocation7 + $0x520] sm:$0xff]
    %v4041 = vld [vmem:[#allocation7 + $0x528] sm:$0xff]
    %v4042 = vld [vmem:[#allocation7 + $0x530] sm:$0xff]
    %v4043 = vld [vmem:[#allocation7 + $0x538] sm:$0xff]
    %v4044 = vld [vmem:[#allocation7 + $0x540] sm:$0xff]
    %v4045 = vld [vmem:[#allocation7 + $0x548] sm:$0xff]
    %v4046 = vld [vmem:[#allocation7 + $0x550] sm:$0xff]
    %v4047 = vld [vmem:[#allocation7 + $0x558] sm:$0xff]
    %v4048 = vld [vmem:[#allocation7 + $0x560] sm:$0xff]
    %v4049 = vld [vmem:[#allocation7 + $0x568] sm:$0xff]
    %v4050 = vld [vmem:[#allocation7 + $0x570] sm:$0xff]
    %v4051 = vld [vmem:[#allocation7 + $0x578] sm:$0xff]
    %v4052 = vld [vmem:[#allocation7 + $0x580] sm:$0xff]
    %v4053 = vld [vmem:[#allocation7 + $0x588] sm:$0xff]
    %v4054 = vld [vmem:[#allocation7 + $0x590] sm:$0xff]
    %v4055 = vld [vmem:[#allocation7 + $0x598] sm:$0xff]
    %v4056 = vld [vmem:[#allocation7 + $0x5a0] sm:$0xff]
    %v4057 = vld [vmem:[#allocation7 + $0x5a8] sm:$0xff]
    %v4058 = vld [vmem:[#allocation7 + $0x5b0] sm:$0xff]
    %v4059 = vld [vmem:[#allocation7 + $0x5b8] sm:$0xff]
    %v4060 = vld [vmem:[#allocation7 + $0x5c0] sm:$0xff]
    %v4061 = vld [vmem:[#allocation7 + $0x5c8] sm:$0xff]
    %v4062 = vld [vmem:[#allocation7 + $0x5d0] sm:$0xff]
    %v4063 = vld [vmem:[#allocation7 + $0x5d8] sm:$0xff]
    %v4064 = vld [vmem:[#allocation7 + $0x5e0] sm:$0xff]
    %v4065 = vld [vmem:[#allocation7 + $0x5e8] sm:$0xff]
    %v4066 = vld [vmem:[#allocation7 + $0x5f0] sm:$0xff]
    %v4067 = vld [vmem:[#allocation7 + $0x5f8] sm:$0xff]
    %v4068 = vld [vmem:[#allocation7 + $0x600] sm:$0xff]
    %v4069 = vld [vmem:[#allocation7 + $0x608] sm:$0xff]
    %v4070 = vld [vmem:[#allocation7 + $0x610] sm:$0xff]
    %v4071 = vld [vmem:[#allocation7 + $0x618] sm:$0xff]
    %v4072 = vld [vmem:[#allocation7 + $0x620] sm:$0xff]
    %v4073 = vld [vmem:[#allocation7 + $0x628] sm:$0xff]
    %v4074 = vld [vmem:[#allocation7 + $0x630] sm:$0xff]
    %v4075 = vld [vmem:[#allocation7 + $0x638] sm:$0xff]
    %v4076 = vld [vmem:[#allocation7 + $0x640] sm:$0xff]
    %v4077 = vld [vmem:[#allocation7 + $0x648] sm:$0xff]
    %v4078 = vld [vmem:[#allocation7 + $0x650] sm:$0xff]
    %v4079 = vld [vmem:[#allocation7 + $0x658] sm:$0xff]
    %v4080 = vld [vmem:[#allocation7 + $0x660] sm:$0xff]
    %v4081 = vld [vmem:[#allocation7 + $0x668] sm:$0xff]
    %v4082 = vld [vmem:[#allocation7 + $0x670] sm:$0xff]
    %v4083 = vld [vmem:[#allocation7 + $0x678] sm:$0xff]
    %v4084 = vld [vmem:[#allocation7 + $0x680] sm:$0xff]
    %v4085 = vld [vmem:[#allocation7 + $0x688] sm:$0xff]
    %v4086 = vld [vmem:[#allocation7 + $0x690] sm:$0xff]
    %v4087 = vld [vmem:[#allocation7 + $0x698] sm:$0xff]
    %v4088 = vld [vmem:[#allocation7 + $0x6a0] sm:$0xff]
    %v4089 = vld [vmem:[#allocation7 + $0x6a8] sm:$0xff]
    %v4090 = vld [vmem:[#allocation7 + $0x6b0] sm:$0xff]
    %v4091 = vld [vmem:[#allocation7 + $0x6b8] sm:$0xff]
    %v4092 = vld [vmem:[#allocation7 + $0x6c0] sm:$0xff]
    %v4093 = vld [vmem:[#allocation7 + $0x6c8] sm:$0xff]
    %v4094 = vld [vmem:[#allocation7 + $0x6d0] sm:$0xff]
    %v4095 = vld [vmem:[#allocation7 + $0x6d8] sm:$0xff]
    %v4096 = vld [vmem:[#allocation7 + $0x6e0] sm:$0xff]
    %v4097 = vld [vmem:[#allocation7 + $0x6e8] sm:$0xff]
    %v4098 = vld [vmem:[#allocation7 + $0x6f0] sm:$0xff]
    %v4099 = vld [vmem:[#allocation7 + $0x6f8] sm:$0xff]
    %v4100 = vld [vmem:[#allocation7 + $0x700] sm:$0xff]
    %v4101 = vld [vmem:[#allocation7 + $0x708] sm:$0xff]
    %v4102 = vld [vmem:[#allocation7 + $0x710] sm:$0xff]
    %v4103 = vld [vmem:[#allocation7 + $0x718] sm:$0xff]
    %v4104 = vld [vmem:[#allocation7 + $0x720] sm:$0xff]
    %v4105 = vld [vmem:[#allocation7 + $0x728] sm:$0xff]
    %v4106 = vld [vmem:[#allocation7 + $0x730] sm:$0xff]
    %v4107 = vld [vmem:[#allocation7 + $0x738] sm:$0xff]
    %v4108 = vld [vmem:[#allocation7 + $0x740] sm:$0xff]
    %v4109 = vld [vmem:[#allocation7 + $0x748] sm:$0xff]
    %v4110 = vld [vmem:[#allocation7 + $0x750] sm:$0xff]
    %v4111 = vld [vmem:[#allocation7 + $0x758] sm:$0xff]
    %v4112 = vld [vmem:[#allocation7 + $0x760] sm:$0xff]
    %v4113 = vld [vmem:[#allocation7 + $0x768] sm:$0xff]
    %v4114 = vld [vmem:[#allocation7 + $0x770] sm:$0xff]
    %v4115 = vld [vmem:[#allocation7 + $0x778] sm:$0xff]
    %v4116 = vld [vmem:[#allocation7 + $0x780] sm:$0xff]
    %v4117 = vld [vmem:[#allocation7 + $0x788] sm:$0xff]
    %v4118 = vld [vmem:[#allocation7 + $0x790] sm:$0xff]
    %v4119 = vld [vmem:[#allocation7 + $0x798] sm:$0xff]
    %v4120 = vld [vmem:[#allocation7 + $0x7a0] sm:$0xff]
    %v4121 = vld [vmem:[#allocation7 + $0x7a8] sm:$0xff]
    %v4122 = vld [vmem:[#allocation7 + $0x7b0] sm:$0xff]
    %v4123 = vld [vmem:[#allocation7 + $0x7b8] sm:$0xff]
    %v4124 = vld [vmem:[#allocation7 + $0x7c0] sm:$0xff]
    %v4125 = vld [vmem:[#allocation7 + $0x7c8] sm:$0xff]
    %v4126 = vld [vmem:[#allocation7 + $0x7d0] sm:$0xff]
    %v4127 = vld [vmem:[#allocation7 + $0x7d8] sm:$0xff]
    %v4128 = vld [vmem:[#allocation7 + $0x7e0] sm:$0xff]
    %v4129 = vld [vmem:[#allocation7 + $0x7e8] sm:$0xff]
    %v4130 = vld [vmem:[#allocation7 + $0x7f0] sm:$0xff]
    %v4131 = vld [vmem:[#allocation7 + $0x7f8] sm:$0xff]
    %v4132 = vld [vmem:[#allocation7 + $0x800] sm:$0xff]
    %v4133 = vld [vmem:[#allocation7 + $0x808] sm:$0xff]
    %v4134 = vld [vmem:[#allocation7 + $0x810] sm:$0xff]
    %v4135 = vld [vmem:[#allocation7 + $0x818] sm:$0xff]
    %v4136 = vld [vmem:[#allocation7 + $0x820] sm:$0xff]
    %v4137 = vld [vmem:[#allocation7 + $0x828] sm:$0xff]
    %v4138 = vld [vmem:[#allocation7 + $0x830] sm:$0xff]
    %v4139 = vld [vmem:[#allocation7 + $0x838] sm:$0xff]
    %v4140 = vld [vmem:[#allocation7 + $0x840] sm:$0xff]
    %v4141 = vld [vmem:[#allocation7 + $0x848] sm:$0xff]
    %v4142 = vld [vmem:[#allocation7 + $0x850] sm:$0xff]
    %v4143 = vld [vmem:[#allocation7 + $0x858] sm:$0xff]
    %v4144 = vld [vmem:[#allocation7 + $0x860] sm:$0xff]
    %v4145 = vld [vmem:[#allocation7 + $0x868] sm:$0xff]
    %v4146 = vld [vmem:[#allocation7 + $0x870] sm:$0xff]
    %v4147 = vld [vmem:[#allocation7 + $0x878] sm:$0xff]
    %v4148 = vld [vmem:[#allocation7 + $0x880] sm:$0xff]
    %v4149 = vld [vmem:[#allocation7 + $0x888] sm:$0xff]
    %v4150 = vld [vmem:[#allocation7 + $0x890] sm:$0xff]
    %v4151 = vld [vmem:[#allocation7 + $0x898] sm:$0xff]
    %v4152 = vld [vmem:[#allocation7 + $0x8a0] sm:$0xff]
    %v4153 = vld [vmem:[#allocation7 + $0x8a8] sm:$0xff]
    %v4154 = vld [vmem:[#allocation7 + $0x8b0] sm:$0xff]
    %v4155 = vld [vmem:[#allocation7 + $0x8b8] sm:$0xff]
    %v4156 = vld [vmem:[#allocation7 + $0x8c0] sm:$0xff]
    %v4157 = vld [vmem:[#allocation7 + $0x8c8] sm:$0xff]
    %v4158 = vld [vmem:[#allocation7 + $0x8d0] sm:$0xff]
    %v4159 = vld [vmem:[#allocation7 + $0x8d8] sm:$0xff]
    %v4160 = vld [vmem:[#allocation7 + $0x8e0] sm:$0xff]
    %v4161 = vld [vmem:[#allocation7 + $0x8e8] sm:$0xff]
    %v4162 = vld [vmem:[#allocation7 + $0x8f0] sm:$0xff]
    %v4163 = vld [vmem:[#allocation7 + $0x8f8] sm:$0xff]
    %v4164 = vld [vmem:[#allocation7 + $0x900] sm:$0xff]
    %v4165 = vld [vmem:[#allocation7 + $0x908] sm:$0xff]
    %v4166 = vld [vmem:[#allocation7 + $0x910] sm:$0xff]
    %v4167 = vld [vmem:[#allocation7 + $0x918] sm:$0xff]
    %v4168 = vld [vmem:[#allocation7 + $0x920] sm:$0xff]
    %v4169 = vld [vmem:[#allocation7 + $0x928] sm:$0xff]
    %v4170 = vld [vmem:[#allocation7 + $0x930] sm:$0xff]
    %v4171 = vld [vmem:[#allocation7 + $0x938] sm:$0xff]
    %v4172 = vld [vmem:[#allocation7 + $0x940] sm:$0xff]
    %v4173 = vld [vmem:[#allocation7 + $0x948] sm:$0xff]
    %v4174 = vld [vmem:[#allocation7 + $0x950] sm:$0xff]
    %v4175 = vld [vmem:[#allocation7 + $0x958] sm:$0xff]
    %v4176 = vld [vmem:[#allocation7 + $0x960] sm:$0xff]
    %v4177 = vld [vmem:[#allocation7 + $0x968] sm:$0xff]
    %v4178 = vld [vmem:[#allocation7 + $0x970] sm:$0xff]
    %v4179 = vld [vmem:[#allocation7 + $0x978] sm:$0xff]
    %v4180 = vld [vmem:[#allocation7 + $0x980] sm:$0xff]
    %v4181 = vld [vmem:[#allocation7 + $0x988] sm:$0xff]
    %v4182 = vld [vmem:[#allocation7 + $0x990] sm:$0xff]
    %v4183 = vld [vmem:[#allocation7 + $0x998] sm:$0xff]
    %v4184 = vld [vmem:[#allocation7 + $0x9a0] sm:$0xff]
    %v4185 = vld [vmem:[#allocation7 + $0x9a8] sm:$0xff]
    %v4186 = vld [vmem:[#allocation7 + $0x9b0] sm:$0xff]
    %v4187 = vld [vmem:[#allocation7 + $0x9b8] sm:$0xff]
    %v4188 = vld [vmem:[#allocation7 + $0x9c0] sm:$0xff]
    %v4189 = vld [vmem:[#allocation7 + $0x9c8] sm:$0xff]
    %v4190 = vld [vmem:[#allocation7 + $0x9d0] sm:$0xff]
    %v4191 = vld [vmem:[#allocation7 + $0x9d8] sm:$0xff]
    %v4192 = vld [vmem:[#allocation7 + $0x9e0] sm:$0xff]
    %v4193 = vld [vmem:[#allocation7 + $0x9e8] sm:$0xff]
    %v4194 = vld [vmem:[#allocation7 + $0x9f0] sm:$0xff]
    %v4195 = vld [vmem:[#allocation7 + $0x9f8] sm:$0xff]
    %v4196 = vld [vmem:[#allocation7 + $0xa00] sm:$0xff]
    %v4197 = vld [vmem:[#allocation7 + $0xa08] sm:$0xff]
    %v4198 = vld [vmem:[#allocation7 + $0xa10] sm:$0xff]
    %v4199 = vld [vmem:[#allocation7 + $0xa18] sm:$0xff]
    %v4200 = vld [vmem:[#allocation7 + $0xa20] sm:$0xff]
    %v4201 = vld [vmem:[#allocation7 + $0xa28] sm:$0xff]
    %v4202 = vld [vmem:[#allocation7 + $0xa30] sm:$0xff]
    %v4203 = vld [vmem:[#allocation7 + $0xa38] sm:$0xff]
    %v4204 = vld [vmem:[#allocation7 + $0xa40] sm:$0xff]
    %v4205 = vld [vmem:[#allocation7 + $0xa48] sm:$0xff]
    %v4206 = vld [vmem:[#allocation7 + $0xa50] sm:$0xff]
    %v4207 = vld [vmem:[#allocation7 + $0xa58] sm:$0xff]
    %v4208 = vld [vmem:[#allocation7 + $0xa60] sm:$0xff]
    %v4209 = vld [vmem:[#allocation7 + $0xa68] sm:$0xff]
    %v4210 = vld [vmem:[#allocation7 + $0xa70] sm:$0xff]
    %v4211 = vld [vmem:[#allocation7 + $0xa78] sm:$0xff]
    %v4212 = vld [vmem:[#allocation7 + $0xa80] sm:$0xff]
    %v4213 = vld [vmem:[#allocation7 + $0xa88] sm:$0xff]
    %v4214 = vld [vmem:[#allocation7 + $0xa90] sm:$0xff]
    %v4215 = vld [vmem:[#allocation7 + $0xa98] sm:$0xff]
    %v4216 = vld [vmem:[#allocation7 + $0xaa0] sm:$0xff]
    %v4217 = vld [vmem:[#allocation7 + $0xaa8] sm:$0xff]
    %v4218 = vld [vmem:[#allocation7 + $0xab0] sm:$0xff]
    %v4219 = vld [vmem:[#allocation7 + $0xab8] sm:$0xff]
    %v4220 = vld [vmem:[#allocation7 + $0xac0] sm:$0xff]
    %v4221 = vld [vmem:[#allocation7 + $0xac8] sm:$0xff]
    %v4222 = vld [vmem:[#allocation7 + $0xad0] sm:$0xff]
    %v4223 = vld [vmem:[#allocation7 + $0xad8] sm:$0xff]
    %v4224 = vld [vmem:[#allocation7 + $0xae0] sm:$0xff]
    %v4225 = vld [vmem:[#allocation7 + $0xae8] sm:$0xff]
    %v4226 = vld [vmem:[#allocation7 + $0xaf0] sm:$0xff]
    %v4227 = vld [vmem:[#allocation7 + $0xaf8] sm:$0xff]
    %v4228 = vld [vmem:[#allocation7 + $0xb00] sm:$0xff]
    %v4229 = vld [vmem:[#allocation7 + $0xb08] sm:$0xff]
    %v4230 = vld [vmem:[#allocation7 + $0xb10] sm:$0xff]
    %v4231 = vld [vmem:[#allocation7 + $0xb18] sm:$0xff]
    %v4232 = vld [vmem:[#allocation7 + $0xb20] sm:$0xff]
    %v4233 = vld [vmem:[#allocation7 + $0xb28] sm:$0xff]
    %v4234 = vld [vmem:[#allocation7 + $0xb30] sm:$0xff]
    %v4235 = vld [vmem:[#allocation7 + $0xb38] sm:$0xff]
    %v4236 = vld [vmem:[#allocation7 + $0xb40] sm:$0xff]
    %v4237 = vld [vmem:[#allocation7 + $0xb48] sm:$0xff]
    %v4238 = vld [vmem:[#allocation7 + $0xb50] sm:$0xff]
    %v4239 = vld [vmem:[#allocation7 + $0xb58] sm:$0xff]
    %v4240 = vld [vmem:[#allocation7 + $0xb60] sm:$0xff]
    %v4241 = vld [vmem:[#allocation7 + $0xb68] sm:$0xff]
    %v4242 = vld [vmem:[#allocation7 + $0xb70] sm:$0xff]
    %v4243 = vld [vmem:[#allocation7 + $0xb78] sm:$0xff]
    %v4244 = vld [vmem:[#allocation7 + $0xb80] sm:$0xff]
    %v4245 = vld [vmem:[#allocation7 + $0xb88] sm:$0xff]
    %v4246 = vld [vmem:[#allocation7 + $0xb90] sm:$0xff]
    %v4247 = vld [vmem:[#allocation7 + $0xb98] sm:$0xff]
    %v4248 = vld [vmem:[#allocation7 + $0xba0] sm:$0xff]
    %v4249 = vld [vmem:[#allocation7 + $0xba8] sm:$0xff]
    %v4250 = vld [vmem:[#allocation7 + $0xbb0] sm:$0xff]
    %v4251 = vld [vmem:[#allocation7 + $0xbb8] sm:$0xff]
    %v4252 = vld [vmem:[#allocation7 + $0xbc0] sm:$0xff]
    %v4253 = vld [vmem:[#allocation7 + $0xbc8] sm:$0xff]
    %v4254 = vld [vmem:[#allocation7 + $0xbd0] sm:$0xff]
    %v4255 = vld [vmem:[#allocation7 + $0xbd8] sm:$0xff]
    %v4256 = vld [vmem:[#allocation7 + $0xbe0] sm:$0xff]
    %v4257 = vld [vmem:[#allocation7 + $0xbe8] sm:$0xff]
    %v4258 = vld [vmem:[#allocation7 + $0xbf0] sm:$0xff]
    %v4259 = vld [vmem:[#allocation7 + $0xbf8] sm:$0xff]
    %v4260 = vld [vmem:[#allocation7 + $0xc00] sm:$0xff]
    %v4261 = vld [vmem:[#allocation7 + $0xc08] sm:$0xff]
    %v4262 = vld [vmem:[#allocation7 + $0xc10] sm:$0xff]
    %v4263 = vld [vmem:[#allocation7 + $0xc18] sm:$0xff]
    %v4264 = vld [vmem:[#allocation7 + $0xc20] sm:$0xff]
    %v4265 = vld [vmem:[#allocation7 + $0xc28] sm:$0xff]
    %v4266 = vld [vmem:[#allocation7 + $0xc30] sm:$0xff]
    %v4267 = vld [vmem:[#allocation7 + $0xc38] sm:$0xff]
    %v4268 = vld [vmem:[#allocation7 + $0xc40] sm:$0xff]
    %v4269 = vld [vmem:[#allocation7 + $0xc48] sm:$0xff]
    %v4270 = vld [vmem:[#allocation7 + $0xc50] sm:$0xff]
    %v4271 = vld [vmem:[#allocation7 + $0xc58] sm:$0xff]
    %v4272 = vld [vmem:[#allocation7 + $0xc60] sm:$0xff]
    %v4273 = vld [vmem:[#allocation7 + $0xc68] sm:$0xff]
    %v4274 = vld [vmem:[#allocation7 + $0xc70] sm:$0xff]
    %v4275 = vld [vmem:[#allocation7 + $0xc78] sm:$0xff]
    %v4276 = vld [vmem:[#allocation7 + $0xc80] sm:$0xff]
    %v4277 = vld [vmem:[#allocation7 + $0xc88] sm:$0xff]
    %v4278 = vld [vmem:[#allocation7 + $0xc90] sm:$0xff]
    %v4279 = vld [vmem:[#allocation7 + $0xc98] sm:$0xff]
    %v4280 = vld [vmem:[#allocation7 + $0xca0] sm:$0xff]
    %v4281 = vld [vmem:[#allocation7 + $0xca8] sm:$0xff]
    %v4282 = vld [vmem:[#allocation7 + $0xcb0] sm:$0xff]
    %v4283 = vld [vmem:[#allocation7 + $0xcb8] sm:$0xff]
    %v4284 = vld [vmem:[#allocation7 + $0xcc0] sm:$0xff]
    %v4285 = vld [vmem:[#allocation7 + $0xcc8] sm:$0xff]
    %v4286 = vld [vmem:[#allocation7 + $0xcd0] sm:$0xff]
    %v4287 = vld [vmem:[#allocation7 + $0xcd8] sm:$0xff]
    %v4288 = vld [vmem:[#allocation7 + $0xce0] sm:$0xff]
    %v4289 = vld [vmem:[#allocation7 + $0xce8] sm:$0xff]
    %v4290 = vld [vmem:[#allocation7 + $0xcf0] sm:$0xff]
    %v4291 = vld [vmem:[#allocation7 + $0xcf8] sm:$0xff]
    %v4292 = vld [vmem:[#allocation7 + $0xd00] sm:$0xff]
    %v4293 = vld [vmem:[#allocation7 + $0xd08] sm:$0xff]
    %v4294 = vld [vmem:[#allocation7 + $0xd10] sm:$0xff]
    %v4295 = vld [vmem:[#allocation7 + $0xd18] sm:$0xff]
    %v4296 = vld [vmem:[#allocation7 + $0xd20] sm:$0xff]
    %v4297 = vld [vmem:[#allocation7 + $0xd28] sm:$0xff]
    %v4298 = vld [vmem:[#allocation7 + $0xd30] sm:$0xff]
    %v4299 = vld [vmem:[#allocation7 + $0xd38] sm:$0xff]
    %v4300 = vld [vmem:[#allocation7 + $0xd40] sm:$0xff]
    %v4301 = vld [vmem:[#allocation7 + $0xd48] sm:$0xff]
    %v4302 = vld [vmem:[#allocation7 + $0xd50] sm:$0xff]
    %v4303 = vld [vmem:[#allocation7 + $0xd58] sm:$0xff]
    %v4304 = vld [vmem:[#allocation7 + $0xd60] sm:$0xff]
    %v4305 = vld [vmem:[#allocation7 + $0xd68] sm:$0xff]
    %v4306 = vld [vmem:[#allocation7 + $0xd70] sm:$0xff]
    %v4307 = vld [vmem:[#allocation7 + $0xd78] sm:$0xff]
    %v4308 = vld [vmem:[#allocation7 + $0xd80] sm:$0xff]
    %v4309 = vld [vmem:[#allocation7 + $0xd88] sm:$0xff]
    %v4310 = vld [vmem:[#allocation7 + $0xd90] sm:$0xff]
    %v4311 = vld [vmem:[#allocation7 + $0xd98] sm:$0xff]
    %v4312 = vld [vmem:[#allocation7 + $0xda0] sm:$0xff]
    %v4313 = vld [vmem:[#allocation7 + $0xda8] sm:$0xff]
    %v4314 = vld [vmem:[#allocation7 + $0xdb0] sm:$0xff]
    %v4315 = vld [vmem:[#allocation7 + $0xdb8] sm:$0xff]
    %v4316 = vld [vmem:[#allocation7 + $0xdc0] sm:$0xff]
    %v4317 = vld [vmem:[#allocation7 + $0xdc8] sm:$0xff]
    %v4318 = vld [vmem:[#allocation7 + $0xdd0] sm:$0xff]
    %v4319 = vld [vmem:[#allocation7 + $0xdd8] sm:$0xff]
    %v4320 = vld [vmem:[#allocation7 + $0xde0] sm:$0xff]
    %v4321 = vld [vmem:[#allocation7 + $0xde8] sm:$0xff]
    %v4322 = vld [vmem:[#allocation7 + $0xdf0] sm:$0xff]
    %v4323 = vld [vmem:[#allocation7 + $0xdf8] sm:$0xff]
    %v4324 = vld [vmem:[#allocation7 + $0xe00] sm:$0xff]
    %v4325 = vld [vmem:[#allocation7 + $0xe08] sm:$0xff]
    %v4326 = vld [vmem:[#allocation7 + $0xe10] sm:$0xff]
    %v4327 = vld [vmem:[#allocation7 + $0xe18] sm:$0xff]
    %v4328 = vld [vmem:[#allocation7 + $0xe20] sm:$0xff]
    %v4329 = vld [vmem:[#allocation7 + $0xe28] sm:$0xff]
    %v4330 = vld [vmem:[#allocation7 + $0xe30] sm:$0xff]
    %v4331 = vld [vmem:[#allocation7 + $0xe38] sm:$0xff]
    %v4332 = vld [vmem:[#allocation7 + $0xe40] sm:$0xff]
    %v4333 = vld [vmem:[#allocation7 + $0xe48] sm:$0xff]
    %v4334 = vld [vmem:[#allocation7 + $0xe50] sm:$0xff]
    %v4335 = vld [vmem:[#allocation7 + $0xe58] sm:$0xff]
    %v4336 = vld [vmem:[#allocation7 + $0xe60] sm:$0xff]
    %v4337 = vld [vmem:[#allocation7 + $0xe68] sm:$0xff]
    %v4338 = vld [vmem:[#allocation7 + $0xe70] sm:$0xff]
    %v4339 = vld [vmem:[#allocation7 + $0xe78] sm:$0xff]
    %v4340 = vld [vmem:[#allocation7 + $0xe80] sm:$0xff]
    %v4341 = vld [vmem:[#allocation7 + $0xe88] sm:$0xff]
    %v4342 = vld [vmem:[#allocation7 + $0xe90] sm:$0xff]
    %v4343 = vld [vmem:[#allocation7 + $0xe98] sm:$0xff]
    %v4344 = vld [vmem:[#allocation7 + $0xea0] sm:$0xff]
    %v4345 = vld [vmem:[#allocation7 + $0xea8] sm:$0xff]
    %v4346 = vld [vmem:[#allocation7 + $0xeb0] sm:$0xff]
    %v4347 = vld [vmem:[#allocation7 + $0xeb8] sm:$0xff]
    %v4348 = vld [vmem:[#allocation7 + $0xec0] sm:$0xff]
    %v4349 = vld [vmem:[#allocation7 + $0xec8] sm:$0xff]
    %v4350 = vld [vmem:[#allocation7 + $0xed0] sm:$0xff]
    %v4351 = vld [vmem:[#allocation7 + $0xed8] sm:$0xff]
    %v4352 = vld [vmem:[#allocation7 + $0xee0] sm:$0xff]
    %v4353 = vld [vmem:[#allocation7 + $0xee8] sm:$0xff]
    %v4354 = vld [vmem:[#allocation7 + $0xef0] sm:$0xff]
    %v4355 = vld [vmem:[#allocation7 + $0xef8] sm:$0xff]
    %v4356 = vld [vmem:[#allocation7 + $0xf00] sm:$0xff]
    %v4357 = vld [vmem:[#allocation7 + $0xf08] sm:$0xff]
    %v4358 = vld [vmem:[#allocation7 + $0xf10] sm:$0xff]
    %v4359 = vld [vmem:[#allocation7 + $0xf18] sm:$0xff]
    %v4360 = vld [vmem:[#allocation7 + $0xf20] sm:$0xff]
    %v4361 = vld [vmem:[#allocation7 + $0xf28] sm:$0xff]
    %v4362 = vld [vmem:[#allocation7 + $0xf30] sm:$0xff]
    %v4363 = vld [vmem:[#allocation7 + $0xf38] sm:$0xff]
    %v4364 = vld [vmem:[#allocation7 + $0xf40] sm:$0xff]
    %v4365 = vld [vmem:[#allocation7 + $0xf48] sm:$0xff]
    %v4366 = vld [vmem:[#allocation7 + $0xf50] sm:$0xff]
    %v4367 = vld [vmem:[#allocation7 + $0xf58] sm:$0xff]
    %v4368 = vld [vmem:[#allocation7 + $0xf60] sm:$0xff]
    %v4369 = vld [vmem:[#allocation7 + $0xf68] sm:$0xff]
    %v4370 = vld [vmem:[#allocation7 + $0xf70] sm:$0xff]
    %v4371 = vld [vmem:[#allocation7 + $0xf78] sm:$0xff]
    %v4372 = vld [vmem:[#allocation7 + $0xf80] sm:$0xff]
    %v4373 = vld [vmem:[#allocation7 + $0xf88] sm:$0xff]
    %v4374 = vld [vmem:[#allocation7 + $0xf90] sm:$0xff]
    %v4375 = vld [vmem:[#allocation7 + $0xf98] sm:$0xff]
    %v4376 = vld [vmem:[#allocation7 + $0xfa0] sm:$0xff]
    %v4377 = vld [vmem:[#allocation7 + $0xfa8] sm:$0xff]
    %v4378 = vld [vmem:[#allocation7 + $0xfb0] sm:$0xff]
    %v4379 = vld [vmem:[#allocation7 + $0xfb8] sm:$0xff]
    %v4380 = vld [vmem:[#allocation7 + $0xfc0] sm:$0xff]
    %v4381 = vld [vmem:[#allocation7 + $0xfc8] sm:$0xff]
    %v4382 = vld [vmem:[#allocation7 + $0xfd0] sm:$0xff]
    %v4383 = vld [vmem:[#allocation7 + $0xfd8] sm:$0xff]
    %v4384 = vld [vmem:[#allocation7 + $0xfe0] sm:$0xff]
    %v4385 = vld [vmem:[#allocation7 + $0xfe8] sm:$0xff]
    %v4386 = vld [vmem:[#allocation7 + $0xff0] sm:$0xff]
    %v4387 = vld [vmem:[#allocation7 + $0xff8] sm:$0xff]
    %v4900 = vunpack.c.l.b16 %v3876
    %v4901 = vunpack.c.h.b16 %v3876
    %v4902 = vunpack.c.l.b16 %v3877
    %v4903 = vunpack.c.h.b16 %v3877
    %v4904 = vunpack.c.l.b16 %v3878
    %v4905 = vunpack.c.h.b16 %v3878
    %v4906 = vunpack.c.l.b16 %v3879
    %v4907 = vunpack.c.h.b16 %v3879
    %v4908 = vunpack.c.l.b16 %v3880
    %v4909 = vunpack.c.h.b16 %v3880
    %v4910 = vunpack.c.l.b16 %v3881
    %v4911 = vunpack.c.h.b16 %v3881
    %v4912 = vunpack.c.l.b16 %v3882
    %v4913 = vunpack.c.h.b16 %v3882
    %v4914 = vunpack.c.l.b16 %v3883
    %v4915 = vunpack.c.h.b16 %v3883
    %v4916 = vunpack.c.l.b16 %v3884
    %v4917 = vunpack.c.h.b16 %v3884
    %v4918 = vunpack.c.l.b16 %v3885
    %v4919 = vunpack.c.h.b16 %v3885
    %v4920 = vunpack.c.l.b16 %v3886
    %v4921 = vunpack.c.h.b16 %v3886
    %v4922 = vunpack.c.l.b16 %v3887
    %v4923 = vunpack.c.h.b16 %v3887
    %v4924 = vunpack.c.l.b16 %v3888
    %v4925 = vunpack.c.h.b16 %v3888
    %v4926 = vunpack.c.l.b16 %v3889
    %v4927 = vunpack.c.h.b16 %v3889
    %v4928 = vunpack.c.l.b16 %v3890
    %v4929 = vunpack.c.h.b16 %v3890
    %v4930 = vunpack.c.l.b16 %v3891
    %v4931 = vunpack.c.h.b16 %v3891
    %v4932 = vunpack.c.l.b16 %v3892
    %v4933 = vunpack.c.h.b16 %v3892
    %v4934 = vunpack.c.l.b16 %v3893
    %v4935 = vunpack.c.h.b16 %v3893
    %v4936 = vunpack.c.l.b16 %v3894
    %v4937 = vunpack.c.h.b16 %v3894
    %v4938 = vunpack.c.l.b16 %v3895
    %v4939 = vunpack.c.h.b16 %v3895
    %v4940 = vunpack.c.l.b16 %v3896
    %v4941 = vunpack.c.h.b16 %v3896
    %v4942 = vunpack.c.l.b16 %v3897
    %v4943 = vunpack.c.h.b16 %v3897
    %v4944 = vunpack.c.l.b16 %v3898
    %v4945 = vunpack.c.h.b16 %v3898
    %v4946 = vunpack.c.l.b16 %v3899
    %v4947 = vunpack.c.h.b16 %v3899
    %v4948 = vunpack.c.l.b16 %v3900
    %v4949 = vunpack.c.h.b16 %v3900
    %v4950 = vunpack.c.l.b16 %v3901
    %v4951 = vunpack.c.h.b16 %v3901
    %v4952 = vunpack.c.l.b16 %v3902
    %v4953 = vunpack.c.h.b16 %v3902
    %v4954 = vunpack.c.l.b16 %v3903
    %v4955 = vunpack.c.h.b16 %v3903
    %v4956 = vunpack.c.l.b16 %v3904
    %v4957 = vunpack.c.h.b16 %v3904
    %v4958 = vunpack.c.l.b16 %v3905
    %v4959 = vunpack.c.h.b16 %v3905
    %v4960 = vunpack.c.l.b16 %v3906
    %v4961 = vunpack.c.h.b16 %v3906
    %v4962 = vunpack.c.l.b16 %v3907
    %v4963 = vunpack.c.h.b16 %v3907
    %v4964 = vunpack.c.l.b16 %v3908
    %v4965 = vunpack.c.h.b16 %v3908
    %v4966 = vunpack.c.l.b16 %v3909
    %v4967 = vunpack.c.h.b16 %v3909
    %v4968 = vunpack.c.l.b16 %v3910
    %v4969 = vunpack.c.h.b16 %v3910
    %v4970 = vunpack.c.l.b16 %v3911
    %v4971 = vunpack.c.h.b16 %v3911
    %v4972 = vunpack.c.l.b16 %v3912
    %v4973 = vunpack.c.h.b16 %v3912
    %v4974 = vunpack.c.l.b16 %v3913
    %v4975 = vunpack.c.h.b16 %v3913
    %v4976 = vunpack.c.l.b16 %v3914
    %v4977 = vunpack.c.h.b16 %v3914
    %v4978 = vunpack.c.l.b16 %v3915
    %v4979 = vunpack.c.h.b16 %v3915
    %v4980 = vunpack.c.l.b16 %v3916
    %v4981 = vunpack.c.h.b16 %v3916
    %v4982 = vunpack.c.l.b16 %v3917
    %v4983 = vunpack.c.h.b16 %v3917
    %v4984 = vunpack.c.l.b16 %v3918
    %v4985 = vunpack.c.h.b16 %v3918
    %v4986 = vunpack.c.l.b16 %v3919
    %v4987 = vunpack.c.h.b16 %v3919
    %v4988 = vunpack.c.l.b16 %v3920
    %v4989 = vunpack.c.h.b16 %v3920
    %v4990 = vunpack.c.l.b16 %v3921
    %v4991 = vunpack.c.h.b16 %v3921
    %v4992 = vunpack.c.l.b16 %v3922
    %v4993 = vunpack.c.h.b16 %v3922
    %v4994 = vunpack.c.l.b16 %v3923
    %v4995 = vunpack.c.h.b16 %v3923
    %v4996 = vunpack.c.l.b16 %v3924
    %v4997 = vunpack.c.h.b16 %v3924
    %v4998 = vunpack.c.l.b16 %v3925
    %v4999 = vunpack.c.h.b16 %v3925
    %v5000 = vunpack.c.l.b16 %v3926
    %v5001 = vunpack.c.h.b16 %v3926
    %v5002 = vunpack.c.l.b16 %v3927
    %v5003 = vunpack.c.h.b16 %v3927
    %v5004 = vunpack.c.l.b16 %v3928
    %v5005 = vunpack.c.h.b16 %v3928
    %v5006 = vunpack.c.l.b16 %v3929
    %v5007 = vunpack.c.h.b16 %v3929
    %v5008 = vunpack.c.l.b16 %v3930
    %v5009 = vunpack.c.h.b16 %v3930
    %v5010 = vunpack.c.l.b16 %v3931
    %v5011 = vunpack.c.h.b16 %v3931
    %v5012 = vunpack.c.l.b16 %v3932
    %v5013 = vunpack.c.h.b16 %v3932
    %v5014 = vunpack.c.l.b16 %v3933
    %v5015 = vunpack.c.h.b16 %v3933
    %v5016 = vunpack.c.l.b16 %v3934
    %v5017 = vunpack.c.h.b16 %v3934
    %v5018 = vunpack.c.l.b16 %v3935
    %v5019 = vunpack.c.h.b16 %v3935
    %v5020 = vunpack.c.l.b16 %v3936
    %v5021 = vunpack.c.h.b16 %v3936
    %v5022 = vunpack.c.l.b16 %v3937
    %v5023 = vunpack.c.h.b16 %v3937
    %v5024 = vunpack.c.l.b16 %v3938
    %v5025 = vunpack.c.h.b16 %v3938
    %v5026 = vunpack.c.l.b16 %v3939
    %v5027 = vunpack.c.h.b16 %v3939
    %v5028 = vunpack.c.l.b16 %v3940
    %v5029 = vunpack.c.h.b16 %v3940
    %v5030 = vunpack.c.l.b16 %v3941
    %v5031 = vunpack.c.h.b16 %v3941
    %v5032 = vunpack.c.l.b16 %v3942
    %v5033 = vunpack.c.h.b16 %v3942
    %v5034 = vunpack.c.l.b16 %v3943
    %v5035 = vunpack.c.h.b16 %v3943
    %v5036 = vunpack.c.l.b16 %v3944
    %v5037 = vunpack.c.h.b16 %v3944
    %v5038 = vunpack.c.l.b16 %v3945
    %v5039 = vunpack.c.h.b16 %v3945
    %v5040 = vunpack.c.l.b16 %v3946
    %v5041 = vunpack.c.h.b16 %v3946
    %v5042 = vunpack.c.l.b16 %v3947
    %v5043 = vunpack.c.h.b16 %v3947
    %v5044 = vunpack.c.l.b16 %v3948
    %v5045 = vunpack.c.h.b16 %v3948
    %v5046 = vunpack.c.l.b16 %v3949
    %v5047 = vunpack.c.h.b16 %v3949
    %v5048 = vunpack.c.l.b16 %v3950
    %v5049 = vunpack.c.h.b16 %v3950
    %v5050 = vunpack.c.l.b16 %v3951
    %v5051 = vunpack.c.h.b16 %v3951
    %v5052 = vunpack.c.l.b16 %v3952
    %v5053 = vunpack.c.h.b16 %v3952
    %v5054 = vunpack.c.l.b16 %v3953
    %v5055 = vunpack.c.h.b16 %v3953
    %v5056 = vunpack.c.l.b16 %v3954
    %v5057 = vunpack.c.h.b16 %v3954
    %v5058 = vunpack.c.l.b16 %v3955
    %v5059 = vunpack.c.h.b16 %v3955
    %v5060 = vunpack.c.l.b16 %v3956
    %v5061 = vunpack.c.h.b16 %v3956
    %v5062 = vunpack.c.l.b16 %v3957
    %v5063 = vunpack.c.h.b16 %v3957
    %v5064 = vunpack.c.l.b16 %v3958
    %v5065 = vunpack.c.h.b16 %v3958
    %v5066 = vunpack.c.l.b16 %v3959
    %v5067 = vunpack.c.h.b16 %v3959
    %v5068 = vunpack.c.l.b16 %v3960
    %v5069 = vunpack.c.h.b16 %v3960
    %v5070 = vunpack.c.l.b16 %v3961
    %v5071 = vunpack.c.h.b16 %v3961
    %v5072 = vunpack.c.l.b16 %v3962
    %v5073 = vunpack.c.h.b16 %v3962
    %v5074 = vunpack.c.l.b16 %v3963
    %v5075 = vunpack.c.h.b16 %v3963
    %v5076 = vunpack.c.l.b16 %v3964
    %v5077 = vunpack.c.h.b16 %v3964
    %v5078 = vunpack.c.l.b16 %v3965
    %v5079 = vunpack.c.h.b16 %v3965
    %v5080 = vunpack.c.l.b16 %v3966
    %v5081 = vunpack.c.h.b16 %v3966
    %v5082 = vunpack.c.l.b16 %v3967
    %v5083 = vunpack.c.h.b16 %v3967
    %v5084 = vunpack.c.l.b16 %v3968
    %v5085 = vunpack.c.h.b16 %v3968
    %v5086 = vunpack.c.l.b16 %v3969
    %v5087 = vunpack.c.h.b16 %v3969
    %v5088 = vunpack.c.l.b16 %v3970
    %v5089 = vunpack.c.h.b16 %v3970
    %v5090 = vunpack.c.l.b16 %v3971
    %v5091 = vunpack.c.h.b16 %v3971
    %v5092 = vunpack.c.l.b16 %v3972
    %v5093 = vunpack.c.h.b16 %v3972
    %v5094 = vunpack.c.l.b16 %v3973
    %v5095 = vunpack.c.h.b16 %v3973
    %v5096 = vunpack.c.l.b16 %v3974
    %v5097 = vunpack.c.h.b16 %v3974
    %v5098 = vunpack.c.l.b16 %v3975
    %v5099 = vunpack.c.h.b16 %v3975
    %v5100 = vunpack.c.l.b16 %v3976
    %v5101 = vunpack.c.h.b16 %v3976
    %v5102 = vunpack.c.l.b16 %v3977
    %v5103 = vunpack.c.h.b16 %v3977
    %v5104 = vunpack.c.l.b16 %v3978
    %v5105 = vunpack.c.h.b16 %v3978
    %v5106 = vunpack.c.l.b16 %v3979
    %v5107 = vunpack.c.h.b16 %v3979
    %v5108 = vunpack.c.l.b16 %v3980
    %v5109 = vunpack.c.h.b16 %v3980
    %v5110 = vunpack.c.l.b16 %v3981
    %v5111 = vunpack.c.h.b16 %v3981
    %v5112 = vunpack.c.l.b16 %v3982
    %v5113 = vunpack.c.h.b16 %v3982
    %v5114 = vunpack.c.l.b16 %v3983
    %v5115 = vunpack.c.h.b16 %v3983
    %v5116 = vunpack.c.l.b16 %v3984
    %v5117 = vunpack.c.h.b16 %v3984
    %v5118 = vunpack.c.l.b16 %v3985
    %v5119 = vunpack.c.h.b16 %v3985
    %v5120 = vunpack.c.l.b16 %v3986
    %v5121 = vunpack.c.h.b16 %v3986
    %v5122 = vunpack.c.l.b16 %v3987
    %v5123 = vunpack.c.h.b16 %v3987
    %v5124 = vunpack.c.l.b16 %v3988
    %v5125 = vunpack.c.h.b16 %v3988
    %v5126 = vunpack.c.l.b16 %v3989
    %v5127 = vunpack.c.h.b16 %v3989
    %v5128 = vunpack.c.l.b16 %v3990
    %v5129 = vunpack.c.h.b16 %v3990
    %v5130 = vunpack.c.l.b16 %v3991
    %v5131 = vunpack.c.h.b16 %v3991
    %v5132 = vunpack.c.l.b16 %v3992
    %v5133 = vunpack.c.h.b16 %v3992
    %v5134 = vunpack.c.l.b16 %v3993
    %v5135 = vunpack.c.h.b16 %v3993
    %v5136 = vunpack.c.l.b16 %v3994
    %v5137 = vunpack.c.h.b16 %v3994
    %v5138 = vunpack.c.l.b16 %v3995
    %v5139 = vunpack.c.h.b16 %v3995
    %v5140 = vunpack.c.l.b16 %v3996
    %v5141 = vunpack.c.h.b16 %v3996
    %v5142 = vunpack.c.l.b16 %v3997
    %v5143 = vunpack.c.h.b16 %v3997
    %v5144 = vunpack.c.l.b16 %v3998
    %v5145 = vunpack.c.h.b16 %v3998
    %v5146 = vunpack.c.l.b16 %v3999
    %v5147 = vunpack.c.h.b16 %v3999
    %v5148 = vunpack.c.l.b16 %v4000
    %v5149 = vunpack.c.h.b16 %v4000
    %v5150 = vunpack.c.l.b16 %v4001
    %v5151 = vunpack.c.h.b16 %v4001
    %v5152 = vunpack.c.l.b16 %v4002
    %v5153 = vunpack.c.h.b16 %v4002
    %v5154 = vunpack.c.l.b16 %v4003
    %v5155 = vunpack.c.h.b16 %v4003
    %v5156 = vunpack.c.l.b16 %v4004
    %v5157 = vunpack.c.h.b16 %v4004
    %v5158 = vunpack.c.l.b16 %v4005
    %v5159 = vunpack.c.h.b16 %v4005
    %v5160 = vunpack.c.l.b16 %v4006
    %v5161 = vunpack.c.h.b16 %v4006
    %v5162 = vunpack.c.l.b16 %v4007
    %v5163 = vunpack.c.h.b16 %v4007
    %v5164 = vunpack.c.l.b16 %v4008
    %v5165 = vunpack.c.h.b16 %v4008
    %v5166 = vunpack.c.l.b16 %v4009
    %v5167 = vunpack.c.h.b16 %v4009
    %v5168 = vunpack.c.l.b16 %v4010
    %v5169 = vunpack.c.h.b16 %v4010
    %v5170 = vunpack.c.l.b16 %v4011
    %v5171 = vunpack.c.h.b16 %v4011
    %v5172 = vunpack.c.l.b16 %v4012
    %v5173 = vunpack.c.h.b16 %v4012
    %v5174 = vunpack.c.l.b16 %v4013
    %v5175 = vunpack.c.h.b16 %v4013
    %v5176 = vunpack.c.l.b16 %v4014
    %v5177 = vunpack.c.h.b16 %v4014
    %v5178 = vunpack.c.l.b16 %v4015
    %v5179 = vunpack.c.h.b16 %v4015
    %v5180 = vunpack.c.l.b16 %v4016
    %v5181 = vunpack.c.h.b16 %v4016
    %v5182 = vunpack.c.l.b16 %v4017
    %v5183 = vunpack.c.h.b16 %v4017
    %v5184 = vunpack.c.l.b16 %v4018
    %v5185 = vunpack.c.h.b16 %v4018
    %v5186 = vunpack.c.l.b16 %v4019
    %v5187 = vunpack.c.h.b16 %v4019
    %v5188 = vunpack.c.l.b16 %v4020
    %v5189 = vunpack.c.h.b16 %v4020
    %v5190 = vunpack.c.l.b16 %v4021
    %v5191 = vunpack.c.h.b16 %v4021
    %v5192 = vunpack.c.l.b16 %v4022
    %v5193 = vunpack.c.h.b16 %v4022
    %v5194 = vunpack.c.l.b16 %v4023
    %v5195 = vunpack.c.h.b16 %v4023
    %v5196 = vunpack.c.l.b16 %v4024
    %v5197 = vunpack.c.h.b16 %v4024
    %v5198 = vunpack.c.l.b16 %v4025
    %v5199 = vunpack.c.h.b16 %v4025
    %v5200 = vunpack.c.l.b16 %v4026
    %v5201 = vunpack.c.h.b16 %v4026
    %v5202 = vunpack.c.l.b16 %v4027
    %v5203 = vunpack.c.h.b16 %v4027
    %v5204 = vunpack.c.l.b16 %v4028
    %v5205 = vunpack.c.h.b16 %v4028
    %v5206 = vunpack.c.l.b16 %v4029
    %v5207 = vunpack.c.h.b16 %v4029
    %v5208 = vunpack.c.l.b16 %v4030
    %v5209 = vunpack.c.h.b16 %v4030
    %v5210 = vunpack.c.l.b16 %v4031
    %v5211 = vunpack.c.h.b16 %v4031
    %v5212 = vunpack.c.l.b16 %v4032
    %v5213 = vunpack.c.h.b16 %v4032
    %v5214 = vunpack.c.l.b16 %v4033
    %v5215 = vunpack.c.h.b16 %v4033
    %v5216 = vunpack.c.l.b16 %v4034
    %v5217 = vunpack.c.h.b16 %v4034
    %v5218 = vunpack.c.l.b16 %v4035
    %v5219 = vunpack.c.h.b16 %v4035
    %v5220 = vunpack.c.l.b16 %v4036
    %v5221 = vunpack.c.h.b16 %v4036
    %v5222 = vunpack.c.l.b16 %v4037
    %v5223 = vunpack.c.h.b16 %v4037
    %v5224 = vunpack.c.l.b16 %v4038
    %v5225 = vunpack.c.h.b16 %v4038
    %v5226 = vunpack.c.l.b16 %v4039
    %v5227 = vunpack.c.h.b16 %v4039
    %v5228 = vunpack.c.l.b16 %v4040
    %v5229 = vunpack.c.h.b16 %v4040
    %v5230 = vunpack.c.l.b16 %v4041
    %v5231 = vunpack.c.h.b16 %v4041
    %v5232 = vunpack.c.l.b16 %v4042
    %v5233 = vunpack.c.h.b16 %v4042
    %v5234 = vunpack.c.l.b16 %v4043
    %v5235 = vunpack.c.h.b16 %v4043
    %v5236 = vunpack.c.l.b16 %v4044
    %v5237 = vunpack.c.h.b16 %v4044
    %v5238 = vunpack.c.l.b16 %v4045
    %v5239 = vunpack.c.h.b16 %v4045
    %v5240 = vunpack.c.l.b16 %v4046
    %v5241 = vunpack.c.h.b16 %v4046
    %v5242 = vunpack.c.l.b16 %v4047
    %v5243 = vunpack.c.h.b16 %v4047
    %v5244 = vunpack.c.l.b16 %v4048
    %v5245 = vunpack.c.h.b16 %v4048
    %v5246 = vunpack.c.l.b16 %v4049
    %v5247 = vunpack.c.h.b16 %v4049
    %v5248 = vunpack.c.l.b16 %v4050
    %v5249 = vunpack.c.h.b16 %v4050
    %v5250 = vunpack.c.l.b16 %v4051
    %v5251 = vunpack.c.h.b16 %v4051
    %v5252 = vunpack.c.l.b16 %v4052
    %v5253 = vunpack.c.h.b16 %v4052
    %v5254 = vunpack.c.l.b16 %v4053
    %v5255 = vunpack.c.h.b16 %v4053
    %v5256 = vunpack.c.l.b16 %v4054
    %v5257 = vunpack.c.h.b16 %v4054
    %v5258 = vunpack.c.l.b16 %v4055
    %v5259 = vunpack.c.h.b16 %v4055
    %v5260 = vunpack.c.l.b16 %v4056
    %v5261 = vunpack.c.h.b16 %v4056
    %v5262 = vunpack.c.l.b16 %v4057
    %v5263 = vunpack.c.h.b16 %v4057
    %v5264 = vunpack.c.l.b16 %v4058
    %v5265 = vunpack.c.h.b16 %v4058
    %v5266 = vunpack.c.l.b16 %v4059
    %v5267 = vunpack.c.h.b16 %v4059
    %v5268 = vunpack.c.l.b16 %v4060
    %v5269 = vunpack.c.h.b16 %v4060
    %v5270 = vunpack.c.l.b16 %v4061
    %v5271 = vunpack.c.h.b16 %v4061
    %v5272 = vunpack.c.l.b16 %v4062
    %v5273 = vunpack.c.h.b16 %v4062
    %v5274 = vunpack.c.l.b16 %v4063
    %v5275 = vunpack.c.h.b16 %v4063
    %v5276 = vunpack.c.l.b16 %v4064
    %v5277 = vunpack.c.h.b16 %v4064
    %v5278 = vunpack.c.l.b16 %v4065
    %v5279 = vunpack.c.h.b16 %v4065
    %v5280 = vunpack.c.l.b16 %v4066
    %v5281 = vunpack.c.h.b16 %v4066
    %v5282 = vunpack.c.l.b16 %v4067
    %v5283 = vunpack.c.h.b16 %v4067
    %v5284 = vunpack.c.l.b16 %v4068
    %v5285 = vunpack.c.h.b16 %v4068
    %v5286 = vunpack.c.l.b16 %v4069
    %v5287 = vunpack.c.h.b16 %v4069
    %v5288 = vunpack.c.l.b16 %v4070
    %v5289 = vunpack.c.h.b16 %v4070
    %v5290 = vunpack.c.l.b16 %v4071
    %v5291 = vunpack.c.h.b16 %v4071
    %v5292 = vunpack.c.l.b16 %v4072
    %v5293 = vunpack.c.h.b16 %v4072
    %v5294 = vunpack.c.l.b16 %v4073
    %v5295 = vunpack.c.h.b16 %v4073
    %v5296 = vunpack.c.l.b16 %v4074
    %v5297 = vunpack.c.h.b16 %v4074
    %v5298 = vunpack.c.l.b16 %v4075
    %v5299 = vunpack.c.h.b16 %v4075
    %v5300 = vunpack.c.l.b16 %v4076
    %v5301 = vunpack.c.h.b16 %v4076
    %v5302 = vunpack.c.l.b16 %v4077
    %v5303 = vunpack.c.h.b16 %v4077
    %v5304 = vunpack.c.l.b16 %v4078
    %v5305 = vunpack.c.h.b16 %v4078
    %v5306 = vunpack.c.l.b16 %v4079
    %v5307 = vunpack.c.h.b16 %v4079
    %v5308 = vunpack.c.l.b16 %v4080
    %v5309 = vunpack.c.h.b16 %v4080
    %v5310 = vunpack.c.l.b16 %v4081
    %v5311 = vunpack.c.h.b16 %v4081
    %v5312 = vunpack.c.l.b16 %v4082
    %v5313 = vunpack.c.h.b16 %v4082
    %v5314 = vunpack.c.l.b16 %v4083
    %v5315 = vunpack.c.h.b16 %v4083
    %v5316 = vunpack.c.l.b16 %v4084
    %v5317 = vunpack.c.h.b16 %v4084
    %v5318 = vunpack.c.l.b16 %v4085
    %v5319 = vunpack.c.h.b16 %v4085
    %v5320 = vunpack.c.l.b16 %v4086
    %v5321 = vunpack.c.h.b16 %v4086
    %v5322 = vunpack.c.l.b16 %v4087
    %v5323 = vunpack.c.h.b16 %v4087
    %v5324 = vunpack.c.l.b16 %v4088
    %v5325 = vunpack.c.h.b16 %v4088
    %v5326 = vunpack.c.l.b16 %v4089
    %v5327 = vunpack.c.h.b16 %v4089
    %v5328 = vunpack.c.l.b16 %v4090
    %v5329 = vunpack.c.h.b16 %v4090
    %v5330 = vunpack.c.l.b16 %v4091
    %v5331 = vunpack.c.h.b16 %v4091
    %v5332 = vunpack.c.l.b16 %v4092
    %v5333 = vunpack.c.h.b16 %v4092
    %v5334 = vunpack.c.l.b16 %v4093
    %v5335 = vunpack.c.h.b16 %v4093
    %v5336 = vunpack.c.l.b16 %v4094
    %v5337 = vunpack.c.h.b16 %v4094
    %v5338 = vunpack.c.l.b16 %v4095
    %v5339 = vunpack.c.h.b16 %v4095
    %v5340 = vunpack.c.l.b16 %v4096
    %v5341 = vunpack.c.h.b16 %v4096
    %v5342 = vunpack.c.l.b16 %v4097
    %v5343 = vunpack.c.h.b16 %v4097
    %v5344 = vunpack.c.l.b16 %v4098
    %v5345 = vunpack.c.h.b16 %v4098
    %v5346 = vunpack.c.l.b16 %v4099
    %v5347 = vunpack.c.h.b16 %v4099
    %v5348 = vunpack.c.l.b16 %v4100
    %v5349 = vunpack.c.h.b16 %v4100
    %v5350 = vunpack.c.l.b16 %v4101
    %v5351 = vunpack.c.h.b16 %v4101
    %v5352 = vunpack.c.l.b16 %v4102
    %v5353 = vunpack.c.h.b16 %v4102
    %v5354 = vunpack.c.l.b16 %v4103
    %v5355 = vunpack.c.h.b16 %v4103
    %v5356 = vunpack.c.l.b16 %v4104
    %v5357 = vunpack.c.h.b16 %v4104
    %v5358 = vunpack.c.l.b16 %v4105
    %v5359 = vunpack.c.h.b16 %v4105
    %v5360 = vunpack.c.l.b16 %v4106
    %v5361 = vunpack.c.h.b16 %v4106
    %v5362 = vunpack.c.l.b16 %v4107
    %v5363 = vunpack.c.h.b16 %v4107
    %v5364 = vunpack.c.l.b16 %v4108
    %v5365 = vunpack.c.h.b16 %v4108
    %v5366 = vunpack.c.l.b16 %v4109
    %v5367 = vunpack.c.h.b16 %v4109
    %v5368 = vunpack.c.l.b16 %v4110
    %v5369 = vunpack.c.h.b16 %v4110
    %v5370 = vunpack.c.l.b16 %v4111
    %v5371 = vunpack.c.h.b16 %v4111
    %v5372 = vunpack.c.l.b16 %v4112
    %v5373 = vunpack.c.h.b16 %v4112
    %v5374 = vunpack.c.l.b16 %v4113
    %v5375 = vunpack.c.h.b16 %v4113
    %v5376 = vunpack.c.l.b16 %v4114
    %v5377 = vunpack.c.h.b16 %v4114
    %v5378 = vunpack.c.l.b16 %v4115
    %v5379 = vunpack.c.h.b16 %v4115
    %v5380 = vunpack.c.l.b16 %v4116
    %v5381 = vunpack.c.h.b16 %v4116
    %v5382 = vunpack.c.l.b16 %v4117
    %v5383 = vunpack.c.h.b16 %v4117
    %v5384 = vunpack.c.l.b16 %v4118
    %v5385 = vunpack.c.h.b16 %v4118
    %v5386 = vunpack.c.l.b16 %v4119
    %v5387 = vunpack.c.h.b16 %v4119
    %v5388 = vunpack.c.l.b16 %v4120
    %v5389 = vunpack.c.h.b16 %v4120
    %v5390 = vunpack.c.l.b16 %v4121
    %v5391 = vunpack.c.h.b16 %v4121
    %v5392 = vunpack.c.l.b16 %v4122
    %v5393 = vunpack.c.h.b16 %v4122
    %v5394 = vunpack.c.l.b16 %v4123
    %v5395 = vunpack.c.h.b16 %v4123
    %v5396 = vunpack.c.l.b16 %v4124
    %v5397 = vunpack.c.h.b16 %v4124
    %v5398 = vunpack.c.l.b16 %v4125
    %v5399 = vunpack.c.h.b16 %v4125
    %v5400 = vunpack.c.l.b16 %v4126
    %v5401 = vunpack.c.h.b16 %v4126
    %v5402 = vunpack.c.l.b16 %v4127
    %v5403 = vunpack.c.h.b16 %v4127
    %v5404 = vunpack.c.l.b16 %v4128
    %v5405 = vunpack.c.h.b16 %v4128
    %v5406 = vunpack.c.l.b16 %v4129
    %v5407 = vunpack.c.h.b16 %v4129
    %v5408 = vunpack.c.l.b16 %v4130
    %v5409 = vunpack.c.h.b16 %v4130
    %v5410 = vunpack.c.l.b16 %v4131
    %v5411 = vunpack.c.h.b16 %v4131
    %v5412 = vunpack.c.l.b16 %v4132
    %v5413 = vunpack.c.h.b16 %v4132
    %v5414 = vunpack.c.l.b16 %v4133
    %v5415 = vunpack.c.h.b16 %v4133
    %v5416 = vunpack.c.l.b16 %v4134
    %v5417 = vunpack.c.h.b16 %v4134
    %v5418 = vunpack.c.l.b16 %v4135
    %v5419 = vunpack.c.h.b16 %v4135
    %v5420 = vunpack.c.l.b16 %v4136
    %v5421 = vunpack.c.h.b16 %v4136
    %v5422 = vunpack.c.l.b16 %v4137
    %v5423 = vunpack.c.h.b16 %v4137
    %v5424 = vunpack.c.l.b16 %v4138
    %v5425 = vunpack.c.h.b16 %v4138
    %v5426 = vunpack.c.l.b16 %v4139
    %v5427 = vunpack.c.h.b16 %v4139
    %v5428 = vunpack.c.l.b16 %v4140
    %v5429 = vunpack.c.h.b16 %v4140
    %v5430 = vunpack.c.l.b16 %v4141
    %v5431 = vunpack.c.h.b16 %v4141
    %v5432 = vunpack.c.l.b16 %v4142
    %v5433 = vunpack.c.h.b16 %v4142
    %v5434 = vunpack.c.l.b16 %v4143
    %v5435 = vunpack.c.h.b16 %v4143
    %v5436 = vunpack.c.l.b16 %v4144
    %v5437 = vunpack.c.h.b16 %v4144
    %v5438 = vunpack.c.l.b16 %v4145
    %v5439 = vunpack.c.h.b16 %v4145
    %v5440 = vunpack.c.l.b16 %v4146
    %v5441 = vunpack.c.h.b16 %v4146
    %v5442 = vunpack.c.l.b16 %v4147
    %v5443 = vunpack.c.h.b16 %v4147
    %v5444 = vunpack.c.l.b16 %v4148
    %v5445 = vunpack.c.h.b16 %v4148
    %v5446 = vunpack.c.l.b16 %v4149
    %v5447 = vunpack.c.h.b16 %v4149
    %v5448 = vunpack.c.l.b16 %v4150
    %v5449 = vunpack.c.h.b16 %v4150
    %v5450 = vunpack.c.l.b16 %v4151
    %v5451 = vunpack.c.h.b16 %v4151
    %v5452 = vunpack.c.l.b16 %v4152
    %v5453 = vunpack.c.h.b16 %v4152
    %v5454 = vunpack.c.l.b16 %v4153
    %v5455 = vunpack.c.h.b16 %v4153
    %v5456 = vunpack.c.l.b16 %v4154
    %v5457 = vunpack.c.h.b16 %v4154
    %v5458 = vunpack.c.l.b16 %v4155
    %v5459 = vunpack.c.h.b16 %v4155
    %v5460 = vunpack.c.l.b16 %v4156
    %v5461 = vunpack.c.h.b16 %v4156
    %v5462 = vunpack.c.l.b16 %v4157
    %v5463 = vunpack.c.h.b16 %v4157
    %v5464 = vunpack.c.l.b16 %v4158
    %v5465 = vunpack.c.h.b16 %v4158
    %v5466 = vunpack.c.l.b16 %v4159
    %v5467 = vunpack.c.h.b16 %v4159
    %v5468 = vunpack.c.l.b16 %v4160
    %v5469 = vunpack.c.h.b16 %v4160
    %v5470 = vunpack.c.l.b16 %v4161
    %v5471 = vunpack.c.h.b16 %v4161
    %v5472 = vunpack.c.l.b16 %v4162
    %v5473 = vunpack.c.h.b16 %v4162
    %v5474 = vunpack.c.l.b16 %v4163
    %v5475 = vunpack.c.h.b16 %v4163
    %v5476 = vunpack.c.l.b16 %v4164
    %v5477 = vunpack.c.h.b16 %v4164
    %v5478 = vunpack.c.l.b16 %v4165
    %v5479 = vunpack.c.h.b16 %v4165
    %v5480 = vunpack.c.l.b16 %v4166
    %v5481 = vunpack.c.h.b16 %v4166
    %v5482 = vunpack.c.l.b16 %v4167
    %v5483 = vunpack.c.h.b16 %v4167
    %v5484 = vunpack.c.l.b16 %v4168
    %v5485 = vunpack.c.h.b16 %v4168
    %v5486 = vunpack.c.l.b16 %v4169
    %v5487 = vunpack.c.h.b16 %v4169
    %v5488 = vunpack.c.l.b16 %v4170
    %v5489 = vunpack.c.h.b16 %v4170
    %v5490 = vunpack.c.l.b16 %v4171
    %v5491 = vunpack.c.h.b16 %v4171
    %v5492 = vunpack.c.l.b16 %v4172
    %v5493 = vunpack.c.h.b16 %v4172
    %v5494 = vunpack.c.l.b16 %v4173
    %v5495 = vunpack.c.h.b16 %v4173
    %v5496 = vunpack.c.l.b16 %v4174
    %v5497 = vunpack.c.h.b16 %v4174
    %v5498 = vunpack.c.l.b16 %v4175
    %v5499 = vunpack.c.h.b16 %v4175
    %v5500 = vunpack.c.l.b16 %v4176
    %v5501 = vunpack.c.h.b16 %v4176
    %v5502 = vunpack.c.l.b16 %v4177
    %v5503 = vunpack.c.h.b16 %v4177
    %v5504 = vunpack.c.l.b16 %v4178
    %v5505 = vunpack.c.h.b16 %v4178
    %v5506 = vunpack.c.l.b16 %v4179
    %v5507 = vunpack.c.h.b16 %v4179
    %v5508 = vunpack.c.l.b16 %v4180
    %v5509 = vunpack.c.h.b16 %v4180
    %v5510 = vunpack.c.l.b16 %v4181
    %v5511 = vunpack.c.h.b16 %v4181
    %v5512 = vunpack.c.l.b16 %v4182
    %v5513 = vunpack.c.h.b16 %v4182
    %v5514 = vunpack.c.l.b16 %v4183
    %v5515 = vunpack.c.h.b16 %v4183
    %v5516 = vunpack.c.l.b16 %v4184
    %v5517 = vunpack.c.h.b16 %v4184
    %v5518 = vunpack.c.l.b16 %v4185
    %v5519 = vunpack.c.h.b16 %v4185
    %v5520 = vunpack.c.l.b16 %v4186
    %v5521 = vunpack.c.h.b16 %v4186
    %v5522 = vunpack.c.l.b16 %v4187
    %v5523 = vunpack.c.h.b16 %v4187
    %v5524 = vunpack.c.l.b16 %v4188
    %v5525 = vunpack.c.h.b16 %v4188
    %v5526 = vunpack.c.l.b16 %v4189
    %v5527 = vunpack.c.h.b16 %v4189
    %v5528 = vunpack.c.l.b16 %v4190
    %v5529 = vunpack.c.h.b16 %v4190
    %v5530 = vunpack.c.l.b16 %v4191
    %v5531 = vunpack.c.h.b16 %v4191
    %v5532 = vunpack.c.l.b16 %v4192
    %v5533 = vunpack.c.h.b16 %v4192
    %v5534 = vunpack.c.l.b16 %v4193
    %v5535 = vunpack.c.h.b16 %v4193
    %v5536 = vunpack.c.l.b16 %v4194
    %v5537 = vunpack.c.h.b16 %v4194
    %v5538 = vunpack.c.l.b16 %v4195
    %v5539 = vunpack.c.h.b16 %v4195
    %v5540 = vunpack.c.l.b16 %v4196
    %v5541 = vunpack.c.h.b16 %v4196
    %v5542 = vunpack.c.l.b16 %v4197
    %v5543 = vunpack.c.h.b16 %v4197
    %v5544 = vunpack.c.l.b16 %v4198
    %v5545 = vunpack.c.h.b16 %v4198
    %v5546 = vunpack.c.l.b16 %v4199
    %v5547 = vunpack.c.h.b16 %v4199
    %v5548 = vunpack.c.l.b16 %v4200
    %v5549 = vunpack.c.h.b16 %v4200
    %v5550 = vunpack.c.l.b16 %v4201
    %v5551 = vunpack.c.h.b16 %v4201
    %v5552 = vunpack.c.l.b16 %v4202
    %v5553 = vunpack.c.h.b16 %v4202
    %v5554 = vunpack.c.l.b16 %v4203
    %v5555 = vunpack.c.h.b16 %v4203
    %v5556 = vunpack.c.l.b16 %v4204
    %v5557 = vunpack.c.h.b16 %v4204
    %v5558 = vunpack.c.l.b16 %v4205
    %v5559 = vunpack.c.h.b16 %v4205
    %v5560 = vunpack.c.l.b16 %v4206
    %v5561 = vunpack.c.h.b16 %v4206
    %v5562 = vunpack.c.l.b16 %v4207
    %v5563 = vunpack.c.h.b16 %v4207
    %v5564 = vunpack.c.l.b16 %v4208
    %v5565 = vunpack.c.h.b16 %v4208
    %v5566 = vunpack.c.l.b16 %v4209
    %v5567 = vunpack.c.h.b16 %v4209
    %v5568 = vunpack.c.l.b16 %v4210
    %v5569 = vunpack.c.h.b16 %v4210
    %v5570 = vunpack.c.l.b16 %v4211
    %v5571 = vunpack.c.h.b16 %v4211
    %v5572 = vunpack.c.l.b16 %v4212
    %v5573 = vunpack.c.h.b16 %v4212
    %v5574 = vunpack.c.l.b16 %v4213
    %v5575 = vunpack.c.h.b16 %v4213
    %v5576 = vunpack.c.l.b16 %v4214
    %v5577 = vunpack.c.h.b16 %v4214
    %v5578 = vunpack.c.l.b16 %v4215
    %v5579 = vunpack.c.h.b16 %v4215
    %v5580 = vunpack.c.l.b16 %v4216
    %v5581 = vunpack.c.h.b16 %v4216
    %v5582 = vunpack.c.l.b16 %v4217
    %v5583 = vunpack.c.h.b16 %v4217
    %v5584 = vunpack.c.l.b16 %v4218
    %v5585 = vunpack.c.h.b16 %v4218
    %v5586 = vunpack.c.l.b16 %v4219
    %v5587 = vunpack.c.h.b16 %v4219
    %v5588 = vunpack.c.l.b16 %v4220
    %v5589 = vunpack.c.h.b16 %v4220
    %v5590 = vunpack.c.l.b16 %v4221
    %v5591 = vunpack.c.h.b16 %v4221
    %v5592 = vunpack.c.l.b16 %v4222
    %v5593 = vunpack.c.h.b16 %v4222
    %v5594 = vunpack.c.l.b16 %v4223
    %v5595 = vunpack.c.h.b16 %v4223
    %v5596 = vunpack.c.l.b16 %v4224
    %v5597 = vunpack.c.h.b16 %v4224
    %v5598 = vunpack.c.l.b16 %v4225
    %v5599 = vunpack.c.h.b16 %v4225
    %v5600 = vunpack.c.l.b16 %v4226
    %v5601 = vunpack.c.h.b16 %v4226
    %v5602 = vunpack.c.l.b16 %v4227
    %v5603 = vunpack.c.h.b16 %v4227
    %v5604 = vunpack.c.l.b16 %v4228
    %v5605 = vunpack.c.h.b16 %v4228
    %v5606 = vunpack.c.l.b16 %v4229
    %v5607 = vunpack.c.h.b16 %v4229
    %v5608 = vunpack.c.l.b16 %v4230
    %v5609 = vunpack.c.h.b16 %v4230
    %v5610 = vunpack.c.l.b16 %v4231
    %v5611 = vunpack.c.h.b16 %v4231
    %v5612 = vunpack.c.l.b16 %v4232
    %v5613 = vunpack.c.h.b16 %v4232
    %v5614 = vunpack.c.l.b16 %v4233
    %v5615 = vunpack.c.h.b16 %v4233
    %v5616 = vunpack.c.l.b16 %v4234
    %v5617 = vunpack.c.h.b16 %v4234
    %v5618 = vunpack.c.l.b16 %v4235
    %v5619 = vunpack.c.h.b16 %v4235
    %v5620 = vunpack.c.l.b16 %v4236
    %v5621 = vunpack.c.h.b16 %v4236
    %v5622 = vunpack.c.l.b16 %v4237
    %v5623 = vunpack.c.h.b16 %v4237
    %v5624 = vunpack.c.l.b16 %v4238
    %v5625 = vunpack.c.h.b16 %v4238
    %v5626 = vunpack.c.l.b16 %v4239
    %v5627 = vunpack.c.h.b16 %v4239
    %v5628 = vunpack.c.l.b16 %v4240
    %v5629 = vunpack.c.h.b16 %v4240
    %v5630 = vunpack.c.l.b16 %v4241
    %v5631 = vunpack.c.h.b16 %v4241
    %v5632 = vunpack.c.l.b16 %v4242
    %v5633 = vunpack.c.h.b16 %v4242
    %v5634 = vunpack.c.l.b16 %v4243
    %v5635 = vunpack.c.h.b16 %v4243
    %v5636 = vunpack.c.l.b16 %v4244
    %v5637 = vunpack.c.h.b16 %v4244
    %v5638 = vunpack.c.l.b16 %v4245
    %v5639 = vunpack.c.h.b16 %v4245
    %v5640 = vunpack.c.l.b16 %v4246
    %v5641 = vunpack.c.h.b16 %v4246
    %v5642 = vunpack.c.l.b16 %v4247
    %v5643 = vunpack.c.h.b16 %v4247
    %v5644 = vunpack.c.l.b16 %v4248
    %v5645 = vunpack.c.h.b16 %v4248
    %v5646 = vunpack.c.l.b16 %v4249
    %v5647 = vunpack.c.h.b16 %v4249
    %v5648 = vunpack.c.l.b16 %v4250
    %v5649 = vunpack.c.h.b16 %v4250
    %v5650 = vunpack.c.l.b16 %v4251
    %v5651 = vunpack.c.h.b16 %v4251
    %v5652 = vunpack.c.l.b16 %v4252
    %v5653 = vunpack.c.h.b16 %v4252
    %v5654 = vunpack.c.l.b16 %v4253
    %v5655 = vunpack.c.h.b16 %v4253
    %v5656 = vunpack.c.l.b16 %v4254
    %v5657 = vunpack.c.h.b16 %v4254
    %v5658 = vunpack.c.l.b16 %v4255
    %v5659 = vunpack.c.h.b16 %v4255
    %v5660 = vunpack.c.l.b16 %v4256
    %v5661 = vunpack.c.h.b16 %v4256
    %v5662 = vunpack.c.l.b16 %v4257
    %v5663 = vunpack.c.h.b16 %v4257
    %v5664 = vunpack.c.l.b16 %v4258
    %v5665 = vunpack.c.h.b16 %v4258
    %v5666 = vunpack.c.l.b16 %v4259
    %v5667 = vunpack.c.h.b16 %v4259
    %v5668 = vunpack.c.l.b16 %v4260
    %v5669 = vunpack.c.h.b16 %v4260
    %v5670 = vunpack.c.l.b16 %v4261
    %v5671 = vunpack.c.h.b16 %v4261
    %v5672 = vunpack.c.l.b16 %v4262
    %v5673 = vunpack.c.h.b16 %v4262
    %v5674 = vunpack.c.l.b16 %v4263
    %v5675 = vunpack.c.h.b16 %v4263
    %v5676 = vunpack.c.l.b16 %v4264
    %v5677 = vunpack.c.h.b16 %v4264
    %v5678 = vunpack.c.l.b16 %v4265
    %v5679 = vunpack.c.h.b16 %v4265
    %v5680 = vunpack.c.l.b16 %v4266
    %v5681 = vunpack.c.h.b16 %v4266
    %v5682 = vunpack.c.l.b16 %v4267
    %v5683 = vunpack.c.h.b16 %v4267
    %v5684 = vunpack.c.l.b16 %v4268
    %v5685 = vunpack.c.h.b16 %v4268
    %v5686 = vunpack.c.l.b16 %v4269
    %v5687 = vunpack.c.h.b16 %v4269
    %v5688 = vunpack.c.l.b16 %v4270
    %v5689 = vunpack.c.h.b16 %v4270
    %v5690 = vunpack.c.l.b16 %v4271
    %v5691 = vunpack.c.h.b16 %v4271
    %v5692 = vunpack.c.l.b16 %v4272
    %v5693 = vunpack.c.h.b16 %v4272
    %v5694 = vunpack.c.l.b16 %v4273
    %v5695 = vunpack.c.h.b16 %v4273
    %v5696 = vunpack.c.l.b16 %v4274
    %v5697 = vunpack.c.h.b16 %v4274
    %v5698 = vunpack.c.l.b16 %v4275
    %v5699 = vunpack.c.h.b16 %v4275
    %v5700 = vunpack.c.l.b16 %v4276
    %v5701 = vunpack.c.h.b16 %v4276
    %v5702 = vunpack.c.l.b16 %v4277
    %v5703 = vunpack.c.h.b16 %v4277
    %v5704 = vunpack.c.l.b16 %v4278
    %v5705 = vunpack.c.h.b16 %v4278
    %v5706 = vunpack.c.l.b16 %v4279
    %v5707 = vunpack.c.h.b16 %v4279
    %v5708 = vunpack.c.l.b16 %v4280
    %v5709 = vunpack.c.h.b16 %v4280
    %v5710 = vunpack.c.l.b16 %v4281
    %v5711 = vunpack.c.h.b16 %v4281
    %v5712 = vunpack.c.l.b16 %v4282
    %v5713 = vunpack.c.h.b16 %v4282
    %v5714 = vunpack.c.l.b16 %v4283
    %v5715 = vunpack.c.h.b16 %v4283
    %v5716 = vunpack.c.l.b16 %v4284
    %v5717 = vunpack.c.h.b16 %v4284
    %v5718 = vunpack.c.l.b16 %v4285
    %v5719 = vunpack.c.h.b16 %v4285
    %v5720 = vunpack.c.l.b16 %v4286
    %v5721 = vunpack.c.h.b16 %v4286
    %v5722 = vunpack.c.l.b16 %v4287
    %v5723 = vunpack.c.h.b16 %v4287
    %v5724 = vunpack.c.l.b16 %v4288
    %v5725 = vunpack.c.h.b16 %v4288
    %v5726 = vunpack.c.l.b16 %v4289
    %v5727 = vunpack.c.h.b16 %v4289
    %v5728 = vunpack.c.l.b16 %v4290
    %v5729 = vunpack.c.h.b16 %v4290
    %v5730 = vunpack.c.l.b16 %v4291
    %v5731 = vunpack.c.h.b16 %v4291
    %v5732 = vunpack.c.l.b16 %v4292
    %v5733 = vunpack.c.h.b16 %v4292
    %v5734 = vunpack.c.l.b16 %v4293
    %v5735 = vunpack.c.h.b16 %v4293
    %v5736 = vunpack.c.l.b16 %v4294
    %v5737 = vunpack.c.h.b16 %v4294
    %v5738 = vunpack.c.l.b16 %v4295
    %v5739 = vunpack.c.h.b16 %v4295
    %v5740 = vunpack.c.l.b16 %v4296
    %v5741 = vunpack.c.h.b16 %v4296
    %v5742 = vunpack.c.l.b16 %v4297
    %v5743 = vunpack.c.h.b16 %v4297
    %v5744 = vunpack.c.l.b16 %v4298
    %v5745 = vunpack.c.h.b16 %v4298
    %v5746 = vunpack.c.l.b16 %v4299
    %v5747 = vunpack.c.h.b16 %v4299
    %v5748 = vunpack.c.l.b16 %v4300
    %v5749 = vunpack.c.h.b16 %v4300
    %v5750 = vunpack.c.l.b16 %v4301
    %v5751 = vunpack.c.h.b16 %v4301
    %v5752 = vunpack.c.l.b16 %v4302
    %v5753 = vunpack.c.h.b16 %v4302
    %v5754 = vunpack.c.l.b16 %v4303
    %v5755 = vunpack.c.h.b16 %v4303
    %v5756 = vunpack.c.l.b16 %v4304
    %v5757 = vunpack.c.h.b16 %v4304
    %v5758 = vunpack.c.l.b16 %v4305
    %v5759 = vunpack.c.h.b16 %v4305
    %v5760 = vunpack.c.l.b16 %v4306
    %v5761 = vunpack.c.h.b16 %v4306
    %v5762 = vunpack.c.l.b16 %v4307
    %v5763 = vunpack.c.h.b16 %v4307
    %v5764 = vunpack.c.l.b16 %v4308
    %v5765 = vunpack.c.h.b16 %v4308
    %v5766 = vunpack.c.l.b16 %v4309
    %v5767 = vunpack.c.h.b16 %v4309
    %v5768 = vunpack.c.l.b16 %v4310
    %v5769 = vunpack.c.h.b16 %v4310
    %v5770 = vunpack.c.l.b16 %v4311
    %v5771 = vunpack.c.h.b16 %v4311
    %v5772 = vunpack.c.l.b16 %v4312
    %v5773 = vunpack.c.h.b16 %v4312
    %v5774 = vunpack.c.l.b16 %v4313
    %v5775 = vunpack.c.h.b16 %v4313
    %v5776 = vunpack.c.l.b16 %v4314
    %v5777 = vunpack.c.h.b16 %v4314
    %v5778 = vunpack.c.l.b16 %v4315
    %v5779 = vunpack.c.h.b16 %v4315
    %v5780 = vunpack.c.l.b16 %v4316
    %v5781 = vunpack.c.h.b16 %v4316
    %v5782 = vunpack.c.l.b16 %v4317
    %v5783 = vunpack.c.h.b16 %v4317
    %v5784 = vunpack.c.l.b16 %v4318
    %v5785 = vunpack.c.h.b16 %v4318
    %v5786 = vunpack.c.l.b16 %v4319
    %v5787 = vunpack.c.h.b16 %v4319
    %v5788 = vunpack.c.l.b16 %v4320
    %v5789 = vunpack.c.h.b16 %v4320
    %v5790 = vunpack.c.l.b16 %v4321
    %v5791 = vunpack.c.h.b16 %v4321
    %v5792 = vunpack.c.l.b16 %v4322
    %v5793 = vunpack.c.h.b16 %v4322
    %v5794 = vunpack.c.l.b16 %v4323
    %v5795 = vunpack.c.h.b16 %v4323
    %v5796 = vunpack.c.l.b16 %v4324
    %v5797 = vunpack.c.h.b16 %v4324
    %v5798 = vunpack.c.l.b16 %v4325
    %v5799 = vunpack.c.h.b16 %v4325
    %v5800 = vunpack.c.l.b16 %v4326
    %v5801 = vunpack.c.h.b16 %v4326
    %v5802 = vunpack.c.l.b16 %v4327
    %v5803 = vunpack.c.h.b16 %v4327
    %v5804 = vunpack.c.l.b16 %v4328
    %v5805 = vunpack.c.h.b16 %v4328
    %v5806 = vunpack.c.l.b16 %v4329
    %v5807 = vunpack.c.h.b16 %v4329
    %v5808 = vunpack.c.l.b16 %v4330
    %v5809 = vunpack.c.h.b16 %v4330
    %v5810 = vunpack.c.l.b16 %v4331
    %v5811 = vunpack.c.h.b16 %v4331
    %v5812 = vunpack.c.l.b16 %v4332
    %v5813 = vunpack.c.h.b16 %v4332
    %v5814 = vunpack.c.l.b16 %v4333
    %v5815 = vunpack.c.h.b16 %v4333
    %v5816 = vunpack.c.l.b16 %v4334
    %v5817 = vunpack.c.h.b16 %v4334
    %v5818 = vunpack.c.l.b16 %v4335
    %v5819 = vunpack.c.h.b16 %v4335
    %v5820 = vunpack.c.l.b16 %v4336
    %v5821 = vunpack.c.h.b16 %v4336
    %v5822 = vunpack.c.l.b16 %v4337
    %v5823 = vunpack.c.h.b16 %v4337
    %v5824 = vunpack.c.l.b16 %v4338
    %v5825 = vunpack.c.h.b16 %v4338
    %v5826 = vunpack.c.l.b16 %v4339
    %v5827 = vunpack.c.h.b16 %v4339
    %v5828 = vunpack.c.l.b16 %v4340
    %v5829 = vunpack.c.h.b16 %v4340
    %v5830 = vunpack.c.l.b16 %v4341
    %v5831 = vunpack.c.h.b16 %v4341
    %v5832 = vunpack.c.l.b16 %v4342
    %v5833 = vunpack.c.h.b16 %v4342
    %v5834 = vunpack.c.l.b16 %v4343
    %v5835 = vunpack.c.h.b16 %v4343
    %v5836 = vunpack.c.l.b16 %v4344
    %v5837 = vunpack.c.h.b16 %v4344
    %v5838 = vunpack.c.l.b16 %v4345
    %v5839 = vunpack.c.h.b16 %v4345
    %v5840 = vunpack.c.l.b16 %v4346
    %v5841 = vunpack.c.h.b16 %v4346
    %v5842 = vunpack.c.l.b16 %v4347
    %v5843 = vunpack.c.h.b16 %v4347
    %v5844 = vunpack.c.l.b16 %v4348
    %v5845 = vunpack.c.h.b16 %v4348
    %v5846 = vunpack.c.l.b16 %v4349
    %v5847 = vunpack.c.h.b16 %v4349
    %v5848 = vunpack.c.l.b16 %v4350
    %v5849 = vunpack.c.h.b16 %v4350
    %v5850 = vunpack.c.l.b16 %v4351
    %v5851 = vunpack.c.h.b16 %v4351
    %v5852 = vunpack.c.l.b16 %v4352
    %v5853 = vunpack.c.h.b16 %v4352
    %v5854 = vunpack.c.l.b16 %v4353
    %v5855 = vunpack.c.h.b16 %v4353
    %v5856 = vunpack.c.l.b16 %v4354
    %v5857 = vunpack.c.h.b16 %v4354
    %v5858 = vunpack.c.l.b16 %v4355
    %v5859 = vunpack.c.h.b16 %v4355
    %v5860 = vunpack.c.l.b16 %v4356
    %v5861 = vunpack.c.h.b16 %v4356
    %v5862 = vunpack.c.l.b16 %v4357
    %v5863 = vunpack.c.h.b16 %v4357
    %v5864 = vunpack.c.l.b16 %v4358
    %v5865 = vunpack.c.h.b16 %v4358
    %v5866 = vunpack.c.l.b16 %v4359
    %v5867 = vunpack.c.h.b16 %v4359
    %v5868 = vunpack.c.l.b16 %v4360
    %v5869 = vunpack.c.h.b16 %v4360
    %v5870 = vunpack.c.l.b16 %v4361
    %v5871 = vunpack.c.h.b16 %v4361
    %v5872 = vunpack.c.l.b16 %v4362
    %v5873 = vunpack.c.h.b16 %v4362
    %v5874 = vunpack.c.l.b16 %v4363
    %v5875 = vunpack.c.h.b16 %v4363
    %v5876 = vunpack.c.l.b16 %v4364
    %v5877 = vunpack.c.h.b16 %v4364
    %v5878 = vunpack.c.l.b16 %v4365
    %v5879 = vunpack.c.h.b16 %v4365
    %v5880 = vunpack.c.l.b16 %v4366
    %v5881 = vunpack.c.h.b16 %v4366
    %v5882 = vunpack.c.l.b16 %v4367
    %v5883 = vunpack.c.h.b16 %v4367
    %v5884 = vunpack.c.l.b16 %v4368
    %v5885 = vunpack.c.h.b16 %v4368
    %v5886 = vunpack.c.l.b16 %v4369
    %v5887 = vunpack.c.h.b16 %v4369
    %v5888 = vunpack.c.l.b16 %v4370
    %v5889 = vunpack.c.h.b16 %v4370
    %v5890 = vunpack.c.l.b16 %v4371
    %v5891 = vunpack.c.h.b16 %v4371
    %v5892 = vunpack.c.l.b16 %v4372
    %v5893 = vunpack.c.h.b16 %v4372
    %v5894 = vunpack.c.l.b16 %v4373
    %v5895 = vunpack.c.h.b16 %v4373
    %v5896 = vunpack.c.l.b16 %v4374
    %v5897 = vunpack.c.h.b16 %v4374
    %v5898 = vunpack.c.l.b16 %v4375
    %v5899 = vunpack.c.h.b16 %v4375
    %v5900 = vunpack.c.l.b16 %v4376
    %v5901 = vunpack.c.h.b16 %v4376
    %v5902 = vunpack.c.l.b16 %v4377
    %v5903 = vunpack.c.h.b16 %v4377
    %v5904 = vunpack.c.l.b16 %v4378
    %v5905 = vunpack.c.h.b16 %v4378
    %v5906 = vunpack.c.l.b16 %v4379
    %v5907 = vunpack.c.h.b16 %v4379
    %v5908 = vunpack.c.l.b16 %v4380
    %v5909 = vunpack.c.h.b16 %v4380
    %v5910 = vunpack.c.l.b16 %v4381
    %v5911 = vunpack.c.h.b16 %v4381
    %v5912 = vunpack.c.l.b16 %v4382
    %v5913 = vunpack.c.h.b16 %v4382
    %v5914 = vunpack.c.l.b16 %v4383
    %v5915 = vunpack.c.h.b16 %v4383
    %v5916 = vunpack.c.l.b16 %v4384
    %v5917 = vunpack.c.h.b16 %v4384
    %v5918 = vunpack.c.l.b16 %v4385
    %v5919 = vunpack.c.h.b16 %v4385
    %v5920 = vunpack.c.l.b16 %v4386
    %v5921 = vunpack.c.h.b16 %v4386
    %v5922 = vunpack.c.l.b16 %v4387
    %v5923 = vunpack.c.h.b16 %v4387
    %v5924 = vpack.c.b16 %v4904, %v4900
    %v5925 = vpack.c.b16 %v4905, %v4901
    %v5926 = vpack.c.b16 %v4906, %v4902
    %v5927 = vpack.c.b16 %v4907, %v4903
    %v5928 = vpack.c.b16 %v4912, %v4908
    %v5929 = vpack.c.b16 %v4913, %v4909
    %v5930 = vpack.c.b16 %v4914, %v4910
    %v5931 = vpack.c.b16 %v4915, %v4911
    %v5932 = vpack.c.b16 %v4920, %v4916
    %v5933 = vpack.c.b16 %v4921, %v4917
    %v5934 = vpack.c.b16 %v4922, %v4918
    %v5935 = vpack.c.b16 %v4923, %v4919
    %v5936 = vpack.c.b16 %v4928, %v4924
    %v5937 = vpack.c.b16 %v4929, %v4925
    %v5938 = vpack.c.b16 %v4930, %v4926
    %v5939 = vpack.c.b16 %v4931, %v4927
    %v5940 = vpack.c.b16 %v4936, %v4932
    %v5941 = vpack.c.b16 %v4937, %v4933
    %v5942 = vpack.c.b16 %v4938, %v4934
    %v5943 = vpack.c.b16 %v4939, %v4935
    %v5944 = vpack.c.b16 %v4944, %v4940
    %v5945 = vpack.c.b16 %v4945, %v4941
    %v5946 = vpack.c.b16 %v4946, %v4942
    %v5947 = vpack.c.b16 %v4947, %v4943
    %v5948 = vpack.c.b16 %v4952, %v4948
    %v5949 = vpack.c.b16 %v4953, %v4949
    %v5950 = vpack.c.b16 %v4954, %v4950
    %v5951 = vpack.c.b16 %v4955, %v4951
    %v5952 = vpack.c.b16 %v4960, %v4956
    %v5953 = vpack.c.b16 %v4961, %v4957
    %v5954 = vpack.c.b16 %v4962, %v4958
    %v5955 = vpack.c.b16 %v4963, %v4959
    %v5956 = vpack.c.b16 %v4968, %v4964
    %v5957 = vpack.c.b16 %v4969, %v4965
    %v5958 = vpack.c.b16 %v4970, %v4966
    %v5959 = vpack.c.b16 %v4971, %v4967
    %v5960 = vpack.c.b16 %v4976, %v4972
    %v5961 = vpack.c.b16 %v4977, %v4973
    %v5962 = vpack.c.b16 %v4978, %v4974
    %v5963 = vpack.c.b16 %v4979, %v4975
    %v5964 = vpack.c.b16 %v4984, %v4980
    %v5965 = vpack.c.b16 %v4985, %v4981
    %v5966 = vpack.c.b16 %v4986, %v4982
    %v5967 = vpack.c.b16 %v4987, %v4983
    %v5968 = vpack.c.b16 %v4992, %v4988
    %v5969 = vpack.c.b16 %v4993, %v4989
    %v5970 = vpack.c.b16 %v4994, %v4990
    %v5971 = vpack.c.b16 %v4995, %v4991
    %v5972 = vpack.c.b16 %v5000, %v4996
    %v5973 = vpack.c.b16 %v5001, %v4997
    %v5974 = vpack.c.b16 %v5002, %v4998
    %v5975 = vpack.c.b16 %v5003, %v4999
    %v5976 = vpack.c.b16 %v5008, %v5004
    %v5977 = vpack.c.b16 %v5009, %v5005
    %v5978 = vpack.c.b16 %v5010, %v5006
    %v5979 = vpack.c.b16 %v5011, %v5007
    %v5980 = vpack.c.b16 %v5016, %v5012
    %v5981 = vpack.c.b16 %v5017, %v5013
    %v5982 = vpack.c.b16 %v5018, %v5014
    %v5983 = vpack.c.b16 %v5019, %v5015
    %v5984 = vpack.c.b16 %v5024, %v5020
    %v5985 = vpack.c.b16 %v5025, %v5021
    %v5986 = vpack.c.b16 %v5026, %v5022
    %v5987 = vpack.c.b16 %v5027, %v5023
    %v5988 = vpack.c.b16 %v5032, %v5028
    %v5989 = vpack.c.b16 %v5033, %v5029
    %v5990 = vpack.c.b16 %v5034, %v5030
    %v5991 = vpack.c.b16 %v5035, %v5031
    %v5992 = vpack.c.b16 %v5040, %v5036
    %v5993 = vpack.c.b16 %v5041, %v5037
    %v5994 = vpack.c.b16 %v5042, %v5038
    %v5995 = vpack.c.b16 %v5043, %v5039
    %v5996 = vpack.c.b16 %v5048, %v5044
    %v5997 = vpack.c.b16 %v5049, %v5045
    %v5998 = vpack.c.b16 %v5050, %v5046
    %v5999 = vpack.c.b16 %v5051, %v5047
    %v6000 = vpack.c.b16 %v5056, %v5052
    %v6001 = vpack.c.b16 %v5057, %v5053
    %v6002 = vpack.c.b16 %v5058, %v5054
    %v6003 = vpack.c.b16 %v5059, %v5055
    %v6004 = vpack.c.b16 %v5064, %v5060
    %v6005 = vpack.c.b16 %v5065, %v5061
    %v6006 = vpack.c.b16 %v5066, %v5062
    %v6007 = vpack.c.b16 %v5067, %v5063
    %v6008 = vpack.c.b16 %v5072, %v5068
    %v6009 = vpack.c.b16 %v5073, %v5069
    %v6010 = vpack.c.b16 %v5074, %v5070
    %v6011 = vpack.c.b16 %v5075, %v5071
    %v6012 = vpack.c.b16 %v5080, %v5076
    %v6013 = vpack.c.b16 %v5081, %v5077
    %v6014 = vpack.c.b16 %v5082, %v5078
    %v6015 = vpack.c.b16 %v5083, %v5079
    %v6016 = vpack.c.b16 %v5088, %v5084
    %v6017 = vpack.c.b16 %v5089, %v5085
    %v6018 = vpack.c.b16 %v5090, %v5086
    %v6019 = vpack.c.b16 %v5091, %v5087
    %v6020 = vpack.c.b16 %v5096, %v5092
    %v6021 = vpack.c.b16 %v5097, %v5093
    %v6022 = vpack.c.b16 %v5098, %v5094
    %v6023 = vpack.c.b16 %v5099, %v5095
    %v6024 = vpack.c.b16 %v5104, %v5100
    %v6025 = vpack.c.b16 %v5105, %v5101
    %v6026 = vpack.c.b16 %v5106, %v5102
    %v6027 = vpack.c.b16 %v5107, %v5103
    %v6028 = vpack.c.b16 %v5112, %v5108
    %v6029 = vpack.c.b16 %v5113, %v5109
    %v6030 = vpack.c.b16 %v5114, %v5110
    %v6031 = vpack.c.b16 %v5115, %v5111
    %v6032 = vpack.c.b16 %v5120, %v5116
    %v6033 = vpack.c.b16 %v5121, %v5117
    %v6034 = vpack.c.b16 %v5122, %v5118
    %v6035 = vpack.c.b16 %v5123, %v5119
    %v6036 = vpack.c.b16 %v5128, %v5124
    %v6037 = vpack.c.b16 %v5129, %v5125
    %v6038 = vpack.c.b16 %v5130, %v5126
    %v6039 = vpack.c.b16 %v5131, %v5127
    %v6040 = vpack.c.b16 %v5136, %v5132
    %v6041 = vpack.c.b16 %v5137, %v5133
    %v6042 = vpack.c.b16 %v5138, %v5134
    %v6043 = vpack.c.b16 %v5139, %v5135
    %v6044 = vpack.c.b16 %v5144, %v5140
    %v6045 = vpack.c.b16 %v5145, %v5141
    %v6046 = vpack.c.b16 %v5146, %v5142
    %v6047 = vpack.c.b16 %v5147, %v5143
    %v6048 = vpack.c.b16 %v5152, %v5148
    %v6049 = vpack.c.b16 %v5153, %v5149
    %v6050 = vpack.c.b16 %v5154, %v5150
    %v6051 = vpack.c.b16 %v5155, %v5151
    %v6052 = vpack.c.b16 %v5160, %v5156
    %v6053 = vpack.c.b16 %v5161, %v5157
    %v6054 = vpack.c.b16 %v5162, %v5158
    %v6055 = vpack.c.b16 %v5163, %v5159
    %v6056 = vpack.c.b16 %v5168, %v5164
    %v6057 = vpack.c.b16 %v5169, %v5165
    %v6058 = vpack.c.b16 %v5170, %v5166
    %v6059 = vpack.c.b16 %v5171, %v5167
    %v6060 = vpack.c.b16 %v5176, %v5172
    %v6061 = vpack.c.b16 %v5177, %v5173
    %v6062 = vpack.c.b16 %v5178, %v5174
    %v6063 = vpack.c.b16 %v5179, %v5175
    %v6064 = vpack.c.b16 %v5184, %v5180
    %v6065 = vpack.c.b16 %v5185, %v5181
    %v6066 = vpack.c.b16 %v5186, %v5182
    %v6067 = vpack.c.b16 %v5187, %v5183
    %v6068 = vpack.c.b16 %v5192, %v5188
    %v6069 = vpack.c.b16 %v5193, %v5189
    %v6070 = vpack.c.b16 %v5194, %v5190
    %v6071 = vpack.c.b16 %v5195, %v5191
    %v6072 = vpack.c.b16 %v5200, %v5196
    %v6073 = vpack.c.b16 %v5201, %v5197
    %v6074 = vpack.c.b16 %v5202, %v5198
    %v6075 = vpack.c.b16 %v5203, %v5199
    %v6076 = vpack.c.b16 %v5208, %v5204
    %v6077 = vpack.c.b16 %v5209, %v5205
    %v6078 = vpack.c.b16 %v5210, %v5206
    %v6079 = vpack.c.b16 %v5211, %v5207
    %v6080 = vpack.c.b16 %v5216, %v5212
    %v6081 = vpack.c.b16 %v5217, %v5213
    %v6082 = vpack.c.b16 %v5218, %v5214
    %v6083 = vpack.c.b16 %v5219, %v5215
    %v6084 = vpack.c.b16 %v5224, %v5220
    %v6085 = vpack.c.b16 %v5225, %v5221
    %v6086 = vpack.c.b16 %v5226, %v5222
    %v6087 = vpack.c.b16 %v5227, %v5223
    %v6088 = vpack.c.b16 %v5232, %v5228
    %v6089 = vpack.c.b16 %v5233, %v5229
    %v6090 = vpack.c.b16 %v5234, %v5230
    %v6091 = vpack.c.b16 %v5235, %v5231
    %v6092 = vpack.c.b16 %v5240, %v5236
    %v6093 = vpack.c.b16 %v5241, %v5237
    %v6094 = vpack.c.b16 %v5242, %v5238
    %v6095 = vpack.c.b16 %v5243, %v5239
    %v6096 = vpack.c.b16 %v5248, %v5244
    %v6097 = vpack.c.b16 %v5249, %v5245
    %v6098 = vpack.c.b16 %v5250, %v5246
    %v6099 = vpack.c.b16 %v5251, %v5247
    %v6100 = vpack.c.b16 %v5256, %v5252
    %v6101 = vpack.c.b16 %v5257, %v5253
    %v6102 = vpack.c.b16 %v5258, %v5254
    %v6103 = vpack.c.b16 %v5259, %v5255
    %v6104 = vpack.c.b16 %v5264, %v5260
    %v6105 = vpack.c.b16 %v5265, %v5261
    %v6106 = vpack.c.b16 %v5266, %v5262
    %v6107 = vpack.c.b16 %v5267, %v5263
    %v6108 = vpack.c.b16 %v5272, %v5268
    %v6109 = vpack.c.b16 %v5273, %v5269
    %v6110 = vpack.c.b16 %v5274, %v5270
    %v6111 = vpack.c.b16 %v5275, %v5271
    %v6112 = vpack.c.b16 %v5280, %v5276
    %v6113 = vpack.c.b16 %v5281, %v5277
    %v6114 = vpack.c.b16 %v5282, %v5278
    %v6115 = vpack.c.b16 %v5283, %v5279
    %v6116 = vpack.c.b16 %v5288, %v5284
    %v6117 = vpack.c.b16 %v5289, %v5285
    %v6118 = vpack.c.b16 %v5290, %v5286
    %v6119 = vpack.c.b16 %v5291, %v5287
    %v6120 = vpack.c.b16 %v5296, %v5292
    %v6121 = vpack.c.b16 %v5297, %v5293
    %v6122 = vpack.c.b16 %v5298, %v5294
    %v6123 = vpack.c.b16 %v5299, %v5295
    %v6124 = vpack.c.b16 %v5304, %v5300
    %v6125 = vpack.c.b16 %v5305, %v5301
    %v6126 = vpack.c.b16 %v5306, %v5302
    %v6127 = vpack.c.b16 %v5307, %v5303
    %v6128 = vpack.c.b16 %v5312, %v5308
    %v6129 = vpack.c.b16 %v5313, %v5309
    %v6130 = vpack.c.b16 %v5314, %v5310
    %v6131 = vpack.c.b16 %v5315, %v5311
    %v6132 = vpack.c.b16 %v5320, %v5316
    %v6133 = vpack.c.b16 %v5321, %v5317
    %v6134 = vpack.c.b16 %v5322, %v5318
    %v6135 = vpack.c.b16 %v5323, %v5319
    %v6136 = vpack.c.b16 %v5328, %v5324
    %v6137 = vpack.c.b16 %v5329, %v5325
    %v6138 = vpack.c.b16 %v5330, %v5326
    %v6139 = vpack.c.b16 %v5331, %v5327
    %v6140 = vpack.c.b16 %v5336, %v5332
    %v6141 = vpack.c.b16 %v5337, %v5333
    %v6142 = vpack.c.b16 %v5338, %v5334
    %v6143 = vpack.c.b16 %v5339, %v5335
    %v6144 = vpack.c.b16 %v5344, %v5340
    %v6145 = vpack.c.b16 %v5345, %v5341
    %v6146 = vpack.c.b16 %v5346, %v5342
    %v6147 = vpack.c.b16 %v5347, %v5343
    %v6148 = vpack.c.b16 %v5352, %v5348
    %v6149 = vpack.c.b16 %v5353, %v5349
    %v6150 = vpack.c.b16 %v5354, %v5350
    %v6151 = vpack.c.b16 %v5355, %v5351
    %v6152 = vpack.c.b16 %v5360, %v5356
    %v6153 = vpack.c.b16 %v5361, %v5357
    %v6154 = vpack.c.b16 %v5362, %v5358
    %v6155 = vpack.c.b16 %v5363, %v5359
    %v6156 = vpack.c.b16 %v5368, %v5364
    %v6157 = vpack.c.b16 %v5369, %v5365
    %v6158 = vpack.c.b16 %v5370, %v5366
    %v6159 = vpack.c.b16 %v5371, %v5367
    %v6160 = vpack.c.b16 %v5376, %v5372
    %v6161 = vpack.c.b16 %v5377, %v5373
    %v6162 = vpack.c.b16 %v5378, %v5374
    %v6163 = vpack.c.b16 %v5379, %v5375
    %v6164 = vpack.c.b16 %v5384, %v5380
    %v6165 = vpack.c.b16 %v5385, %v5381
    %v6166 = vpack.c.b16 %v5386, %v5382
    %v6167 = vpack.c.b16 %v5387, %v5383
    %v6168 = vpack.c.b16 %v5392, %v5388
    %v6169 = vpack.c.b16 %v5393, %v5389
    %v6170 = vpack.c.b16 %v5394, %v5390
    %v6171 = vpack.c.b16 %v5395, %v5391
    %v6172 = vpack.c.b16 %v5400, %v5396
    %v6173 = vpack.c.b16 %v5401, %v5397
    %v6174 = vpack.c.b16 %v5402, %v5398
    %v6175 = vpack.c.b16 %v5403, %v5399
    %v6176 = vpack.c.b16 %v5408, %v5404
    %v6177 = vpack.c.b16 %v5409, %v5405
    %v6178 = vpack.c.b16 %v5410, %v5406
    %v6179 = vpack.c.b16 %v5411, %v5407
    %v6180 = vpack.c.b16 %v5416, %v5412
    %v6181 = vpack.c.b16 %v5417, %v5413
    %v6182 = vpack.c.b16 %v5418, %v5414
    %v6183 = vpack.c.b16 %v5419, %v5415
    %v6184 = vpack.c.b16 %v5424, %v5420
    %v6185 = vpack.c.b16 %v5425, %v5421
    %v6186 = vpack.c.b16 %v5426, %v5422
    %v6187 = vpack.c.b16 %v5427, %v5423
    %v6188 = vpack.c.b16 %v5432, %v5428
    %v6189 = vpack.c.b16 %v5433, %v5429
    %v6190 = vpack.c.b16 %v5434, %v5430
    %v6191 = vpack.c.b16 %v5435, %v5431
    %v6192 = vpack.c.b16 %v5440, %v5436
    %v6193 = vpack.c.b16 %v5441, %v5437
    %v6194 = vpack.c.b16 %v5442, %v5438
    %v6195 = vpack.c.b16 %v5443, %v5439
    %v6196 = vpack.c.b16 %v5448, %v5444
    %v6197 = vpack.c.b16 %v5449, %v5445
    %v6198 = vpack.c.b16 %v5450, %v5446
    %v6199 = vpack.c.b16 %v5451, %v5447
    %v6200 = vpack.c.b16 %v5456, %v5452
    %v6201 = vpack.c.b16 %v5457, %v5453
    %v6202 = vpack.c.b16 %v5458, %v5454
    %v6203 = vpack.c.b16 %v5459, %v5455
    %v6204 = vpack.c.b16 %v5464, %v5460
    %v6205 = vpack.c.b16 %v5465, %v5461
    %v6206 = vpack.c.b16 %v5466, %v5462
    %v6207 = vpack.c.b16 %v5467, %v5463
    %v6208 = vpack.c.b16 %v5472, %v5468
    %v6209 = vpack.c.b16 %v5473, %v5469
    %v6210 = vpack.c.b16 %v5474, %v5470
    %v6211 = vpack.c.b16 %v5475, %v5471
    %v6212 = vpack.c.b16 %v5480, %v5476
    %v6213 = vpack.c.b16 %v5481, %v5477
    %v6214 = vpack.c.b16 %v5482, %v5478
    %v6215 = vpack.c.b16 %v5483, %v5479
    %v6216 = vpack.c.b16 %v5488, %v5484
    %v6217 = vpack.c.b16 %v5489, %v5485
    %v6218 = vpack.c.b16 %v5490, %v5486
    %v6219 = vpack.c.b16 %v5491, %v5487
    %v6220 = vpack.c.b16 %v5496, %v5492
    %v6221 = vpack.c.b16 %v5497, %v5493
    %v6222 = vpack.c.b16 %v5498, %v5494
    %v6223 = vpack.c.b16 %v5499, %v5495
    %v6224 = vpack.c.b16 %v5504, %v5500
    %v6225 = vpack.c.b16 %v5505, %v5501
    %v6226 = vpack.c.b16 %v5506, %v5502
    %v6227 = vpack.c.b16 %v5507, %v5503
    %v6228 = vpack.c.b16 %v5512, %v5508
    %v6229 = vpack.c.b16 %v5513, %v5509
    %v6230 = vpack.c.b16 %v5514, %v5510
    %v6231 = vpack.c.b16 %v5515, %v5511
    %v6232 = vpack.c.b16 %v5520, %v5516
    %v6233 = vpack.c.b16 %v5521, %v5517
    %v6234 = vpack.c.b16 %v5522, %v5518
    %v6235 = vpack.c.b16 %v5523, %v5519
    %v6236 = vpack.c.b16 %v5528, %v5524
    %v6237 = vpack.c.b16 %v5529, %v5525
    %v6238 = vpack.c.b16 %v5530, %v5526
    %v6239 = vpack.c.b16 %v5531, %v5527
    %v6240 = vpack.c.b16 %v5536, %v5532
    %v6241 = vpack.c.b16 %v5537, %v5533
    %v6242 = vpack.c.b16 %v5538, %v5534
    %v6243 = vpack.c.b16 %v5539, %v5535
    %v6244 = vpack.c.b16 %v5544, %v5540
    %v6245 = vpack.c.b16 %v5545, %v5541
    %v6246 = vpack.c.b16 %v5546, %v5542
    %v6247 = vpack.c.b16 %v5547, %v5543
    %v6248 = vpack.c.b16 %v5552, %v5548
    %v6249 = vpack.c.b16 %v5553, %v5549
    %v6250 = vpack.c.b16 %v5554, %v5550
    %v6251 = vpack.c.b16 %v5555, %v5551
    %v6252 = vpack.c.b16 %v5560, %v5556
    %v6253 = vpack.c.b16 %v5561, %v5557
    %v6254 = vpack.c.b16 %v5562, %v5558
    %v6255 = vpack.c.b16 %v5563, %v5559
    %v6256 = vpack.c.b16 %v5568, %v5564
    %v6257 = vpack.c.b16 %v5569, %v5565
    %v6258 = vpack.c.b16 %v5570, %v5566
    %v6259 = vpack.c.b16 %v5571, %v5567
    %v6260 = vpack.c.b16 %v5576, %v5572
    %v6261 = vpack.c.b16 %v5577, %v5573
    %v6262 = vpack.c.b16 %v5578, %v5574
    %v6263 = vpack.c.b16 %v5579, %v5575
    %v6264 = vpack.c.b16 %v5584, %v5580
    %v6265 = vpack.c.b16 %v5585, %v5581
    %v6266 = vpack.c.b16 %v5586, %v5582
    %v6267 = vpack.c.b16 %v5587, %v5583
    %v6268 = vpack.c.b16 %v5592, %v5588
    %v6269 = vpack.c.b16 %v5593, %v5589
    %v6270 = vpack.c.b16 %v5594, %v5590
    %v6271 = vpack.c.b16 %v5595, %v5591
    %v6272 = vpack.c.b16 %v5600, %v5596
    %v6273 = vpack.c.b16 %v5601, %v5597
    %v6274 = vpack.c.b16 %v5602, %v5598
    %v6275 = vpack.c.b16 %v5603, %v5599
    %v6276 = vpack.c.b16 %v5608, %v5604
    %v6277 = vpack.c.b16 %v5609, %v5605
    %v6278 = vpack.c.b16 %v5610, %v5606
    %v6279 = vpack.c.b16 %v5611, %v5607
    %v6280 = vpack.c.b16 %v5616, %v5612
    %v6281 = vpack.c.b16 %v5617, %v5613
    %v6282 = vpack.c.b16 %v5618, %v5614
    %v6283 = vpack.c.b16 %v5619, %v5615
    %v6284 = vpack.c.b16 %v5624, %v5620
    %v6285 = vpack.c.b16 %v5625, %v5621
    %v6286 = vpack.c.b16 %v5626, %v5622
    %v6287 = vpack.c.b16 %v5627, %v5623
    %v6288 = vpack.c.b16 %v5632, %v5628
    %v6289 = vpack.c.b16 %v5633, %v5629
    %v6290 = vpack.c.b16 %v5634, %v5630
    %v6291 = vpack.c.b16 %v5635, %v5631
    %v6292 = vpack.c.b16 %v5640, %v5636
    %v6293 = vpack.c.b16 %v5641, %v5637
    %v6294 = vpack.c.b16 %v5642, %v5638
    %v6295 = vpack.c.b16 %v5643, %v5639
    %v6296 = vpack.c.b16 %v5648, %v5644
    %v6297 = vpack.c.b16 %v5649, %v5645
    %v6298 = vpack.c.b16 %v5650, %v5646
    %v6299 = vpack.c.b16 %v5651, %v5647
    %v6300 = vpack.c.b16 %v5656, %v5652
    %v6301 = vpack.c.b16 %v5657, %v5653
    %v6302 = vpack.c.b16 %v5658, %v5654
    %v6303 = vpack.c.b16 %v5659, %v5655
    %v6304 = vpack.c.b16 %v5664, %v5660
    %v6305 = vpack.c.b16 %v5665, %v5661
    %v6306 = vpack.c.b16 %v5666, %v5662
    %v6307 = vpack.c.b16 %v5667, %v5663
    %v6308 = vpack.c.b16 %v5672, %v5668
    %v6309 = vpack.c.b16 %v5673, %v5669
    %v6310 = vpack.c.b16 %v5674, %v5670
    %v6311 = vpack.c.b16 %v5675, %v5671
    %v6312 = vpack.c.b16 %v5680, %v5676
    %v6313 = vpack.c.b16 %v5681, %v5677
    %v6314 = vpack.c.b16 %v5682, %v5678
    %v6315 = vpack.c.b16 %v5683, %v5679
    %v6316 = vpack.c.b16 %v5688, %v5684
    %v6317 = vpack.c.b16 %v5689, %v5685
    %v6318 = vpack.c.b16 %v5690, %v5686
    %v6319 = vpack.c.b16 %v5691, %v5687
    %v6320 = vpack.c.b16 %v5696, %v5692
    %v6321 = vpack.c.b16 %v5697, %v5693
    %v6322 = vpack.c.b16 %v5698, %v5694
    %v6323 = vpack.c.b16 %v5699, %v5695
    %v6324 = vpack.c.b16 %v5704, %v5700
    %v6325 = vpack.c.b16 %v5705, %v5701
    %v6326 = vpack.c.b16 %v5706, %v5702
    %v6327 = vpack.c.b16 %v5707, %v5703
    %v6328 = vpack.c.b16 %v5712, %v5708
    %v6329 = vpack.c.b16 %v5713, %v5709
    %v6330 = vpack.c.b16 %v5714, %v5710
    %v6331 = vpack.c.b16 %v5715, %v5711
    %v6332 = vpack.c.b16 %v5720, %v5716
    %v6333 = vpack.c.b16 %v5721, %v5717
    %v6334 = vpack.c.b16 %v5722, %v5718
    %v6335 = vpack.c.b16 %v5723, %v5719
    %v6336 = vpack.c.b16 %v5728, %v5724
    %v6337 = vpack.c.b16 %v5729, %v5725
    %v6338 = vpack.c.b16 %v5730, %v5726
    %v6339 = vpack.c.b16 %v5731, %v5727
    %v6340 = vpack.c.b16 %v5736, %v5732
    %v6341 = vpack.c.b16 %v5737, %v5733
    %v6342 = vpack.c.b16 %v5738, %v5734
    %v6343 = vpack.c.b16 %v5739, %v5735
    %v6344 = vpack.c.b16 %v5744, %v5740
    %v6345 = vpack.c.b16 %v5745, %v5741
    %v6346 = vpack.c.b16 %v5746, %v5742
    %v6347 = vpack.c.b16 %v5747, %v5743
    %v6348 = vpack.c.b16 %v5752, %v5748
    %v6349 = vpack.c.b16 %v5753, %v5749
    %v6350 = vpack.c.b16 %v5754, %v5750
    %v6351 = vpack.c.b16 %v5755, %v5751
    %v6352 = vpack.c.b16 %v5760, %v5756
    %v6353 = vpack.c.b16 %v5761, %v5757
    %v6354 = vpack.c.b16 %v5762, %v5758
    %v6355 = vpack.c.b16 %v5763, %v5759
    %v6356 = vpack.c.b16 %v5768, %v5764
    %v6357 = vpack.c.b16 %v5769, %v5765
    %v6358 = vpack.c.b16 %v5770, %v5766
    %v6359 = vpack.c.b16 %v5771, %v5767
    %v6360 = vpack.c.b16 %v5776, %v5772
    %v6361 = vpack.c.b16 %v5777, %v5773
    %v6362 = vpack.c.b16 %v5778, %v5774
    %v6363 = vpack.c.b16 %v5779, %v5775
    %v6364 = vpack.c.b16 %v5784, %v5780
    %v6365 = vpack.c.b16 %v5785, %v5781
    %v6366 = vpack.c.b16 %v5786, %v5782
    %v6367 = vpack.c.b16 %v5787, %v5783
    %v6368 = vpack.c.b16 %v5792, %v5788
    %v6369 = vpack.c.b16 %v5793, %v5789
    %v6370 = vpack.c.b16 %v5794, %v5790
    %v6371 = vpack.c.b16 %v5795, %v5791
    %v6372 = vpack.c.b16 %v5800, %v5796
    %v6373 = vpack.c.b16 %v5801, %v5797
    %v6374 = vpack.c.b16 %v5802, %v5798
    %v6375 = vpack.c.b16 %v5803, %v5799
    %v6376 = vpack.c.b16 %v5808, %v5804
    %v6377 = vpack.c.b16 %v5809, %v5805
    %v6378 = vpack.c.b16 %v5810, %v5806
    %v6379 = vpack.c.b16 %v5811, %v5807
    %v6380 = vpack.c.b16 %v5816, %v5812
    %v6381 = vpack.c.b16 %v5817, %v5813
    %v6382 = vpack.c.b16 %v5818, %v5814
    %v6383 = vpack.c.b16 %v5819, %v5815
    %v6384 = vpack.c.b16 %v5824, %v5820
    %v6385 = vpack.c.b16 %v5825, %v5821
    %v6386 = vpack.c.b16 %v5826, %v5822
    %v6387 = vpack.c.b16 %v5827, %v5823
    %v6388 = vpack.c.b16 %v5832, %v5828
    %v6389 = vpack.c.b16 %v5833, %v5829
    %v6390 = vpack.c.b16 %v5834, %v5830
    %v6391 = vpack.c.b16 %v5835, %v5831
    %v6392 = vpack.c.b16 %v5840, %v5836
    %v6393 = vpack.c.b16 %v5841, %v5837
    %v6394 = vpack.c.b16 %v5842, %v5838
    %v6395 = vpack.c.b16 %v5843, %v5839
    %v6396 = vpack.c.b16 %v5848, %v5844
    %v6397 = vpack.c.b16 %v5849, %v5845
    %v6398 = vpack.c.b16 %v5850, %v5846
    %v6399 = vpack.c.b16 %v5851, %v5847
    %v6400 = vpack.c.b16 %v5856, %v5852
    %v6401 = vpack.c.b16 %v5857, %v5853
    %v6402 = vpack.c.b16 %v5858, %v5854
    %v6403 = vpack.c.b16 %v5859, %v5855
    %v6404 = vpack.c.b16 %v5864, %v5860
    %v6405 = vpack.c.b16 %v5865, %v5861
    %v6406 = vpack.c.b16 %v5866, %v5862
    %v6407 = vpack.c.b16 %v5867, %v5863
    %v6408 = vpack.c.b16 %v5872, %v5868
    %v6409 = vpack.c.b16 %v5873, %v5869
    %v6410 = vpack.c.b16 %v5874, %v5870
    %v6411 = vpack.c.b16 %v5875, %v5871
    %v6412 = vpack.c.b16 %v5880, %v5876
    %v6413 = vpack.c.b16 %v5881, %v5877
    %v6414 = vpack.c.b16 %v5882, %v5878
    %v6415 = vpack.c.b16 %v5883, %v5879
    %v6416 = vpack.c.b16 %v5888, %v5884
    %v6417 = vpack.c.b16 %v5889, %v5885
    %v6418 = vpack.c.b16 %v5890, %v5886
    %v6419 = vpack.c.b16 %v5891, %v5887
    %v6420 = vpack.c.b16 %v5896, %v5892
    %v6421 = vpack.c.b16 %v5897, %v5893
    %v6422 = vpack.c.b16 %v5898, %v5894
    %v6423 = vpack.c.b16 %v5899, %v5895
    %v6424 = vpack.c.b16 %v5904, %v5900
    %v6425 = vpack.c.b16 %v5905, %v5901
    %v6426 = vpack.c.b16 %v5906, %v5902
    %v6427 = vpack.c.b16 %v5907, %v5903
    %v6428 = vpack.c.b16 %v5912, %v5908
    %v6429 = vpack.c.b16 %v5913, %v5909
    %v6430 = vpack.c.b16 %v5914, %v5910
    %v6431 = vpack.c.b16 %v5915, %v5911
    %v6432 = vpack.c.b16 %v5920, %v5916
    %v6433 = vpack.c.b16 %v5921, %v5917
    %v6434 = vpack.c.b16 %v5922, %v5918
    %v6435 = vpack.c.b16 %v5923, %v5919
    %6948 = vmatprep.subr.bf16.mxu0 %v5925
    %6949 = vmatpush1.bf16.msra.mxu0 %v5924
    %6950 = vmatprep.subr.bf16.mxu0 %v5929
    %6951 = vmatpush1.bf16.msra.mxu0 %v5928
    %6952 = vmatprep.subr.bf16.mxu0 %v5933
    %6953 = vmatpush1.bf16.msra.mxu0 %v5932
    %6954 = vmatprep.subr.bf16.mxu0 %v5937
    %6955 = vmatpush1.bf16.msra.mxu0 %v5936
    %6956 = vmatprep.subr.bf16.mxu0 %v5941
    %6957 = vmatpush1.bf16.msra.mxu0 %v5940
    %6958 = vmatprep.subr.bf16.mxu0 %v5945
    %6959 = vmatpush1.bf16.msra.mxu0 %v5944
    %6960 = vmatprep.subr.bf16.mxu0 %v5949
    %6961 = vmatpush1.bf16.msra.mxu0 %v5948
    %6962 = vmatprep.subr.bf16.mxu0 %v5953
    %6963 = vmatpush1.bf16.msra.mxu0 %v5952
    %6964 = vmatprep.subr.bf16.mxu0 %v5957
    %6965 = vmatpush1.bf16.msra.mxu0 %v5956
    %6966 = vmatprep.subr.bf16.mxu0 %v5961
    %6967 = vmatpush1.bf16.msra.mxu0 %v5960
    %6968 = vmatprep.subr.bf16.mxu0 %v5965
    %6969 = vmatpush1.bf16.msra.mxu0 %v5964
    %6970 = vmatprep.subr.bf16.mxu0 %v5969
    %6971 = vmatpush1.bf16.msra.mxu0 %v5968
    %6972 = vmatprep.subr.bf16.mxu0 %v5973
    %6973 = vmatpush1.bf16.msra.mxu0 %v5972
    %6974 = vmatprep.subr.bf16.mxu0 %v5977
    %6975 = vmatpush1.bf16.msra.mxu0 %v5976
    %6976 = vmatprep.subr.bf16.mxu0 %v5981
    %6977 = vmatpush1.bf16.msra.mxu0 %v5980
    %6978 = vmatprep.subr.bf16.mxu0 %v5985
    %6979 = vmatpush1.bf16.msra.mxu0 %v5984
    %6980 = vmatprep.mubr.bf16.mxu0 %v3861
    %6981 = vmatmul.mubr.bf16.gmra.mrb[0].mxu0 %v3860
    %v6982 = vpop.f32.mrb[0].mxu0
    %v6983 = vadd.f32 %v56, %v6982
    %v6984 = vpop.f32.mrb[0].mxu0
    %v6985 = vadd.f32 %v57, %v6984
    %v6986 = vpop.f32.mrb[0].mxu0
    %v6987 = vadd.f32 %v60, %v6986
    %v6988 = vpop.f32.mrb[0].mxu0
    %v6989 = vadd.f32 %v61, %v6988
    %6990 = vdwg.mxu0
    %6991 = vmatprep.subr.bf16.mxu0 %v5989
    %6992 = vmatpush1.bf16.msra.mxu0 %v5988
    %6993 = vmatprep.subr.bf16.mxu0 %v5993
    %6994 = vmatpush1.bf16.msra.mxu0 %v5992
    %6995 = vmatprep.subr.bf16.mxu0 %v5997
    %6996 = vmatpush1.bf16.msra.mxu0 %v5996
    %6997 = vmatprep.subr.bf16.mxu0 %v6001
    %6998 = vmatpush1.bf16.msra.mxu0 %v6000
    %6999 = vmatprep.subr.bf16.mxu0 %v6005
    %7000 = vmatpush1.bf16.msra.mxu0 %v6004
    %7001 = vmatprep.subr.bf16.mxu0 %v6009
    %7002 = vmatpush1.bf16.msra.mxu0 %v6008
    %7003 = vmatprep.subr.bf16.mxu0 %v6013
    %7004 = vmatpush1.bf16.msra.mxu0 %v6012
    %7005 = vmatprep.subr.bf16.mxu0 %v6017
    %7006 = vmatpush1.bf16.msra.mxu0 %v6016
    %7007 = vmatprep.subr.bf16.mxu0 %v6021
    %7008 = vmatpush1.bf16.msra.mxu0 %v6020
    %7009 = vmatprep.subr.bf16.mxu0 %v6025
    %7010 = vmatpush1.bf16.msra.mxu0 %v6024
    %7011 = vmatprep.subr.bf16.mxu0 %v6029
    %7012 = vmatpush1.bf16.msra.mxu0 %v6028
    %7013 = vmatprep.subr.bf16.mxu0 %v6033
    %7014 = vmatpush1.bf16.msra.mxu0 %v6032
    %7015 = vmatprep.subr.bf16.mxu0 %v6037
    %7016 = vmatpush1.bf16.msra.mxu0 %v6036
    %7017 = vmatprep.subr.bf16.mxu0 %v6041
    %7018 = vmatpush1.bf16.msra.mxu0 %v6040
    %7019 = vmatprep.subr.bf16.mxu0 %v6045
    %7020 = vmatpush1.bf16.msra.mxu0 %v6044
    %7021 = vmatprep.subr.bf16.mxu0 %v6049
    %7022 = vmatpush1.bf16.msra.mxu0 %v6048
    %7023 = vmatprep.mubr.bf16.mxu0 %v3863
    %7024 = vmatmul.mubr.bf16.gmra.mrb[0].mxu0 %v3862
    %v7025 = vpop.f32.mrb[0].mxu0
    %v7026 = vadd.f32 %v6983, %v7025
    %v7027 = vpop.f32.mrb[0].mxu0
    %v7028 = vadd.f32 %v6985, %v7027
    %v7029 = vpop.f32.mrb[0].mxu0
    %v7030 = vadd.f32 %v6987, %v7029
    %v7031 = vpop.f32.mrb[0].mxu0
    %v7032 = vadd.f32 %v6989, %v7031
    %7033 = vdwg.mxu0
    %7034 = vmatprep.subr.bf16.mxu0 %v6053
    %7035 = vmatpush1.bf16.msra.mxu0 %v6052
    %7036 = vmatprep.subr.bf16.mxu0 %v6057
    %7037 = vmatpush1.bf16.msra.mxu0 %v6056
    %7038 = vmatprep.subr.bf16.mxu0 %v6061
    %7039 = vmatpush1.bf16.msra.mxu0 %v6060
    %7040 = vmatprep.subr.bf16.mxu0 %v6065
    %7041 = vmatpush1.bf16.msra.mxu0 %v6064
    %7042 = vmatprep.subr.bf16.mxu0 %v6069
    %7043 = vmatpush1.bf16.msra.mxu0 %v6068
    %7044 = vmatprep.subr.bf16.mxu0 %v6073
    %7045 = vmatpush1.bf16.msra.mxu0 %v6072
    %7046 = vmatprep.subr.bf16.mxu0 %v6077
    %7047 = vmatpush1.bf16.msra.mxu0 %v6076
    %7048 = vmatprep.subr.bf16.mxu0 %v6081
    %7049 = vmatpush1.bf16.msra.mxu0 %v6080
    %7050 = vmatprep.subr.bf16.mxu0 %v6085
    %7051 = vmatpush1.bf16.msra.mxu0 %v6084
    %7052 = vmatprep.subr.bf16.mxu0 %v6089
    %7053 = vmatpush1.bf16.msra.mxu0 %v6088
    %7054 = vmatprep.subr.bf16.mxu0 %v6093
    %7055 = vmatpush1.bf16.msra.mxu0 %v6092
    %7056 = vmatprep.subr.bf16.mxu0 %v6097
    %7057 = vmatpush1.bf16.msra.mxu0 %v6096
    %7058 = vmatprep.subr.bf16.mxu0 %v6101
    %7059 = vmatpush1.bf16.msra.mxu0 %v6100
    %7060 = vmatprep.subr.bf16.mxu0 %v6105
    %7061 = vmatpush1.bf16.msra.mxu0 %v6104
    %7062 = vmatprep.subr.bf16.mxu0 %v6109
    %7063 = vmatpush1.bf16.msra.mxu0 %v6108
    %7064 = vmatprep.subr.bf16.mxu0 %v6113
    %7065 = vmatpush1.bf16.msra.mxu0 %v6112
    %7066 = vmatprep.mubr.bf16.mxu0 %v3865
    %7067 = vmatmul.mubr.bf16.gmra.mrb[0].mxu0 %v3864
    %v7068 = vpop.f32.mrb[0].mxu0
    %v7069 = vadd.f32 %v7026, %v7068
    %v7070 = vpop.f32.mrb[0].mxu0
    %v7071 = vadd.f32 %v7028, %v7070
    %v7072 = vpop.f32.mrb[0].mxu0
    %v7073 = vadd.f32 %v7030, %v7072
    %v7074 = vpop.f32.mrb[0].mxu0
    %v7075 = vadd.f32 %v7032, %v7074
    %7076 = vdwg.mxu0
    %7077 = vmatprep.subr.bf16.mxu0 %v6117
    %7078 = vmatpush1.bf16.msra.mxu0 %v6116
    %7079 = vmatprep.subr.bf16.mxu0 %v6121
    %7080 = vmatpush1.bf16.msra.mxu0 %v6120
    %7081 = vmatprep.subr.bf16.mxu0 %v6125
    %7082 = vmatpush1.bf16.msra.mxu0 %v6124
    %7083 = vmatprep.subr.bf16.mxu0 %v6129
    %7084 = vmatpush1.bf16.msra.mxu0 %v6128
    %7085 = vmatprep.subr.bf16.mxu0 %v6133
    %7086 = vmatpush1.bf16.msra.mxu0 %v6132
    %7087 = vmatprep.subr.bf16.mxu0 %v6137
    %7088 = vmatpush1.bf16.msra.mxu0 %v6136
    %7089 = vmatprep.subr.bf16.mxu0 %v6141
    %7090 = vmatpush1.bf16.msra.mxu0 %v6140
    %7091 = vmatprep.subr.bf16.mxu0 %v6145
    %7092 = vmatpush1.bf16.msra.mxu0 %v6144
    %7093 = vmatprep.subr.bf16.mxu0 %v6149
    %7094 = vmatpush1.bf16.msra.mxu0 %v6148
    %7095 = vmatprep.subr.bf16.mxu0 %v6153
    %7096 = vmatpush1.bf16.msra.mxu0 %v6152
    %7097 = vmatprep.subr.bf16.mxu0 %v6157
    %7098 = vmatpush1.bf16.msra.mxu0 %v6156
    %7099 = vmatprep.subr.bf16.mxu0 %v6161
    %7100 = vmatpush1.bf16.msra.mxu0 %v6160
    %7101 = vmatprep.subr.bf16.mxu0 %v6165
    %7102 = vmatpush1.bf16.msra.mxu0 %v6164
    %7103 = vmatprep.subr.bf16.mxu0 %v6169
    %7104 = vmatpush1.bf16.msra.mxu0 %v6168
    %7105 = vmatprep.subr.bf16.mxu0 %v6173
    %7106 = vmatpush1.bf16.msra.mxu0 %v6172
    %7107 = vmatprep.subr.bf16.mxu0 %v6177
    %7108 = vmatpush1.bf16.msra.mxu0 %v6176
    %7109 = vmatprep.mubr.bf16.mxu0 %v3867
    %7110 = vmatmul.mubr.bf16.gmra.mrb[0].mxu0 %v3866
    %v7111 = vpop.f32.mrb[0].mxu0
    %v7112 = vadd.f32 %v7069, %v7111
    %v7113 = vpop.f32.mrb[0].mxu0
    %v7114 = vadd.f32 %v7071, %v7113
    %v7115 = vpop.f32.mrb[0].mxu0
    %v7116 = vadd.f32 %v7073, %v7115
    %v7117 = vpop.f32.mrb[0].mxu0
    %v7118 = vadd.f32 %v7075, %v7117
    %7119 = vdwg.mxu0
    %7120 = vmatprep.subr.bf16.mxu0 %v6181
    %7121 = vmatpush1.bf16.msra.mxu0 %v6180
    %7122 = vmatprep.subr.bf16.mxu0 %v6185
    %7123 = vmatpush1.bf16.msra.mxu0 %v6184
    %7124 = vmatprep.subr.bf16.mxu0 %v6189
    %7125 = vmatpush1.bf16.msra.mxu0 %v6188
    %7126 = vmatprep.subr.bf16.mxu0 %v6193
    %7127 = vmatpush1.bf16.msra.mxu0 %v6192
    %7128 = vmatprep.subr.bf16.mxu0 %v6197
    %7129 = vmatpush1.bf16.msra.mxu0 %v6196
    %7130 = vmatprep.subr.bf16.mxu0 %v6201
    %7131 = vmatpush1.bf16.msra.mxu0 %v6200
    %7132 = vmatprep.subr.bf16.mxu0 %v6205
    %7133 = vmatpush1.bf16.msra.mxu0 %v6204
    %7134 = vmatprep.subr.bf16.mxu0 %v6209
    %7135 = vmatpush1.bf16.msra.mxu0 %v6208
    %7136 = vmatprep.subr.bf16.mxu0 %v6213
    %7137 = vmatpush1.bf16.msra.mxu0 %v6212
    %7138 = vmatprep.subr.bf16.mxu0 %v6217
    %7139 = vmatpush1.bf16.msra.mxu0 %v6216
    %7140 = vmatprep.subr.bf16.mxu0 %v6221
    %7141 = vmatpush1.bf16.msra.mxu0 %v6220
    %7142 = vmatprep.subr.bf16.mxu0 %v6225
    %7143 = vmatpush1.bf16.msra.mxu0 %v6224
    %7144 = vmatprep.subr.bf16.mxu0 %v6229
    %7145 = vmatpush1.bf16.msra.mxu0 %v6228
    %7146 = vmatprep.subr.bf16.mxu0 %v6233
    %7147 = vmatpush1.bf16.msra.mxu0 %v6232
    %7148 = vmatprep.subr.bf16.mxu0 %v6237
    %7149 = vmatpush1.bf16.msra.mxu0 %v6236
    %7150 = vmatprep.subr.bf16.mxu0 %v6241
    %7151 = vmatpush1.bf16.msra.mxu0 %v6240
    %7152 = vmatprep.mubr.bf16.mxu0 %v3869
    %7153 = vmatmul.mubr.bf16.gmra.mrb[0].mxu0 %v3868
    %v7154 = vpop.f32.mrb[0].mxu0
    %v7155 = vadd.f32 %v7112, %v7154
    %v7156 = vpop.f32.mrb[0].mxu0
    %v7157 = vadd.f32 %v7114, %v7156
    %v7158 = vpop.f32.mrb[0].mxu0
    %v7159 = vadd.f32 %v7116, %v7158
    %v7160 = vpop.f32.mrb[0].mxu0
    %v7161 = vadd.f32 %v7118, %v7160
    %7162 = vdwg.mxu0
    %7163 = vmatprep.subr.bf16.mxu0 %v6245
    %7164 = vmatpush1.bf16.msra.mxu0 %v6244
    %7165 = vmatprep.subr.bf16.mxu0 %v6249
    %7166 = vmatpush1.bf16.msra.mxu0 %v6248
    %7167 = vmatprep.subr.bf16.mxu0 %v6253
    %7168 = vmatpush1.bf16.msra.mxu0 %v6252
    %7169 = vmatprep.subr.bf16.mxu0 %v6257
    %7170 = vmatpush1.bf16.msra.mxu0 %v6256
    %7171 = vmatprep.subr.bf16.mxu0 %v6261
    %7172 = vmatpush1.bf16.msra.mxu0 %v6260
    %7173 = vmatprep.subr.bf16.mxu0 %v6265
    %7174 = vmatpush1.bf16.msra.mxu0 %v6264
    %7175 = vmatprep.subr.bf16.mxu0 %v6269
    %7176 = vmatpush1.bf16.msra.mxu0 %v6268
    %7177 = vmatprep.subr.bf16.mxu0 %v6273
    %7178 = vmatpush1.bf16.msra.mxu0 %v6272
    %7179 = vmatprep.subr.bf16.mxu0 %v6277
    %7180 = vmatpush1.bf16.msra.mxu0 %v6276
    %7181 = vmatprep.subr.bf16.mxu0 %v6281
    %7182 = vmatpush1.bf16.msra.mxu0 %v6280
    %7183 = vmatprep.subr.bf16.mxu0 %v6285
    %7184 = vmatpush1.bf16.msra.mxu0 %v6284
    %7185 = vmatprep.subr.bf16.mxu0 %v6289
    %7186 = vmatpush1.bf16.msra.mxu0 %v6288
    %7187 = vmatprep.subr.bf16.mxu0 %v6293
    %7188 = vmatpush1.bf16.msra.mxu0 %v6292
    %7189 = vmatprep.subr.bf16.mxu0 %v6297
    %7190 = vmatpush1.bf16.msra.mxu0 %v6296
    %7191 = vmatprep.subr.bf16.mxu0 %v6301
    %7192 = vmatpush1.bf16.msra.mxu0 %v6300
    %7193 = vmatprep.subr.bf16.mxu0 %v6305
    %7194 = vmatpush1.bf16.msra.mxu0 %v6304
    %7195 = vmatprep.mubr.bf16.mxu0 %v3871
    %7196 = vmatmul.mubr.bf16.gmra.mrb[0].mxu0 %v3870
    %v7197 = vpop.f32.mrb[0].mxu0
    %v7198 = vadd.f32 %v7155, %v7197
    %v7199 = vpop.f32.mrb[0].mxu0
    %v7200 = vadd.f32 %v7157, %v7199
    %v7201 = vpop.f32.mrb[0].mxu0
    %v7202 = vadd.f32 %v7159, %v7201
    %v7203 = vpop.f32.mrb[0].mxu0
    %v7204 = vadd.f32 %v7161, %v7203
    %7205 = vdwg.mxu0
    %7206 = vmatprep.subr.bf16.mxu0 %v6309
    %7207 = vmatpush1.bf16.msra.mxu0 %v6308
    %7208 = vmatprep.subr.bf16.mxu0 %v6313
    %7209 = vmatpush1.bf16.msra.mxu0 %v6312
    %7210 = vmatprep.subr.bf16.mxu0 %v6317
    %7211 = vmatpush1.bf16.msra.mxu0 %v6316
    %7212 = vmatprep.subr.bf16.mxu0 %v6321
    %7213 = vmatpush1.bf16.msra.mxu0 %v6320
    %7214 = vmatprep.subr.bf16.mxu0 %v6325
    %7215 = vmatpush1.bf16.msra.mxu0 %v6324
    %7216 = vmatprep.subr.bf16.mxu0 %v6329
    %7217 = vmatpush1.bf16.msra.mxu0 %v6328
    %7218 = vmatprep.subr.bf16.mxu0 %v6333
    %7219 = vmatpush1.bf16.msra.mxu0 %v6332
    %7220 = vmatprep.subr.bf16.mxu0 %v6337
    %7221 = vmatpush1.bf16.msra.mxu0 %v6336
    %7222 = vmatprep.subr.bf16.mxu0 %v6341
    %7223 = vmatpush1.bf16.msra.mxu0 %v6340
    %7224 = vmatprep.subr.bf16.mxu0 %v6345
    %7225 = vmatpush1.bf16.msra.mxu0 %v6344
    %7226 = vmatprep.subr.bf16.mxu0 %v6349
    %7227 = vmatpush1.bf16.msra.mxu0 %v6348
    %7228 = vmatprep.subr.bf16.mxu0 %v6353
    %7229 = vmatpush1.bf16.msra.mxu0 %v6352
    %7230 = vmatprep.subr.bf16.mxu0 %v6357
    %7231 = vmatpush1.bf16.msra.mxu0 %v6356
    %7232 = vmatprep.subr.bf16.mxu0 %v6361
    %7233 = vmatpush1.bf16.msra.mxu0 %v6360
    %7234 = vmatprep.subr.bf16.mxu0 %v6365
    %7235 = vmatpush1.bf16.msra.mxu0 %v6364
    %7236 = vmatprep.subr.bf16.mxu0 %v6369
    %7237 = vmatpush1.bf16.msra.mxu0 %v6368
    %7238 = vmatprep.mubr.bf16.mxu0 %v3873
    %7239 = vmatmul.mubr.bf16.gmra.mrb[0].mxu0 %v3872
    %v7240 = vpop.f32.mrb[0].mxu0
    %v7241 = vadd.f32 %v7198, %v7240
    %v7242 = vpop.f32.mrb[0].mxu0
    %v7243 = vadd.f32 %v7200, %v7242
    %v7244 = vpop.f32.mrb[0].mxu0
    %v7245 = vadd.f32 %v7202, %v7244
    %v7246 = vpop.f32.mrb[0].mxu0
    %v7247 = vadd.f32 %v7204, %v7246
    %7248 = vdwg.mxu0
    %7249 = vmatprep.subr.bf16.mxu0 %v6373
    %7250 = vmatpush1.bf16.msra.mxu0 %v6372
    %7251 = vmatprep.subr.bf16.mxu0 %v6377
    %7252 = vmatpush1.bf16.msra.mxu0 %v6376
    %7253 = vmatprep.subr.bf16.mxu0 %v6381
    %7254 = vmatpush1.bf16.msra.mxu0 %v6380
    %7255 = vmatprep.subr.bf16.mxu0 %v6385
    %7256 = vmatpush1.bf16.msra.mxu0 %v6384
    %7257 = vmatprep.subr.bf16.mxu0 %v6389
    %7258 = vmatpush1.bf16.msra.mxu0 %v6388
    %7259 = vmatprep.subr.bf16.mxu0 %v6393
    %7260 = vmatpush1.bf16.msra.mxu0 %v6392
    %7261 = vmatprep.subr.bf16.mxu0 %v6397
    %7262 = vmatpush1.bf16.msra.mxu0 %v6396
    %7263 = vmatprep.subr.bf16.mxu0 %v6401
    %7264 = vmatpush1.bf16.msra.mxu0 %v6400
    %7265 = vmatprep.subr.bf16.mxu0 %v6405
    %7266 = vmatpush1.bf16.msra.mxu0 %v6404
    %7267 = vmatprep.subr.bf16.mxu0 %v6409
    %7268 = vmatpush1.bf16.msra.mxu0 %v6408
    %7269 = vmatprep.subr.bf16.mxu0 %v6413
    %7270 = vmatpush1.bf16.msra.mxu0 %v6412
    %7271 = vmatprep.subr.bf16.mxu0 %v6417
    %7272 = vmatpush1.bf16.msra.mxu0 %v6416
    %7273 = vmatprep.subr.bf16.mxu0 %v6421
    %7274 = vmatpush1.bf16.msra.mxu0 %v6420
    %7275 = vmatprep.subr.bf16.mxu0 %v6425
    %7276 = vmatpush1.bf16.msra.mxu0 %v6424
    %7277 = vmatprep.subr.bf16.mxu0 %v6429
    %7278 = vmatpush1.bf16.msra.mxu0 %v6428
    %7279 = vmatprep.subr.bf16.mxu0 %v6433
    %7280 = vmatpush1.bf16.msra.mxu0 %v6432
    %7281 = vmatprep.mubr.bf16.mxu0 %v3875
    %7282 = vmatmul.mubr.bf16.gmra.mrb[0].mxu0 %v3874
    %v7283 = vpop.f32.mrb[0].mxu0
    %v7284 = vadd.f32 %v7241, %v7283
    %v7285 = vpop.f32.mrb[0].mxu0
    %v7286 = vadd.f32 %v7243, %v7285
    %v7287 = vpop.f32.mrb[0].mxu0
    %v7288 = vadd.f32 %v7245, %v7287
    %v7289 = vpop.f32.mrb[0].mxu0
    %v7290 = vadd.f32 %v7247, %v7289
    %7291 = vdwg.mxu0
    %7292 = vmatprep.subr.bf16.mxu0 %v5927
    %7293 = vmatpush1.bf16.msra.mxu0 %v5926
    %7294 = vmatprep.subr.bf16.mxu0 %v5931
    %7295 = vmatpush1.bf16.msra.mxu0 %v5930
    %7296 = vmatprep.subr.bf16.mxu0 %v5935
    %7297 = vmatpush1.bf16.msra.mxu0 %v5934
    %7298 = vmatprep.subr.bf16.mxu0 %v5939
    %7299 = vmatpush1.bf16.msra.mxu0 %v5938
    %7300 = vmatprep.subr.bf16.mxu0 %v5943
    %7301 = vmatpush1.bf16.msra.mxu0 %v5942
    %7302 = vmatprep.subr.bf16.mxu0 %v5947
    %7303 = vmatpush1.bf16.msra.mxu0 %v5946
    %7304 = vmatprep.subr.bf16.mxu0 %v5951
    %7305 = vmatpush1.bf16.msra.mxu0 %v5950
    %7306 = vmatprep.subr.bf16.mxu0 %v5955
    %7307 = vmatpush1.bf16.msra.mxu0 %v5954
    %7308 = vmatprep.subr.bf16.mxu0 %v5959
    %7309 = vmatpush1.bf16.msra.mxu0 %v5958
    %7310 = vmatprep.subr.bf16.mxu0 %v5963
    %7311 = vmatpush1.bf16.msra.mxu0 %v5962
    %7312 = vmatprep.subr.bf16.mxu0 %v5967
    %7313 = vmatpush1.bf16.msra.mxu0 %v5966
    %7314 = vmatprep.subr.bf16.mxu0 %v5971
    %7315 = vmatpush1.bf16.msra.mxu0 %v5970
    %7316 = vmatprep.subr.bf16.mxu0 %v5975
    %7317 = vmatpush1.bf16.msra.mxu0 %v5974
    %7318 = vmatprep.subr.bf16.mxu0 %v5979
    %7319 = vmatpush1.bf16.msra.mxu0 %v5978
    %7320 = vmatprep.subr.bf16.mxu0 %v5983
    %7321 = vmatpush1.bf16.msra.mxu0 %v5982
    %7322 = vmatprep.subr.bf16.mxu0 %v5987
    %7323 = vmatpush1.bf16.msra.mxu0 %v5986
    %7324 = vmatprep.mubr.bf16.mxu0 %v3861
    %7325 = vmatmul.mubr.bf16.gmra.mrb[0].mxu0 %v3860
    %v7326 = vpop.f32.mrb[0].mxu0
    %v7327 = vadd.f32 %v58, %v7326
    %v7328 = vpop.f32.mrb[0].mxu0
    %v7329 = vadd.f32 %v59, %v7328
    %v7330 = vpop.f32.mrb[0].mxu0
    %v7331 = vadd.f32 %v62, %v7330
    %v7332 = vpop.f32.mrb[0].mxu0
    %v7333 = vadd.f32 %v63, %v7332
    %7334 = vdwg.mxu0
    %7335 = vmatprep.subr.bf16.mxu0 %v5991
    %7336 = vmatpush1.bf16.msra.mxu0 %v5990
    %7337 = vmatprep.subr.bf16.mxu0 %v5995
    %7338 = vmatpush1.bf16.msra.mxu0 %v5994
    %7339 = vmatprep.subr.bf16.mxu0 %v5999
    %7340 = vmatpush1.bf16.msra.mxu0 %v5998
    %7341 = vmatprep.subr.bf16.mxu0 %v6003
    %7342 = vmatpush1.bf16.msra.mxu0 %v6002
    %7343 = vmatprep.subr.bf16.mxu0 %v6007
    %7344 = vmatpush1.bf16.msra.mxu0 %v6006
    %7345 = vmatprep.subr.bf16.mxu0 %v6011
    %7346 = vmatpush1.bf16.msra.mxu0 %v6010
    %7347 = vmatprep.subr.bf16.mxu0 %v6015
    %7348 = vmatpush1.bf16.msra.mxu0 %v6014
    %7349 = vmatprep.subr.bf16.mxu0 %v6019
    %7350 = vmatpush1.bf16.msra.mxu0 %v6018
    %7351 = vmatprep.subr.bf16.mxu0 %v6023
    %7352 = vmatpush1.bf16.msra.mxu0 %v6022
    %7353 = vmatprep.subr.bf16.mxu0 %v6027
    %7354 = vmatpush1.bf16.msra.mxu0 %v6026
    %7355 = vmatprep.subr.bf16.mxu0 %v6031
    %7356 = vmatpush1.bf16.msra.mxu0 %v6030
    %7357 = vmatprep.subr.bf16.mxu0 %v6035
    %7358 = vmatpush1.bf16.msra.mxu0 %v6034
    %7359 = vmatprep.subr.bf16.mxu0 %v6039
    %7360 = vmatpush1.bf16.msra.mxu0 %v6038
    %7361 = vmatprep.subr.bf16.mxu0 %v6043
    %7362 = vmatpush1.bf16.msra.mxu0 %v6042
    %7363 = vmatprep.subr.bf16.mxu0 %v6047
    %7364 = vmatpush1.bf16.msra.mxu0 %v6046
    %7365 = vmatprep.subr.bf16.mxu0 %v6051
    %7366 = vmatpush1.bf16.msra.mxu0 %v6050
    %7367 = vmatprep.mubr.bf16.mxu0 %v3863
    %7368 = vmatmul.mubr.bf16.gmra.mrb[0].mxu0 %v3862
    %v7369 = vpop.f32.mrb[0].mxu0
    %v7370 = vadd.f32 %v7327, %v7369
    %v7371 = vpop.f32.mrb[0].mxu0
    %v7372 = vadd.f32 %v7329, %v7371
    %v7373 = vpop.f32.mrb[0].mxu0
    %v7374 = vadd.f32 %v7331, %v7373
    %v7375 = vpop.f32.mrb[0].mxu0
    %v7376 = vadd.f32 %v7333, %v7375
    %7377 = vdwg.mxu0
    %7378 = vmatprep.subr.bf16.mxu0 %v6055
    %7379 = vmatpush1.bf16.msra.mxu0 %v6054
    %7380 = vmatprep.subr.bf16.mxu0 %v6059
    %7381 = vmatpush1.bf16.msra.mxu0 %v6058
    %7382 = vmatprep.subr.bf16.mxu0 %v6063
    %7383 = vmatpush1.bf16.msra.mxu0 %v6062
    %7384 = vmatprep.subr.bf16.mxu0 %v6067
    %7385 = vmatpush1.bf16.msra.mxu0 %v6066
    %7386 = vmatprep.subr.bf16.mxu0 %v6071
    %7387 = vmatpush1.bf16.msra.mxu0 %v6070
    %7388 = vmatprep.subr.bf16.mxu0 %v6075
    %7389 = vmatpush1.bf16.msra.mxu0 %v6074
    %7390 = vmatprep.subr.bf16.mxu0 %v6079
    %7391 = vmatpush1.bf16.msra.mxu0 %v6078
    %7392 = vmatprep.subr.bf16.mxu0 %v6083
    %7393 = vmatpush1.bf16.msra.mxu0 %v6082
    %7394 = vmatprep.subr.bf16.mxu0 %v6087
    %7395 = vmatpush1.bf16.msra.mxu0 %v6086
    %7396 = vmatprep.subr.bf16.mxu0 %v6091
    %7397 = vmatpush1.bf16.msra.mxu0 %v6090
    %7398 = vmatprep.subr.bf16.mxu0 %v6095
    %7399 = vmatpush1.bf16.msra.mxu0 %v6094
    %7400 = vmatprep.subr.bf16.mxu0 %v6099
    %7401 = vmatpush1.bf16.msra.mxu0 %v6098
    %7402 = vmatprep.subr.bf16.mxu0 %v6103
    %7403 = vmatpush1.bf16.msra.mxu0 %v6102
    %7404 = vmatprep.subr.bf16.mxu0 %v6107
    %7405 = vmatpush1.bf16.msra.mxu0 %v6106
    %7406 = vmatprep.subr.bf16.mxu0 %v6111
    %7407 = vmatpush1.bf16.msra.mxu0 %v6110
    %7408 = vmatprep.subr.bf16.mxu0 %v6115
    %7409 = vmatpush1.bf16.msra.mxu0 %v6114
    %7410 = vmatprep.mubr.bf16.mxu0 %v3865
    %7411 = vmatmul.mubr.bf16.gmra.mrb[0].mxu0 %v3864
    %v7412 = vpop.f32.mrb[0].mxu0
    %v7413 = vadd.f32 %v7370, %v7412
    %v7414 = vpop.f32.mrb[0].mxu0
    %v7415 = vadd.f32 %v7372, %v7414
    %v7416 = vpop.f32.mrb[0].mxu0
    %v7417 = vadd.f32 %v7374, %v7416
    %v7418 = vpop.f32.mrb[0].mxu0
    %v7419 = vadd.f32 %v7376, %v7418
    %7420 = vdwg.mxu0
    %7421 = vmatprep.subr.bf16.mxu0 %v6119
    %7422 = vmatpush1.bf16.msra.mxu0 %v6118
    %7423 = vmatprep.subr.bf16.mxu0 %v6123
    %7424 = vmatpush1.bf16.msra.mxu0 %v6122
    %7425 = vmatprep.subr.bf16.mxu0 %v6127
    %7426 = vmatpush1.bf16.msra.mxu0 %v6126
    %7427 = vmatprep.subr.bf16.mxu0 %v6131
    %7428 = vmatpush1.bf16.msra.mxu0 %v6130
    %7429 = vmatprep.subr.bf16.mxu0 %v6135
    %7430 = vmatpush1.bf16.msra.mxu0 %v6134
    %7431 = vmatprep.subr.bf16.mxu0 %v6139
    %7432 = vmatpush1.bf16.msra.mxu0 %v6138
    %7433 = vmatprep.subr.bf16.mxu0 %v6143
    %7434 = vmatpush1.bf16.msra.mxu0 %v6142
    %7435 = vmatprep.subr.bf16.mxu0 %v6147
    %7436 = vmatpush1.bf16.msra.mxu0 %v6146
    %7437 = vmatprep.subr.bf16.mxu0 %v6151
    %7438 = vmatpush1.bf16.msra.mxu0 %v6150
    %7439 = vmatprep.subr.bf16.mxu0 %v6155
    %7440 = vmatpush1.bf16.msra.mxu0 %v6154
    %7441 = vmatprep.subr.bf16.mxu0 %v6159
    %7442 = vmatpush1.bf16.msra.mxu0 %v6158
    %7443 = vmatprep.subr.bf16.mxu0 %v6163
    %7444 = vmatpush1.bf16.msra.mxu0 %v6162
    %7445 = vmatprep.subr.bf16.mxu0 %v6167
    %7446 = vmatpush1.bf16.msra.mxu0 %v6166
    %7447 = vmatprep.subr.bf16.mxu0 %v6171
    %7448 = vmatpush1.bf16.msra.mxu0 %v6170
    %7449 = vmatprep.subr.bf16.mxu0 %v6175
    %7450 = vmatpush1.bf16.msra.mxu0 %v6174
    %7451 = vmatprep.subr.bf16.mxu0 %v6179
    %7452 = vmatpush1.bf16.msra.mxu0 %v6178
    %7453 = vmatprep.mubr.bf16.mxu0 %v3867
    %7454 = vmatmul.mubr.bf16.gmra.mrb[0].mxu0 %v3866
    %v7455 = vpop.f32.mrb[0].mxu0
    %v7456 = vadd.f32 %v7413, %v7455
    %v7457 = vpop.f32.mrb[0].mxu0
    %v7458 = vadd.f32 %v7415, %v7457
    %v7459 = vpop.f32.mrb[0].mxu0
    %v7460 = vadd.f32 %v7417, %v7459
    %v7461 = vpop.f32.mrb[0].mxu0
    %v7462 = vadd.f32 %v7419, %v7461
    %7463 = vdwg.mxu0
    %7464 = vmatprep.subr.bf16.mxu0 %v6183
    %7465 = vmatpush1.bf16.msra.mxu0 %v6182
    %7466 = vmatprep.subr.bf16.mxu0 %v6187
    %7467 = vmatpush1.bf16.msra.mxu0 %v6186
    %7468 = vmatprep.subr.bf16.mxu0 %v6191
    %7469 = vmatpush1.bf16.msra.mxu0 %v6190
    %7470 = vmatprep.subr.bf16.mxu0 %v6195
    %7471 = vmatpush1.bf16.msra.mxu0 %v6194
    %7472 = vmatprep.subr.bf16.mxu0 %v6199
    %7473 = vmatpush1.bf16.msra.mxu0 %v6198
    %7474 = vmatprep.subr.bf16.mxu0 %v6203
    %7475 = vmatpush1.bf16.msra.mxu0 %v6202
    %7476 = vmatprep.subr.bf16.mxu0 %v6207
    %7477 = vmatpush1.bf16.msra.mxu0 %v6206
    %7478 = vmatprep.subr.bf16.mxu0 %v6211
    %7479 = vmatpush1.bf16.msra.mxu0 %v6210
    %7480 = vmatprep.subr.bf16.mxu0 %v6215
    %7481 = vmatpush1.bf16.msra.mxu0 %v6214
    %7482 = vmatprep.subr.bf16.mxu0 %v6219
    %7483 = vmatpush1.bf16.msra.mxu0 %v6218
    %7484 = vmatprep.subr.bf16.mxu0 %v6223
    %7485 = vmatpush1.bf16.msra.mxu0 %v6222
    %7486 = vmatprep.subr.bf16.mxu0 %v6227
    %7487 = vmatpush1.bf16.msra.mxu0 %v6226
    %7488 = vmatprep.subr.bf16.mxu0 %v6231
    %7489 = vmatpush1.bf16.msra.mxu0 %v6230
    %7490 = vmatprep.subr.bf16.mxu0 %v6235
    %7491 = vmatpush1.bf16.msra.mxu0 %v6234
    %7492 = vmatprep.subr.bf16.mxu0 %v6239
    %7493 = vmatpush1.bf16.msra.mxu0 %v6238
    %7494 = vmatprep.subr.bf16.mxu0 %v6243
    %7495 = vmatpush1.bf16.msra.mxu0 %v6242
    %7496 = vmatprep.mubr.bf16.mxu0 %v3869
    %7497 = vmatmul.mubr.bf16.gmra.mrb[0].mxu0 %v3868
    %v7498 = vpop.f32.mrb[0].mxu0
    %v7499 = vadd.f32 %v7456, %v7498
    %v7500 = vpop.f32.mrb[0].mxu0
    %v7501 = vadd.f32 %v7458, %v7500
    %v7502 = vpop.f32.mrb[0].mxu0
    %v7503 = vadd.f32 %v7460, %v7502
    %v7504 = vpop.f32.mrb[0].mxu0
    %v7505 = vadd.f32 %v7462, %v7504
    %7506 = vdwg.mxu0
    %7507 = vmatprep.subr.bf16.mxu0 %v6247
    %7508 = vmatpush1.bf16.msra.mxu0 %v6246
    %7509 = vmatprep.subr.bf16.mxu0 %v6251
    %7510 = vmatpush1.bf16.msra.mxu0 %v6250
    %7511 = vmatprep.subr.bf16.mxu0 %v6255
    %7512 = vmatpush1.bf16.msra.mxu0 %v6254
    %7513 = vmatprep.subr.bf16.mxu0 %v6259
    %7514 = vmatpush1.bf16.msra.mxu0 %v6258
    %7515 = vmatprep.subr.bf16.mxu0 %v6263
    %7516 = vmatpush1.bf16.msra.mxu0 %v6262
    %7517 = vmatprep.subr.bf16.mxu0 %v6267
    %7518 = vmatpush1.bf16.msra.mxu0 %v6266
    %7519 = vmatprep.subr.bf16.mxu0 %v6271
    %7520 = vmatpush1.bf16.msra.mxu0 %v6270
    %7521 = vmatprep.subr.bf16.mxu0 %v6275
    %7522 = vmatpush1.bf16.msra.mxu0 %v6274
    %7523 = vmatprep.subr.bf16.mxu0 %v6279
    %7524 = vmatpush1.bf16.msra.mxu0 %v6278
    %7525 = vmatprep.subr.bf16.mxu0 %v6283
    %7526 = vmatpush1.bf16.msra.mxu0 %v6282
    %7527 = vmatprep.subr.bf16.mxu0 %v6287
    %7528 = vmatpush1.bf16.msra.mxu0 %v6286
    %7529 = vmatprep.subr.bf16.mxu0 %v6291
    %7530 = vmatpush1.bf16.msra.mxu0 %v6290
    %7531 = vmatprep.subr.bf16.mxu0 %v6295
    %7532 = vmatpush1.bf16.msra.mxu0 %v6294
    %7533 = vmatprep.subr.bf16.mxu0 %v6299
    %7534 = vmatpush1.bf16.msra.mxu0 %v6298
    %7535 = vmatprep.subr.bf16.mxu0 %v6303
    %7536 = vmatpush1.bf16.msra.mxu0 %v6302
    %7537 = vmatprep.subr.bf16.mxu0 %v6307
    %7538 = vmatpush1.bf16.msra.mxu0 %v6306
    %7539 = vmatprep.mubr.bf16.mxu0 %v3871
    %7540 = vmatmul.mubr.bf16.gmra.mrb[0].mxu0 %v3870
    %v7541 = vpop.f32.mrb[0].mxu0
    %v7542 = vadd.f32 %v7499, %v7541
    %v7543 = vpop.f32.mrb[0].mxu0
    %v7544 = vadd.f32 %v7501, %v7543
    %v7545 = vpop.f32.mrb[0].mxu0
    %v7546 = vadd.f32 %v7503, %v7545
    %v7547 = vpop.f32.mrb[0].mxu0
    %v7548 = vadd.f32 %v7505, %v7547
    %7549 = vdwg.mxu0
    %7550 = vmatprep.subr.bf16.mxu0 %v6311
    %7551 = vmatpush1.bf16.msra.mxu0 %v6310
    %7552 = vmatprep.subr.bf16.mxu0 %v6315
    %7553 = vmatpush1.bf16.msra.mxu0 %v6314
    %7554 = vmatprep.subr.bf16.mxu0 %v6319
    %7555 = vmatpush1.bf16.msra.mxu0 %v6318
    %7556 = vmatprep.subr.bf16.mxu0 %v6323
    %7557 = vmatpush1.bf16.msra.mxu0 %v6322
    %7558 = vmatprep.subr.bf16.mxu0 %v6327
    %7559 = vmatpush1.bf16.msra.mxu0 %v6326
    %7560 = vmatprep.subr.bf16.mxu0 %v6331
    %7561 = vmatpush1.bf16.msra.mxu0 %v6330
    %7562 = vmatprep.subr.bf16.mxu0 %v6335
    %7563 = vmatpush1.bf16.msra.mxu0 %v6334
    %7564 = vmatprep.subr.bf16.mxu0 %v6339
    %7565 = vmatpush1.bf16.msra.mxu0 %v6338
    %7566 = vmatprep.subr.bf16.mxu0 %v6343
    %7567 = vmatpush1.bf16.msra.mxu0 %v6342
    %7568 = vmatprep.subr.bf16.mxu0 %v6347
    %7569 = vmatpush1.bf16.msra.mxu0 %v6346
    %7570 = vmatprep.subr.bf16.mxu0 %v6351
    %7571 = vmatpush1.bf16.msra.mxu0 %v6350
    %7572 = vmatprep.subr.bf16.mxu0 %v6355
    %7573 = vmatpush1.bf16.msra.mxu0 %v6354
    %7574 = vmatprep.subr.bf16.mxu0 %v6359
    %7575 = vmatpush1.bf16.msra.mxu0 %v6358
    %7576 = vmatprep.subr.bf16.mxu0 %v6363
    %7577 = vmatpush1.bf16.msra.mxu0 %v6362
    %7578 = vmatprep.subr.bf16.mxu0 %v6367
    %7579 = vmatpush1.bf16.msra.mxu0 %v6366
    %7580 = vmatprep.subr.bf16.mxu0 %v6371
    %7581 = vmatpush1.bf16.msra.mxu0 %v6370
    %7582 = vmatprep.mubr.bf16.mxu0 %v3873
    %7583 = vmatmul.mubr.bf16.gmra.mrb[0].mxu0 %v3872
    %v7584 = vpop.f32.mrb[0].mxu0
    %v7585 = vadd.f32 %v7542, %v7584
    %v7586 = vpop.f32.mrb[0].mxu0
    %v7587 = vadd.f32 %v7544, %v7586
    %v7588 = vpop.f32.mrb[0].mxu0
    %v7589 = vadd.f32 %v7546, %v7588
    %v7590 = vpop.f32.mrb[0].mxu0
    %v7591 = vadd.f32 %v7548, %v7590
    %7592 = vdwg.mxu0
    %7593 = vmatprep.subr.bf16.mxu0 %v6375
    %7594 = vmatpush1.bf16.msra.mxu0 %v6374
    %7595 = vmatprep.subr.bf16.mxu0 %v6379
    %7596 = vmatpush1.bf16.msra.mxu0 %v6378
    %7597 = vmatprep.subr.bf16.mxu0 %v6383
    %7598 = vmatpush1.bf16.msra.mxu0 %v6382
    %7599 = vmatprep.subr.bf16.mxu0 %v6387
    %7600 = vmatpush1.bf16.msra.mxu0 %v6386
    %7601 = vmatprep.subr.bf16.mxu0 %v6391
    %7602 = vmatpush1.bf16.msra.mxu0 %v6390
    %7603 = vmatprep.subr.bf16.mxu0 %v6395
    %7604 = vmatpush1.bf16.msra.mxu0 %v6394
    %7605 = vmatprep.subr.bf16.mxu0 %v6399
    %7606 = vmatpush1.bf16.msra.mxu0 %v6398
    %7607 = vmatprep.subr.bf16.mxu0 %v6403
    %7608 = vmatpush1.bf16.msra.mxu0 %v6402
    %7609 = vmatprep.subr.bf16.mxu0 %v6407
    %7610 = vmatpush1.bf16.msra.mxu0 %v6406
    %7611 = vmatprep.subr.bf16.mxu0 %v6411
    %7612 = vmatpush1.bf16.msra.mxu0 %v6410
    %7613 = vmatprep.subr.bf16.mxu0 %v6415
    %7614 = vmatpush1.bf16.msra.mxu0 %v6414
    %7615 = vmatprep.subr.bf16.mxu0 %v6419
    %7616 = vmatpush1.bf16.msra.mxu0 %v6418
    %7617 = vmatprep.subr.bf16.mxu0 %v6423
    %7618 = vmatpush1.bf16.msra.mxu0 %v6422
    %7619 = vmatprep.subr.bf16.mxu0 %v6427
    %7620 = vmatpush1.bf16.msra.mxu0 %v6426
    %7621 = vmatprep.subr.bf16.mxu0 %v6431
    %7622 = vmatpush1.bf16.msra.mxu0 %v6430
    %7623 = vmatprep.subr.bf16.mxu0 %v6435
    %7624 = vmatpush1.bf16.msra.mxu0 %v6434
    %7625 = vmatprep.mubr.bf16.mxu0 %v3875
    %7626 = vmatmul.mubr.bf16.gmra.mrb[0].mxu0 %v3874
    %v7627 = vpop.f32.mrb[0].mxu0
    %v7628 = vadd.f32 %v7585, %v7627
    %v7629 = vpop.f32.mrb[0].mxu0
    %v7630 = vadd.f32 %v7587, %v7629
    %v7631 = vpop.f32.mrb[0].mxu0
    %v7632 = vadd.f32 %v7589, %v7631
    %v7633 = vpop.f32.mrb[0].mxu0
    %v7634 = vadd.f32 %v7591, %v7633
    %7635 = vdwg.mxu0
    %v7636 = vadd.f32 %v7284, %v7286
    %v7637 = vadd.f32 %v7636, %v7628
    %v7638 = vadd.f32 %v7637, %v7630
    %7639 = vadd.xlane.f32.xlu0 %v7638
    %v7640 = vpop.xlane.xlu0 %7639
    %v7641 = vadd.f32 %v7288, %v7290
    %v7642 = vadd.f32 %v7641, %v7632
    %v7643 = vadd.f32 %v7642, %v7634
    %7644 = vadd.xlane.f32.xlu0 %v7643
    %v7645 = vpop.xlane.xlu0 %7644
    %v7646 = vrcp.pop 512.0
    %v7647 = vmul.f32 %v7640, %v7646
    %v7648 = vmul.f32 %v7645, %v7646
    %v7649 = vsub.f32 %v7284, %v7647
    %v7650 = vsub.f32 %v7286, %v7647
    %v7651 = vsub.f32 %v7628, %v7647
    %v7652 = vsub.f32 %v7630, %v7647
    %v7653 = vsub.f32 %v7288, %v7648
    %v7654 = vsub.f32 %v7290, %v7648
    %v7655 = vsub.f32 %v7632, %v7648
    %v7656 = vsub.f32 %v7634, %v7648
    %v7657 = vmul.f32 %v7649, %v7649
    %v7658 = vmul.f32 %v7650, %v7650
    %v7659 = vmul.f32 %v7651, %v7651
    %v7660 = vmul.f32 %v7652, %v7652
    %v7661 = vmul.f32 %v7653, %v7653
    %v7662 = vmul.f32 %v7654, %v7654
    %v7663 = vmul.f32 %v7655, %v7655
    %v7664 = vmul.f32 %v7656, %v7656
    %v7665 = vadd.f32 %v7657, %v7658
    %v7666 = vadd.f32 %v7665, %v7659
    %v7667 = vadd.f32 %v7666, %v7660
    %7668 = vadd.xlane.f32.xlu0 %v7667
    %v7669 = vpop.xlane.xlu0 %7668
    %v7670 = vadd.f32 %v7661, %v7662
    %v7671 = vadd.f32 %v7670, %v7663
    %v7672 = vadd.f32 %v7671, %v7664
    %7673 = vadd.xlane.f32.xlu0 %v7672
    %v7674 = vpop.xlane.xlu0 %7673
    %v7675 = vmul.f32 %v7669, %v7646
    %v7676 = vmul.f32 %v7674, %v7646
    %v7677 = vadd.f32 %v7675, 1e-05
    %v7678 = vadd.f32 %v7676, 1e-05
    %v7679 = vrsqrt.pop %v7677
    %v7680 = vrsqrt.pop %v7678
    %v7681 = vmul.f32 %v7649, %v7679
    %v7682 = vmul.f32 %v7650, %v7679
    %v7683 = vmul.f32 %v7651, %v7679
    %v7684 = vmul.f32 %v7652, %v7679
    %v7685 = vmul.f32 %v7653, %v7680
    %v7686 = vmul.f32 %v7654, %v7680
    %v7687 = vmul.f32 %v7655, %v7680
    %v7688 = vmul.f32 %v7656, %v7680
    %7689 = vst [vmem:[#allocation8] sm:$0xff] %v7681
    %7690 = vst [vmem:[#allocation8 + $0x8] sm:$0xff] %v7682
    %7691 = vst [vmem:[#allocation8 + $0x10] sm:$0xff] %v7683
    %7692 = vst [vmem:[#allocation8 + $0x18] sm:$0xff] %v7684
    %7693 = vst [vmem:[#allocation8 + $0x20] sm:$0xff] %v7685
    %7694 = vst [vmem:[#allocation8 + $0x28] sm:$0xff] %v7686
    %7695 = vst [vmem:[#allocation8 + $0x30] sm:$0xff] %v7687
    %7696 = vst [vmem:[#allocation8 + $0x38] sm:$0xff] %v7688
    // Predicated region
    $region26: #{_ffn_pallas.1} parent=1 // pred_check
      _
    $region27: #{_ffn_pallas.1} parent=1 // pred_check_branch
      %7698 = sbr.rel (0) target = $region29
    $region28: #{_ffn_pallas.1} parent=1 // pred_region
      %s7700 = ssub.s32 1024, 1024
      %7701 = vsyncadd [#allocation4], %s7700
      %s7702 = sshll.u32 [#allocation8], 4
      %s7703 = int_to_ptr.vmem [resolvable:$true] %s7702
      %7708 = dma.vmem_to_hbm [thread:$0]  %s7703, 1024, %s3, [#allocation4], 512, 512, 32
    $region29: #{_ffn_pallas.1} parent=1 // pred_fallthru
      _
    // Predicated region
    $region30: #{_ffn_pallas.1} parent=1 // pred_check
      _
    $region31: #{_ffn_pallas.1} parent=1 // pred_check_branch
      %7710 = sbr.rel (0) target = $region33
    $region32: #{_ffn_pallas.1} parent=1 // pred_region
      %7711 = dma.done [#allocation4], 1024
    $region33: #{_ffn_pallas.1} parent=1 // pred_fallthru
      _
    %7712 = vsyncpa [#allocation3], 1
    %7713 = vsyncpa [#allocation6], 1
    %7714 = vsyncpa [#allocation4], 1

</llo_original>
